<compile_context>
chip_gen: v6e
topology: v6e:2x2x1
jax: 0.10.0
libtpu: 0.0.40
codegen_flags: <defaults>
</compile_context>

<pallas_src>
import jax
import jax.numpy as jnp
from jax.experimental import pallas as pl
from jax.experimental.pallas import tpu as pltpu


def _make_basic_block_kernel(H, W, C, W_row, F_rows):
    """Build the fused BasicBlock kernel for static geometry (H, W, C, W_row, F_rows)."""
    r0 = W_row + 8                      # flat row of image pixel (0, 0); multiple of 8
    M1 = H * W_row                      # rows each conv matmul runs over (incl. harmless gap rows)
    lo = 8                              # first flat row touched by matmuls / shifted-group builds
    hi = (H + 2) * W_row + 8            # one past the last such row (multiple of 8)
    r_bot = r0 + (H - 1) * W_row + W    # one past the last image row
    C3 = 3 * C

    def kernel(x_ref, w1_ref, w2_ref, b1_ref, b2_ref, out_ref, s_ref):
        # x_ref  : (1, H, W, C)   f32  input image block (also the residual)
        # w1_ref : (9*C, C)       cdt  conv1 weights (BN1 scale folded); rows [kh*3C:(kh+1)*3C] = kernel row kh
        # w2_ref : (9*C, C)       cdt  conv2 weights (BN2 scale folded)
        # b1_ref : (1, C)         f32  folded BN1 bias
        # b2_ref : (1, C)         f32  folded BN2 bias
        # out_ref: (1, H, W, C)   f32  output block
        # s_ref  : (F_rows, 3*C)  cdt  flat conv-input scratch; channel group g holds the
        #                              activation shifted by (g-1) flat rows (dw = g-1)
        cdt = s_ref.dtype

        # ---- per-step halo / gap zero fill (replaces all per-tap masks) ----
        s_ref[0:r0, :] = jnp.zeros((r0, C3), cdt)                       # top halo block
        s_ref[r_bot:F_rows, :] = jnp.zeros((F_rows - r_bot, C3), cdt)   # bottom halo block
        for h in range(H):
            p = r0 + h * W_row
            s_ref[p + W:p + W_row, :] = jnp.zeros((W_row - W, C3), cdt)  # left/right gap strip
            # image row h -> center channel group (dw = 0); aligned sublane start (p % 8 == 0)
            s_ref[p:p + W, C:2 * C] = x_ref[0, h].astype(cdt)

        def build_shifted_groups():
            # Channel group 0 <- activation shifted by -1 flat row, group 2 <- +1.
            # Big contiguous copies; write rows are sublane-aligned (lo, hi multiples of 8).
            s_ref[lo:hi, 0:C] = s_ref[lo - 1:hi - 1, C:2 * C]
            s_ref[lo:hi, 2 * C:3 * C] = s_ref[lo + 1:hi + 1, C:2 * C]

        def conv3x3(w_ref):
            # 3 MXU matmuls (one per kernel row), K = 3C, all LHS slices aligned
            # (row offsets (kh-1)*W_row are multiples of 8).  Local f32 accumulation.
            acc = None
            for kh in range(3):
                start = r0 + (kh - 1) * W_row
                contrib = jnp.dot(s_ref[start:start + M1, :],
                                  w_ref[kh * C3:(kh + 1) * C3, :],
                                  preferred_element_type=jnp.float32)
                acc = contrib if acc is None else acc + contrib
            return acc                                                   # (M1, C) f32

        # ---- conv1 (+ folded bn1) + relu ----
        build_shifted_groups()
        y1 = jnp.maximum(conv3x3(w1_ref) + b1_ref[...], 0.0).astype(cdt)  # (M1, C), gap rows are junk (never read)
        for h in range(H):
            p = r0 + h * W_row
            s_ref[p:p + W, C:2 * C] = y1[h * W_row:h * W_row + W, :]      # interior rows only -> halo stays zero

        # ---- conv2 (+ folded bn2) + residual + relu ----
        build_shifted_groups()
        acc2 = conv3x3(w2_ref) + b2_ref[...]                              # (M1, C) f32
        for h in range(H):
            out_ref[0, h] = jnp.maximum(
                acc2[h * W_row:h * W_row + W, :] + x_ref[0, h], 0.0       # residual from exact f32 input
            ).astype(out_ref.dtype)

    return kernel


def _fold_bn(gamma, beta, mean, var, eps=1e-5):
    scale = gamma / jnp.sqrt(var + eps)
    return scale, beta - mean * scale


def _prep_weight(w_oihw, scale, dtype):
    """(Cout, Cin, 3, 3) OIHW -> 2D (9*Cin, Cout) slab with BN scale folded in.
    Row ordering is (kh, kw, cin), i.e. rows [kh*3*Cin:(kh+1)*3*Cin] form the (3Cin, Cout)
    slab for kernel row kh used by the K-fused matmuls."""
    w = w_oihw * scale[:, None, None, None]
    w = jnp.transpose(w, (2, 3, 1, 0))                    # (kh, kw, Cin, Cout)
    return w.reshape(-1, w.shape[-1]).astype(dtype)


def basic_block_forward_nhwc(x_nhwc, w1_oihw, w2_oihw, bn1, bn2,
                             *, compute_dtype=jnp.bfloat16):
    """Fused BasicBlock forward.  x_nhwc: (N, H, W, C) float32.  Returns NHWC float32."""
    N, H, W, C = x_nhwc.shape
    Cout = w1_oihw.shape[0]
    assert Cout == C, "downsample=None / stride=1 requires planes == inplanes"

    W_row = ((W + 2 + 7) // 8) * 8            # padded flat row width (>= W+2, multiple of 8)
    F_rows = (H + 2) * W_row + 16             # flat scratch rows (covers all shifted reads)

    s1, b1 = _fold_bn(*bn1)
    s2, b2 = _fold_bn(*bn2)
    w1_2d = _prep_weight(w1_oihw, s1, compute_dtype)      # (9*C, C)
    w2_2d = _prep_weight(w2_oihw, s2, compute_dtype)
    b1 = b1.reshape(1, C).astype(jnp.float32)
    b2 = b2.reshape(1, C).astype(jnp.float32)

    kernel = _make_basic_block_kernel(H, W, C, W_row, F_rows)

    out = pl.pallas_call(
        kernel,
        out_shape=jax.ShapeDtypeStruct((N, H, W, C), jnp.float32),
        grid=(N,),
        in_specs=[
            pl.BlockSpec((1, H, W, C), lambda n: (n, 0, 0, 0)),   # image + residual
            pl.BlockSpec((9 * C, C), lambda n: (0, 0)),           # conv1 weight slab (resident)
            pl.BlockSpec((9 * C, C), lambda n: (0, 0)),           # conv2 weight slab (resident)
            pl.BlockSpec((1, C), lambda n: (0, 0)),               # bn1 bias
            pl.BlockSpec((1, C), lambda n: (0, 0)),               # bn2 bias
        ],
        out_specs=pl.BlockSpec((1, H, W, C), lambda n: (n, 0, 0, 0)),
        scratch_shapes=[
            pltpu.VMEM((F_rows, 3 * C), compute_dtype),           # flat 3-group conv-input scratch
        ],
        compiler_params=pltpu.CompilerParams(
            dimension_semantics=("parallel",),        # batch axis can shard across v7x's 2 cores
            vmem_limit_bytes=32 * 1024 * 1024),
    )(x_nhwc.astype(jnp.float32), w1_2d, w2_2d, b1, b2)

    return out


def basic_block_forward(x_nchw, w1_oihw, w2_oihw, bn1, bn2,
                        *, compute_dtype=jnp.bfloat16):
    """NCHW adapter matching the PyTorch module interface (NHWC is the fast path)."""
    x_nhwc = jnp.transpose(x_nchw, (0, 2, 3, 1))
    out = basic_block_forward_nhwc(x_nhwc, w1_oihw, w2_oihw, bn1, bn2,
                                   compute_dtype=compute_dtype)
    return jnp.transpose(out, (0, 3, 1, 2))


def reference_forward(x_nchw, w1_oihw, w2_oihw, bn1, bn2):
    """Pure-JAX reference (mirrors the PyTorch forward, eval-mode BN)."""
    def conv(x, w):
        return jax.lax.conv_general_dilated(
            x, w, window_strides=(1, 1), padding='SAME',
            dimension_numbers=('NCHW', 'OIHW', 'NCHW'))

    s1, b1 = _fold_bn(*bn1)
    s2, b2 = _fold_bn(*bn2)
    s1 = s1[None, :, None, None]; b1 = b1[None, :, None, None]
    s2 = s2[None, :, None, None]; b2 = b2[None, :, None, None]

    out = jnp.maximum(conv(x_nchw, w1_oihw) * s1 + b1, 0.0)
    out = conv(out, w2_oihw) * s2 + b2 + x_nchw
    return jnp.maximum(out, 0.0)


if __name__ == "__main__":
    key = jax.random.PRNGKey(0)
    ks = jax.random.split(key, 7)

    N, C, H, W = 2, 4, 16, 16      # inplanes == planes == 4, stride=1, downsample=None

    x = jax.random.normal(ks[0], (N, C, H, W), jnp.float32)
    w1 = jax.random.normal(ks[1], (C, C, 3, 3), jnp.float32) * 0.1   # conv1 weight (OIHW)
    w2 = jax.random.normal(ks[2], (C, C, 3, 3), jnp.float32) * 0.1   # conv2 weight (OIHW)

    # BatchNorm params (eval mode): learned gamma/beta, default running stats.
    gamma1 = 1.0 + 0.1 * jax.random.normal(ks[3], (C,), jnp.float32)
    beta1 = 0.1 * jax.random.normal(ks[4], (C,), jnp.float32)
    gamma2 = 1.0 + 0.1 * jax.random.normal(ks[5], (C,), jnp.float32)
    beta2 = 0.1 * jax.random.normal(ks[6], (C,), jnp.float32)
    mean0 = jnp.zeros((C,), jnp.float32)
    var1 = jnp.ones((C,), jnp.float32)
    bn1 = (gamma1, beta1, mean0, var1)
    bn2 = (gamma2, beta2, mean0, var1)

    ref = reference_forward(x, w1, w2, bn1, bn2)

    # Fast path: bf16 MXU operands, f32 accumulation (loose tolerance from bf16 rounding).
    out_bf16 = jax.block_until_ready(basic_block_forward(x, w1, w2, bn1, bn2))
    assert out_bf16.shape == (N, C, H, W)
    assert jnp.allclose(out_bf16, ref, atol=5e-2, rtol=5e-2), "bf16 path mismatch vs reference"

    # Exact path: f32 operands everywhere, tight check.
    out_f32 = jax.block_until_ready(
        basic_block_forward(x, w1, w2, bn1, bn2, compute_dtype=jnp.float32))
    assert jnp.allclose(out_f32, ref, atol=1e-4, rtol=1e-4), "f32 path mismatch vs reference"

    print("KERNEL_OK")
</pallas_src>

<mosaic_0001>
module attributes {stable_mosaic.version = 11 : i64} {
  func.func @kernel(%arg0: i32, %arg1: memref<1x16x16x4xf32, #tpu.memory_space<vmem>>, %arg2: memref<36x4xbf16, #tpu.memory_space<vmem>>, %arg3: memref<36x4xbf16, #tpu.memory_space<vmem>>, %arg4: memref<1x4xf32, #tpu.memory_space<vmem>>, %arg5: memref<1x4xf32, #tpu.memory_space<vmem>>, %arg6: memref<1x16x16x4xf32, #tpu.memory_space<vmem>>, %arg7: memref<448x12xbf16, #tpu.memory_space<vmem>>) attributes {dimension_semantics = [#tpu.dimension_semantics<parallel>], iteration_bounds = array<i64: 2>, scalar_prefetch = 0 : i64, scratch_operands = 1 : i64, tpu.core_type = #tpu.core_type<tc>, window_params = [{transform_indices = @transform_0, window_bounds = array<i64: 1, 16, 16, 4>}, {pipeline_mode = #tpu.pipeline_mode<synchronous>, transform_indices = @transform_1, window_bounds = array<i64: 36, 4>}, {pipeline_mode = #tpu.pipeline_mode<synchronous>, transform_indices = @transform_2, window_bounds = array<i64: 36, 4>}, {pipeline_mode = #tpu.pipeline_mode<synchronous>, transform_indices = @transform_3, window_bounds = array<i64: 1, 4>}, {pipeline_mode = #tpu.pipeline_mode<synchronous>, transform_indices = @transform_4, window_bounds = array<i64: 1, 4>}, {transform_indices = @transform_5, window_bounds = array<i64: 1, 16, 16, 4>}]} {
    %cst = arith.constant 0.000000e+00 : bf16
    %0 = vector.broadcast %cst : bf16 to vector<32x12xbf16>
    %c0 = arith.constant 0 : index
    %c0_0 = arith.constant 0 : index
    %1 = vector.load %arg7[%c0, %c0_0] : memref<448x12xbf16, #tpu.memory_space<vmem>>, vector<32x12xbf16>
    tpu.vector_store %arg7[%c0, %c0_0], %0 {strides = array<i32>} : memref<448x12xbf16, #tpu.memory_space<vmem>>, vector<32x12xbf16>,
    %cst_1 = arith.constant 0.000000e+00 : bf16
    %2 = vector.broadcast %cst_1 : bf16 to vector<40x12xbf16>
    %c408 = arith.constant 408 : index
    %c0_2 = arith.constant 0 : index
    %3 = vector.load %arg7[%c408, %c0_2] : memref<448x12xbf16, #tpu.memory_space<vmem>>, vector<40x12xbf16>
    tpu.vector_store %arg7[%c408, %c0_2], %2 {strides = array<i32>} : memref<448x12xbf16, #tpu.memory_space<vmem>>, vector<40x12xbf16>,
    %cst_3 = arith.constant 0.000000e+00 : bf16
    %4 = vector.broadcast %cst_3 : bf16 to vector<8x12xbf16>
    %c48 = arith.constant 48 : index
    %c0_4 = arith.constant 0 : index
    %5 = vector.load %arg7[%c48, %c0_4] : memref<448x12xbf16, #tpu.memory_space<vmem>>, vector<8x12xbf16>
    tpu.vector_store %arg7[%c48, %c0_4], %4 {strides = array<i32>} : memref<448x12xbf16, #tpu.memory_space<vmem>>, vector<8x12xbf16>,
    %c0_5 = arith.constant 0 : index
    %c0_6 = arith.constant 0 : index
    %c0_7 = arith.constant 0 : index
    %c0_8 = arith.constant 0 : index
    %6 = vector.load %arg1[%c0_5, %c0_6, %c0_7, %c0_8] : memref<1x16x16x4xf32, #tpu.memory_space<vmem>>, vector<1x1x16x4xf32>
    %7 = vector.shape_cast %6 : vector<1x1x16x4xf32> to vector<16x4xf32>
    %8 = arith.truncf %7 : vector<16x4xf32> to vector<16x4xbf16>
    %c32 = arith.constant 32 : index
    %c4 = arith.constant 4 : index
    %9 = vector.load %arg7[%c32, %c4] : memref<448x12xbf16, #tpu.memory_space<vmem>>, vector<16x4xbf16>
    tpu.vector_store %arg7[%c32, %c4], %8 {strides = array<i32>} : memref<448x12xbf16, #tpu.memory_space<vmem>>, vector<16x4xbf16>,
    %cst_9 = arith.constant 0.000000e+00 : bf16
    %10 = vector.broadcast %cst_9 : bf16 to vector<8x12xbf16>
    %c72 = arith.constant 72 : index
    %c0_10 = arith.constant 0 : index
    %11 = vector.load %arg7[%c72, %c0_10] : memref<448x12xbf16, #tpu.memory_space<vmem>>, vector<8x12xbf16>
    tpu.vector_store %arg7[%c72, %c0_10], %10 {strides = array<i32>} : memref<448x12xbf16, #tpu.memory_space<vmem>>, vector<8x12xbf16>,
    %c0_11 = arith.constant 0 : index
    %c1 = arith.constant 1 : index
    %c0_12 = arith.constant 0 : index
    %c0_13 = arith.constant 0 : index
    %12 = vector.load %arg1[%c0_11, %c1, %c0_12, %c0_13] : memref<1x16x16x4xf32, #tpu.memory_space<vmem>>, vector<1x1x16x4xf32>
    %13 = vector.shape_cast %12 : vector<1x1x16x4xf32> to vector<16x4xf32>
    %14 = arith.truncf %13 : vector<16x4xf32> to vector<16x4xbf16>
    %c56 = arith.constant 56 : index
    %c4_14 = arith.constant 4 : index
    %15 = vector.load %arg7[%c56, %c4_14] : memref<448x12xbf16, #tpu.memory_space<vmem>>, vector<16x4xbf16>
    tpu.vector_store %arg7[%c56, %c4_14], %14 {strides = array<i32>} : memref<448x12xbf16, #tpu.memory_space<vmem>>, vector<16x4xbf16>,
    %cst_15 = arith.constant 0.000000e+00 : bf16
    %16 = vector.broadcast %cst_15 : bf16 to vector<8x12xbf16>
    %c96 = arith.constant 96 : index
    %c0_16 = arith.constant 0 : index
    %17 = vector.load %arg7[%c96, %c0_16] : memref<448x12xbf16, #tpu.memory_space<vmem>>, vector<8x12xbf16>
    tpu.vector_store %arg7[%c96, %c0_16], %16 {strides = array<i32>} : memref<448x12xbf16, #tpu.memory_space<vmem>>, vector<8x12xbf16>,
    %c0_17 = arith.constant 0 : index
    %c2 = arith.constant 2 : index
    %c0_18 = arith.constant 0 : index
    %c0_19 = arith.constant 0 : index
    %18 = vector.load %arg1[%c0_17, %c2, %c0_18, %c0_19] : memref<1x16x16x4xf32, #tpu.memory_space<vmem>>, vector<1x1x16x4xf32>
    %19 = vector.shape_cast %18 : vector<1x1x16x4xf32> to vector<16x4xf32>
    %20 = arith.truncf %19 : vector<16x4xf32> to vector<16x4xbf16>
    %c80 = arith.constant 80 : index
    %c4_20 = arith.constant 4 : index
    %21 = vector.load %arg7[%c80, %c4_20] : memref<448x12xbf16, #tpu.memory_space<vmem>>, vector<16x4xbf16>
    tpu.vector_store %arg7[%c80, %c4_20], %20 {strides = array<i32>} : memref<448x12xbf16, #tpu.memory_space<vmem>>, vector<16x4xbf16>,
    %cst_21 = arith.constant 0.000000e+00 : bf16
    %22 = vector.broadcast %cst_21 : bf16 to vector<8x12xbf16>
    %c120 = arith.constant 120 : index
    %c0_22 = arith.constant 0 : index
    %23 = vector.load %arg7[%c120, %c0_22] : memref<448x12xbf16, #tpu.memory_space<vmem>>, vector<8x12xbf16>
    tpu.vector_store %arg7[%c120, %c0_22], %22 {strides = array<i32>} : memref<448x12xbf16, #tpu.memory_space<vmem>>, vector<8x12xbf16>,
    %c0_23 = arith.constant 0 : index
    %c3 = arith.constant 3 : index
    %c0_24 = arith.constant 0 : index
    %c0_25 = arith.constant 0 : index
    %24 = vector.load %arg1[%c0_23, %c3, %c0_24, %c0_25] : memref<1x16x16x4xf32, #tpu.memory_space<vmem>>, vector<1x1x16x4xf32>
    %25 = vector.shape_cast %24 : vector<1x1x16x4xf32> to vector<16x4xf32>
    %26 = arith.truncf %25 : vector<16x4xf32> to vector<16x4xbf16>
    %c104 = arith.constant 104 : index
    %c4_26 = arith.constant 4 : index
    %27 = vector.load %arg7[%c104, %c4_26] : memref<448x12xbf16, #tpu.memory_space<vmem>>, vector<16x4xbf16>
    tpu.vector_store %arg7[%c104, %c4_26], %26 {strides = array<i32>} : memref<448x12xbf16, #tpu.memory_space<vmem>>, vector<16x4xbf16>,
    %cst_27 = arith.constant 0.000000e+00 : bf16
    %28 = vector.broadcast %cst_27 : bf16 to vector<8x12xbf16>
    %c144 = arith.constant 144 : index
    %c0_28 = arith.constant 0 : index
    %29 = vector.load %arg7[%c144, %c0_28] : memref<448x12xbf16, #tpu.memory_space<vmem>>, vector<8x12xbf16>
    tpu.vector_store %arg7[%c144, %c0_28], %28 {strides = array<i32>} : memref<448x12xbf16, #tpu.memory_space<vmem>>, vector<8x12xbf16>,
    %c0_29 = arith.constant 0 : index
    %c4_30 = arith.constant 4 : index
    %c0_31 = arith.constant 0 : index
    %c0_32 = arith.constant 0 : index
    %30 = vector.load %arg1[%c0_29, %c4_30, %c0_31, %c0_32] : memref<1x16x16x4xf32, #tpu.memory_space<vmem>>, vector<1x1x16x4xf32>
    %31 = vector.shape_cast %30 : vector<1x1x16x4xf32> to vector<16x4xf32>
    %32 = arith.truncf %31 : vector<16x4xf32> to vector<16x4xbf16>
    %c128 = arith.constant 128 : index
    %c4_33 = arith.constant 4 : index
    %33 = vector.load %arg7[%c128, %c4_33] : memref<448x12xbf16, #tpu.memory_space<vmem>>, vector<16x4xbf16>
    tpu.vector_store %arg7[%c128, %c4_33], %32 {strides = array<i32>} : memref<448x12xbf16, #tpu.memory_space<vmem>>, vector<16x4xbf16>,
    %cst_34 = arith.constant 0.000000e+00 : bf16
    %34 = vector.broadcast %cst_34 : bf16 to vector<8x12xbf16>
    %c168 = arith.constant 168 : index
    %c0_35 = arith.constant 0 : index
    %35 = vector.load %arg7[%c168, %c0_35] : memref<448x12xbf16, #tpu.memory_space<vmem>>, vector<8x12xbf16>
    tpu.vector_store %arg7[%c168, %c0_35], %34 {strides = array<i32>} : memref<448x12xbf16, #tpu.memory_space<vmem>>, vector<8x12xbf16>,
    %c0_36 = arith.constant 0 : index
    %c5 = arith.constant 5 : index
    %c0_37 = arith.constant 0 : index
    %c0_38 = arith.constant 0 : index
    %36 = vector.load %arg1[%c0_36, %c5, %c0_37, %c0_38] : memref<1x16x16x4xf32, #tpu.memory_space<vmem>>, vector<1x1x16x4xf32>
    %37 = vector.shape_cast %36 : vector<1x1x16x4xf32> to vector<16x4xf32>
    %38 = arith.truncf %37 : vector<16x4xf32> to vector<16x4xbf16>
    %c152 = arith.constant 152 : index
    %c4_39 = arith.constant 4 : index
    %39 = vector.load %arg7[%c152, %c4_39] : memref<448x12xbf16, #tpu.memory_space<vmem>>, vector<16x4xbf16>
    tpu.vector_store %arg7[%c152, %c4_39], %38 {strides = array<i32>} : memref<448x12xbf16, #tpu.memory_space<vmem>>, vector<16x4xbf16>,
    %cst_40 = arith.constant 0.000000e+00 : bf16
    %40 = vector.broadcast %cst_40 : bf16 to vector<8x12xbf16>
    %c192 = arith.constant 192 : index
    %c0_41 = arith.constant 0 : index
    %41 = vector.load %arg7[%c192, %c0_41] : memref<448x12xbf16, #tpu.memory_space<vmem>>, vector<8x12xbf16>
    tpu.vector_store %arg7[%c192, %c0_41], %40 {strides = array<i32>} : memref<448x12xbf16, #tpu.memory_space<vmem>>, vector<8x12xbf16>,
    %c0_42 = arith.constant 0 : index
    %c6 = arith.constant 6 : index
    %c0_43 = arith.constant 0 : index
    %c0_44 = arith.constant 0 : index
    %42 = vector.load %arg1[%c0_42, %c6, %c0_43, %c0_44] : memref<1x16x16x4xf32, #tpu.memory_space<vmem>>, vector<1x1x16x4xf32>
    %43 = vector.shape_cast %42 : vector<1x1x16x4xf32> to vector<16x4xf32>
    %44 = arith.truncf %43 : vector<16x4xf32> to vector<16x4xbf16>
    %c176 = arith.constant 176 : index
    %c4_45 = arith.constant 4 : index
    %45 = vector.load %arg7[%c176, %c4_45] : memref<448x12xbf16, #tpu.memory_space<vmem>>, vector<16x4xbf16>
    tpu.vector_store %arg7[%c176, %c4_45], %44 {strides = array<i32>} : memref<448x12xbf16, #tpu.memory_space<vmem>>, vector<16x4xbf16>,
    %cst_46 = arith.constant 0.000000e+00 : bf16
    %46 = vector.broadcast %cst_46 : bf16 to vector<8x12xbf16>
    %c216 = arith.constant 216 : index
    %c0_47 = arith.constant 0 : index
    %47 = vector.load %arg7[%c216, %c0_47] : memref<448x12xbf16, #tpu.memory_space<vmem>>, vector<8x12xbf16>
    tpu.vector_store %arg7[%c216, %c0_47], %46 {strides = array<i32>} : memref<448x12xbf16, #tpu.memory_space<vmem>>, vector<8x12xbf16>,
    %c0_48 = arith.constant 0 : index
    %c7 = arith.constant 7 : index
    %c0_49 = arith.constant 0 : index
    %c0_50 = arith.constant 0 : index
    %48 = vector.load %arg1[%c0_48, %c7, %c0_49, %c0_50] : memref<1x16x16x4xf32, #tpu.memory_space<vmem>>, vector<1x1x16x4xf32>
    %49 = vector.shape_cast %48 : vector<1x1x16x4xf32> to vector<16x4xf32>
    %50 = arith.truncf %49 : vector<16x4xf32> to vector<16x4xbf16>
    %c200 = arith.constant 200 : index
    %c4_51 = arith.constant 4 : index
    %51 = vector.load %arg7[%c200, %c4_51] : memref<448x12xbf16, #tpu.memory_space<vmem>>, vector<16x4xbf16>
    tpu.vector_store %arg7[%c200, %c4_51], %50 {strides = array<i32>} : memref<448x12xbf16, #tpu.memory_space<vmem>>, vector<16x4xbf16>,
    %cst_52 = arith.constant 0.000000e+00 : bf16
    %52 = vector.broadcast %cst_52 : bf16 to vector<8x12xbf16>
    %c240 = arith.constant 240 : index
    %c0_53 = arith.constant 0 : index
    %53 = vector.load %arg7[%c240, %c0_53] : memref<448x12xbf16, #tpu.memory_space<vmem>>, vector<8x12xbf16>
    tpu.vector_store %arg7[%c240, %c0_53], %52 {strides = array<i32>} : memref<448x12xbf16, #tpu.memory_space<vmem>>, vector<8x12xbf16>,
    %c0_54 = arith.constant 0 : index
    %c8 = arith.constant 8 : index
    %c0_55 = arith.constant 0 : index
    %c0_56 = arith.constant 0 : index
    %54 = vector.load %arg1[%c0_54, %c8, %c0_55, %c0_56] : memref<1x16x16x4xf32, #tpu.memory_space<vmem>>, vector<1x1x16x4xf32>
    %55 = vector.shape_cast %54 : vector<1x1x16x4xf32> to vector<16x4xf32>
    %56 = arith.truncf %55 : vector<16x4xf32> to vector<16x4xbf16>
    %c224 = arith.constant 224 : index
    %c4_57 = arith.constant 4 : index
    %57 = vector.load %arg7[%c224, %c4_57] : memref<448x12xbf16, #tpu.memory_space<vmem>>, vector<16x4xbf16>
    tpu.vector_store %arg7[%c224, %c4_57], %56 {strides = array<i32>} : memref<448x12xbf16, #tpu.memory_space<vmem>>, vector<16x4xbf16>,
    %cst_58 = arith.constant 0.000000e+00 : bf16
    %58 = vector.broadcast %cst_58 : bf16 to vector<8x12xbf16>
    %c264 = arith.constant 264 : index
    %c0_59 = arith.constant 0 : index
    %59 = vector.load %arg7[%c264, %c0_59] : memref<448x12xbf16, #tpu.memory_space<vmem>>, vector<8x12xbf16>
    tpu.vector_store %arg7[%c264, %c0_59], %58 {strides = array<i32>} : memref<448x12xbf16, #tpu.memory_space<vmem>>, vector<8x12xbf16>,
    %c0_60 = arith.constant 0 : index
    %c9 = arith.constant 9 : index
    %c0_61 = arith.constant 0 : index
    %c0_62 = arith.constant 0 : index
    %60 = vector.load %arg1[%c0_60, %c9, %c0_61, %c0_62] : memref<1x16x16x4xf32, #tpu.memory_space<vmem>>, vector<1x1x16x4xf32>
    %61 = vector.shape_cast %60 : vector<1x1x16x4xf32> to vector<16x4xf32>
    %62 = arith.truncf %61 : vector<16x4xf32> to vector<16x4xbf16>
    %c248 = arith.constant 248 : index
    %c4_63 = arith.constant 4 : index
    %63 = vector.load %arg7[%c248, %c4_63] : memref<448x12xbf16, #tpu.memory_space<vmem>>, vector<16x4xbf16>
    tpu.vector_store %arg7[%c248, %c4_63], %62 {strides = array<i32>} : memref<448x12xbf16, #tpu.memory_space<vmem>>, vector<16x4xbf16>,
    %cst_64 = arith.constant 0.000000e+00 : bf16
    %64 = vector.broadcast %cst_64 : bf16 to vector<8x12xbf16>
    %c288 = arith.constant 288 : index
    %c0_65 = arith.constant 0 : index
    %65 = vector.load %arg7[%c288, %c0_65] : memref<448x12xbf16, #tpu.memory_space<vmem>>, vector<8x12xbf16>
    tpu.vector_store %arg7[%c288, %c0_65], %64 {strides = array<i32>} : memref<448x12xbf16, #tpu.memory_space<vmem>>, vector<8x12xbf16>,
    %c0_66 = arith.constant 0 : index
    %c10 = arith.constant 10 : index
    %c0_67 = arith.constant 0 : index
    %c0_68 = arith.constant 0 : index
    %66 = vector.load %arg1[%c0_66, %c10, %c0_67, %c0_68] : memref<1x16x16x4xf32, #tpu.memory_space<vmem>>, vector<1x1x16x4xf32>
    %67 = vector.shape_cast %66 : vector<1x1x16x4xf32> to vector<16x4xf32>
    %68 = arith.truncf %67 : vector<16x4xf32> to vector<16x4xbf16>
    %c272 = arith.constant 272 : index
    %c4_69 = arith.constant 4 : index
    %69 = vector.load %arg7[%c272, %c4_69] : memref<448x12xbf16, #tpu.memory_space<vmem>>, vector<16x4xbf16>
    tpu.vector_store %arg7[%c272, %c4_69], %68 {strides = array<i32>} : memref<448x12xbf16, #tpu.memory_space<vmem>>, vector<16x4xbf16>,
    %cst_70 = arith.constant 0.000000e+00 : bf16
    %70 = vector.broadcast %cst_70 : bf16 to vector<8x12xbf16>
    %c312 = arith.constant 312 : index
    %c0_71 = arith.constant 0 : index
    %71 = vector.load %arg7[%c312, %c0_71] : memref<448x12xbf16, #tpu.memory_space<vmem>>, vector<8x12xbf16>
    tpu.vector_store %arg7[%c312, %c0_71], %70 {strides = array<i32>} : memref<448x12xbf16, #tpu.memory_space<vmem>>, vector<8x12xbf16>,
    %c0_72 = arith.constant 0 : index
    %c11 = arith.constant 11 : index
    %c0_73 = arith.constant 0 : index
    %c0_74 = arith.constant 0 : index
    %72 = vector.load %arg1[%c0_72, %c11, %c0_73, %c0_74] : memref<1x16x16x4xf32, #tpu.memory_space<vmem>>, vector<1x1x16x4xf32>
    %73 = vector.shape_cast %72 : vector<1x1x16x4xf32> to vector<16x4xf32>
    %74 = arith.truncf %73 : vector<16x4xf32> to vector<16x4xbf16>
    %c296 = arith.constant 296 : index
    %c4_75 = arith.constant 4 : index
    %75 = vector.load %arg7[%c296, %c4_75] : memref<448x12xbf16, #tpu.memory_space<vmem>>, vector<16x4xbf16>
    tpu.vector_store %arg7[%c296, %c4_75], %74 {strides = array<i32>} : memref<448x12xbf16, #tpu.memory_space<vmem>>, vector<16x4xbf16>,
    %cst_76 = arith.constant 0.000000e+00 : bf16
    %76 = vector.broadcast %cst_76 : bf16 to vector<8x12xbf16>
    %c336 = arith.constant 336 : index
    %c0_77 = arith.constant 0 : index
    %77 = vector.load %arg7[%c336, %c0_77] : memref<448x12xbf16, #tpu.memory_space<vmem>>, vector<8x12xbf16>
    tpu.vector_store %arg7[%c336, %c0_77], %76 {strides = array<i32>} : memref<448x12xbf16, #tpu.memory_space<vmem>>, vector<8x12xbf16>,
    %c0_78 = arith.constant 0 : index
    %c12 = arith.constant 12 : index
    %c0_79 = arith.constant 0 : index
    %c0_80 = arith.constant 0 : index
    %78 = vector.load %arg1[%c0_78, %c12, %c0_79, %c0_80] : memref<1x16x16x4xf32, #tpu.memory_space<vmem>>, vector<1x1x16x4xf32>
    %79 = vector.shape_cast %78 : vector<1x1x16x4xf32> to vector<16x4xf32>
    %80 = arith.truncf %79 : vector<16x4xf32> to vector<16x4xbf16>
    %c320 = arith.constant 320 : index
    %c4_81 = arith.constant 4 : index
    %81 = vector.load %arg7[%c320, %c4_81] : memref<448x12xbf16, #tpu.memory_space<vmem>>, vector<16x4xbf16>
    tpu.vector_store %arg7[%c320, %c4_81], %80 {strides = array<i32>} : memref<448x12xbf16, #tpu.memory_space<vmem>>, vector<16x4xbf16>,
    %cst_82 = arith.constant 0.000000e+00 : bf16
    %82 = vector.broadcast %cst_82 : bf16 to vector<8x12xbf16>
    %c360 = arith.constant 360 : index
    %c0_83 = arith.constant 0 : index
    %83 = vector.load %arg7[%c360, %c0_83] : memref<448x12xbf16, #tpu.memory_space<vmem>>, vector<8x12xbf16>
    tpu.vector_store %arg7[%c360, %c0_83], %82 {strides = array<i32>} : memref<448x12xbf16, #tpu.memory_space<vmem>>, vector<8x12xbf16>,
    %c0_84 = arith.constant 0 : index
    %c13 = arith.constant 13 : index
    %c0_85 = arith.constant 0 : index
    %c0_86 = arith.constant 0 : index
    %84 = vector.load %arg1[%c0_84, %c13, %c0_85, %c0_86] : memref<1x16x16x4xf32, #tpu.memory_space<vmem>>, vector<1x1x16x4xf32>
    %85 = vector.shape_cast %84 : vector<1x1x16x4xf32> to vector<16x4xf32>
    %86 = arith.truncf %85 : vector<16x4xf32> to vector<16x4xbf16>
    %c344 = arith.constant 344 : index
    %c4_87 = arith.constant 4 : index
    %87 = vector.load %arg7[%c344, %c4_87] : memref<448x12xbf16, #tpu.memory_space<vmem>>, vector<16x4xbf16>
    tpu.vector_store %arg7[%c344, %c4_87], %86 {strides = array<i32>} : memref<448x12xbf16, #tpu.memory_space<vmem>>, vector<16x4xbf16>,
    %cst_88 = arith.constant 0.000000e+00 : bf16
    %88 = vector.broadcast %cst_88 : bf16 to vector<8x12xbf16>
    %c384 = arith.constant 384 : index
    %c0_89 = arith.constant 0 : index
    %89 = vector.load %arg7[%c384, %c0_89] : memref<448x12xbf16, #tpu.memory_space<vmem>>, vector<8x12xbf16>
    tpu.vector_store %arg7[%c384, %c0_89], %88 {strides = array<i32>} : memref<448x12xbf16, #tpu.memory_space<vmem>>, vector<8x12xbf16>,
    %c0_90 = arith.constant 0 : index
    %c14 = arith.constant 14 : index
    %c0_91 = arith.constant 0 : index
    %c0_92 = arith.constant 0 : index
    %90 = vector.load %arg1[%c0_90, %c14, %c0_91, %c0_92] : memref<1x16x16x4xf32, #tpu.memory_space<vmem>>, vector<1x1x16x4xf32>
    %91 = vector.shape_cast %90 : vector<1x1x16x4xf32> to vector<16x4xf32>
    %92 = arith.truncf %91 : vector<16x4xf32> to vector<16x4xbf16>
    %c368 = arith.constant 368 : index
    %c4_93 = arith.constant 4 : index
    %93 = vector.load %arg7[%c368, %c4_93] : memref<448x12xbf16, #tpu.memory_space<vmem>>, vector<16x4xbf16>
    tpu.vector_store %arg7[%c368, %c4_93], %92 {strides = array<i32>} : memref<448x12xbf16, #tpu.memory_space<vmem>>, vector<16x4xbf16>,
    %cst_94 = arith.constant 0.000000e+00 : bf16
    %94 = vector.broadcast %cst_94 : bf16 to vector<8x12xbf16>
    %c408_95 = arith.constant 408 : index
    %c0_96 = arith.constant 0 : index
    %95 = vector.load %arg7[%c408_95, %c0_96] : memref<448x12xbf16, #tpu.memory_space<vmem>>, vector<8x12xbf16>
    tpu.vector_store %arg7[%c408_95, %c0_96], %94 {strides = array<i32>} : memref<448x12xbf16, #tpu.memory_space<vmem>>, vector<8x12xbf16>,
    %c0_97 = arith.constant 0 : index
    %c15 = arith.constant 15 : index
    %c0_98 = arith.constant 0 : index
    %c0_99 = arith.constant 0 : index
    %96 = vector.load %arg1[%c0_97, %c15, %c0_98, %c0_99] : memref<1x16x16x4xf32, #tpu.memory_space<vmem>>, vector<1x1x16x4xf32>
    %97 = vector.shape_cast %96 : vector<1x1x16x4xf32> to vector<16x4xf32>
    %98 = arith.truncf %97 : vector<16x4xf32> to vector<16x4xbf16>
    %c392 = arith.constant 392 : index
    %c4_100 = arith.constant 4 : index
    %99 = vector.load %arg7[%c392, %c4_100] : memref<448x12xbf16, #tpu.memory_space<vmem>>, vector<16x4xbf16>
    tpu.vector_store %arg7[%c392, %c4_100], %98 {strides = array<i32>} : memref<448x12xbf16, #tpu.memory_space<vmem>>, vector<16x4xbf16>,
    %c7_101 = arith.constant 7 : index
    %c4_102 = arith.constant 4 : index
    %100 = vector.load %arg7[%c7_101, %c4_102] : memref<448x12xbf16, #tpu.memory_space<vmem>>, vector<432x4xbf16>
    %c8_103 = arith.constant 8 : index
    %c0_104 = arith.constant 0 : index
    %101 = vector.load %arg7[%c8_103, %c0_104] : memref<448x12xbf16, #tpu.memory_space<vmem>>, vector<432x4xbf16>
    tpu.vector_store %arg7[%c8_103, %c0_104], %100 {strides = array<i32>} : memref<448x12xbf16, #tpu.memory_space<vmem>>, vector<432x4xbf16>,
    %c9_105 = arith.constant 9 : index
    %c4_106 = arith.constant 4 : index
    %102 = vector.load %arg7[%c9_105, %c4_106] : memref<448x12xbf16, #tpu.memory_space<vmem>>, vector<432x4xbf16>
    %c8_107 = arith.constant 8 : index
    %c8_108 = arith.constant 8 : index
    %103 = vector.load %arg7[%c8_107, %c8_108] : memref<448x12xbf16, #tpu.memory_space<vmem>>, vector<432x4xbf16>
    tpu.vector_store %arg7[%c8_107, %c8_108], %102 {strides = array<i32>} : memref<448x12xbf16, #tpu.memory_space<vmem>>, vector<432x4xbf16>,
    %c8_109 = arith.constant 8 : index
    %c0_110 = arith.constant 0 : index
    %104 = vector.load %arg7[%c8_109, %c0_110] : memref<448x12xbf16, #tpu.memory_space<vmem>>, vector<384x12xbf16>
    %c0_111 = arith.constant 0 : index
    %c0_112 = arith.constant 0 : index
    %105 = vector.load %arg2[%c0_111, %c0_112] : memref<36x4xbf16, #tpu.memory_space<vmem>>, vector<12x4xbf16>
    %cst_113 = arith.constant dense<0.000000e+00> : vector<384x4xf32>
    %106 = tpu.matmul %104, %105, %cst_113 {dimension_numbers = #tpu.dot_dimension_numbers<[1], [0], [0], [1], [0, 0, 1, 1], [], []>} : vector<384x12xbf16>, vector<12x4xbf16>, vector<384x4xf32> -> vector<384x4xf32>
    %c32_114 = arith.constant 32 : index
    %c0_115 = arith.constant 0 : index
    %107 = vector.load %arg7[%c32_114, %c0_115] : memref<448x12xbf16, #tpu.memory_space<vmem>>, vector<384x12xbf16>
    %c12_116 = arith.constant 12 : index
    %c0_117 = arith.constant 0 : index
    %108 = vector.load %arg2[%c12_116, %c0_117] : memref<36x4xbf16, #tpu.memory_space<vmem>>, vector<12x4xbf16>
    %cst_118 = arith.constant dense<0.000000e+00> : vector<384x4xf32>
    %109 = tpu.matmul %107, %108, %cst_118 {dimension_numbers = #tpu.dot_dimension_numbers<[1], [0], [0], [1], [0, 0, 1, 1], [], []>} : vector<384x12xbf16>, vector<12x4xbf16>, vector<384x4xf32> -> vector<384x4xf32>
    %110 = arith.addf %106, %109 : vector<384x4xf32>
    %c56_119 = arith.constant 56 : index
    %c0_120 = arith.constant 0 : index
    %111 = vector.load %arg7[%c56_119, %c0_120] : memref<448x12xbf16, #tpu.memory_space<vmem>>, vector<384x12xbf16>
    %c24 = arith.constant 24 : index
    %c0_121 = arith.constant 0 : index
    %112 = vector.load %arg2[%c24, %c0_121] : memref<36x4xbf16, #tpu.memory_space<vmem>>, vector<12x4xbf16>
    %cst_122 = arith.constant dense<0.000000e+00> : vector<384x4xf32>
    %113 = tpu.matmul %111, %112, %cst_122 {dimension_numbers = #tpu.dot_dimension_numbers<[1], [0], [0], [1], [0, 0, 1, 1], [], []>} : vector<384x12xbf16>, vector<12x4xbf16>, vector<384x4xf32> -> vector<384x4xf32>
    %114 = arith.addf %110, %113 : vector<384x4xf32>
    %c0_123 = arith.constant 0 : index
    %c0_124 = arith.constant 0 : index
    %115 = vector.load %arg4[%c0_123, %c0_124] : memref<1x4xf32, #tpu.memory_space<vmem>>, vector<1x4xf32>
    %116 = vector.broadcast %115 : vector<1x4xf32> to vector<384x4xf32>
    %117 = arith.addf %114, %116 : vector<384x4xf32>
    %cst_125 = arith.constant 0.000000e+00 : f32
    %118 = vector.broadcast %cst_125 : f32 to vector<384x4xf32>
    %119 = arith.maximumf %117, %118 : vector<384x4xf32>
    %120 = arith.truncf %119 : vector<384x4xf32> to vector<384x4xbf16>
    %121 = vector.extract_strided_slice %120 {offsets = [0, 0], sizes = [16, 4], strides = [1, 1]} : vector<384x4xbf16> to vector<16x4xbf16>
    %c32_126 = arith.constant 32 : index
    %c4_127 = arith.constant 4 : index
    %122 = vector.load %arg7[%c32_126, %c4_127] : memref<448x12xbf16, #tpu.memory_space<vmem>>, vector<16x4xbf16>
    tpu.vector_store %arg7[%c32_126, %c4_127], %121 {strides = array<i32>} : memref<448x12xbf16, #tpu.memory_space<vmem>>, vector<16x4xbf16>,
    %123 = vector.extract_strided_slice %120 {offsets = [24, 0], sizes = [16, 4], strides = [1, 1]} : vector<384x4xbf16> to vector<16x4xbf16>
    %c56_128 = arith.constant 56 : index
    %c4_129 = arith.constant 4 : index
    %124 = vector.load %arg7[%c56_128, %c4_129] : memref<448x12xbf16, #tpu.memory_space<vmem>>, vector<16x4xbf16>
    tpu.vector_store %arg7[%c56_128, %c4_129], %123 {strides = array<i32>} : memref<448x12xbf16, #tpu.memory_space<vmem>>, vector<16x4xbf16>,
    %125 = vector.extract_strided_slice %120 {offsets = [48, 0], sizes = [16, 4], strides = [1, 1]} : vector<384x4xbf16> to vector<16x4xbf16>
    %c80_130 = arith.constant 80 : index
    %c4_131 = arith.constant 4 : index
    %126 = vector.load %arg7[%c80_130, %c4_131] : memref<448x12xbf16, #tpu.memory_space<vmem>>, vector<16x4xbf16>
    tpu.vector_store %arg7[%c80_130, %c4_131], %125 {strides = array<i32>} : memref<448x12xbf16, #tpu.memory_space<vmem>>, vector<16x4xbf16>,
    %127 = vector.extract_strided_slice %120 {offsets = [72, 0], sizes = [16, 4], strides = [1, 1]} : vector<384x4xbf16> to vector<16x4xbf16>
    %c104_132 = arith.constant 104 : index
    %c4_133 = arith.constant 4 : index
    %128 = vector.load %arg7[%c104_132, %c4_133] : memref<448x12xbf16, #tpu.memory_space<vmem>>, vector<16x4xbf16>
    tpu.vector_store %arg7[%c104_132, %c4_133], %127 {strides = array<i32>} : memref<448x12xbf16, #tpu.memory_space<vmem>>, vector<16x4xbf16>,
    %129 = vector.extract_strided_slice %120 {offsets = [96, 0], sizes = [16, 4], strides = [1, 1]} : vector<384x4xbf16> to vector<16x4xbf16>
    %c128_134 = arith.constant 128 : index
    %c4_135 = arith.constant 4 : index
    %130 = vector.load %arg7[%c128_134, %c4_135] : memref<448x12xbf16, #tpu.memory_space<vmem>>, vector<16x4xbf16>
    tpu.vector_store %arg7[%c128_134, %c4_135], %129 {strides = array<i32>} : memref<448x12xbf16, #tpu.memory_space<vmem>>, vector<16x4xbf16>,
    %131 = vector.extract_strided_slice %120 {offsets = [120, 0], sizes = [16, 4], strides = [1, 1]} : vector<384x4xbf16> to vector<16x4xbf16>
    %c152_136 = arith.constant 152 : index
    %c4_137 = arith.constant 4 : index
    %132 = vector.load %arg7[%c152_136, %c4_137] : memref<448x12xbf16, #tpu.memory_space<vmem>>, vector<16x4xbf16>
    tpu.vector_store %arg7[%c152_136, %c4_137], %131 {strides = array<i32>} : memref<448x12xbf16, #tpu.memory_space<vmem>>, vector<16x4xbf16>,
    %133 = vector.extract_strided_slice %120 {offsets = [144, 0], sizes = [16, 4], strides = [1, 1]} : vector<384x4xbf16> to vector<16x4xbf16>
    %c176_138 = arith.constant 176 : index
    %c4_139 = arith.constant 4 : index
    %134 = vector.load %arg7[%c176_138, %c4_139] : memref<448x12xbf16, #tpu.memory_space<vmem>>, vector<16x4xbf16>
    tpu.vector_store %arg7[%c176_138, %c4_139], %133 {strides = array<i32>} : memref<448x12xbf16, #tpu.memory_space<vmem>>, vector<16x4xbf16>,
    %135 = vector.extract_strided_slice %120 {offsets = [168, 0], sizes = [16, 4], strides = [1, 1]} : vector<384x4xbf16> to vector<16x4xbf16>
    %c200_140 = arith.constant 200 : index
    %c4_141 = arith.constant 4 : index
    %136 = vector.load %arg7[%c200_140, %c4_141] : memref<448x12xbf16, #tpu.memory_space<vmem>>, vector<16x4xbf16>
    tpu.vector_store %arg7[%c200_140, %c4_141], %135 {strides = array<i32>} : memref<448x12xbf16, #tpu.memory_space<vmem>>, vector<16x4xbf16>,
    %137 = vector.extract_strided_slice %120 {offsets = [192, 0], sizes = [16, 4], strides = [1, 1]} : vector<384x4xbf16> to vector<16x4xbf16>
    %c224_142 = arith.constant 224 : index
    %c4_143 = arith.constant 4 : index
    %138 = vector.load %arg7[%c224_142, %c4_143] : memref<448x12xbf16, #tpu.memory_space<vmem>>, vector<16x4xbf16>
    tpu.vector_store %arg7[%c224_142, %c4_143], %137 {strides = array<i32>} : memref<448x12xbf16, #tpu.memory_space<vmem>>, vector<16x4xbf16>,
    %139 = vector.extract_strided_slice %120 {offsets = [216, 0], sizes = [16, 4], strides = [1, 1]} : vector<384x4xbf16> to vector<16x4xbf16>
    %c248_144 = arith.constant 248 : index
    %c4_145 = arith.constant 4 : index
    %140 = vector.load %arg7[%c248_144, %c4_145] : memref<448x12xbf16, #tpu.memory_space<vmem>>, vector<16x4xbf16>
    tpu.vector_store %arg7[%c248_144, %c4_145], %139 {strides = array<i32>} : memref<448x12xbf16, #tpu.memory_space<vmem>>, vector<16x4xbf16>,
    %141 = vector.extract_strided_slice %120 {offsets = [240, 0], sizes = [16, 4], strides = [1, 1]} : vector<384x4xbf16> to vector<16x4xbf16>
    %c272_146 = arith.constant 272 : index
    %c4_147 = arith.constant 4 : index
    %142 = vector.load %arg7[%c272_146, %c4_147] : memref<448x12xbf16, #tpu.memory_space<vmem>>, vector<16x4xbf16>
    tpu.vector_store %arg7[%c272_146, %c4_147], %141 {strides = array<i32>} : memref<448x12xbf16, #tpu.memory_space<vmem>>, vector<16x4xbf16>,
    %143 = vector.extract_strided_slice %120 {offsets = [264, 0], sizes = [16, 4], strides = [1, 1]} : vector<384x4xbf16> to vector<16x4xbf16>
    %c296_148 = arith.constant 296 : index
    %c4_149 = arith.constant 4 : index
    %144 = vector.load %arg7[%c296_148, %c4_149] : memref<448x12xbf16, #tpu.memory_space<vmem>>, vector<16x4xbf16>
    tpu.vector_store %arg7[%c296_148, %c4_149], %143 {strides = array<i32>} : memref<448x12xbf16, #tpu.memory_space<vmem>>, vector<16x4xbf16>,
    %145 = vector.extract_strided_slice %120 {offsets = [288, 0], sizes = [16, 4], strides = [1, 1]} : vector<384x4xbf16> to vector<16x4xbf16>
    %c320_150 = arith.constant 320 : index
    %c4_151 = arith.constant 4 : index
    %146 = vector.load %arg7[%c320_150, %c4_151] : memref<448x12xbf16, #tpu.memory_space<vmem>>, vector<16x4xbf16>
    tpu.vector_store %arg7[%c320_150, %c4_151], %145 {strides = array<i32>} : memref<448x12xbf16, #tpu.memory_space<vmem>>, vector<16x4xbf16>,
    %147 = vector.extract_strided_slice %120 {offsets = [312, 0], sizes = [16, 4], strides = [1, 1]} : vector<384x4xbf16> to vector<16x4xbf16>
    %c344_152 = arith.constant 344 : index
    %c4_153 = arith.constant 4 : index
    %148 = vector.load %arg7[%c344_152, %c4_153] : memref<448x12xbf16, #tpu.memory_space<vmem>>, vector<16x4xbf16>
    tpu.vector_store %arg7[%c344_152, %c4_153], %147 {strides = array<i32>} : memref<448x12xbf16, #tpu.memory_space<vmem>>, vector<16x4xbf16>,
    %149 = vector.extract_strided_slice %120 {offsets = [336, 0], sizes = [16, 4], strides = [1, 1]} : vector<384x4xbf16> to vector<16x4xbf16>
    %c368_154 = arith.constant 368 : index
    %c4_155 = arith.constant 4 : index
    %150 = vector.load %arg7[%c368_154, %c4_155] : memref<448x12xbf16, #tpu.memory_space<vmem>>, vector<16x4xbf16>
    tpu.vector_store %arg7[%c368_154, %c4_155], %149 {strides = array<i32>} : memref<448x12xbf16, #tpu.memory_space<vmem>>, vector<16x4xbf16>,
    %151 = vector.extract_strided_slice %120 {offsets = [360, 0], sizes = [16, 4], strides = [1, 1]} : vector<384x4xbf16> to vector<16x4xbf16>
    %c392_156 = arith.constant 392 : index
    %c4_157 = arith.constant 4 : index
    %152 = vector.load %arg7[%c392_156, %c4_157] : memref<448x12xbf16, #tpu.memory_space<vmem>>, vector<16x4xbf16>
    tpu.vector_store %arg7[%c392_156, %c4_157], %151 {strides = array<i32>} : memref<448x12xbf16, #tpu.memory_space<vmem>>, vector<16x4xbf16>,
    %c7_158 = arith.constant 7 : index
    %c4_159 = arith.constant 4 : index
    %153 = vector.load %arg7[%c7_158, %c4_159] : memref<448x12xbf16, #tpu.memory_space<vmem>>, vector<432x4xbf16>
    %c8_160 = arith.constant 8 : index
    %c0_161 = arith.constant 0 : index
    %154 = vector.load %arg7[%c8_160, %c0_161] : memref<448x12xbf16, #tpu.memory_space<vmem>>, vector<432x4xbf16>
    tpu.vector_store %arg7[%c8_160, %c0_161], %153 {strides = array<i32>} : memref<448x12xbf16, #tpu.memory_space<vmem>>, vector<432x4xbf16>,
    %c9_162 = arith.constant 9 : index
    %c4_163 = arith.constant 4 : index
    %155 = vector.load %arg7[%c9_162, %c4_163] : memref<448x12xbf16, #tpu.memory_space<vmem>>, vector<432x4xbf16>
    %c8_164 = arith.constant 8 : index
    %c8_165 = arith.constant 8 : index
    %156 = vector.load %arg7[%c8_164, %c8_165] : memref<448x12xbf16, #tpu.memory_space<vmem>>, vector<432x4xbf16>
    tpu.vector_store %arg7[%c8_164, %c8_165], %155 {strides = array<i32>} : memref<448x12xbf16, #tpu.memory_space<vmem>>, vector<432x4xbf16>,
    %c8_166 = arith.constant 8 : index
    %c0_167 = arith.constant 0 : index
    %157 = vector.load %arg7[%c8_166, %c0_167] : memref<448x12xbf16, #tpu.memory_space<vmem>>, vector<384x12xbf16>
    %c0_168 = arith.constant 0 : index
    %c0_169 = arith.constant 0 : index
    %158 = vector.load %arg3[%c0_168, %c0_169] : memref<36x4xbf16, #tpu.memory_space<vmem>>, vector<12x4xbf16>
    %cst_170 = arith.constant dense<0.000000e+00> : vector<384x4xf32>
    %159 = tpu.matmul %157, %158, %cst_170 {dimension_numbers = #tpu.dot_dimension_numbers<[1], [0], [0], [1], [0, 0, 1, 1], [], []>} : vector<384x12xbf16>, vector<12x4xbf16>, vector<384x4xf32> -> vector<384x4xf32>
    %c32_171 = arith.constant 32 : index
    %c0_172 = arith.constant 0 : index
    %160 = vector.load %arg7[%c32_171, %c0_172] : memref<448x12xbf16, #tpu.memory_space<vmem>>, vector<384x12xbf16>
    %c12_173 = arith.constant 12 : index
    %c0_174 = arith.constant 0 : index
    %161 = vector.load %arg3[%c12_173, %c0_174] : memref<36x4xbf16, #tpu.memory_space<vmem>>, vector<12x4xbf16>
    %cst_175 = arith.constant dense<0.000000e+00> : vector<384x4xf32>
    %162 = tpu.matmul %160, %161, %cst_175 {dimension_numbers = #tpu.dot_dimension_numbers<[1], [0], [0], [1], [0, 0, 1, 1], [], []>} : vector<384x12xbf16>, vector<12x4xbf16>, vector<384x4xf32> -> vector<384x4xf32>
    %163 = arith.addf %159, %162 : vector<384x4xf32>
    %c56_176 = arith.constant 56 : index
    %c0_177 = arith.constant 0 : index
    %164 = vector.load %arg7[%c56_176, %c0_177] : memref<448x12xbf16, #tpu.memory_space<vmem>>, vector<384x12xbf16>
    %c24_178 = arith.constant 24 : index
    %c0_179 = arith.constant 0 : index
    %165 = vector.load %arg3[%c24_178, %c0_179] : memref<36x4xbf16, #tpu.memory_space<vmem>>, vector<12x4xbf16>
    %cst_180 = arith.constant dense<0.000000e+00> : vector<384x4xf32>
    %166 = tpu.matmul %164, %165, %cst_180 {dimension_numbers = #tpu.dot_dimension_numbers<[1], [0], [0], [1], [0, 0, 1, 1], [], []>} : vector<384x12xbf16>, vector<12x4xbf16>, vector<384x4xf32> -> vector<384x4xf32>
    %167 = arith.addf %163, %166 : vector<384x4xf32>
    %c0_181 = arith.constant 0 : index
    %c0_182 = arith.constant 0 : index
    %168 = vector.load %arg5[%c0_181, %c0_182] : memref<1x4xf32, #tpu.memory_space<vmem>>, vector<1x4xf32>
    %169 = vector.broadcast %168 : vector<1x4xf32> to vector<384x4xf32>
    %170 = arith.addf %167, %169 : vector<384x4xf32>
    %171 = vector.extract_strided_slice %170 {offsets = [0, 0], sizes = [16, 4], strides = [1, 1]} : vector<384x4xf32> to vector<16x4xf32>
    %c0_183 = arith.constant 0 : index
    %c0_184 = arith.constant 0 : index
    %c0_185 = arith.constant 0 : index
    %c0_186 = arith.constant 0 : index
    %172 = vector.load %arg1[%c0_183, %c0_184, %c0_185, %c0_186] : memref<1x16x16x4xf32, #tpu.memory_space<vmem>>, vector<1x1x16x4xf32>
    %173 = vector.shape_cast %172 : vector<1x1x16x4xf32> to vector<16x4xf32>
    %174 = arith.addf %171, %173 : vector<16x4xf32>
    %cst_187 = arith.constant 0.000000e+00 : f32
    %175 = vector.broadcast %cst_187 : f32 to vector<16x4xf32>
    %176 = arith.maximumf %174, %175 : vector<16x4xf32>
    %c0_188 = arith.constant 0 : index
    %c0_189 = arith.constant 0 : index
    %c0_190 = arith.constant 0 : index
    %c0_191 = arith.constant 0 : index
    %177 = vector.load %arg6[%c0_188, %c0_189, %c0_190, %c0_191] : memref<1x16x16x4xf32, #tpu.memory_space<vmem>>, vector<1x1x16x4xf32>
    %178 = vector.shape_cast %177 : vector<1x1x16x4xf32> to vector<16x4xf32>
    %179 = vector.shape_cast %176 : vector<16x4xf32> to vector<1x1x16x4xf32>
    tpu.vector_store %arg6[%c0_188, %c0_189, %c0_190, %c0_191], %179 {strides = array<i32>} : memref<1x16x16x4xf32, #tpu.memory_space<vmem>>, vector<1x1x16x4xf32>,
    %180 = vector.extract_strided_slice %170 {offsets = [24, 0], sizes = [16, 4], strides = [1, 1]} : vector<384x4xf32> to vector<16x4xf32>
    %c0_192 = arith.constant 0 : index
    %c1_193 = arith.constant 1 : index
    %c0_194 = arith.constant 0 : index
    %c0_195 = arith.constant 0 : index
    %181 = vector.load %arg1[%c0_192, %c1_193, %c0_194, %c0_195] : memref<1x16x16x4xf32, #tpu.memory_space<vmem>>, vector<1x1x16x4xf32>
    %182 = vector.shape_cast %181 : vector<1x1x16x4xf32> to vector<16x4xf32>
    %183 = arith.addf %180, %182 : vector<16x4xf32>
    %cst_196 = arith.constant 0.000000e+00 : f32
    %184 = vector.broadcast %cst_196 : f32 to vector<16x4xf32>
    %185 = arith.maximumf %183, %184 : vector<16x4xf32>
    %c0_197 = arith.constant 0 : index
    %c1_198 = arith.constant 1 : index
    %c0_199 = arith.constant 0 : index
    %c0_200 = arith.constant 0 : index
    %186 = vector.load %arg6[%c0_197, %c1_198, %c0_199, %c0_200] : memref<1x16x16x4xf32, #tpu.memory_space<vmem>>, vector<1x1x16x4xf32>
    %187 = vector.shape_cast %186 : vector<1x1x16x4xf32> to vector<16x4xf32>
    %188 = vector.shape_cast %185 : vector<16x4xf32> to vector<1x1x16x4xf32>
    tpu.vector_store %arg6[%c0_197, %c1_198, %c0_199, %c0_200], %188 {strides = array<i32>} : memref<1x16x16x4xf32, #tpu.memory_space<vmem>>, vector<1x1x16x4xf32>,
    %189 = vector.extract_strided_slice %170 {offsets = [48, 0], sizes = [16, 4], strides = [1, 1]} : vector<384x4xf32> to vector<16x4xf32>
    %c0_201 = arith.constant 0 : index
    %c2_202 = arith.constant 2 : index
    %c0_203 = arith.constant 0 : index
    %c0_204 = arith.constant 0 : index
    %190 = vector.load %arg1[%c0_201, %c2_202, %c0_203, %c0_204] : memref<1x16x16x4xf32, #tpu.memory_space<vmem>>, vector<1x1x16x4xf32>
    %191 = vector.shape_cast %190 : vector<1x1x16x4xf32> to vector<16x4xf32>
    %192 = arith.addf %189, %191 : vector<16x4xf32>
    %cst_205 = arith.constant 0.000000e+00 : f32
    %193 = vector.broadcast %cst_205 : f32 to vector<16x4xf32>
    %194 = arith.maximumf %192, %193 : vector<16x4xf32>
    %c0_206 = arith.constant 0 : index
    %c2_207 = arith.constant 2 : index
    %c0_208 = arith.constant 0 : index
    %c0_209 = arith.constant 0 : index
    %195 = vector.load %arg6[%c0_206, %c2_207, %c0_208, %c0_209] : memref<1x16x16x4xf32, #tpu.memory_space<vmem>>, vector<1x1x16x4xf32>
    %196 = vector.shape_cast %195 : vector<1x1x16x4xf32> to vector<16x4xf32>
    %197 = vector.shape_cast %194 : vector<16x4xf32> to vector<1x1x16x4xf32>
    tpu.vector_store %arg6[%c0_206, %c2_207, %c0_208, %c0_209], %197 {strides = array<i32>} : memref<1x16x16x4xf32, #tpu.memory_space<vmem>>, vector<1x1x16x4xf32>,
    %198 = vector.extract_strided_slice %170 {offsets = [72, 0], sizes = [16, 4], strides = [1, 1]} : vector<384x4xf32> to vector<16x4xf32>
    %c0_210 = arith.constant 0 : index
    %c3_211 = arith.constant 3 : index
    %c0_212 = arith.constant 0 : index
    %c0_213 = arith.constant 0 : index
    %199 = vector.load %arg1[%c0_210, %c3_211, %c0_212, %c0_213] : memref<1x16x16x4xf32, #tpu.memory_space<vmem>>, vector<1x1x16x4xf32>
    %200 = vector.shape_cast %199 : vector<1x1x16x4xf32> to vector<16x4xf32>
    %201 = arith.addf %198, %200 : vector<16x4xf32>
    %cst_214 = arith.constant 0.000000e+00 : f32
    %202 = vector.broadcast %cst_214 : f32 to vector<16x4xf32>
    %203 = arith.maximumf %201, %202 : vector<16x4xf32>
    %c0_215 = arith.constant 0 : index
    %c3_216 = arith.constant 3 : index
    %c0_217 = arith.constant 0 : index
    %c0_218 = arith.constant 0 : index
    %204 = vector.load %arg6[%c0_215, %c3_216, %c0_217, %c0_218] : memref<1x16x16x4xf32, #tpu.memory_space<vmem>>, vector<1x1x16x4xf32>
    %205 = vector.shape_cast %204 : vector<1x1x16x4xf32> to vector<16x4xf32>
    %206 = vector.shape_cast %203 : vector<16x4xf32> to vector<1x1x16x4xf32>
    tpu.vector_store %arg6[%c0_215, %c3_216, %c0_217, %c0_218], %206 {strides = array<i32>} : memref<1x16x16x4xf32, #tpu.memory_space<vmem>>, vector<1x1x16x4xf32>,
    %207 = vector.extract_strided_slice %170 {offsets = [96, 0], sizes = [16, 4], strides = [1, 1]} : vector<384x4xf32> to vector<16x4xf32>
    %c0_219 = arith.constant 0 : index
    %c4_220 = arith.constant 4 : index
    %c0_221 = arith.constant 0 : index
    %c0_222 = arith.constant 0 : index
    %208 = vector.load %arg1[%c0_219, %c4_220, %c0_221, %c0_222] : memref<1x16x16x4xf32, #tpu.memory_space<vmem>>, vector<1x1x16x4xf32>
    %209 = vector.shape_cast %208 : vector<1x1x16x4xf32> to vector<16x4xf32>
    %210 = arith.addf %207, %209 : vector<16x4xf32>
    %cst_223 = arith.constant 0.000000e+00 : f32
    %211 = vector.broadcast %cst_223 : f32 to vector<16x4xf32>
    %212 = arith.maximumf %210, %211 : vector<16x4xf32>
    %c0_224 = arith.constant 0 : index
    %c4_225 = arith.constant 4 : index
    %c0_226 = arith.constant 0 : index
    %c0_227 = arith.constant 0 : index
    %213 = vector.load %arg6[%c0_224, %c4_225, %c0_226, %c0_227] : memref<1x16x16x4xf32, #tpu.memory_space<vmem>>, vector<1x1x16x4xf32>
    %214 = vector.shape_cast %213 : vector<1x1x16x4xf32> to vector<16x4xf32>
    %215 = vector.shape_cast %212 : vector<16x4xf32> to vector<1x1x16x4xf32>
    tpu.vector_store %arg6[%c0_224, %c4_225, %c0_226, %c0_227], %215 {strides = array<i32>} : memref<1x16x16x4xf32, #tpu.memory_space<vmem>>, vector<1x1x16x4xf32>,
    %216 = vector.extract_strided_slice %170 {offsets = [120, 0], sizes = [16, 4], strides = [1, 1]} : vector<384x4xf32> to vector<16x4xf32>
    %c0_228 = arith.constant 0 : index
    %c5_229 = arith.constant 5 : index
    %c0_230 = arith.constant 0 : index
    %c0_231 = arith.constant 0 : index
    %217 = vector.load %arg1[%c0_228, %c5_229, %c0_230, %c0_231] : memref<1x16x16x4xf32, #tpu.memory_space<vmem>>, vector<1x1x16x4xf32>
    %218 = vector.shape_cast %217 : vector<1x1x16x4xf32> to vector<16x4xf32>
    %219 = arith.addf %216, %218 : vector<16x4xf32>
    %cst_232 = arith.constant 0.000000e+00 : f32
    %220 = vector.broadcast %cst_232 : f32 to vector<16x4xf32>
    %221 = arith.maximumf %219, %220 : vector<16x4xf32>
    %c0_233 = arith.constant 0 : index
    %c5_234 = arith.constant 5 : index
    %c0_235 = arith.constant 0 : index
    %c0_236 = arith.constant 0 : index
    %222 = vector.load %arg6[%c0_233, %c5_234, %c0_235, %c0_236] : memref<1x16x16x4xf32, #tpu.memory_space<vmem>>, vector<1x1x16x4xf32>
    %223 = vector.shape_cast %222 : vector<1x1x16x4xf32> to vector<16x4xf32>
    %224 = vector.shape_cast %221 : vector<16x4xf32> to vector<1x1x16x4xf32>
    tpu.vector_store %arg6[%c0_233, %c5_234, %c0_235, %c0_236], %224 {strides = array<i32>} : memref<1x16x16x4xf32, #tpu.memory_space<vmem>>, vector<1x1x16x4xf32>,
    %225 = vector.extract_strided_slice %170 {offsets = [144, 0], sizes = [16, 4], strides = [1, 1]} : vector<384x4xf32> to vector<16x4xf32>
    %c0_237 = arith.constant 0 : index
    %c6_238 = arith.constant 6 : index
    %c0_239 = arith.constant 0 : index
    %c0_240 = arith.constant 0 : index
    %226 = vector.load %arg1[%c0_237, %c6_238, %c0_239, %c0_240] : memref<1x16x16x4xf32, #tpu.memory_space<vmem>>, vector<1x1x16x4xf32>
    %227 = vector.shape_cast %226 : vector<1x1x16x4xf32> to vector<16x4xf32>
    %228 = arith.addf %225, %227 : vector<16x4xf32>
    %cst_241 = arith.constant 0.000000e+00 : f32
    %229 = vector.broadcast %cst_241 : f32 to vector<16x4xf32>
    %230 = arith.maximumf %228, %229 : vector<16x4xf32>
    %c0_242 = arith.constant 0 : index
    %c6_243 = arith.constant 6 : index
    %c0_244 = arith.constant 0 : index
    %c0_245 = arith.constant 0 : index
    %231 = vector.load %arg6[%c0_242, %c6_243, %c0_244, %c0_245] : memref<1x16x16x4xf32, #tpu.memory_space<vmem>>, vector<1x1x16x4xf32>
    %232 = vector.shape_cast %231 : vector<1x1x16x4xf32> to vector<16x4xf32>
    %233 = vector.shape_cast %230 : vector<16x4xf32> to vector<1x1x16x4xf32>
    tpu.vector_store %arg6[%c0_242, %c6_243, %c0_244, %c0_245], %233 {strides = array<i32>} : memref<1x16x16x4xf32, #tpu.memory_space<vmem>>, vector<1x1x16x4xf32>,
    %234 = vector.extract_strided_slice %170 {offsets = [168, 0], sizes = [16, 4], strides = [1, 1]} : vector<384x4xf32> to vector<16x4xf32>
    %c0_246 = arith.constant 0 : index
    %c7_247 = arith.constant 7 : index
    %c0_248 = arith.constant 0 : index
    %c0_249 = arith.constant 0 : index
    %235 = vector.load %arg1[%c0_246, %c7_247, %c0_248, %c0_249] : memref<1x16x16x4xf32, #tpu.memory_space<vmem>>, vector<1x1x16x4xf32>
    %236 = vector.shape_cast %235 : vector<1x1x16x4xf32> to vector<16x4xf32>
    %237 = arith.addf %234, %236 : vector<16x4xf32>
    %cst_250 = arith.constant 0.000000e+00 : f32
    %238 = vector.broadcast %cst_250 : f32 to vector<16x4xf32>
    %239 = arith.maximumf %237, %238 : vector<16x4xf32>
    %c0_251 = arith.constant 0 : index
    %c7_252 = arith.constant 7 : index
    %c0_253 = arith.constant 0 : index
    %c0_254 = arith.constant 0 : index
    %240 = vector.load %arg6[%c0_251, %c7_252, %c0_253, %c0_254] : memref<1x16x16x4xf32, #tpu.memory_space<vmem>>, vector<1x1x16x4xf32>
    %241 = vector.shape_cast %240 : vector<1x1x16x4xf32> to vector<16x4xf32>
    %242 = vector.shape_cast %239 : vector<16x4xf32> to vector<1x1x16x4xf32>
    tpu.vector_store %arg6[%c0_251, %c7_252, %c0_253, %c0_254], %242 {strides = array<i32>} : memref<1x16x16x4xf32, #tpu.memory_space<vmem>>, vector<1x1x16x4xf32>,
    %243 = vector.extract_strided_slice %170 {offsets = [192, 0], sizes = [16, 4], strides = [1, 1]} : vector<384x4xf32> to vector<16x4xf32>
    %c0_255 = arith.constant 0 : index
    %c8_256 = arith.constant 8 : index
    %c0_257 = arith.constant 0 : index
    %c0_258 = arith.constant 0 : index
    %244 = vector.load %arg1[%c0_255, %c8_256, %c0_257, %c0_258] : memref<1x16x16x4xf32, #tpu.memory_space<vmem>>, vector<1x1x16x4xf32>
    %245 = vector.shape_cast %244 : vector<1x1x16x4xf32> to vector<16x4xf32>
    %246 = arith.addf %243, %245 : vector<16x4xf32>
    %cst_259 = arith.constant 0.000000e+00 : f32
    %247 = vector.broadcast %cst_259 : f32 to vector<16x4xf32>
    %248 = arith.maximumf %246, %247 : vector<16x4xf32>
    %c0_260 = arith.constant 0 : index
    %c8_261 = arith.constant 8 : index
    %c0_262 = arith.constant 0 : index
    %c0_263 = arith.constant 0 : index
    %249 = vector.load %arg6[%c0_260, %c8_261, %c0_262, %c0_263] : memref<1x16x16x4xf32, #tpu.memory_space<vmem>>, vector<1x1x16x4xf32>
    %250 = vector.shape_cast %249 : vector<1x1x16x4xf32> to vector<16x4xf32>
    %251 = vector.shape_cast %248 : vector<16x4xf32> to vector<1x1x16x4xf32>
    tpu.vector_store %arg6[%c0_260, %c8_261, %c0_262, %c0_263], %251 {strides = array<i32>} : memref<1x16x16x4xf32, #tpu.memory_space<vmem>>, vector<1x1x16x4xf32>,
    %252 = vector.extract_strided_slice %170 {offsets = [216, 0], sizes = [16, 4], strides = [1, 1]} : vector<384x4xf32> to vector<16x4xf32>
    %c0_264 = arith.constant 0 : index
    %c9_265 = arith.constant 9 : index
    %c0_266 = arith.constant 0 : index
    %c0_267 = arith.constant 0 : index
    %253 = vector.load %arg1[%c0_264, %c9_265, %c0_266, %c0_267] : memref<1x16x16x4xf32, #tpu.memory_space<vmem>>, vector<1x1x16x4xf32>
    %254 = vector.shape_cast %253 : vector<1x1x16x4xf32> to vector<16x4xf32>
    %255 = arith.addf %252, %254 : vector<16x4xf32>
    %cst_268 = arith.constant 0.000000e+00 : f32
    %256 = vector.broadcast %cst_268 : f32 to vector<16x4xf32>
    %257 = arith.maximumf %255, %256 : vector<16x4xf32>
    %c0_269 = arith.constant 0 : index
    %c9_270 = arith.constant 9 : index
    %c0_271 = arith.constant 0 : index
    %c0_272 = arith.constant 0 : index
    %258 = vector.load %arg6[%c0_269, %c9_270, %c0_271, %c0_272] : memref<1x16x16x4xf32, #tpu.memory_space<vmem>>, vector<1x1x16x4xf32>
    %259 = vector.shape_cast %258 : vector<1x1x16x4xf32> to vector<16x4xf32>
    %260 = vector.shape_cast %257 : vector<16x4xf32> to vector<1x1x16x4xf32>
    tpu.vector_store %arg6[%c0_269, %c9_270, %c0_271, %c0_272], %260 {strides = array<i32>} : memref<1x16x16x4xf32, #tpu.memory_space<vmem>>, vector<1x1x16x4xf32>,
    %261 = vector.extract_strided_slice %170 {offsets = [240, 0], sizes = [16, 4], strides = [1, 1]} : vector<384x4xf32> to vector<16x4xf32>
    %c0_273 = arith.constant 0 : index
    %c10_274 = arith.constant 10 : index
    %c0_275 = arith.constant 0 : index
    %c0_276 = arith.constant 0 : index
    %262 = vector.load %arg1[%c0_273, %c10_274, %c0_275, %c0_276] : memref<1x16x16x4xf32, #tpu.memory_space<vmem>>, vector<1x1x16x4xf32>
    %263 = vector.shape_cast %262 : vector<1x1x16x4xf32> to vector<16x4xf32>
    %264 = arith.addf %261, %263 : vector<16x4xf32>
    %cst_277 = arith.constant 0.000000e+00 : f32
    %265 = vector.broadcast %cst_277 : f32 to vector<16x4xf32>
    %266 = arith.maximumf %264, %265 : vector<16x4xf32>
    %c0_278 = arith.constant 0 : index
    %c10_279 = arith.constant 10 : index
    %c0_280 = arith.constant 0 : index
    %c0_281 = arith.constant 0 : index
    %267 = vector.load %arg6[%c0_278, %c10_279, %c0_280, %c0_281] : memref<1x16x16x4xf32, #tpu.memory_space<vmem>>, vector<1x1x16x4xf32>
    %268 = vector.shape_cast %267 : vector<1x1x16x4xf32> to vector<16x4xf32>
    %269 = vector.shape_cast %266 : vector<16x4xf32> to vector<1x1x16x4xf32>
    tpu.vector_store %arg6[%c0_278, %c10_279, %c0_280, %c0_281], %269 {strides = array<i32>} : memref<1x16x16x4xf32, #tpu.memory_space<vmem>>, vector<1x1x16x4xf32>,
    %270 = vector.extract_strided_slice %170 {offsets = [264, 0], sizes = [16, 4], strides = [1, 1]} : vector<384x4xf32> to vector<16x4xf32>
    %c0_282 = arith.constant 0 : index
    %c11_283 = arith.constant 11 : index
    %c0_284 = arith.constant 0 : index
    %c0_285 = arith.constant 0 : index
    %271 = vector.load %arg1[%c0_282, %c11_283, %c0_284, %c0_285] : memref<1x16x16x4xf32, #tpu.memory_space<vmem>>, vector<1x1x16x4xf32>
    %272 = vector.shape_cast %271 : vector<1x1x16x4xf32> to vector<16x4xf32>
    %273 = arith.addf %270, %272 : vector<16x4xf32>
    %cst_286 = arith.constant 0.000000e+00 : f32
    %274 = vector.broadcast %cst_286 : f32 to vector<16x4xf32>
    %275 = arith.maximumf %273, %274 : vector<16x4xf32>
    %c0_287 = arith.constant 0 : index
    %c11_288 = arith.constant 11 : index
    %c0_289 = arith.constant 0 : index
    %c0_290 = arith.constant 0 : index
    %276 = vector.load %arg6[%c0_287, %c11_288, %c0_289, %c0_290] : memref<1x16x16x4xf32, #tpu.memory_space<vmem>>, vector<1x1x16x4xf32>
    %277 = vector.shape_cast %276 : vector<1x1x16x4xf32> to vector<16x4xf32>
    %278 = vector.shape_cast %275 : vector<16x4xf32> to vector<1x1x16x4xf32>
    tpu.vector_store %arg6[%c0_287, %c11_288, %c0_289, %c0_290], %278 {strides = array<i32>} : memref<1x16x16x4xf32, #tpu.memory_space<vmem>>, vector<1x1x16x4xf32>,
    %279 = vector.extract_strided_slice %170 {offsets = [288, 0], sizes = [16, 4], strides = [1, 1]} : vector<384x4xf32> to vector<16x4xf32>
    %c0_291 = arith.constant 0 : index
    %c12_292 = arith.constant 12 : index
    %c0_293 = arith.constant 0 : index
    %c0_294 = arith.constant 0 : index
    %280 = vector.load %arg1[%c0_291, %c12_292, %c0_293, %c0_294] : memref<1x16x16x4xf32, #tpu.memory_space<vmem>>, vector<1x1x16x4xf32>
    %281 = vector.shape_cast %280 : vector<1x1x16x4xf32> to vector<16x4xf32>
    %282 = arith.addf %279, %281 : vector<16x4xf32>
    %cst_295 = arith.constant 0.000000e+00 : f32
    %283 = vector.broadcast %cst_295 : f32 to vector<16x4xf32>
    %284 = arith.maximumf %282, %283 : vector<16x4xf32>
    %c0_296 = arith.constant 0 : index
    %c12_297 = arith.constant 12 : index
    %c0_298 = arith.constant 0 : index
    %c0_299 = arith.constant 0 : index
    %285 = vector.load %arg6[%c0_296, %c12_297, %c0_298, %c0_299] : memref<1x16x16x4xf32, #tpu.memory_space<vmem>>, vector<1x1x16x4xf32>
    %286 = vector.shape_cast %285 : vector<1x1x16x4xf32> to vector<16x4xf32>
    %287 = vector.shape_cast %284 : vector<16x4xf32> to vector<1x1x16x4xf32>
    tpu.vector_store %arg6[%c0_296, %c12_297, %c0_298, %c0_299], %287 {strides = array<i32>} : memref<1x16x16x4xf32, #tpu.memory_space<vmem>>, vector<1x1x16x4xf32>,
    %288 = vector.extract_strided_slice %170 {offsets = [312, 0], sizes = [16, 4], strides = [1, 1]} : vector<384x4xf32> to vector<16x4xf32>
    %c0_300 = arith.constant 0 : index
    %c13_301 = arith.constant 13 : index
    %c0_302 = arith.constant 0 : index
    %c0_303 = arith.constant 0 : index
    %289 = vector.load %arg1[%c0_300, %c13_301, %c0_302, %c0_303] : memref<1x16x16x4xf32, #tpu.memory_space<vmem>>, vector<1x1x16x4xf32>
    %290 = vector.shape_cast %289 : vector<1x1x16x4xf32> to vector<16x4xf32>
    %291 = arith.addf %288, %290 : vector<16x4xf32>
    %cst_304 = arith.constant 0.000000e+00 : f32
    %292 = vector.broadcast %cst_304 : f32 to vector<16x4xf32>
    %293 = arith.maximumf %291, %292 : vector<16x4xf32>
    %c0_305 = arith.constant 0 : index
    %c13_306 = arith.constant 13 : index
    %c0_307 = arith.constant 0 : index
    %c0_308 = arith.constant 0 : index
    %294 = vector.load %arg6[%c0_305, %c13_306, %c0_307, %c0_308] : memref<1x16x16x4xf32, #tpu.memory_space<vmem>>, vector<1x1x16x4xf32>
    %295 = vector.shape_cast %294 : vector<1x1x16x4xf32> to vector<16x4xf32>
    %296 = vector.shape_cast %293 : vector<16x4xf32> to vector<1x1x16x4xf32>
    tpu.vector_store %arg6[%c0_305, %c13_306, %c0_307, %c0_308], %296 {strides = array<i32>} : memref<1x16x16x4xf32, #tpu.memory_space<vmem>>, vector<1x1x16x4xf32>,
    %297 = vector.extract_strided_slice %170 {offsets = [336, 0], sizes = [16, 4], strides = [1, 1]} : vector<384x4xf32> to vector<16x4xf32>
    %c0_309 = arith.constant 0 : index
    %c14_310 = arith.constant 14 : index
    %c0_311 = arith.constant 0 : index
    %c0_312 = arith.constant 0 : index
    %298 = vector.load %arg1[%c0_309, %c14_310, %c0_311, %c0_312] : memref<1x16x16x4xf32, #tpu.memory_space<vmem>>, vector<1x1x16x4xf32>
    %299 = vector.shape_cast %298 : vector<1x1x16x4xf32> to vector<16x4xf32>
    %300 = arith.addf %297, %299 : vector<16x4xf32>
    %cst_313 = arith.constant 0.000000e+00 : f32
    %301 = vector.broadcast %cst_313 : f32 to vector<16x4xf32>
    %302 = arith.maximumf %300, %301 : vector<16x4xf32>
    %c0_314 = arith.constant 0 : index
    %c14_315 = arith.constant 14 : index
    %c0_316 = arith.constant 0 : index
    %c0_317 = arith.constant 0 : index
    %303 = vector.load %arg6[%c0_314, %c14_315, %c0_316, %c0_317] : memref<1x16x16x4xf32, #tpu.memory_space<vmem>>, vector<1x1x16x4xf32>
    %304 = vector.shape_cast %303 : vector<1x1x16x4xf32> to vector<16x4xf32>
    %305 = vector.shape_cast %302 : vector<16x4xf32> to vector<1x1x16x4xf32>
    tpu.vector_store %arg6[%c0_314, %c14_315, %c0_316, %c0_317], %305 {strides = array<i32>} : memref<1x16x16x4xf32, #tpu.memory_space<vmem>>, vector<1x1x16x4xf32>,
    %306 = vector.extract_strided_slice %170 {offsets = [360, 0], sizes = [16, 4], strides = [1, 1]} : vector<384x4xf32> to vector<16x4xf32>
    %c0_318 = arith.constant 0 : index
    %c15_319 = arith.constant 15 : index
    %c0_320 = arith.constant 0 : index
    %c0_321 = arith.constant 0 : index
    %307 = vector.load %arg1[%c0_318, %c15_319, %c0_320, %c0_321] : memref<1x16x16x4xf32, #tpu.memory_space<vmem>>, vector<1x1x16x4xf32>
    %308 = vector.shape_cast %307 : vector<1x1x16x4xf32> to vector<16x4xf32>
    %309 = arith.addf %306, %308 : vector<16x4xf32>
    %cst_322 = arith.constant 0.000000e+00 : f32
    %310 = vector.broadcast %cst_322 : f32 to vector<16x4xf32>
    %311 = arith.maximumf %309, %310 : vector<16x4xf32>
    %c0_323 = arith.constant 0 : index
    %c15_324 = arith.constant 15 : index
    %c0_325 = arith.constant 0 : index
    %c0_326 = arith.constant 0 : index
    %312 = vector.load %arg6[%c0_323, %c15_324, %c0_325, %c0_326] : memref<1x16x16x4xf32, #tpu.memory_space<vmem>>, vector<1x1x16x4xf32>
    %313 = vector.shape_cast %312 : vector<1x1x16x4xf32> to vector<16x4xf32>
    %314 = vector.shape_cast %311 : vector<16x4xf32> to vector<1x1x16x4xf32>
    tpu.vector_store %arg6[%c0_323, %c15_324, %c0_325, %c0_326], %314 {strides = array<i32>} : memref<1x16x16x4xf32, #tpu.memory_space<vmem>>, vector<1x1x16x4xf32>,
    return
  }
  func.func @transform_0(%arg0: i32) -> (i32, i32, i32, i32) {
    %c0_i32 = arith.constant 0 : i32
    %c0_i32_0 = arith.constant 0 : i32
    %c0_i32_1 = arith.constant 0 : i32
    %c0_i32_2 = arith.constant 0 : i32
    return %arg0, %c0_i32, %c0_i32_0, %c0_i32_1 : i32, i32, i32, i32
  }
  func.func @transform_1(%arg0: i32) -> (i32, i32) {
    %c0_i32 = arith.constant 0 : i32
    %c0_i32_0 = arith.constant 0 : i32
    %c0_i32_1 = arith.constant 0 : i32
    return %c0_i32, %c0_i32_0 : i32, i32
  }
  func.func @transform_2(%arg0: i32) -> (i32, i32) {
    %c0_i32 = arith.constant 0 : i32
    %c0_i32_0 = arith.constant 0 : i32
    %c0_i32_1 = arith.constant 0 : i32
    return %c0_i32, %c0_i32_0 : i32, i32
  }
  func.func @transform_3(%arg0: i32) -> (i32, i32) {
    %c0_i32 = arith.constant 0 : i32
    %c0_i32_0 = arith.constant 0 : i32
    %c0_i32_1 = arith.constant 0 : i32
    return %c0_i32, %c0_i32_0 : i32, i32
  }
  func.func @transform_4(%arg0: i32) -> (i32, i32) {
    %c0_i32 = arith.constant 0 : i32
    %c0_i32_0 = arith.constant 0 : i32
    %c0_i32_1 = arith.constant 0 : i32
    return %c0_i32, %c0_i32_0 : i32, i32
  }
  func.func @transform_5(%arg0: i32) -> (i32, i32, i32, i32) {
    %c0_i32 = arith.constant 0 : i32
    %c0_i32_0 = arith.constant 0 : i32
    %c0_i32_1 = arith.constant 0 : i32
    %c0_i32_2 = arith.constant 0 : i32
    return %arg0, %c0_i32, %c0_i32_0, %c0_i32_1 : i32, i32, i32, i32
  }
}

</mosaic_0001>

<llo_original>
// kernel: tpu_custom_call.1
$region0: #{tpu_custom_call.1}
  #allocation0 [shape = 'u32[]', space=smem, size = 0x4, offset = 0x4, fixed_abs, tag = 'smem constant byte address 0x4 - core index']
  #allocation1 [shape = 'u32[144,128]{1,0:T(1,128)}', space=vmem, size = 0x12000, scoped, tag = 'internal scratch']
  #allocation2 [shape = 'bf16[448,12]{1,0:T(8,128)(2,1)}', space=vmem, size = 0x1c000, scoped, tag = 'scratch operand']
  %s0 = inlined_call_operand.vmem [shape: f32[2,16,16,4], index: 0, kind: input, shape index: {}]
  %s1 = inlined_call_operand.vmem [shape: bf16[36,4], index: 1, kind: input, shape index: {}]
  %s2 = inlined_call_operand.vmem [shape: bf16[36,4], index: 2, kind: input, shape index: {}]
  %s3 = inlined_call_operand.vmem [shape: f32[1,4], index: 3, kind: input, shape index: {}]
  %s4 = inlined_call_operand.vmem [shape: f32[1,4], index: 4, kind: input, shape index: {}]
  %s5 = inlined_call_operand.vmem [shape: f32[2,16,16,4], index: 5, kind: output, shape index: {}]
  %s6 = sld [smem:[#allocation0]]
  $region53: #{tpu_custom_call.1} parent=0
    _
  %s8 = ssub.s32 1, %s6
  %s9 = scalar_select 0, %s8, %s6
  loop: start=0, step=1, limit=4
  $region2: #{tpu_custom_call.1} parent=0 // loop_pre_header
    _
  $region3: #{tpu_custom_call.1} parent=0 // loop_header
    %s11 = sphi 0, %s15
    %p12 = scmp.ge.s32.totalorder %s11, 4
    %s21 = sphi 0, %s23
    %s24 = sphi 0, %s21
    %s25 = sphi 0, %s24
    %s41 = sphi 0, %s25
    %s45 = sphi 0, %s45
    %s47 = sphi 0, %s45
    %s48 = sphi 0, %s47
    %s62 = sphi 0, %s48
    %s66 = sphi 0, %s66
    %s68 = sphi 0, %s66
    %s69 = sphi 0, %s68
    %s83 = sphi 0, %s69
    %s87 = sphi 0, %s87
    %s89 = sphi 0, %s87
    %s90 = sphi 0, %s89
    %s104 = sphi 0, %s90
    %s108 = sphi 0, %s108
    %s110 = sphi 0, %s108
    %s111 = sphi 0, %s110
    %s125 = sphi 0, %s111
    %s131 = sphi 0, %s133
    %s134 = sphi 0, %s131
    %s135 = sphi 0, %s134
    %s151 = sphi 0, %s135
  $region4: #{tpu_custom_call.1} parent=0 // loop_header_branch
    %14 = sbr.rel (%p12) target = $region8
  $region5: #{tpu_custom_call.1} parent=0 // loop_body
    %s16 = ssub.s32 %s11, 1
    %s17 = ssub.s32 %s11, 2
    %s18 = sadd.s32 %s11, 1
    %s19 = ssub.s32 %s11, %s18
    %p20 = scmp.eq.s32.totalorder %s19, 0
    %s22 = sadd.s32 %s21, 1
    %s23 = scalar_select %p20, %s21, %s22
    %p26 = pneg %p20
    %p27 = scmp.eq.s32.totalorder %s11, 1
    %p28 = por %p26, %p27
    %p29 = scmp.ne.s32.totalorder %s21, %s24
    %p30 = scmp.eq.s32.totalorder %s11, 0
    %p31 = por %p29, %p30
    %p32 = scmp.ne.s32.totalorder %s21, %s24
    %p33 = scmp.eq.s32.totalorder %s16, 1
    %p34 = por %p32, %p33
    %p35 = scmp.ne.s32.totalorder %s24, %s25
    %p36 = scmp.eq.s32.totalorder %s16, 0
    %p37 = por %p35, %p36
    %p38 = scmp.ne.s32.totalorder %s24, %s25
    %p39 = scmp.eq.s32.totalorder %s17, 1
    %p40 = por %p38, %p39
    %p42 = scmp.ne.s32.totalorder %s25, %s41
    %p43 = scmp.eq.s32.totalorder %s17, 0
    %p44 = por %p42, %p43
    %s46 = sadd.s32 %s45, 1
    %p49 = scmp.eq.s32.totalorder %s11, 1
    %p50 = scmp.ne.s32.totalorder %s45, %s47
    %p51 = scmp.eq.s32.totalorder %s11, 0
    %p52 = por %p50, %p51
    %p53 = scmp.ne.s32.totalorder %s45, %s47
    %p54 = scmp.eq.s32.totalorder %s16, 1
    %p55 = por %p53, %p54
    %p56 = scmp.ne.s32.totalorder %s47, %s48
    %p57 = scmp.eq.s32.totalorder %s16, 0
    %p58 = por %p56, %p57
    %p59 = scmp.ne.s32.totalorder %s47, %s48
    %p60 = scmp.eq.s32.totalorder %s17, 1
    %p61 = por %p59, %p60
    %p63 = scmp.ne.s32.totalorder %s48, %s62
    %p64 = scmp.eq.s32.totalorder %s17, 0
    %p65 = por %p63, %p64
    %s67 = sadd.s32 %s66, 1
    %p70 = scmp.eq.s32.totalorder %s11, 1
    %p71 = scmp.ne.s32.totalorder %s66, %s68
    %p72 = scmp.eq.s32.totalorder %s11, 0
    %p73 = por %p71, %p72
    %p74 = scmp.ne.s32.totalorder %s66, %s68
    %p75 = scmp.eq.s32.totalorder %s16, 1
    %p76 = por %p74, %p75
    %p77 = scmp.ne.s32.totalorder %s68, %s69
    %p78 = scmp.eq.s32.totalorder %s16, 0
    %p79 = por %p77, %p78
    %p80 = scmp.ne.s32.totalorder %s68, %s69
    %p81 = scmp.eq.s32.totalorder %s17, 1
    %p82 = por %p80, %p81
    %p84 = scmp.ne.s32.totalorder %s69, %s83
    %p85 = scmp.eq.s32.totalorder %s17, 0
    %p86 = por %p84, %p85
    %s88 = sadd.s32 %s87, 1
    %p91 = scmp.eq.s32.totalorder %s11, 1
    %p92 = scmp.ne.s32.totalorder %s87, %s89
    %p93 = scmp.eq.s32.totalorder %s11, 0
    %p94 = por %p92, %p93
    %p95 = scmp.ne.s32.totalorder %s87, %s89
    %p96 = scmp.eq.s32.totalorder %s16, 1
    %p97 = por %p95, %p96
    %p98 = scmp.ne.s32.totalorder %s89, %s90
    %p99 = scmp.eq.s32.totalorder %s16, 0
    %p100 = por %p98, %p99
    %p101 = scmp.ne.s32.totalorder %s89, %s90
    %p102 = scmp.eq.s32.totalorder %s17, 1
    %p103 = por %p101, %p102
    %p105 = scmp.ne.s32.totalorder %s90, %s104
    %p106 = scmp.eq.s32.totalorder %s17, 0
    %p107 = por %p105, %p106
    %s109 = sadd.s32 %s108, 1
    %p112 = scmp.eq.s32.totalorder %s11, 1
    %p113 = scmp.ne.s32.totalorder %s108, %s110
    %p114 = scmp.eq.s32.totalorder %s11, 0
    %p115 = por %p113, %p114
    %p116 = scmp.ne.s32.totalorder %s108, %s110
    %p117 = scmp.eq.s32.totalorder %s16, 1
    %p118 = por %p116, %p117
    %p119 = scmp.ne.s32.totalorder %s110, %s111
    %p120 = scmp.eq.s32.totalorder %s16, 0
    %p121 = por %p119, %p120
    %p122 = scmp.ne.s32.totalorder %s110, %s111
    %p123 = scmp.eq.s32.totalorder %s17, 1
    %p124 = por %p122, %p123
    %p126 = scmp.ne.s32.totalorder %s111, %s125
    %p127 = scmp.eq.s32.totalorder %s17, 0
    %p128 = por %p126, %p127
    %s129 = ssub.s32 %s11, %s18
    %p130 = scmp.eq.s32.totalorder %s129, 0
    %s132 = sadd.s32 %s131, 1
    %s133 = scalar_select %p130, %s131, %s132
    %p136 = pneg %p130
    %p137 = scmp.eq.s32.totalorder %s11, 1
    %p138 = por %p136, %p137
    %p139 = scmp.ne.s32.totalorder %s131, %s134
    %p140 = scmp.eq.s32.totalorder %s11, 0
    %p141 = por %p139, %p140
    %p142 = scmp.ne.s32.totalorder %s131, %s134
    %p143 = scmp.eq.s32.totalorder %s16, 1
    %p144 = por %p142, %p143
    %p145 = scmp.ne.s32.totalorder %s134, %s135
    %p146 = scmp.eq.s32.totalorder %s16, 0
    %p147 = por %p145, %p146
    %p148 = scmp.ne.s32.totalorder %s134, %s135
    %p149 = scmp.eq.s32.totalorder %s17, 1
    %p150 = por %p148, %p149
    %p152 = scmp.ne.s32.totalorder %s135, %s151
    %p153 = scmp.eq.s32.totalorder %s17, 0
    %p154 = por %p152, %p153
    %p155 = scmp.le.s32.totalorder 1, %s11
    %p156 = scmp.lt.s32.totalorder %s11, 3
    %p157 = pnand %p155, %p156
    %p158 = pneg %p157
    // Predicated region
    $region9: #{tpu_custom_call.1} parent=5 // pred_check
      _
    $region10: #{tpu_custom_call.1} parent=5 // pred_check_branch
      %160 = sbr.rel (%p157) target = $region12
    $region11: #{tpu_custom_call.1} parent=5 // pred_region
      %s161 = ssub.s32 %s11, 1
      // Predicated region
      $region13: #{tpu_custom_call.1} parent=11 // pred_check
        %p162 = pneg %p58
      $region14: #{tpu_custom_call.1} parent=11 // pred_check_branch
        %164 = sbr.rel (%p162) target = $region16
      $region15: #{tpu_custom_call.1} parent=11 // pred_region
        _
      $region16: #{tpu_custom_call.1} parent=11 // pred_fallthru
        _
      // Predicated region
      $region17: #{tpu_custom_call.1} parent=11 // pred_check
        %p165 = pneg %p79
      $region18: #{tpu_custom_call.1} parent=11 // pred_check_branch
        %167 = sbr.rel (%p165) target = $region20
      $region19: #{tpu_custom_call.1} parent=11 // pred_region
        _
      $region20: #{tpu_custom_call.1} parent=11 // pred_fallthru
        _
      // Predicated region
      $region21: #{tpu_custom_call.1} parent=11 // pred_check
        %p168 = pneg %p100
      $region22: #{tpu_custom_call.1} parent=11 // pred_check_branch
        %170 = sbr.rel (%p168) target = $region24
      $region23: #{tpu_custom_call.1} parent=11 // pred_region
        _
      $region24: #{tpu_custom_call.1} parent=11 // pred_fallthru
        _
      // Predicated region
      $region25: #{tpu_custom_call.1} parent=11 // pred_check
        %p171 = pneg %p121
      $region26: #{tpu_custom_call.1} parent=11 // pred_check_branch
        %173 = sbr.rel (%p171) target = $region28
      $region27: #{tpu_custom_call.1} parent=11 // pred_region
        _
      $region28: #{tpu_custom_call.1} parent=11 // pred_fallthru
        _
    $region12: #{tpu_custom_call.1} parent=5 // pred_fallthru
      _
    %p174 = scmp.lt.s32.totalorder %s11, 2
    // Predicated region
    $region29: #{tpu_custom_call.1} parent=5 // pred_check
      %p175 = pneg %p174
    $region30: #{tpu_custom_call.1} parent=5 // pred_check_branch
      %177 = sbr.rel (%p175) target = $region32
    $region31: #{tpu_custom_call.1} parent=5 // pred_region
      // Predicated region
      $region33: #{tpu_custom_call.1} parent=31 // pred_check
        %p178 = pneg %p31
      $region34: #{tpu_custom_call.1} parent=31 // pred_check_branch
        %180 = sbr.rel (%p178) target = $region36
      $region35: #{tpu_custom_call.1} parent=31 // pred_region
        %p181 = scmp.lt.s32.totalorder %s11, 1
        %s182 = scalar_select %p181, %s11, 1
        %s183 = smul.addr %s182, 32
        %s184 = smul.addr %s183, 8
        %s185 = scalar_lea.vmem %s0, %s184
      $region36: #{tpu_custom_call.1} parent=31 // pred_fallthru
        _
    $region32: #{tpu_custom_call.1} parent=5 // pred_fallthru
      _
    %p186 = scmp.le.s32.totalorder 1, %s11
    %p187 = scmp.lt.s32.totalorder %s11, 3
    %p188 = pnand %p186, %p187
    %p189 = pneg %p188
    // Predicated region
    $region37: #{tpu_custom_call.1} parent=5 // pred_check
      _
    $region38: #{tpu_custom_call.1} parent=5 // pred_check_branch
      %191 = sbr.rel (%p188) target = $region40
    $region39: #{tpu_custom_call.1} parent=5 // pred_region
      %s192 = ssub.s32 %s11, 1
      %p193 = scmp.lt.s32.totalorder %s16, 1
      %s194 = scalar_select %p193, %s16, 1
      %s195 = smul.addr %s194, 32
      %s196 = smul.addr %s195, 8
      %s197 = scalar_lea.vmem %s0, %s196
      %p198 = pneg %p37
      %p199 = pneg %p34
      %p200 = pneg %p58
      %p201 = pneg %p55
      %p202 = pneg %p79
      %p203 = pneg %p76
      %p204 = pneg %p100
      %p205 = pneg %p97
      %p206 = pneg %p121
      %p207 = pneg %p118
      %p208 = pneg %p147
      %p209 = pneg %p144
      %p210 = scmp.lt.s32.totalorder %s16, 1
      %s211 = scalar_select %p210, %s16, 1
      %s212 = smul.addr %s211, 32
      %s213 = smul.addr %s212, 8
      %s214 = scalar_lea.vmem %s5, %s213
      %p215 = scmp.lt.s32.totalorder %s16, 1
      %s216 = scalar_select %p215, %s16, 1
      %s217 = smul.addr %s216, 32
      %s218 = smul.addr %s217, 8
      %s219 = scalar_lea.vmem %s0, %s218
      %p220 = scmp.lt.s32.totalorder %s16, 1
      %s221 = scalar_select %p220, %s16, 1
      %s222 = smul.addr %s221, 32
      %s223 = smul.addr %s222, 8
      %s224 = scalar_lea.vmem %s5, %s223
      %vm226 = vcmask 93184
      %227 = vst.msk [vmem:[#allocation2] sm:$0xf] %vm226, 0
      %228 = vst.msk [vmem:[#allocation2 + $0x4] sm:$0xf] %vm226, 0
      %229 = vst.msk [vmem:[#allocation2 + $0x8] sm:$0xf] %vm226, 0
      %230 = vst.msk [vmem:[#allocation2 + $0xc] sm:$0xf] %vm226, 0
      %231 = vst.msk [vmem:[#allocation2 + $0xcc] sm:$0xf] %vm226, 0
      %232 = vst.msk [vmem:[#allocation2 + $0xd0] sm:$0xf] %vm226, 0
      %233 = vst.msk [vmem:[#allocation2 + $0xd4] sm:$0xf] %vm226, 0
      %234 = vst.msk [vmem:[#allocation2 + $0xd8] sm:$0xf] %vm226, 0
      %235 = vst.msk [vmem:[#allocation2 + $0xdc] sm:$0xf] %vm226, 0
      %236 = vst.msk [vmem:[#allocation2 + $0x18] sm:$0xf] %vm226, 0
      %v237 = vld [vmem:[%s219] sm:$0xff]
      %v238 = vld [vmem:[%s219 + $0x8] sm:$0xff]
      %v239 = vpack.c.bf16 %v238, %v237
      %v241 = vunpack.c.l.b16 %v239
      %v242 = vunpack.c.h.b16 %v239
      %v243 = vpack.c.b16 %v241, %v241
      %v244 = vpack.c.b16 %v242, %v242
      %245 = vrot.lane.b32.xlu0 %v243, 4
      %v246 = vpop.permute.xlu0 %245
      %247 = vrot.lane.b32.xlu0 %v244, 4
      %v248 = vpop.permute.xlu0 %247
      %vm251 = vcmask 60448
      %252 = vst.msk [vmem:[#allocation2 + $0x10] sm:$0xf] %vm251, %v246
      %253 = vst.msk [vmem:[#allocation2 + $0x14] sm:$0xf] %vm251, %v248
      %254 = vst.msk [vmem:[#allocation2 + $0x24] sm:$0xf] %vm226, 0
      %s255 = scalar_lea.vmem %s219, 16
      %v256 = vld [vmem:[%s255] sm:$0xff]
      %v257 = vld [vmem:[%s255 + $0x8] sm:$0xff]
      %v258 = vpack.c.bf16 %v257, %v256
      %v260 = vunpack.c.l.b16 %v258
      %v261 = vunpack.c.h.b16 %v258
      %v262 = vpack.c.b16 %v260, %v260
      %v263 = vpack.c.b16 %v261, %v261
      %264 = vrot.lane.b32.xlu0 %v262, 4
      %v265 = vpop.permute.xlu0 %264
      %266 = vrot.lane.b32.xlu0 %v263, 4
      %v267 = vpop.permute.xlu0 %266
      %270 = vst.msk [vmem:[#allocation2 + $0x1c] sm:$0xf] %vm251, %v265
      %271 = vst.msk [vmem:[#allocation2 + $0x20] sm:$0xf] %vm251, %v267
      %272 = vst.msk [vmem:[#allocation2 + $0x30] sm:$0xf] %vm226, 0
      %s273 = scalar_lea.vmem %s219, 32
      %v274 = vld [vmem:[%s273] sm:$0xff]
      %v275 = vld [vmem:[%s273 + $0x8] sm:$0xff]
      %v276 = vpack.c.bf16 %v275, %v274
      %v278 = vunpack.c.l.b16 %v276
      %v279 = vunpack.c.h.b16 %v276
      %v280 = vpack.c.b16 %v278, %v278
      %v281 = vpack.c.b16 %v279, %v279
      %282 = vrot.lane.b32.xlu0 %v280, 4
      %v283 = vpop.permute.xlu0 %282
      %284 = vrot.lane.b32.xlu0 %v281, 4
      %v285 = vpop.permute.xlu0 %284
      %288 = vst.msk [vmem:[#allocation2 + $0x28] sm:$0xf] %vm251, %v283
      %289 = vst.msk [vmem:[#allocation2 + $0x2c] sm:$0xf] %vm251, %v285
      %290 = vst.msk [vmem:[#allocation2 + $0x3c] sm:$0xf] %vm226, 0
      %s291 = scalar_lea.vmem %s219, 48
      %v292 = vld [vmem:[%s291] sm:$0xff]
      %v293 = vld [vmem:[%s291 + $0x8] sm:$0xff]
      %v294 = vpack.c.bf16 %v293, %v292
      %v296 = vunpack.c.l.b16 %v294
      %v297 = vunpack.c.h.b16 %v294
      %v298 = vpack.c.b16 %v296, %v296
      %v299 = vpack.c.b16 %v297, %v297
      %300 = vrot.lane.b32.xlu0 %v298, 4
      %v301 = vpop.permute.xlu0 %300
      %302 = vrot.lane.b32.xlu0 %v299, 4
      %v303 = vpop.permute.xlu0 %302
      %306 = vst.msk [vmem:[#allocation2 + $0x34] sm:$0xf] %vm251, %v301
      %307 = vst.msk [vmem:[#allocation2 + $0x38] sm:$0xf] %vm251, %v303
      %308 = vst.msk [vmem:[#allocation2 + $0x48] sm:$0xf] %vm226, 0
      %s309 = scalar_lea.vmem %s219, 64
      %v310 = vld [vmem:[%s309] sm:$0xff]
      %v311 = vld [vmem:[%s309 + $0x8] sm:$0xff]
      %v312 = vpack.c.bf16 %v311, %v310
      %v314 = vunpack.c.l.b16 %v312
      %v315 = vunpack.c.h.b16 %v312
      %v316 = vpack.c.b16 %v314, %v314
      %v317 = vpack.c.b16 %v315, %v315
      %318 = vrot.lane.b32.xlu0 %v316, 4
      %v319 = vpop.permute.xlu0 %318
      %320 = vrot.lane.b32.xlu0 %v317, 4
      %v321 = vpop.permute.xlu0 %320
      %324 = vst.msk [vmem:[#allocation2 + $0x40] sm:$0xf] %vm251, %v319
      %325 = vst.msk [vmem:[#allocation2 + $0x44] sm:$0xf] %vm251, %v321
      %326 = vst.msk [vmem:[#allocation2 + $0x54] sm:$0xf] %vm226, 0
      %s327 = scalar_lea.vmem %s219, 80
      %v328 = vld [vmem:[%s327] sm:$0xff]
      %v329 = vld [vmem:[%s327 + $0x8] sm:$0xff]
      %v330 = vpack.c.bf16 %v329, %v328
      %v332 = vunpack.c.l.b16 %v330
      %v333 = vunpack.c.h.b16 %v330
      %v334 = vpack.c.b16 %v332, %v332
      %v335 = vpack.c.b16 %v333, %v333
      %336 = vrot.lane.b32.xlu0 %v334, 4
      %v337 = vpop.permute.xlu0 %336
      %338 = vrot.lane.b32.xlu0 %v335, 4
      %v339 = vpop.permute.xlu0 %338
      %342 = vst.msk [vmem:[#allocation2 + $0x4c] sm:$0xf] %vm251, %v337
      %343 = vst.msk [vmem:[#allocation2 + $0x50] sm:$0xf] %vm251, %v339
      %344 = vst.msk [vmem:[#allocation2 + $0x60] sm:$0xf] %vm226, 0
      %s345 = scalar_lea.vmem %s219, 96
      %v346 = vld [vmem:[%s345] sm:$0xff]
      %v347 = vld [vmem:[%s345 + $0x8] sm:$0xff]
      %v348 = vpack.c.bf16 %v347, %v346
      %v350 = vunpack.c.l.b16 %v348
      %v351 = vunpack.c.h.b16 %v348
      %v352 = vpack.c.b16 %v350, %v350
      %v353 = vpack.c.b16 %v351, %v351
      %354 = vrot.lane.b32.xlu0 %v352, 4
      %v355 = vpop.permute.xlu0 %354
      %356 = vrot.lane.b32.xlu0 %v353, 4
      %v357 = vpop.permute.xlu0 %356
      %360 = vst.msk [vmem:[#allocation2 + $0x58] sm:$0xf] %vm251, %v355
      %361 = vst.msk [vmem:[#allocation2 + $0x5c] sm:$0xf] %vm251, %v357
      %362 = vst.msk [vmem:[#allocation2 + $0x6c] sm:$0xf] %vm226, 0
      %s363 = scalar_lea.vmem %s219, 112
      %v364 = vld [vmem:[%s363] sm:$0xff]
      %v365 = vld [vmem:[%s363 + $0x8] sm:$0xff]
      %v366 = vpack.c.bf16 %v365, %v364
      %v368 = vunpack.c.l.b16 %v366
      %v369 = vunpack.c.h.b16 %v366
      %v370 = vpack.c.b16 %v368, %v368
      %v371 = vpack.c.b16 %v369, %v369
      %372 = vrot.lane.b32.xlu0 %v370, 4
      %v373 = vpop.permute.xlu0 %372
      %374 = vrot.lane.b32.xlu0 %v371, 4
      %v375 = vpop.permute.xlu0 %374
      %378 = vst.msk [vmem:[#allocation2 + $0x64] sm:$0xf] %vm251, %v373
      %379 = vst.msk [vmem:[#allocation2 + $0x68] sm:$0xf] %vm251, %v375
      %380 = vst.msk [vmem:[#allocation2 + $0x78] sm:$0xf] %vm226, 0
      %s381 = scalar_lea.vmem %s219, 128
      %v382 = vld [vmem:[%s381] sm:$0xff]
      %v383 = vld [vmem:[%s381 + $0x8] sm:$0xff]
      %v384 = vpack.c.bf16 %v383, %v382
      %v386 = vunpack.c.l.b16 %v384
      %v387 = vunpack.c.h.b16 %v384
      %v388 = vpack.c.b16 %v386, %v386
      %v389 = vpack.c.b16 %v387, %v387
      %390 = vrot.lane.b32.xlu0 %v388, 4
      %v391 = vpop.permute.xlu0 %390
      %392 = vrot.lane.b32.xlu0 %v389, 4
      %v393 = vpop.permute.xlu0 %392
      %396 = vst.msk [vmem:[#allocation2 + $0x70] sm:$0xf] %vm251, %v391
      %397 = vst.msk [vmem:[#allocation2 + $0x74] sm:$0xf] %vm251, %v393
      %398 = vst.msk [vmem:[#allocation2 + $0x84] sm:$0xf] %vm226, 0
      %s399 = scalar_lea.vmem %s219, 144
      %v400 = vld [vmem:[%s399] sm:$0xff]
      %v401 = vld [vmem:[%s399 + $0x8] sm:$0xff]
      %v402 = vpack.c.bf16 %v401, %v400
      %v404 = vunpack.c.l.b16 %v402
      %v405 = vunpack.c.h.b16 %v402
      %v406 = vpack.c.b16 %v404, %v404
      %v407 = vpack.c.b16 %v405, %v405
      %408 = vrot.lane.b32.xlu0 %v406, 4
      %v409 = vpop.permute.xlu0 %408
      %410 = vrot.lane.b32.xlu0 %v407, 4
      %v411 = vpop.permute.xlu0 %410
      %414 = vst.msk [vmem:[#allocation2 + $0x7c] sm:$0xf] %vm251, %v409
      %415 = vst.msk [vmem:[#allocation2 + $0x80] sm:$0xf] %vm251, %v411
      %416 = vst.msk [vmem:[#allocation2 + $0x90] sm:$0xf] %vm226, 0
      %s417 = scalar_lea.vmem %s219, 160
      %v418 = vld [vmem:[%s417] sm:$0xff]
      %v419 = vld [vmem:[%s417 + $0x8] sm:$0xff]
      %v420 = vpack.c.bf16 %v419, %v418
      %v422 = vunpack.c.l.b16 %v420
      %v423 = vunpack.c.h.b16 %v420
      %v424 = vpack.c.b16 %v422, %v422
      %v425 = vpack.c.b16 %v423, %v423
      %426 = vrot.lane.b32.xlu0 %v424, 4
      %v427 = vpop.permute.xlu0 %426
      %428 = vrot.lane.b32.xlu0 %v425, 4
      %v429 = vpop.permute.xlu0 %428
      %432 = vst.msk [vmem:[#allocation2 + $0x88] sm:$0xf] %vm251, %v427
      %433 = vst.msk [vmem:[#allocation2 + $0x8c] sm:$0xf] %vm251, %v429
      %434 = vst.msk [vmem:[#allocation2 + $0x9c] sm:$0xf] %vm226, 0
      %s435 = scalar_lea.vmem %s219, 176
      %v436 = vld [vmem:[%s435] sm:$0xff]
      %v437 = vld [vmem:[%s435 + $0x8] sm:$0xff]
      %v438 = vpack.c.bf16 %v437, %v436
      %v440 = vunpack.c.l.b16 %v438
      %v441 = vunpack.c.h.b16 %v438
      %v442 = vpack.c.b16 %v440, %v440
      %v443 = vpack.c.b16 %v441, %v441
      %444 = vrot.lane.b32.xlu0 %v442, 4
      %v445 = vpop.permute.xlu0 %444
      %446 = vrot.lane.b32.xlu0 %v443, 4
      %v447 = vpop.permute.xlu0 %446
      %450 = vst.msk [vmem:[#allocation2 + $0x94] sm:$0xf] %vm251, %v445
      %451 = vst.msk [vmem:[#allocation2 + $0x98] sm:$0xf] %vm251, %v447
      %452 = vst.msk [vmem:[#allocation2 + $0xa8] sm:$0xf] %vm226, 0
      %s453 = scalar_lea.vmem %s219, 192
      %v454 = vld [vmem:[%s453] sm:$0xff]
      %v455 = vld [vmem:[%s453 + $0x8] sm:$0xff]
      %v456 = vpack.c.bf16 %v455, %v454
      %v458 = vunpack.c.l.b16 %v456
      %v459 = vunpack.c.h.b16 %v456
      %v460 = vpack.c.b16 %v458, %v458
      %v461 = vpack.c.b16 %v459, %v459
      %462 = vrot.lane.b32.xlu0 %v460, 4
      %v463 = vpop.permute.xlu0 %462
      %464 = vrot.lane.b32.xlu0 %v461, 4
      %v465 = vpop.permute.xlu0 %464
      %468 = vst.msk [vmem:[#allocation2 + $0xa0] sm:$0xf] %vm251, %v463
      %469 = vst.msk [vmem:[#allocation2 + $0xa4] sm:$0xf] %vm251, %v465
      %470 = vst.msk [vmem:[#allocation2 + $0xb4] sm:$0xf] %vm226, 0
      %s471 = scalar_lea.vmem %s219, 208
      %v472 = vld [vmem:[%s471] sm:$0xff]
      %v473 = vld [vmem:[%s471 + $0x8] sm:$0xff]
      %v474 = vpack.c.bf16 %v473, %v472
      %v476 = vunpack.c.l.b16 %v474
      %v477 = vunpack.c.h.b16 %v474
      %v478 = vpack.c.b16 %v476, %v476
      %v479 = vpack.c.b16 %v477, %v477
      %480 = vrot.lane.b32.xlu0 %v478, 4
      %v481 = vpop.permute.xlu0 %480
      %482 = vrot.lane.b32.xlu0 %v479, 4
      %v483 = vpop.permute.xlu0 %482
      %486 = vst.msk [vmem:[#allocation2 + $0xac] sm:$0xf] %vm251, %v481
      %487 = vst.msk [vmem:[#allocation2 + $0xb0] sm:$0xf] %vm251, %v483
      %488 = vst.msk [vmem:[#allocation2 + $0xc0] sm:$0xf] %vm226, 0
      %s489 = scalar_lea.vmem %s219, 224
      %v490 = vld [vmem:[%s489] sm:$0xff]
      %v491 = vld [vmem:[%s489 + $0x8] sm:$0xff]
      %v492 = vpack.c.bf16 %v491, %v490
      %v494 = vunpack.c.l.b16 %v492
      %v495 = vunpack.c.h.b16 %v492
      %v496 = vpack.c.b16 %v494, %v494
      %v497 = vpack.c.b16 %v495, %v495
      %498 = vrot.lane.b32.xlu0 %v496, 4
      %v499 = vpop.permute.xlu0 %498
      %500 = vrot.lane.b32.xlu0 %v497, 4
      %v501 = vpop.permute.xlu0 %500
      %504 = vst.msk [vmem:[#allocation2 + $0xb8] sm:$0xf] %vm251, %v499
      %505 = vst.msk [vmem:[#allocation2 + $0xbc] sm:$0xf] %vm251, %v501
      %506 = vst.msk [vmem:[#allocation2 + $0xcc] sm:$0xf] %vm226, 0
      %s507 = scalar_lea.vmem %s219, 240
      %v508 = vld [vmem:[%s507] sm:$0xff]
      %v509 = vld [vmem:[%s507 + $0x8] sm:$0xff]
      %v510 = vpack.c.bf16 %v509, %v508
      %v512 = vunpack.c.l.b16 %v510
      %v513 = vunpack.c.h.b16 %v510
      %v514 = vpack.c.b16 %v512, %v512
      %v515 = vpack.c.b16 %v513, %v513
      %516 = vrot.lane.b32.xlu0 %v514, 4
      %v517 = vpop.permute.xlu0 %516
      %518 = vrot.lane.b32.xlu0 %v515, 4
      %v519 = vpop.permute.xlu0 %518
      %522 = vst.msk [vmem:[#allocation2 + $0xc4] sm:$0xf] %vm251, %v517
      %523 = vst.msk [vmem:[#allocation2 + $0xc8] sm:$0xf] %vm251, %v519
      %v524 = vld [vmem:[#allocation2] sm:$0x8]
      %v525 = vld [vmem:[#allocation2 + $0x4] sm:$0xf]
      %v526 = vld [vmem:[#allocation2 + $0x8] sm:$0xf]
      %v527 = vld [vmem:[#allocation2 + $0xc] sm:$0xf]
      %v528 = vld [vmem:[#allocation2 + $0x10] sm:$0xf]
      %v529 = vld [vmem:[#allocation2 + $0x14] sm:$0xf]
      %v530 = vld [vmem:[#allocation2 + $0x18] sm:$0xf]
      %v531 = vld [vmem:[#allocation2 + $0x1c] sm:$0xf]
      %v532 = vld [vmem:[#allocation2 + $0x20] sm:$0xf]
      %v533 = vld [vmem:[#allocation2 + $0x24] sm:$0xf]
      %v534 = vld [vmem:[#allocation2 + $0x28] sm:$0xf]
      %v535 = vld [vmem:[#allocation2 + $0x2c] sm:$0xf]
      %v536 = vld [vmem:[#allocation2 + $0x30] sm:$0xf]
      %v537 = vld [vmem:[#allocation2 + $0x34] sm:$0xf]
      %v538 = vld [vmem:[#allocation2 + $0x38] sm:$0xf]
      %v539 = vld [vmem:[#allocation2 + $0x3c] sm:$0xf]
      %v540 = vld [vmem:[#allocation2 + $0x40] sm:$0xf]
      %v541 = vld [vmem:[#allocation2 + $0x44] sm:$0xf]
      %v542 = vld [vmem:[#allocation2 + $0x48] sm:$0xf]
      %v543 = vld [vmem:[#allocation2 + $0x4c] sm:$0xf]
      %v544 = vld [vmem:[#allocation2 + $0x50] sm:$0xf]
      %v545 = vld [vmem:[#allocation2 + $0x54] sm:$0xf]
      %v546 = vld [vmem:[#allocation2 + $0x58] sm:$0xf]
      %v547 = vld [vmem:[#allocation2 + $0x5c] sm:$0xf]
      %v548 = vld [vmem:[#allocation2 + $0x60] sm:$0xf]
      %v549 = vld [vmem:[#allocation2 + $0x64] sm:$0xf]
      %v550 = vld [vmem:[#allocation2 + $0x68] sm:$0xf]
      %v551 = vld [vmem:[#allocation2 + $0x6c] sm:$0xf]
      %v552 = vld [vmem:[#allocation2 + $0x70] sm:$0xf]
      %v553 = vld [vmem:[#allocation2 + $0x74] sm:$0xf]
      %v554 = vld [vmem:[#allocation2 + $0x78] sm:$0xf]
      %v555 = vld [vmem:[#allocation2 + $0x7c] sm:$0xf]
      %v556 = vld [vmem:[#allocation2 + $0x80] sm:$0xf]
      %v557 = vld [vmem:[#allocation2 + $0x84] sm:$0xf]
      %v558 = vld [vmem:[#allocation2 + $0x88] sm:$0xf]
      %v559 = vld [vmem:[#allocation2 + $0x8c] sm:$0xf]
      %v560 = vld [vmem:[#allocation2 + $0x90] sm:$0xf]
      %v561 = vld [vmem:[#allocation2 + $0x94] sm:$0xf]
      %v562 = vld [vmem:[#allocation2 + $0x98] sm:$0xf]
      %v563 = vld [vmem:[#allocation2 + $0x9c] sm:$0xf]
      %v564 = vld [vmem:[#allocation2 + $0xa0] sm:$0xf]
      %v565 = vld [vmem:[#allocation2 + $0xa4] sm:$0xf]
      %v566 = vld [vmem:[#allocation2 + $0xa8] sm:$0xf]
      %v567 = vld [vmem:[#allocation2 + $0xac] sm:$0xf]
      %v568 = vld [vmem:[#allocation2 + $0xb0] sm:$0xf]
      %v569 = vld [vmem:[#allocation2 + $0xb4] sm:$0xf]
      %v570 = vld [vmem:[#allocation2 + $0xb8] sm:$0xf]
      %v571 = vld [vmem:[#allocation2 + $0xbc] sm:$0xf]
      %v572 = vld [vmem:[#allocation2 + $0xc0] sm:$0xf]
      %v573 = vld [vmem:[#allocation2 + $0xc4] sm:$0xf]
      %v574 = vld [vmem:[#allocation2 + $0xc8] sm:$0xf]
      %v575 = vld [vmem:[#allocation2 + $0xcc] sm:$0xf]
      %v576 = vld [vmem:[#allocation2 + $0xd0] sm:$0xf]
      %v577 = vld [vmem:[#allocation2 + $0xd4] sm:$0xf]
      %v578 = vld [vmem:[#allocation2 + $0xd8] sm:$0xf]
      %vm579 = vsmask.f32 256
      %vm580 = vsmask.f32 4368
      %vm581 = vmor %vm579, %vm580
      %v583 = vshrl.u32 %v524, 16
      %v585 = vrot.slane %v583, 7
      %v586 = vrot.slane %v585, 4
      %v588 = vshrl.u32 %v525, 16
      %v590 = vrot.slane %v588, 7
      %v591 = vshll.u32 %v525, 16
      %v593 = vor.u32 %v590, %v591
      %v594 = vsel %vm581, %v586, %v593
      %v595 = vrot.slane %v590, 4
      %v597 = vshrl.u32 %v526, 16
      %v599 = vrot.slane %v597, 7
      %v600 = vshll.u32 %v526, 16
      %v602 = vor.u32 %v599, %v600
      %v603 = vsel %vm581, %v595, %v602
      %v604 = vrot.slane %v599, 4
      %v606 = vshrl.u32 %v527, 16
      %v608 = vrot.slane %v606, 7
      %v609 = vshll.u32 %v527, 16
      %v611 = vor.u32 %v608, %v609
      %v612 = vsel %vm581, %v604, %v611
      %v613 = vrot.slane %v608, 4
      %v615 = vshrl.u32 %v528, 16
      %v617 = vrot.slane %v615, 7
      %v618 = vshll.u32 %v528, 16
      %v620 = vor.u32 %v617, %v618
      %v621 = vsel %vm581, %v613, %v620
      %v622 = vrot.slane %v617, 4
      %v624 = vshrl.u32 %v529, 16
      %v626 = vrot.slane %v624, 7
      %v627 = vshll.u32 %v529, 16
      %v629 = vor.u32 %v626, %v627
      %v630 = vsel %vm581, %v622, %v629
      %v631 = vrot.slane %v626, 4
      %v633 = vshrl.u32 %v530, 16
      %v635 = vrot.slane %v633, 7
      %v636 = vshll.u32 %v530, 16
      %v638 = vor.u32 %v635, %v636
      %v639 = vsel %vm581, %v631, %v638
      %v640 = vrot.slane %v635, 4
      %v642 = vshrl.u32 %v531, 16
      %v644 = vrot.slane %v642, 7
      %v645 = vshll.u32 %v531, 16
      %v647 = vor.u32 %v644, %v645
      %v648 = vsel %vm581, %v640, %v647
      %v649 = vrot.slane %v644, 4
      %v651 = vshrl.u32 %v532, 16
      %v653 = vrot.slane %v651, 7
      %v654 = vshll.u32 %v532, 16
      %v656 = vor.u32 %v653, %v654
      %v657 = vsel %vm581, %v649, %v656
      %v658 = vrot.slane %v653, 4
      %v660 = vshrl.u32 %v533, 16
      %v662 = vrot.slane %v660, 7
      %v663 = vshll.u32 %v533, 16
      %v665 = vor.u32 %v662, %v663
      %v666 = vsel %vm581, %v658, %v665
      %v667 = vrot.slane %v662, 4
      %v669 = vshrl.u32 %v534, 16
      %v671 = vrot.slane %v669, 7
      %v672 = vshll.u32 %v534, 16
      %v674 = vor.u32 %v671, %v672
      %v675 = vsel %vm581, %v667, %v674
      %v676 = vrot.slane %v671, 4
      %v678 = vshrl.u32 %v535, 16
      %v680 = vrot.slane %v678, 7
      %v681 = vshll.u32 %v535, 16
      %v683 = vor.u32 %v680, %v681
      %v684 = vsel %vm581, %v676, %v683
      %v685 = vrot.slane %v680, 4
      %v687 = vshrl.u32 %v536, 16
      %v689 = vrot.slane %v687, 7
      %v690 = vshll.u32 %v536, 16
      %v692 = vor.u32 %v689, %v690
      %v693 = vsel %vm581, %v685, %v692
      %v694 = vrot.slane %v689, 4
      %v696 = vshrl.u32 %v537, 16
      %v698 = vrot.slane %v696, 7
      %v699 = vshll.u32 %v537, 16
      %v701 = vor.u32 %v698, %v699
      %v702 = vsel %vm581, %v694, %v701
      %v703 = vrot.slane %v698, 4
      %v705 = vshrl.u32 %v538, 16
      %v707 = vrot.slane %v705, 7
      %v708 = vshll.u32 %v538, 16
      %v710 = vor.u32 %v707, %v708
      %v711 = vsel %vm581, %v703, %v710
      %v712 = vrot.slane %v707, 4
      %v714 = vshrl.u32 %v539, 16
      %v716 = vrot.slane %v714, 7
      %v717 = vshll.u32 %v539, 16
      %v719 = vor.u32 %v716, %v717
      %v720 = vsel %vm581, %v712, %v719
      %v721 = vrot.slane %v716, 4
      %v723 = vshrl.u32 %v540, 16
      %v725 = vrot.slane %v723, 7
      %v726 = vshll.u32 %v540, 16
      %v728 = vor.u32 %v725, %v726
      %v729 = vsel %vm581, %v721, %v728
      %v730 = vrot.slane %v725, 4
      %v732 = vshrl.u32 %v541, 16
      %v734 = vrot.slane %v732, 7
      %v735 = vshll.u32 %v541, 16
      %v737 = vor.u32 %v734, %v735
      %v738 = vsel %vm581, %v730, %v737
      %v739 = vrot.slane %v734, 4
      %v741 = vshrl.u32 %v542, 16
      %v743 = vrot.slane %v741, 7
      %v744 = vshll.u32 %v542, 16
      %v746 = vor.u32 %v743, %v744
      %v747 = vsel %vm581, %v739, %v746
      %v748 = vrot.slane %v743, 4
      %v750 = vshrl.u32 %v543, 16
      %v752 = vrot.slane %v750, 7
      %v753 = vshll.u32 %v543, 16
      %v755 = vor.u32 %v752, %v753
      %v756 = vsel %vm581, %v748, %v755
      %v757 = vrot.slane %v752, 4
      %v759 = vshrl.u32 %v544, 16
      %v761 = vrot.slane %v759, 7
      %v762 = vshll.u32 %v544, 16
      %v764 = vor.u32 %v761, %v762
      %v765 = vsel %vm581, %v757, %v764
      %v766 = vrot.slane %v761, 4
      %v768 = vshrl.u32 %v545, 16
      %v770 = vrot.slane %v768, 7
      %v771 = vshll.u32 %v545, 16
      %v773 = vor.u32 %v770, %v771
      %v774 = vsel %vm581, %v766, %v773
      %v775 = vrot.slane %v770, 4
      %v777 = vshrl.u32 %v546, 16
      %v779 = vrot.slane %v777, 7
      %v780 = vshll.u32 %v546, 16
      %v782 = vor.u32 %v779, %v780
      %v783 = vsel %vm581, %v775, %v782
      %v784 = vrot.slane %v779, 4
      %v786 = vshrl.u32 %v547, 16
      %v788 = vrot.slane %v786, 7
      %v789 = vshll.u32 %v547, 16
      %v791 = vor.u32 %v788, %v789
      %v792 = vsel %vm581, %v784, %v791
      %v793 = vrot.slane %v788, 4
      %v795 = vshrl.u32 %v548, 16
      %v797 = vrot.slane %v795, 7
      %v798 = vshll.u32 %v548, 16
      %v800 = vor.u32 %v797, %v798
      %v801 = vsel %vm581, %v793, %v800
      %v802 = vrot.slane %v797, 4
      %v804 = vshrl.u32 %v549, 16
      %v806 = vrot.slane %v804, 7
      %v807 = vshll.u32 %v549, 16
      %v809 = vor.u32 %v806, %v807
      %v810 = vsel %vm581, %v802, %v809
      %v811 = vrot.slane %v806, 4
      %v813 = vshrl.u32 %v550, 16
      %v815 = vrot.slane %v813, 7
      %v816 = vshll.u32 %v550, 16
      %v818 = vor.u32 %v815, %v816
      %v819 = vsel %vm581, %v811, %v818
      %v820 = vrot.slane %v815, 4
      %v822 = vshrl.u32 %v551, 16
      %v824 = vrot.slane %v822, 7
      %v825 = vshll.u32 %v551, 16
      %v827 = vor.u32 %v824, %v825
      %v828 = vsel %vm581, %v820, %v827
      %v829 = vrot.slane %v824, 4
      %v831 = vshrl.u32 %v552, 16
      %v833 = vrot.slane %v831, 7
      %v834 = vshll.u32 %v552, 16
      %v836 = vor.u32 %v833, %v834
      %v837 = vsel %vm581, %v829, %v836
      %v838 = vrot.slane %v833, 4
      %v840 = vshrl.u32 %v553, 16
      %v842 = vrot.slane %v840, 7
      %v843 = vshll.u32 %v553, 16
      %v845 = vor.u32 %v842, %v843
      %v846 = vsel %vm581, %v838, %v845
      %v847 = vrot.slane %v842, 4
      %v849 = vshrl.u32 %v554, 16
      %v851 = vrot.slane %v849, 7
      %v852 = vshll.u32 %v554, 16
      %v854 = vor.u32 %v851, %v852
      %v855 = vsel %vm581, %v847, %v854
      %v856 = vrot.slane %v851, 4
      %v858 = vshrl.u32 %v555, 16
      %v860 = vrot.slane %v858, 7
      %v861 = vshll.u32 %v555, 16
      %v863 = vor.u32 %v860, %v861
      %v864 = vsel %vm581, %v856, %v863
      %v865 = vrot.slane %v860, 4
      %v867 = vshrl.u32 %v556, 16
      %v869 = vrot.slane %v867, 7
      %v870 = vshll.u32 %v556, 16
      %v872 = vor.u32 %v869, %v870
      %v873 = vsel %vm581, %v865, %v872
      %v874 = vrot.slane %v869, 4
      %v876 = vshrl.u32 %v557, 16
      %v878 = vrot.slane %v876, 7
      %v879 = vshll.u32 %v557, 16
      %v881 = vor.u32 %v878, %v879
      %v882 = vsel %vm581, %v874, %v881
      %v883 = vrot.slane %v878, 4
      %v885 = vshrl.u32 %v558, 16
      %v887 = vrot.slane %v885, 7
      %v888 = vshll.u32 %v558, 16
      %v890 = vor.u32 %v887, %v888
      %v891 = vsel %vm581, %v883, %v890
      %v892 = vrot.slane %v887, 4
      %v894 = vshrl.u32 %v559, 16
      %v896 = vrot.slane %v894, 7
      %v897 = vshll.u32 %v559, 16
      %v899 = vor.u32 %v896, %v897
      %v900 = vsel %vm581, %v892, %v899
      %v901 = vrot.slane %v896, 4
      %v903 = vshrl.u32 %v560, 16
      %v905 = vrot.slane %v903, 7
      %v906 = vshll.u32 %v560, 16
      %v908 = vor.u32 %v905, %v906
      %v909 = vsel %vm581, %v901, %v908
      %v910 = vrot.slane %v905, 4
      %v912 = vshrl.u32 %v561, 16
      %v914 = vrot.slane %v912, 7
      %v915 = vshll.u32 %v561, 16
      %v917 = vor.u32 %v914, %v915
      %v918 = vsel %vm581, %v910, %v917
      %v919 = vrot.slane %v914, 4
      %v921 = vshrl.u32 %v562, 16
      %v923 = vrot.slane %v921, 7
      %v924 = vshll.u32 %v562, 16
      %v926 = vor.u32 %v923, %v924
      %v927 = vsel %vm581, %v919, %v926
      %v928 = vrot.slane %v923, 4
      %v930 = vshrl.u32 %v563, 16
      %v932 = vrot.slane %v930, 7
      %v933 = vshll.u32 %v563, 16
      %v935 = vor.u32 %v932, %v933
      %v936 = vsel %vm581, %v928, %v935
      %v937 = vrot.slane %v932, 4
      %v939 = vshrl.u32 %v564, 16
      %v941 = vrot.slane %v939, 7
      %v942 = vshll.u32 %v564, 16
      %v944 = vor.u32 %v941, %v942
      %v945 = vsel %vm581, %v937, %v944
      %v946 = vrot.slane %v941, 4
      %v948 = vshrl.u32 %v565, 16
      %v950 = vrot.slane %v948, 7
      %v951 = vshll.u32 %v565, 16
      %v953 = vor.u32 %v950, %v951
      %v954 = vsel %vm581, %v946, %v953
      %v955 = vrot.slane %v950, 4
      %v957 = vshrl.u32 %v566, 16
      %v959 = vrot.slane %v957, 7
      %v960 = vshll.u32 %v566, 16
      %v962 = vor.u32 %v959, %v960
      %v963 = vsel %vm581, %v955, %v962
      %v964 = vrot.slane %v959, 4
      %v966 = vshrl.u32 %v567, 16
      %v968 = vrot.slane %v966, 7
      %v969 = vshll.u32 %v567, 16
      %v971 = vor.u32 %v968, %v969
      %v972 = vsel %vm581, %v964, %v971
      %v973 = vrot.slane %v968, 4
      %v975 = vshrl.u32 %v568, 16
      %v977 = vrot.slane %v975, 7
      %v978 = vshll.u32 %v568, 16
      %v980 = vor.u32 %v977, %v978
      %v981 = vsel %vm581, %v973, %v980
      %v982 = vrot.slane %v977, 4
      %v984 = vshrl.u32 %v569, 16
      %v986 = vrot.slane %v984, 7
      %v987 = vshll.u32 %v569, 16
      %v989 = vor.u32 %v986, %v987
      %v990 = vsel %vm581, %v982, %v989
      %v991 = vrot.slane %v986, 4
      %v993 = vshrl.u32 %v570, 16
      %v995 = vrot.slane %v993, 7
      %v996 = vshll.u32 %v570, 16
      %v998 = vor.u32 %v995, %v996
      %v999 = vsel %vm581, %v991, %v998
      %v1000 = vrot.slane %v995, 4
      %v1002 = vshrl.u32 %v571, 16
      %v1004 = vrot.slane %v1002, 7
      %v1005 = vshll.u32 %v571, 16
      %v1007 = vor.u32 %v1004, %v1005
      %v1008 = vsel %vm581, %v1000, %v1007
      %v1009 = vrot.slane %v1004, 4
      %v1011 = vshrl.u32 %v572, 16
      %v1013 = vrot.slane %v1011, 7
      %v1014 = vshll.u32 %v572, 16
      %v1016 = vor.u32 %v1013, %v1014
      %v1017 = vsel %vm581, %v1009, %v1016
      %v1018 = vrot.slane %v1013, 4
      %v1020 = vshrl.u32 %v573, 16
      %v1022 = vrot.slane %v1020, 7
      %v1023 = vshll.u32 %v573, 16
      %v1025 = vor.u32 %v1022, %v1023
      %v1026 = vsel %vm581, %v1018, %v1025
      %v1027 = vrot.slane %v1022, 4
      %v1029 = vshrl.u32 %v574, 16
      %v1031 = vrot.slane %v1029, 7
      %v1032 = vshll.u32 %v574, 16
      %v1034 = vor.u32 %v1031, %v1032
      %v1035 = vsel %vm581, %v1027, %v1034
      %v1036 = vrot.slane %v1031, 4
      %v1038 = vshrl.u32 %v575, 16
      %v1040 = vrot.slane %v1038, 7
      %v1041 = vshll.u32 %v575, 16
      %v1043 = vor.u32 %v1040, %v1041
      %v1044 = vsel %vm581, %v1036, %v1043
      %v1045 = vrot.slane %v1040, 4
      %v1047 = vshrl.u32 %v576, 16
      %v1049 = vrot.slane %v1047, 7
      %v1050 = vshll.u32 %v576, 16
      %v1052 = vor.u32 %v1049, %v1050
      %v1053 = vsel %vm581, %v1045, %v1052
      %v1054 = vrot.slane %v1049, 4
      %v1056 = vshrl.u32 %v577, 16
      %v1058 = vrot.slane %v1056, 7
      %v1059 = vshll.u32 %v577, 16
      %v1061 = vor.u32 %v1058, %v1059
      %v1062 = vsel %vm581, %v1054, %v1061
      %v1063 = vrot.slane %v1058, 4
      %v1065 = vshrl.u32 %v578, 16
      %v1067 = vrot.slane %v1065, 7
      %v1068 = vshll.u32 %v578, 16
      %v1070 = vor.u32 %v1067, %v1068
      %v1071 = vsel %vm581, %v1063, %v1070
      %1072 = vrot.lane.b32.xlu0 %v594, 124
      %v1073 = vpop.permute.xlu0 %1072
      %1074 = vrot.lane.b32.xlu0 %v603, 124
      %v1075 = vpop.permute.xlu0 %1074
      %1076 = vrot.lane.b32.xlu0 %v612, 124
      %v1077 = vpop.permute.xlu0 %1076
      %1078 = vrot.lane.b32.xlu0 %v621, 124
      %v1079 = vpop.permute.xlu0 %1078
      %1080 = vrot.lane.b32.xlu0 %v630, 124
      %v1081 = vpop.permute.xlu0 %1080
      %1082 = vrot.lane.b32.xlu0 %v639, 124
      %v1083 = vpop.permute.xlu0 %1082
      %1084 = vrot.lane.b32.xlu0 %v648, 124
      %v1085 = vpop.permute.xlu0 %1084
      %1086 = vrot.lane.b32.xlu0 %v657, 124
      %v1087 = vpop.permute.xlu0 %1086
      %1088 = vrot.lane.b32.xlu0 %v666, 124
      %v1089 = vpop.permute.xlu0 %1088
      %1090 = vrot.lane.b32.xlu0 %v675, 124
      %v1091 = vpop.permute.xlu0 %1090
      %1092 = vrot.lane.b32.xlu0 %v684, 124
      %v1093 = vpop.permute.xlu0 %1092
      %1094 = vrot.lane.b32.xlu0 %v693, 124
      %v1095 = vpop.permute.xlu0 %1094
      %1096 = vrot.lane.b32.xlu0 %v702, 124
      %v1097 = vpop.permute.xlu0 %1096
      %1098 = vrot.lane.b32.xlu0 %v711, 124
      %v1099 = vpop.permute.xlu0 %1098
      %1100 = vrot.lane.b32.xlu0 %v720, 124
      %v1101 = vpop.permute.xlu0 %1100
      %1102 = vrot.lane.b32.xlu0 %v729, 124
      %v1103 = vpop.permute.xlu0 %1102
      %1104 = vrot.lane.b32.xlu0 %v738, 124
      %v1105 = vpop.permute.xlu0 %1104
      %1106 = vrot.lane.b32.xlu0 %v747, 124
      %v1107 = vpop.permute.xlu0 %1106
      %1108 = vrot.lane.b32.xlu0 %v756, 124
      %v1109 = vpop.permute.xlu0 %1108
      %1110 = vrot.lane.b32.xlu0 %v765, 124
      %v1111 = vpop.permute.xlu0 %1110
      %1112 = vrot.lane.b32.xlu0 %v774, 124
      %v1113 = vpop.permute.xlu0 %1112
      %1114 = vrot.lane.b32.xlu0 %v783, 124
      %v1115 = vpop.permute.xlu0 %1114
      %1116 = vrot.lane.b32.xlu0 %v792, 124
      %v1117 = vpop.permute.xlu0 %1116
      %1118 = vrot.lane.b32.xlu0 %v801, 124
      %v1119 = vpop.permute.xlu0 %1118
      %1120 = vrot.lane.b32.xlu0 %v810, 124
      %v1121 = vpop.permute.xlu0 %1120
      %1122 = vrot.lane.b32.xlu0 %v819, 124
      %v1123 = vpop.permute.xlu0 %1122
      %1124 = vrot.lane.b32.xlu0 %v828, 124
      %v1125 = vpop.permute.xlu0 %1124
      %1126 = vrot.lane.b32.xlu0 %v837, 124
      %v1127 = vpop.permute.xlu0 %1126
      %1128 = vrot.lane.b32.xlu0 %v846, 124
      %v1129 = vpop.permute.xlu0 %1128
      %1130 = vrot.lane.b32.xlu0 %v855, 124
      %v1131 = vpop.permute.xlu0 %1130
      %1132 = vrot.lane.b32.xlu0 %v864, 124
      %v1133 = vpop.permute.xlu0 %1132
      %1134 = vrot.lane.b32.xlu0 %v873, 124
      %v1135 = vpop.permute.xlu0 %1134
      %1136 = vrot.lane.b32.xlu0 %v882, 124
      %v1137 = vpop.permute.xlu0 %1136
      %1138 = vrot.lane.b32.xlu0 %v891, 124
      %v1139 = vpop.permute.xlu0 %1138
      %1140 = vrot.lane.b32.xlu0 %v900, 124
      %v1141 = vpop.permute.xlu0 %1140
      %1142 = vrot.lane.b32.xlu0 %v909, 124
      %v1143 = vpop.permute.xlu0 %1142
      %1144 = vrot.lane.b32.xlu0 %v918, 124
      %v1145 = vpop.permute.xlu0 %1144
      %1146 = vrot.lane.b32.xlu0 %v927, 124
      %v1147 = vpop.permute.xlu0 %1146
      %1148 = vrot.lane.b32.xlu0 %v936, 124
      %v1149 = vpop.permute.xlu0 %1148
      %1150 = vrot.lane.b32.xlu0 %v945, 124
      %v1151 = vpop.permute.xlu0 %1150
      %1152 = vrot.lane.b32.xlu0 %v954, 124
      %v1153 = vpop.permute.xlu0 %1152
      %1154 = vrot.lane.b32.xlu0 %v963, 124
      %v1155 = vpop.permute.xlu0 %1154
      %1156 = vrot.lane.b32.xlu0 %v972, 124
      %v1157 = vpop.permute.xlu0 %1156
      %1158 = vrot.lane.b32.xlu0 %v981, 124
      %v1159 = vpop.permute.xlu0 %1158
      %1160 = vrot.lane.b32.xlu0 %v990, 124
      %v1161 = vpop.permute.xlu0 %1160
      %1162 = vrot.lane.b32.xlu0 %v999, 124
      %v1163 = vpop.permute.xlu0 %1162
      %1164 = vrot.lane.b32.xlu0 %v1008, 124
      %v1165 = vpop.permute.xlu0 %1164
      %1166 = vrot.lane.b32.xlu0 %v1017, 124
      %v1167 = vpop.permute.xlu0 %1166
      %1168 = vrot.lane.b32.xlu0 %v1026, 124
      %v1169 = vpop.permute.xlu0 %1168
      %1170 = vrot.lane.b32.xlu0 %v1035, 124
      %v1171 = vpop.permute.xlu0 %1170
      %1172 = vrot.lane.b32.xlu0 %v1044, 124
      %v1173 = vpop.permute.xlu0 %1172
      %1174 = vrot.lane.b32.xlu0 %v1053, 124
      %v1175 = vpop.permute.xlu0 %1174
      %1176 = vrot.lane.b32.xlu0 %v1062, 124
      %v1177 = vpop.permute.xlu0 %1176
      %1178 = vrot.lane.b32.xlu0 %v1071, 124
      %v1179 = vpop.permute.xlu0 %1178
      %vm1234 = vcmask 27648
      %1235 = vst.msk [vmem:[#allocation2 + $0x4] sm:$0xf] %vm1234, %v1073
      %1236 = vst.msk [vmem:[#allocation2 + $0x8] sm:$0xf] %vm1234, %v1075
      %1237 = vst.msk [vmem:[#allocation2 + $0xc] sm:$0xf] %vm1234, %v1077
      %1238 = vst.msk [vmem:[#allocation2 + $0x10] sm:$0xf] %vm1234, %v1079
      %1239 = vst.msk [vmem:[#allocation2 + $0x14] sm:$0xf] %vm1234, %v1081
      %1240 = vst.msk [vmem:[#allocation2 + $0x18] sm:$0xf] %vm1234, %v1083
      %1241 = vst.msk [vmem:[#allocation2 + $0x1c] sm:$0xf] %vm1234, %v1085
      %1242 = vst.msk [vmem:[#allocation2 + $0x20] sm:$0xf] %vm1234, %v1087
      %1243 = vst.msk [vmem:[#allocation2 + $0x24] sm:$0xf] %vm1234, %v1089
      %1244 = vst.msk [vmem:[#allocation2 + $0x28] sm:$0xf] %vm1234, %v1091
      %1245 = vst.msk [vmem:[#allocation2 + $0x2c] sm:$0xf] %vm1234, %v1093
      %1246 = vst.msk [vmem:[#allocation2 + $0x30] sm:$0xf] %vm1234, %v1095
      %1247 = vst.msk [vmem:[#allocation2 + $0x34] sm:$0xf] %vm1234, %v1097
      %1248 = vst.msk [vmem:[#allocation2 + $0x38] sm:$0xf] %vm1234, %v1099
      %1249 = vst.msk [vmem:[#allocation2 + $0x3c] sm:$0xf] %vm1234, %v1101
      %1250 = vst.msk [vmem:[#allocation2 + $0x40] sm:$0xf] %vm1234, %v1103
      %1251 = vst.msk [vmem:[#allocation2 + $0x44] sm:$0xf] %vm1234, %v1105
      %1252 = vst.msk [vmem:[#allocation2 + $0x48] sm:$0xf] %vm1234, %v1107
      %1253 = vst.msk [vmem:[#allocation2 + $0x4c] sm:$0xf] %vm1234, %v1109
      %1254 = vst.msk [vmem:[#allocation2 + $0x50] sm:$0xf] %vm1234, %v1111
      %1255 = vst.msk [vmem:[#allocation2 + $0x54] sm:$0xf] %vm1234, %v1113
      %1256 = vst.msk [vmem:[#allocation2 + $0x58] sm:$0xf] %vm1234, %v1115
      %1257 = vst.msk [vmem:[#allocation2 + $0x5c] sm:$0xf] %vm1234, %v1117
      %1258 = vst.msk [vmem:[#allocation2 + $0x60] sm:$0xf] %vm1234, %v1119
      %1259 = vst.msk [vmem:[#allocation2 + $0x64] sm:$0xf] %vm1234, %v1121
      %1260 = vst.msk [vmem:[#allocation2 + $0x68] sm:$0xf] %vm1234, %v1123
      %1261 = vst.msk [vmem:[#allocation2 + $0x6c] sm:$0xf] %vm1234, %v1125
      %1262 = vst.msk [vmem:[#allocation2 + $0x70] sm:$0xf] %vm1234, %v1127
      %1263 = vst.msk [vmem:[#allocation2 + $0x74] sm:$0xf] %vm1234, %v1129
      %1264 = vst.msk [vmem:[#allocation2 + $0x78] sm:$0xf] %vm1234, %v1131
      %1265 = vst.msk [vmem:[#allocation2 + $0x7c] sm:$0xf] %vm1234, %v1133
      %1266 = vst.msk [vmem:[#allocation2 + $0x80] sm:$0xf] %vm1234, %v1135
      %1267 = vst.msk [vmem:[#allocation2 + $0x84] sm:$0xf] %vm1234, %v1137
      %1268 = vst.msk [vmem:[#allocation2 + $0x88] sm:$0xf] %vm1234, %v1139
      %1269 = vst.msk [vmem:[#allocation2 + $0x8c] sm:$0xf] %vm1234, %v1141
      %1270 = vst.msk [vmem:[#allocation2 + $0x90] sm:$0xf] %vm1234, %v1143
      %1271 = vst.msk [vmem:[#allocation2 + $0x94] sm:$0xf] %vm1234, %v1145
      %1272 = vst.msk [vmem:[#allocation2 + $0x98] sm:$0xf] %vm1234, %v1147
      %1273 = vst.msk [vmem:[#allocation2 + $0x9c] sm:$0xf] %vm1234, %v1149
      %1274 = vst.msk [vmem:[#allocation2 + $0xa0] sm:$0xf] %vm1234, %v1151
      %1275 = vst.msk [vmem:[#allocation2 + $0xa4] sm:$0xf] %vm1234, %v1153
      %1276 = vst.msk [vmem:[#allocation2 + $0xa8] sm:$0xf] %vm1234, %v1155
      %1277 = vst.msk [vmem:[#allocation2 + $0xac] sm:$0xf] %vm1234, %v1157
      %1278 = vst.msk [vmem:[#allocation2 + $0xb0] sm:$0xf] %vm1234, %v1159
      %1279 = vst.msk [vmem:[#allocation2 + $0xb4] sm:$0xf] %vm1234, %v1161
      %1280 = vst.msk [vmem:[#allocation2 + $0xb8] sm:$0xf] %vm1234, %v1163
      %1281 = vst.msk [vmem:[#allocation2 + $0xbc] sm:$0xf] %vm1234, %v1165
      %1282 = vst.msk [vmem:[#allocation2 + $0xc0] sm:$0xf] %vm1234, %v1167
      %1283 = vst.msk [vmem:[#allocation2 + $0xc4] sm:$0xf] %vm1234, %v1169
      %1284 = vst.msk [vmem:[#allocation2 + $0xc8] sm:$0xf] %vm1234, %v1171
      %1285 = vst.msk [vmem:[#allocation2 + $0xcc] sm:$0xf] %vm1234, %v1173
      %1286 = vst.msk [vmem:[#allocation2 + $0xd0] sm:$0xf] %vm1234, %v1175
      %1287 = vst.msk [vmem:[#allocation2 + $0xd4] sm:$0xf] %vm1234, %v1177
      %1288 = vst.msk [vmem:[#allocation2 + $0xd8] sm:$0xf] %vm1234, %v1179
      %v1289 = vld [vmem:[#allocation2 + $0x4] sm:$0xf]
      %v1290 = vld [vmem:[#allocation2 + $0x8] sm:$0xf]
      %v1291 = vld [vmem:[#allocation2 + $0xc] sm:$0xf]
      %v1292 = vld [vmem:[#allocation2 + $0x10] sm:$0xf]
      %v1293 = vld [vmem:[#allocation2 + $0x14] sm:$0xf]
      %v1294 = vld [vmem:[#allocation2 + $0x18] sm:$0xf]
      %v1295 = vld [vmem:[#allocation2 + $0x1c] sm:$0xf]
      %v1296 = vld [vmem:[#allocation2 + $0x20] sm:$0xf]
      %v1297 = vld [vmem:[#allocation2 + $0x24] sm:$0xf]
      %v1298 = vld [vmem:[#allocation2 + $0x28] sm:$0xf]
      %v1299 = vld [vmem:[#allocation2 + $0x2c] sm:$0xf]
      %v1300 = vld [vmem:[#allocation2 + $0x30] sm:$0xf]
      %v1301 = vld [vmem:[#allocation2 + $0x34] sm:$0xf]
      %v1302 = vld [vmem:[#allocation2 + $0x38] sm:$0xf]
      %v1303 = vld [vmem:[#allocation2 + $0x3c] sm:$0xf]
      %v1304 = vld [vmem:[#allocation2 + $0x40] sm:$0xf]
      %v1305 = vld [vmem:[#allocation2 + $0x44] sm:$0xf]
      %v1306 = vld [vmem:[#allocation2 + $0x48] sm:$0xf]
      %v1307 = vld [vmem:[#allocation2 + $0x4c] sm:$0xf]
      %v1308 = vld [vmem:[#allocation2 + $0x50] sm:$0xf]
      %v1309 = vld [vmem:[#allocation2 + $0x54] sm:$0xf]
      %v1310 = vld [vmem:[#allocation2 + $0x58] sm:$0xf]
      %v1311 = vld [vmem:[#allocation2 + $0x5c] sm:$0xf]
      %v1312 = vld [vmem:[#allocation2 + $0x60] sm:$0xf]
      %v1313 = vld [vmem:[#allocation2 + $0x64] sm:$0xf]
      %v1314 = vld [vmem:[#allocation2 + $0x68] sm:$0xf]
      %v1315 = vld [vmem:[#allocation2 + $0x6c] sm:$0xf]
      %v1316 = vld [vmem:[#allocation2 + $0x70] sm:$0xf]
      %v1317 = vld [vmem:[#allocation2 + $0x74] sm:$0xf]
      %v1318 = vld [vmem:[#allocation2 + $0x78] sm:$0xf]
      %v1319 = vld [vmem:[#allocation2 + $0x7c] sm:$0xf]
      %v1320 = vld [vmem:[#allocation2 + $0x80] sm:$0xf]
      %v1321 = vld [vmem:[#allocation2 + $0x84] sm:$0xf]
      %v1322 = vld [vmem:[#allocation2 + $0x88] sm:$0xf]
      %v1323 = vld [vmem:[#allocation2 + $0x8c] sm:$0xf]
      %v1324 = vld [vmem:[#allocation2 + $0x90] sm:$0xf]
      %v1325 = vld [vmem:[#allocation2 + $0x94] sm:$0xf]
      %v1326 = vld [vmem:[#allocation2 + $0x98] sm:$0xf]
      %v1327 = vld [vmem:[#allocation2 + $0x9c] sm:$0xf]
      %v1328 = vld [vmem:[#allocation2 + $0xa0] sm:$0xf]
      %v1329 = vld [vmem:[#allocation2 + $0xa4] sm:$0xf]
      %v1330 = vld [vmem:[#allocation2 + $0xa8] sm:$0xf]
      %v1331 = vld [vmem:[#allocation2 + $0xac] sm:$0xf]
      %v1332 = vld [vmem:[#allocation2 + $0xb0] sm:$0xf]
      %v1333 = vld [vmem:[#allocation2 + $0xb4] sm:$0xf]
      %v1334 = vld [vmem:[#allocation2 + $0xb8] sm:$0xf]
      %v1335 = vld [vmem:[#allocation2 + $0xbc] sm:$0xf]
      %v1336 = vld [vmem:[#allocation2 + $0xc0] sm:$0xf]
      %v1337 = vld [vmem:[#allocation2 + $0xc4] sm:$0xf]
      %v1338 = vld [vmem:[#allocation2 + $0xc8] sm:$0xf]
      %v1339 = vld [vmem:[#allocation2 + $0xcc] sm:$0xf]
      %v1340 = vld [vmem:[#allocation2 + $0xd0] sm:$0xf]
      %v1341 = vld [vmem:[#allocation2 + $0xd4] sm:$0xf]
      %v1342 = vld [vmem:[#allocation2 + $0xd8] sm:$0xf]
      %v1343 = vld [vmem:[#allocation2 + $0xdc] sm:$0x1]
      %vm1344 = vsmask.f32 3328
      %vm1345 = vsmask.f32 7440
      %vm1346 = vmor %vm1344, %vm1345
      %v1348 = vshrl.u32 %v1289, 16
      %v1350 = vrot.slane %v1348, 4
      %v1351 = vshll.u32 %v1289, 16
      %v1353 = vrot.slane %v1351, 5
      %v1354 = vor.u32 %v1350, %v1353
      %v1355 = vrot.slane %v1354, 4
      %v1357 = vshll.u32 %v1290, 16
      %v1359 = vrot.slane %v1357, 5
      %v1360 = vsel %vm1346, %v1355, %v1359
      %v1361 = vshrl.u32 %v1290, 16
      %v1363 = vrot.slane %v1361, 4
      %v1364 = vor.u32 %v1363, %v1359
      %v1365 = vrot.slane %v1364, 4
      %v1367 = vshll.u32 %v1291, 16
      %v1369 = vrot.slane %v1367, 5
      %v1370 = vsel %vm1346, %v1365, %v1369
      %v1371 = vshrl.u32 %v1291, 16
      %v1373 = vrot.slane %v1371, 4
      %v1374 = vor.u32 %v1373, %v1369
      %v1375 = vrot.slane %v1374, 4
      %v1377 = vshll.u32 %v1292, 16
      %v1379 = vrot.slane %v1377, 5
      %v1380 = vsel %vm1346, %v1375, %v1379
      %v1381 = vshrl.u32 %v1292, 16
      %v1383 = vrot.slane %v1381, 4
      %v1384 = vor.u32 %v1383, %v1379
      %v1385 = vrot.slane %v1384, 4
      %v1387 = vshll.u32 %v1293, 16
      %v1389 = vrot.slane %v1387, 5
      %v1390 = vsel %vm1346, %v1385, %v1389
      %v1391 = vshrl.u32 %v1293, 16
      %v1393 = vrot.slane %v1391, 4
      %v1394 = vor.u32 %v1393, %v1389
      %v1395 = vrot.slane %v1394, 4
      %v1397 = vshll.u32 %v1294, 16
      %v1399 = vrot.slane %v1397, 5
      %v1400 = vsel %vm1346, %v1395, %v1399
      %v1401 = vshrl.u32 %v1294, 16
      %v1403 = vrot.slane %v1401, 4
      %v1404 = vor.u32 %v1403, %v1399
      %v1405 = vrot.slane %v1404, 4
      %v1407 = vshll.u32 %v1295, 16
      %v1409 = vrot.slane %v1407, 5
      %v1410 = vsel %vm1346, %v1405, %v1409
      %v1411 = vshrl.u32 %v1295, 16
      %v1413 = vrot.slane %v1411, 4
      %v1414 = vor.u32 %v1413, %v1409
      %v1415 = vrot.slane %v1414, 4
      %v1417 = vshll.u32 %v1296, 16
      %v1419 = vrot.slane %v1417, 5
      %v1420 = vsel %vm1346, %v1415, %v1419
      %v1421 = vshrl.u32 %v1296, 16
      %v1423 = vrot.slane %v1421, 4
      %v1424 = vor.u32 %v1423, %v1419
      %v1425 = vrot.slane %v1424, 4
      %v1427 = vshll.u32 %v1297, 16
      %v1429 = vrot.slane %v1427, 5
      %v1430 = vsel %vm1346, %v1425, %v1429
      %v1431 = vshrl.u32 %v1297, 16
      %v1433 = vrot.slane %v1431, 4
      %v1434 = vor.u32 %v1433, %v1429
      %v1435 = vrot.slane %v1434, 4
      %v1437 = vshll.u32 %v1298, 16
      %v1439 = vrot.slane %v1437, 5
      %v1440 = vsel %vm1346, %v1435, %v1439
      %v1441 = vshrl.u32 %v1298, 16
      %v1443 = vrot.slane %v1441, 4
      %v1444 = vor.u32 %v1443, %v1439
      %v1445 = vrot.slane %v1444, 4
      %v1447 = vshll.u32 %v1299, 16
      %v1449 = vrot.slane %v1447, 5
      %v1450 = vsel %vm1346, %v1445, %v1449
      %v1451 = vshrl.u32 %v1299, 16
      %v1453 = vrot.slane %v1451, 4
      %v1454 = vor.u32 %v1453, %v1449
      %v1455 = vrot.slane %v1454, 4
      %v1457 = vshll.u32 %v1300, 16
      %v1459 = vrot.slane %v1457, 5
      %v1460 = vsel %vm1346, %v1455, %v1459
      %v1461 = vshrl.u32 %v1300, 16
      %v1463 = vrot.slane %v1461, 4
      %v1464 = vor.u32 %v1463, %v1459
      %v1465 = vrot.slane %v1464, 4
      %v1467 = vshll.u32 %v1301, 16
      %v1469 = vrot.slane %v1467, 5
      %v1470 = vsel %vm1346, %v1465, %v1469
      %v1471 = vshrl.u32 %v1301, 16
      %v1473 = vrot.slane %v1471, 4
      %v1474 = vor.u32 %v1473, %v1469
      %v1475 = vrot.slane %v1474, 4
      %v1477 = vshll.u32 %v1302, 16
      %v1479 = vrot.slane %v1477, 5
      %v1480 = vsel %vm1346, %v1475, %v1479
      %v1481 = vshrl.u32 %v1302, 16
      %v1483 = vrot.slane %v1481, 4
      %v1484 = vor.u32 %v1483, %v1479
      %v1485 = vrot.slane %v1484, 4
      %v1487 = vshll.u32 %v1303, 16
      %v1489 = vrot.slane %v1487, 5
      %v1490 = vsel %vm1346, %v1485, %v1489
      %v1491 = vshrl.u32 %v1303, 16
      %v1493 = vrot.slane %v1491, 4
      %v1494 = vor.u32 %v1493, %v1489
      %v1495 = vrot.slane %v1494, 4
      %v1497 = vshll.u32 %v1304, 16
      %v1499 = vrot.slane %v1497, 5
      %v1500 = vsel %vm1346, %v1495, %v1499
      %v1501 = vshrl.u32 %v1304, 16
      %v1503 = vrot.slane %v1501, 4
      %v1504 = vor.u32 %v1503, %v1499
      %v1505 = vrot.slane %v1504, 4
      %v1507 = vshll.u32 %v1305, 16
      %v1509 = vrot.slane %v1507, 5
      %v1510 = vsel %vm1346, %v1505, %v1509
      %v1511 = vshrl.u32 %v1305, 16
      %v1513 = vrot.slane %v1511, 4
      %v1514 = vor.u32 %v1513, %v1509
      %v1515 = vrot.slane %v1514, 4
      %v1517 = vshll.u32 %v1306, 16
      %v1519 = vrot.slane %v1517, 5
      %v1520 = vsel %vm1346, %v1515, %v1519
      %v1521 = vshrl.u32 %v1306, 16
      %v1523 = vrot.slane %v1521, 4
      %v1524 = vor.u32 %v1523, %v1519
      %v1525 = vrot.slane %v1524, 4
      %v1527 = vshll.u32 %v1307, 16
      %v1529 = vrot.slane %v1527, 5
      %v1530 = vsel %vm1346, %v1525, %v1529
      %v1531 = vshrl.u32 %v1307, 16
      %v1533 = vrot.slane %v1531, 4
      %v1534 = vor.u32 %v1533, %v1529
      %v1535 = vrot.slane %v1534, 4
      %v1537 = vshll.u32 %v1308, 16
      %v1539 = vrot.slane %v1537, 5
      %v1540 = vsel %vm1346, %v1535, %v1539
      %v1541 = vshrl.u32 %v1308, 16
      %v1543 = vrot.slane %v1541, 4
      %v1544 = vor.u32 %v1543, %v1539
      %v1545 = vrot.slane %v1544, 4
      %v1547 = vshll.u32 %v1309, 16
      %v1549 = vrot.slane %v1547, 5
      %v1550 = vsel %vm1346, %v1545, %v1549
      %v1551 = vshrl.u32 %v1309, 16
      %v1553 = vrot.slane %v1551, 4
      %v1554 = vor.u32 %v1553, %v1549
      %v1555 = vrot.slane %v1554, 4
      %v1557 = vshll.u32 %v1310, 16
      %v1559 = vrot.slane %v1557, 5
      %v1560 = vsel %vm1346, %v1555, %v1559
      %v1561 = vshrl.u32 %v1310, 16
      %v1563 = vrot.slane %v1561, 4
      %v1564 = vor.u32 %v1563, %v1559
      %v1565 = vrot.slane %v1564, 4
      %v1567 = vshll.u32 %v1311, 16
      %v1569 = vrot.slane %v1567, 5
      %v1570 = vsel %vm1346, %v1565, %v1569
      %v1571 = vshrl.u32 %v1311, 16
      %v1573 = vrot.slane %v1571, 4
      %v1574 = vor.u32 %v1573, %v1569
      %v1575 = vrot.slane %v1574, 4
      %v1577 = vshll.u32 %v1312, 16
      %v1579 = vrot.slane %v1577, 5
      %v1580 = vsel %vm1346, %v1575, %v1579
      %v1581 = vshrl.u32 %v1312, 16
      %v1583 = vrot.slane %v1581, 4
      %v1584 = vor.u32 %v1583, %v1579
      %v1585 = vrot.slane %v1584, 4
      %v1587 = vshll.u32 %v1313, 16
      %v1589 = vrot.slane %v1587, 5
      %v1590 = vsel %vm1346, %v1585, %v1589
      %v1591 = vshrl.u32 %v1313, 16
      %v1593 = vrot.slane %v1591, 4
      %v1594 = vor.u32 %v1593, %v1589
      %v1595 = vrot.slane %v1594, 4
      %v1597 = vshll.u32 %v1314, 16
      %v1599 = vrot.slane %v1597, 5
      %v1600 = vsel %vm1346, %v1595, %v1599
      %v1601 = vshrl.u32 %v1314, 16
      %v1603 = vrot.slane %v1601, 4
      %v1604 = vor.u32 %v1603, %v1599
      %v1605 = vrot.slane %v1604, 4
      %v1607 = vshll.u32 %v1315, 16
      %v1609 = vrot.slane %v1607, 5
      %v1610 = vsel %vm1346, %v1605, %v1609
      %v1611 = vshrl.u32 %v1315, 16
      %v1613 = vrot.slane %v1611, 4
      %v1614 = vor.u32 %v1613, %v1609
      %v1615 = vrot.slane %v1614, 4
      %v1617 = vshll.u32 %v1316, 16
      %v1619 = vrot.slane %v1617, 5
      %v1620 = vsel %vm1346, %v1615, %v1619
      %v1621 = vshrl.u32 %v1316, 16
      %v1623 = vrot.slane %v1621, 4
      %v1624 = vor.u32 %v1623, %v1619
      %v1625 = vrot.slane %v1624, 4
      %v1627 = vshll.u32 %v1317, 16
      %v1629 = vrot.slane %v1627, 5
      %v1630 = vsel %vm1346, %v1625, %v1629
      %v1631 = vshrl.u32 %v1317, 16
      %v1633 = vrot.slane %v1631, 4
      %v1634 = vor.u32 %v1633, %v1629
      %v1635 = vrot.slane %v1634, 4
      %v1637 = vshll.u32 %v1318, 16
      %v1639 = vrot.slane %v1637, 5
      %v1640 = vsel %vm1346, %v1635, %v1639
      %v1641 = vshrl.u32 %v1318, 16
      %v1643 = vrot.slane %v1641, 4
      %v1644 = vor.u32 %v1643, %v1639
      %v1645 = vrot.slane %v1644, 4
      %v1647 = vshll.u32 %v1319, 16
      %v1649 = vrot.slane %v1647, 5
      %v1650 = vsel %vm1346, %v1645, %v1649
      %v1651 = vshrl.u32 %v1319, 16
      %v1653 = vrot.slane %v1651, 4
      %v1654 = vor.u32 %v1653, %v1649
      %v1655 = vrot.slane %v1654, 4
      %v1657 = vshll.u32 %v1320, 16
      %v1659 = vrot.slane %v1657, 5
      %v1660 = vsel %vm1346, %v1655, %v1659
      %v1661 = vshrl.u32 %v1320, 16
      %v1663 = vrot.slane %v1661, 4
      %v1664 = vor.u32 %v1663, %v1659
      %v1665 = vrot.slane %v1664, 4
      %v1667 = vshll.u32 %v1321, 16
      %v1669 = vrot.slane %v1667, 5
      %v1670 = vsel %vm1346, %v1665, %v1669
      %v1671 = vshrl.u32 %v1321, 16
      %v1673 = vrot.slane %v1671, 4
      %v1674 = vor.u32 %v1673, %v1669
      %v1675 = vrot.slane %v1674, 4
      %v1677 = vshll.u32 %v1322, 16
      %v1679 = vrot.slane %v1677, 5
      %v1680 = vsel %vm1346, %v1675, %v1679
      %v1681 = vshrl.u32 %v1322, 16
      %v1683 = vrot.slane %v1681, 4
      %v1684 = vor.u32 %v1683, %v1679
      %v1685 = vrot.slane %v1684, 4
      %v1687 = vshll.u32 %v1323, 16
      %v1689 = vrot.slane %v1687, 5
      %v1690 = vsel %vm1346, %v1685, %v1689
      %v1691 = vshrl.u32 %v1323, 16
      %v1693 = vrot.slane %v1691, 4
      %v1694 = vor.u32 %v1693, %v1689
      %v1695 = vrot.slane %v1694, 4
      %v1697 = vshll.u32 %v1324, 16
      %v1699 = vrot.slane %v1697, 5
      %v1700 = vsel %vm1346, %v1695, %v1699
      %v1701 = vshrl.u32 %v1324, 16
      %v1703 = vrot.slane %v1701, 4
      %v1704 = vor.u32 %v1703, %v1699
      %v1705 = vrot.slane %v1704, 4
      %v1707 = vshll.u32 %v1325, 16
      %v1709 = vrot.slane %v1707, 5
      %v1710 = vsel %vm1346, %v1705, %v1709
      %v1711 = vshrl.u32 %v1325, 16
      %v1713 = vrot.slane %v1711, 4
      %v1714 = vor.u32 %v1713, %v1709
      %v1715 = vrot.slane %v1714, 4
      %v1717 = vshll.u32 %v1326, 16
      %v1719 = vrot.slane %v1717, 5
      %v1720 = vsel %vm1346, %v1715, %v1719
      %v1721 = vshrl.u32 %v1326, 16
      %v1723 = vrot.slane %v1721, 4
      %v1724 = vor.u32 %v1723, %v1719
      %v1725 = vrot.slane %v1724, 4
      %v1727 = vshll.u32 %v1327, 16
      %v1729 = vrot.slane %v1727, 5
      %v1730 = vsel %vm1346, %v1725, %v1729
      %v1731 = vshrl.u32 %v1327, 16
      %v1733 = vrot.slane %v1731, 4
      %v1734 = vor.u32 %v1733, %v1729
      %v1735 = vrot.slane %v1734, 4
      %v1737 = vshll.u32 %v1328, 16
      %v1739 = vrot.slane %v1737, 5
      %v1740 = vsel %vm1346, %v1735, %v1739
      %v1741 = vshrl.u32 %v1328, 16
      %v1743 = vrot.slane %v1741, 4
      %v1744 = vor.u32 %v1743, %v1739
      %v1745 = vrot.slane %v1744, 4
      %v1747 = vshll.u32 %v1329, 16
      %v1749 = vrot.slane %v1747, 5
      %v1750 = vsel %vm1346, %v1745, %v1749
      %v1751 = vshrl.u32 %v1329, 16
      %v1753 = vrot.slane %v1751, 4
      %v1754 = vor.u32 %v1753, %v1749
      %v1755 = vrot.slane %v1754, 4
      %v1757 = vshll.u32 %v1330, 16
      %v1759 = vrot.slane %v1757, 5
      %v1760 = vsel %vm1346, %v1755, %v1759
      %v1761 = vshrl.u32 %v1330, 16
      %v1763 = vrot.slane %v1761, 4
      %v1764 = vor.u32 %v1763, %v1759
      %v1765 = vrot.slane %v1764, 4
      %v1767 = vshll.u32 %v1331, 16
      %v1769 = vrot.slane %v1767, 5
      %v1770 = vsel %vm1346, %v1765, %v1769
      %v1771 = vshrl.u32 %v1331, 16
      %v1773 = vrot.slane %v1771, 4
      %v1774 = vor.u32 %v1773, %v1769
      %v1775 = vrot.slane %v1774, 4
      %v1777 = vshll.u32 %v1332, 16
      %v1779 = vrot.slane %v1777, 5
      %v1780 = vsel %vm1346, %v1775, %v1779
      %v1781 = vshrl.u32 %v1332, 16
      %v1783 = vrot.slane %v1781, 4
      %v1784 = vor.u32 %v1783, %v1779
      %v1785 = vrot.slane %v1784, 4
      %v1787 = vshll.u32 %v1333, 16
      %v1789 = vrot.slane %v1787, 5
      %v1790 = vsel %vm1346, %v1785, %v1789
      %v1791 = vshrl.u32 %v1333, 16
      %v1793 = vrot.slane %v1791, 4
      %v1794 = vor.u32 %v1793, %v1789
      %v1795 = vrot.slane %v1794, 4
      %v1797 = vshll.u32 %v1334, 16
      %v1799 = vrot.slane %v1797, 5
      %v1800 = vsel %vm1346, %v1795, %v1799
      %v1801 = vshrl.u32 %v1334, 16
      %v1803 = vrot.slane %v1801, 4
      %v1804 = vor.u32 %v1803, %v1799
      %v1805 = vrot.slane %v1804, 4
      %v1807 = vshll.u32 %v1335, 16
      %v1809 = vrot.slane %v1807, 5
      %v1810 = vsel %vm1346, %v1805, %v1809
      %v1811 = vshrl.u32 %v1335, 16
      %v1813 = vrot.slane %v1811, 4
      %v1814 = vor.u32 %v1813, %v1809
      %v1815 = vrot.slane %v1814, 4
      %v1817 = vshll.u32 %v1336, 16
      %v1819 = vrot.slane %v1817, 5
      %v1820 = vsel %vm1346, %v1815, %v1819
      %v1821 = vshrl.u32 %v1336, 16
      %v1823 = vrot.slane %v1821, 4
      %v1824 = vor.u32 %v1823, %v1819
      %v1825 = vrot.slane %v1824, 4
      %v1827 = vshll.u32 %v1337, 16
      %v1829 = vrot.slane %v1827, 5
      %v1830 = vsel %vm1346, %v1825, %v1829
      %v1831 = vshrl.u32 %v1337, 16
      %v1833 = vrot.slane %v1831, 4
      %v1834 = vor.u32 %v1833, %v1829
      %v1835 = vrot.slane %v1834, 4
      %v1837 = vshll.u32 %v1338, 16
      %v1839 = vrot.slane %v1837, 5
      %v1840 = vsel %vm1346, %v1835, %v1839
      %v1841 = vshrl.u32 %v1338, 16
      %v1843 = vrot.slane %v1841, 4
      %v1844 = vor.u32 %v1843, %v1839
      %v1845 = vrot.slane %v1844, 4
      %v1847 = vshll.u32 %v1339, 16
      %v1849 = vrot.slane %v1847, 5
      %v1850 = vsel %vm1346, %v1845, %v1849
      %v1851 = vshrl.u32 %v1339, 16
      %v1853 = vrot.slane %v1851, 4
      %v1854 = vor.u32 %v1853, %v1849
      %v1855 = vrot.slane %v1854, 4
      %v1857 = vshll.u32 %v1340, 16
      %v1859 = vrot.slane %v1857, 5
      %v1860 = vsel %vm1346, %v1855, %v1859
      %v1861 = vshrl.u32 %v1340, 16
      %v1863 = vrot.slane %v1861, 4
      %v1864 = vor.u32 %v1863, %v1859
      %v1865 = vrot.slane %v1864, 4
      %v1867 = vshll.u32 %v1341, 16
      %v1869 = vrot.slane %v1867, 5
      %v1870 = vsel %vm1346, %v1865, %v1869
      %v1871 = vshrl.u32 %v1341, 16
      %v1873 = vrot.slane %v1871, 4
      %v1874 = vor.u32 %v1873, %v1869
      %v1875 = vrot.slane %v1874, 4
      %v1877 = vshll.u32 %v1342, 16
      %v1879 = vrot.slane %v1877, 5
      %v1880 = vsel %vm1346, %v1875, %v1879
      %v1881 = vshrl.u32 %v1342, 16
      %v1883 = vrot.slane %v1881, 4
      %v1884 = vor.u32 %v1883, %v1879
      %v1885 = vrot.slane %v1884, 4
      %v1887 = vshll.u32 %v1343, 16
      %v1889 = vrot.slane %v1887, 5
      %v1890 = vsel %vm1346, %v1885, %v1889
      %1891 = vrot.lane.b32.xlu0 %v1360, 4
      %v1892 = vpop.permute.xlu0 %1891
      %1893 = vrot.lane.b32.xlu0 %v1370, 4
      %v1894 = vpop.permute.xlu0 %1893
      %1895 = vrot.lane.b32.xlu0 %v1380, 4
      %v1896 = vpop.permute.xlu0 %1895
      %1897 = vrot.lane.b32.xlu0 %v1390, 4
      %v1898 = vpop.permute.xlu0 %1897
      %1899 = vrot.lane.b32.xlu0 %v1400, 4
      %v1900 = vpop.permute.xlu0 %1899
      %1901 = vrot.lane.b32.xlu0 %v1410, 4
      %v1902 = vpop.permute.xlu0 %1901
      %1903 = vrot.lane.b32.xlu0 %v1420, 4
      %v1904 = vpop.permute.xlu0 %1903
      %1905 = vrot.lane.b32.xlu0 %v1430, 4
      %v1906 = vpop.permute.xlu0 %1905
      %1907 = vrot.lane.b32.xlu0 %v1440, 4
      %v1908 = vpop.permute.xlu0 %1907
      %1909 = vrot.lane.b32.xlu0 %v1450, 4
      %v1910 = vpop.permute.xlu0 %1909
      %1911 = vrot.lane.b32.xlu0 %v1460, 4
      %v1912 = vpop.permute.xlu0 %1911
      %1913 = vrot.lane.b32.xlu0 %v1470, 4
      %v1914 = vpop.permute.xlu0 %1913
      %1915 = vrot.lane.b32.xlu0 %v1480, 4
      %v1916 = vpop.permute.xlu0 %1915
      %1917 = vrot.lane.b32.xlu0 %v1490, 4
      %v1918 = vpop.permute.xlu0 %1917
      %1919 = vrot.lane.b32.xlu0 %v1500, 4
      %v1920 = vpop.permute.xlu0 %1919
      %1921 = vrot.lane.b32.xlu0 %v1510, 4
      %v1922 = vpop.permute.xlu0 %1921
      %1923 = vrot.lane.b32.xlu0 %v1520, 4
      %v1924 = vpop.permute.xlu0 %1923
      %1925 = vrot.lane.b32.xlu0 %v1530, 4
      %v1926 = vpop.permute.xlu0 %1925
      %1927 = vrot.lane.b32.xlu0 %v1540, 4
      %v1928 = vpop.permute.xlu0 %1927
      %1929 = vrot.lane.b32.xlu0 %v1550, 4
      %v1930 = vpop.permute.xlu0 %1929
      %1931 = vrot.lane.b32.xlu0 %v1560, 4
      %v1932 = vpop.permute.xlu0 %1931
      %1933 = vrot.lane.b32.xlu0 %v1570, 4
      %v1934 = vpop.permute.xlu0 %1933
      %1935 = vrot.lane.b32.xlu0 %v1580, 4
      %v1936 = vpop.permute.xlu0 %1935
      %1937 = vrot.lane.b32.xlu0 %v1590, 4
      %v1938 = vpop.permute.xlu0 %1937
      %1939 = vrot.lane.b32.xlu0 %v1600, 4
      %v1940 = vpop.permute.xlu0 %1939
      %1941 = vrot.lane.b32.xlu0 %v1610, 4
      %v1942 = vpop.permute.xlu0 %1941
      %1943 = vrot.lane.b32.xlu0 %v1620, 4
      %v1944 = vpop.permute.xlu0 %1943
      %1945 = vrot.lane.b32.xlu0 %v1630, 4
      %v1946 = vpop.permute.xlu0 %1945
      %1947 = vrot.lane.b32.xlu0 %v1640, 4
      %v1948 = vpop.permute.xlu0 %1947
      %1949 = vrot.lane.b32.xlu0 %v1650, 4
      %v1950 = vpop.permute.xlu0 %1949
      %1951 = vrot.lane.b32.xlu0 %v1660, 4
      %v1952 = vpop.permute.xlu0 %1951
      %1953 = vrot.lane.b32.xlu0 %v1670, 4
      %v1954 = vpop.permute.xlu0 %1953
      %1955 = vrot.lane.b32.xlu0 %v1680, 4
      %v1956 = vpop.permute.xlu0 %1955
      %1957 = vrot.lane.b32.xlu0 %v1690, 4
      %v1958 = vpop.permute.xlu0 %1957
      %1959 = vrot.lane.b32.xlu0 %v1700, 4
      %v1960 = vpop.permute.xlu0 %1959
      %1961 = vrot.lane.b32.xlu0 %v1710, 4
      %v1962 = vpop.permute.xlu0 %1961
      %1963 = vrot.lane.b32.xlu0 %v1720, 4
      %v1964 = vpop.permute.xlu0 %1963
      %1965 = vrot.lane.b32.xlu0 %v1730, 4
      %v1966 = vpop.permute.xlu0 %1965
      %1967 = vrot.lane.b32.xlu0 %v1740, 4
      %v1968 = vpop.permute.xlu0 %1967
      %1969 = vrot.lane.b32.xlu0 %v1750, 4
      %v1970 = vpop.permute.xlu0 %1969
      %1971 = vrot.lane.b32.xlu0 %v1760, 4
      %v1972 = vpop.permute.xlu0 %1971
      %1973 = vrot.lane.b32.xlu0 %v1770, 4
      %v1974 = vpop.permute.xlu0 %1973
      %1975 = vrot.lane.b32.xlu0 %v1780, 4
      %v1976 = vpop.permute.xlu0 %1975
      %1977 = vrot.lane.b32.xlu0 %v1790, 4
      %v1978 = vpop.permute.xlu0 %1977
      %1979 = vrot.lane.b32.xlu0 %v1800, 4
      %v1980 = vpop.permute.xlu0 %1979
      %1981 = vrot.lane.b32.xlu0 %v1810, 4
      %v1982 = vpop.permute.xlu0 %1981
      %1983 = vrot.lane.b32.xlu0 %v1820, 4
      %v1984 = vpop.permute.xlu0 %1983
      %1985 = vrot.lane.b32.xlu0 %v1830, 4
      %v1986 = vpop.permute.xlu0 %1985
      %1987 = vrot.lane.b32.xlu0 %v1840, 4
      %v1988 = vpop.permute.xlu0 %1987
      %1989 = vrot.lane.b32.xlu0 %v1850, 4
      %v1990 = vpop.permute.xlu0 %1989
      %1991 = vrot.lane.b32.xlu0 %v1860, 4
      %v1992 = vpop.permute.xlu0 %1991
      %1993 = vrot.lane.b32.xlu0 %v1870, 4
      %v1994 = vpop.permute.xlu0 %1993
      %1995 = vrot.lane.b32.xlu0 %v1880, 4
      %v1996 = vpop.permute.xlu0 %1995
      %1997 = vrot.lane.b32.xlu0 %v1890, 4
      %v1998 = vpop.permute.xlu0 %1997
      %vm2053 = vcmask 93248
      %2054 = vst.msk [vmem:[#allocation2 + $0x4] sm:$0xf] %vm2053, %v1892
      %2055 = vst.msk [vmem:[#allocation2 + $0x8] sm:$0xf] %vm2053, %v1894
      %2056 = vst.msk [vmem:[#allocation2 + $0xc] sm:$0xf] %vm2053, %v1896
      %2057 = vst.msk [vmem:[#allocation2 + $0x10] sm:$0xf] %vm2053, %v1898
      %2058 = vst.msk [vmem:[#allocation2 + $0x14] sm:$0xf] %vm2053, %v1900
      %2059 = vst.msk [vmem:[#allocation2 + $0x18] sm:$0xf] %vm2053, %v1902
      %2060 = vst.msk [vmem:[#allocation2 + $0x1c] sm:$0xf] %vm2053, %v1904
      %2061 = vst.msk [vmem:[#allocation2 + $0x20] sm:$0xf] %vm2053, %v1906
      %2062 = vst.msk [vmem:[#allocation2 + $0x24] sm:$0xf] %vm2053, %v1908
      %2063 = vst.msk [vmem:[#allocation2 + $0x28] sm:$0xf] %vm2053, %v1910
      %2064 = vst.msk [vmem:[#allocation2 + $0x2c] sm:$0xf] %vm2053, %v1912
      %2065 = vst.msk [vmem:[#allocation2 + $0x30] sm:$0xf] %vm2053, %v1914
      %2066 = vst.msk [vmem:[#allocation2 + $0x34] sm:$0xf] %vm2053, %v1916
      %2067 = vst.msk [vmem:[#allocation2 + $0x38] sm:$0xf] %vm2053, %v1918
      %2068 = vst.msk [vmem:[#allocation2 + $0x3c] sm:$0xf] %vm2053, %v1920
      %2069 = vst.msk [vmem:[#allocation2 + $0x40] sm:$0xf] %vm2053, %v1922
      %2070 = vst.msk [vmem:[#allocation2 + $0x44] sm:$0xf] %vm2053, %v1924
      %2071 = vst.msk [vmem:[#allocation2 + $0x48] sm:$0xf] %vm2053, %v1926
      %2072 = vst.msk [vmem:[#allocation2 + $0x4c] sm:$0xf] %vm2053, %v1928
      %2073 = vst.msk [vmem:[#allocation2 + $0x50] sm:$0xf] %vm2053, %v1930
      %2074 = vst.msk [vmem:[#allocation2 + $0x54] sm:$0xf] %vm2053, %v1932
      %2075 = vst.msk [vmem:[#allocation2 + $0x58] sm:$0xf] %vm2053, %v1934
      %2076 = vst.msk [vmem:[#allocation2 + $0x5c] sm:$0xf] %vm2053, %v1936
      %2077 = vst.msk [vmem:[#allocation2 + $0x60] sm:$0xf] %vm2053, %v1938
      %2078 = vst.msk [vmem:[#allocation2 + $0x64] sm:$0xf] %vm2053, %v1940
      %2079 = vst.msk [vmem:[#allocation2 + $0x68] sm:$0xf] %vm2053, %v1942
      %2080 = vst.msk [vmem:[#allocation2 + $0x6c] sm:$0xf] %vm2053, %v1944
      %2081 = vst.msk [vmem:[#allocation2 + $0x70] sm:$0xf] %vm2053, %v1946
      %2082 = vst.msk [vmem:[#allocation2 + $0x74] sm:$0xf] %vm2053, %v1948
      %2083 = vst.msk [vmem:[#allocation2 + $0x78] sm:$0xf] %vm2053, %v1950
      %2084 = vst.msk [vmem:[#allocation2 + $0x7c] sm:$0xf] %vm2053, %v1952
      %2085 = vst.msk [vmem:[#allocation2 + $0x80] sm:$0xf] %vm2053, %v1954
      %2086 = vst.msk [vmem:[#allocation2 + $0x84] sm:$0xf] %vm2053, %v1956
      %2087 = vst.msk [vmem:[#allocation2 + $0x88] sm:$0xf] %vm2053, %v1958
      %2088 = vst.msk [vmem:[#allocation2 + $0x8c] sm:$0xf] %vm2053, %v1960
      %2089 = vst.msk [vmem:[#allocation2 + $0x90] sm:$0xf] %vm2053, %v1962
      %2090 = vst.msk [vmem:[#allocation2 + $0x94] sm:$0xf] %vm2053, %v1964
      %2091 = vst.msk [vmem:[#allocation2 + $0x98] sm:$0xf] %vm2053, %v1966
      %2092 = vst.msk [vmem:[#allocation2 + $0x9c] sm:$0xf] %vm2053, %v1968
      %2093 = vst.msk [vmem:[#allocation2 + $0xa0] sm:$0xf] %vm2053, %v1970
      %2094 = vst.msk [vmem:[#allocation2 + $0xa4] sm:$0xf] %vm2053, %v1972
      %2095 = vst.msk [vmem:[#allocation2 + $0xa8] sm:$0xf] %vm2053, %v1974
      %2096 = vst.msk [vmem:[#allocation2 + $0xac] sm:$0xf] %vm2053, %v1976
      %2097 = vst.msk [vmem:[#allocation2 + $0xb0] sm:$0xf] %vm2053, %v1978
      %2098 = vst.msk [vmem:[#allocation2 + $0xb4] sm:$0xf] %vm2053, %v1980
      %2099 = vst.msk [vmem:[#allocation2 + $0xb8] sm:$0xf] %vm2053, %v1982
      %2100 = vst.msk [vmem:[#allocation2 + $0xbc] sm:$0xf] %vm2053, %v1984
      %2101 = vst.msk [vmem:[#allocation2 + $0xc0] sm:$0xf] %vm2053, %v1986
      %2102 = vst.msk [vmem:[#allocation2 + $0xc4] sm:$0xf] %vm2053, %v1988
      %2103 = vst.msk [vmem:[#allocation2 + $0xc8] sm:$0xf] %vm2053, %v1990
      %2104 = vst.msk [vmem:[#allocation2 + $0xcc] sm:$0xf] %vm2053, %v1992
      %2105 = vst.msk [vmem:[#allocation2 + $0xd0] sm:$0xf] %vm2053, %v1994
      %2106 = vst.msk [vmem:[#allocation2 + $0xd4] sm:$0xf] %vm2053, %v1996
      %2107 = vst.msk [vmem:[#allocation2 + $0xd8] sm:$0xf] %vm2053, %v1998
      %v2108 = vld [vmem:[#allocation2 + $0x4] sm:$0xf]
      %v2109 = vld [vmem:[#allocation2 + $0x8] sm:$0xf]
      %v2110 = vld [vmem:[#allocation2 + $0xc] sm:$0xf]
      %v2111 = vld [vmem:[#allocation2 + $0x10] sm:$0xf]
      %v2112 = vld [vmem:[#allocation2 + $0x14] sm:$0xf]
      %v2113 = vld [vmem:[#allocation2 + $0x18] sm:$0xf]
      %v2114 = vld [vmem:[#allocation2 + $0x1c] sm:$0xf]
      %v2115 = vld [vmem:[#allocation2 + $0x20] sm:$0xf]
      %v2116 = vld [vmem:[#allocation2 + $0x24] sm:$0xf]
      %v2117 = vld [vmem:[#allocation2 + $0x28] sm:$0xf]
      %v2118 = vld [vmem:[#allocation2 + $0x2c] sm:$0xf]
      %v2119 = vld [vmem:[#allocation2 + $0x30] sm:$0xf]
      %v2120 = vld [vmem:[#allocation2 + $0x34] sm:$0xf]
      %v2121 = vld [vmem:[#allocation2 + $0x38] sm:$0xf]
      %v2122 = vld [vmem:[#allocation2 + $0x3c] sm:$0xf]
      %v2123 = vld [vmem:[#allocation2 + $0x40] sm:$0xf]
      %v2124 = vld [vmem:[#allocation2 + $0x44] sm:$0xf]
      %v2125 = vld [vmem:[#allocation2 + $0x48] sm:$0xf]
      %v2126 = vld [vmem:[#allocation2 + $0x4c] sm:$0xf]
      %v2127 = vld [vmem:[#allocation2 + $0x50] sm:$0xf]
      %v2128 = vld [vmem:[#allocation2 + $0x54] sm:$0xf]
      %v2129 = vld [vmem:[#allocation2 + $0x58] sm:$0xf]
      %v2130 = vld [vmem:[#allocation2 + $0x5c] sm:$0xf]
      %v2131 = vld [vmem:[#allocation2 + $0x60] sm:$0xf]
      %v2132 = vld [vmem:[#allocation2 + $0x64] sm:$0xf]
      %v2133 = vld [vmem:[#allocation2 + $0x68] sm:$0xf]
      %v2134 = vld [vmem:[#allocation2 + $0x6c] sm:$0xf]
      %v2135 = vld [vmem:[#allocation2 + $0x70] sm:$0xf]
      %v2136 = vld [vmem:[#allocation2 + $0x74] sm:$0xf]
      %v2137 = vld [vmem:[#allocation2 + $0x78] sm:$0xf]
      %v2138 = vld [vmem:[#allocation2 + $0x7c] sm:$0xf]
      %v2139 = vld [vmem:[#allocation2 + $0x80] sm:$0xf]
      %v2140 = vld [vmem:[#allocation2 + $0x84] sm:$0xf]
      %v2141 = vld [vmem:[#allocation2 + $0x88] sm:$0xf]
      %v2142 = vld [vmem:[#allocation2 + $0x8c] sm:$0xf]
      %v2143 = vld [vmem:[#allocation2 + $0x90] sm:$0xf]
      %v2144 = vld [vmem:[#allocation2 + $0x94] sm:$0xf]
      %v2145 = vld [vmem:[#allocation2 + $0x98] sm:$0xf]
      %v2146 = vld [vmem:[#allocation2 + $0x9c] sm:$0xf]
      %v2147 = vld [vmem:[#allocation2 + $0xa0] sm:$0xf]
      %v2148 = vld [vmem:[#allocation2 + $0xa4] sm:$0xf]
      %v2149 = vld [vmem:[#allocation2 + $0xa8] sm:$0xf]
      %v2150 = vld [vmem:[#allocation2 + $0xac] sm:$0xf]
      %v2151 = vld [vmem:[#allocation2 + $0xb0] sm:$0xf]
      %v2152 = vld [vmem:[#allocation2 + $0xb4] sm:$0xf]
      %v2153 = vld [vmem:[#allocation2 + $0xb8] sm:$0xf]
      %v2154 = vld [vmem:[#allocation2 + $0xbc] sm:$0xf]
      %v2155 = vld [vmem:[#allocation2 + $0xc0] sm:$0xf]
      %v2156 = vld [vmem:[%s1] sm:$0xf]
      %v2157 = vld [vmem:[%s1 + $0x4] sm:$0x3]
      %v2158 = vld [vmem:[#allocation2 + $0xc4] sm:$0xf]
      %v2159 = vld [vmem:[#allocation2 + $0xc8] sm:$0xf]
      %v2160 = vld [vmem:[#allocation2 + $0xcc] sm:$0xf]
      %v2161 = vld [vmem:[%s1 + $0x4] sm:$0xc]
      %v2162 = vld [vmem:[%s1 + $0x8] sm:$0xf]
      %v2211 = vunpack.c.l.b16 %v2111
      %v2212 = vunpack.c.l.b16 %v2112
      %v2213 = vunpack.c.l.b16 %v2113
      %v2214 = vunpack.c.l.b16 %v2114
      %v2215 = vunpack.c.l.b16 %v2115
      %v2216 = vunpack.c.l.b16 %v2116
      %v2217 = vunpack.c.l.b16 %v2117
      %v2218 = vunpack.c.l.b16 %v2118
      %v2219 = vunpack.c.l.b16 %v2119
      %v2220 = vunpack.c.l.b16 %v2120
      %v2221 = vunpack.c.l.b16 %v2121
      %v2222 = vunpack.c.l.b16 %v2122
      %v2223 = vunpack.c.l.b16 %v2123
      %v2224 = vunpack.c.l.b16 %v2124
      %v2225 = vunpack.c.l.b16 %v2125
      %v2226 = vunpack.c.l.b16 %v2126
      %v2227 = vunpack.c.l.b16 %v2127
      %v2228 = vunpack.c.l.b16 %v2128
      %v2229 = vunpack.c.l.b16 %v2129
      %v2230 = vunpack.c.l.b16 %v2130
      %v2231 = vunpack.c.l.b16 %v2131
      %v2232 = vunpack.c.l.b16 %v2132
      %v2233 = vunpack.c.l.b16 %v2133
      %v2234 = vunpack.c.l.b16 %v2134
      %v2235 = vunpack.c.l.b16 %v2135
      %v2236 = vunpack.c.l.b16 %v2136
      %v2237 = vunpack.c.l.b16 %v2137
      %v2238 = vunpack.c.l.b16 %v2138
      %v2239 = vunpack.c.l.b16 %v2139
      %v2240 = vunpack.c.l.b16 %v2140
      %v2241 = vunpack.c.l.b16 %v2141
      %v2242 = vunpack.c.l.b16 %v2142
      %v2243 = vunpack.c.l.b16 %v2143
      %v2244 = vunpack.c.l.b16 %v2144
      %v2245 = vunpack.c.l.b16 %v2145
      %v2246 = vunpack.c.l.b16 %v2146
      %v2247 = vunpack.c.l.b16 %v2147
      %v2248 = vunpack.c.l.b16 %v2148
      %v2249 = vunpack.c.l.b16 %v2149
      %v2250 = vunpack.c.l.b16 %v2150
      %v2251 = vunpack.c.l.b16 %v2151
      %v2252 = vunpack.c.l.b16 %v2152
      %v2253 = vunpack.c.l.b16 %v2153
      %v2254 = vunpack.c.l.b16 %v2154
      %v2255 = vunpack.c.l.b16 %v2155
      %v2256 = vunpack.c.l.b16 %v2158
      %v2257 = vunpack.c.l.b16 %v2159
      %v2258 = vunpack.c.l.b16 %v2160
      %v2259 = vpack.c.b16 %v2212, %v2211
      %v2260 = vpack.c.b16 %v2214, %v2213
      %v2261 = vpack.c.b16 %v2216, %v2215
      %v2262 = vpack.c.b16 %v2218, %v2217
      %v2263 = vpack.c.b16 %v2220, %v2219
      %v2264 = vpack.c.b16 %v2222, %v2221
      %v2265 = vpack.c.b16 %v2224, %v2223
      %v2266 = vpack.c.b16 %v2226, %v2225
      %v2267 = vpack.c.b16 %v2228, %v2227
      %v2268 = vpack.c.b16 %v2230, %v2229
      %v2269 = vpack.c.b16 %v2232, %v2231
      %v2270 = vpack.c.b16 %v2234, %v2233
      %v2271 = vpack.c.b16 %v2236, %v2235
      %v2272 = vpack.c.b16 %v2238, %v2237
      %v2273 = vpack.c.b16 %v2240, %v2239
      %v2274 = vpack.c.b16 %v2242, %v2241
      %v2275 = vpack.c.b16 %v2244, %v2243
      %v2276 = vpack.c.b16 %v2246, %v2245
      %v2277 = vpack.c.b16 %v2248, %v2247
      %v2278 = vpack.c.b16 %v2250, %v2249
      %v2279 = vpack.c.b16 %v2252, %v2251
      %v2280 = vpack.c.b16 %v2254, %v2253
      %v2281 = vpack.c.b16 %v2256, %v2255
      %v2282 = vpack.c.b16 %v2258, %v2257
      %v2285 = vunpack.c.l.b16 %v2161
      %v2286 = vunpack.c.l.b16 %v2162
      %v2287 = vpack.c.b16 %v2286, %v2285
      %v2288 = vrot.slane %v2287, 2
      %vm2289 = vcmask 97280
      %v2291 = vsel %vm2289, %v2259, 0
      %v2294 = vsel %vm2289, %v2260, 0
      %v2297 = vsel %vm2289, %v2261, 0
      %v2300 = vsel %vm2289, %v2262, 0
      %v2303 = vsel %vm2289, %v2263, 0
      %v2306 = vsel %vm2289, %v2264, 0
      %v2309 = vsel %vm2289, %v2265, 0
      %v2312 = vsel %vm2289, %v2266, 0
      %v2315 = vsel %vm2289, %v2267, 0
      %v2318 = vsel %vm2289, %v2268, 0
      %v2321 = vsel %vm2289, %v2269, 0
      %v2324 = vsel %vm2289, %v2270, 0
      %v2327 = vsel %vm2289, %v2271, 0
      %v2330 = vsel %vm2289, %v2272, 0
      %v2333 = vsel %vm2289, %v2273, 0
      %v2336 = vsel %vm2289, %v2274, 0
      %v2339 = vsel %vm2289, %v2275, 0
      %v2342 = vsel %vm2289, %v2276, 0
      %v2345 = vsel %vm2289, %v2277, 0
      %v2348 = vsel %vm2289, %v2278, 0
      %v2351 = vsel %vm2289, %v2279, 0
      %v2354 = vsel %vm2289, %v2280, 0
      %v2357 = vsel %vm2289, %v2281, 0
      %v2360 = vsel %vm2289, %v2282, 0
      %vm2362 = vcmask 1045504
      %v2364 = vsel %vm2362, %v2288, 0
      %2366 = vmatprep.subr.bf16.mxu0 0
      %2367 = vmatpush1.bf16.msra.mxu0 0
      %2368 = vmatprep.subr.bf16.mxu0 0
      %2369 = vmatpush1.bf16.msra.mxu0 0
      %2370 = vmatprep.subr.bf16.mxu0 0
      %2371 = vmatpush1.bf16.msra.mxu0 0
      %2372 = vmatprep.subr.bf16.mxu0 0
      %2373 = vmatpush1.bf16.msra.mxu0 0
      %2374 = vmatprep.subr.bf16.mxu0 0
      %2375 = vmatpush1.bf16.msra.mxu0 0
      %2376 = vmatprep.subr.bf16.mxu0 0
      %2377 = vmatpush1.bf16.msra.mxu0 0
      %2378 = vmatprep.subr.bf16.mxu0 0
      %2379 = vmatpush1.bf16.msra.mxu0 0
      %2380 = vmatprep.subr.bf16.mxu0 0
      %2381 = vmatpush1.bf16.msra.mxu0 %v2364
      %2382 = vmatprep.subr.bf16.mxu0 0
      %2383 = vmatpush2.bf16.msra.mxu0 0
      %2384 = vmatprep.subr.bf16.mxu0 0
      %2385 = vmatpush2.bf16.msra.mxu0 0
      %2386 = vmatprep.subr.bf16.mxu0 0
      %2387 = vmatpush2.bf16.msra.mxu0 0
      %2388 = vmatprep.subr.bf16.mxu0 0
      %2389 = vmatpush2.bf16.msra.mxu0 0
      %2390 = vmatprep.subr.bf16.mxu0 0
      %2391 = vmatpush2.bf16.msra.mxu0 0
      %2392 = vmatprep.subr.bf16.mxu0 0
      %2393 = vmatpush2.bf16.msra.mxu0 0
      %2394 = vmatprep.subr.bf16.mxu0 0
      %2395 = vmatpush2.bf16.msra.mxu0 0
      %2396 = vmatprep.subr.bf16.mxu0 0
      %2397 = vmatpush2.bf16.msra.mxu0 0
      %2398 = vmatprep.mubr.bf16.mxu0 0
      %2399 = vmatmul.mubr.bf16.gmra.mxu0 %v2291
      %v2400 = vpop.f32.mrf.mxu0
      %v2401 = vadd.f32 0.0, %v2400
      %v2402 = vpop.f32.mrf.mxu0
      %v2403 = vpop.f32.mrf.mxu0
      %v2404 = vadd.f32 0.0, %v2403
      %v2405 = vpop.f32.mrf.mxu0
      %2406 = vmatprep.mubr.bf16.mxu0 0
      %2407 = vmatmul.mubr.bf16.gmra.mxu0 %v2294
      %v2408 = vpop.f32.mrf.mxu0
      %v2409 = vadd.f32 0.0, %v2408
      %v2410 = vpop.f32.mrf.mxu0
      %v2411 = vpop.f32.mrf.mxu0
      %v2412 = vadd.f32 0.0, %v2411
      %v2413 = vpop.f32.mrf.mxu0
      %2414 = vmatprep.mubr.bf16.mxu0 0
      %2415 = vmatmul.mubr.bf16.gmra.mxu0 %v2297
      %v2416 = vpop.f32.mrf.mxu0
      %v2417 = vadd.f32 0.0, %v2416
      %v2418 = vpop.f32.mrf.mxu0
      %v2419 = vpop.f32.mrf.mxu0
      %v2420 = vadd.f32 0.0, %v2419
      %v2421 = vpop.f32.mrf.mxu0
      %2422 = vmatprep.mubr.bf16.mxu0 0
      %2423 = vmatmul.mubr.bf16.gmra.mxu0 %v2300
      %v2424 = vpop.f32.mrf.mxu0
      %v2425 = vadd.f32 0.0, %v2424
      %v2426 = vpop.f32.mrf.mxu0
      %v2427 = vpop.f32.mrf.mxu0
      %v2428 = vadd.f32 0.0, %v2427
      %v2429 = vpop.f32.mrf.mxu0
      %2430 = vmatprep.mubr.bf16.mxu0 0
      %2431 = vmatmul.mubr.bf16.gmra.mxu0 %v2303
      %v2432 = vpop.f32.mrf.mxu0
      %v2433 = vadd.f32 0.0, %v2432
      %v2434 = vpop.f32.mrf.mxu0
      %v2435 = vpop.f32.mrf.mxu0
      %v2436 = vadd.f32 0.0, %v2435
      %v2437 = vpop.f32.mrf.mxu0
      %2438 = vmatprep.mubr.bf16.mxu0 0
      %2439 = vmatmul.mubr.bf16.gmra.mxu0 %v2306
      %v2440 = vpop.f32.mrf.mxu0
      %v2441 = vadd.f32 0.0, %v2440
      %v2442 = vpop.f32.mrf.mxu0
      %v2443 = vpop.f32.mrf.mxu0
      %v2444 = vadd.f32 0.0, %v2443
      %v2445 = vpop.f32.mrf.mxu0
      %2446 = vmatprep.mubr.bf16.mxu0 0
      %2447 = vmatmul.mubr.bf16.gmra.mxu0 %v2309
      %v2448 = vpop.f32.mrf.mxu0
      %v2449 = vadd.f32 0.0, %v2448
      %v2450 = vpop.f32.mrf.mxu0
      %v2451 = vpop.f32.mrf.mxu0
      %v2452 = vadd.f32 0.0, %v2451
      %v2453 = vpop.f32.mrf.mxu0
      %2454 = vmatprep.mubr.bf16.mxu0 0
      %2455 = vmatmul.mubr.bf16.gmra.mxu0 %v2312
      %v2456 = vpop.f32.mrf.mxu0
      %v2457 = vadd.f32 0.0, %v2456
      %v2458 = vpop.f32.mrf.mxu0
      %v2459 = vpop.f32.mrf.mxu0
      %v2460 = vadd.f32 0.0, %v2459
      %v2461 = vpop.f32.mrf.mxu0
      %2462 = vmatprep.mubr.bf16.mxu0 0
      %2463 = vmatmul.mubr.bf16.gmra.mxu0 %v2315
      %v2464 = vpop.f32.mrf.mxu0
      %v2465 = vadd.f32 0.0, %v2464
      %v2466 = vpop.f32.mrf.mxu0
      %v2467 = vpop.f32.mrf.mxu0
      %v2468 = vadd.f32 0.0, %v2467
      %v2469 = vpop.f32.mrf.mxu0
      %2470 = vmatprep.mubr.bf16.mxu0 0
      %2471 = vmatmul.mubr.bf16.gmra.mxu0 %v2318
      %v2472 = vpop.f32.mrf.mxu0
      %v2473 = vadd.f32 0.0, %v2472
      %v2474 = vpop.f32.mrf.mxu0
      %v2475 = vpop.f32.mrf.mxu0
      %v2476 = vadd.f32 0.0, %v2475
      %v2477 = vpop.f32.mrf.mxu0
      %2478 = vmatprep.mubr.bf16.mxu0 0
      %2479 = vmatmul.mubr.bf16.gmra.mxu0 %v2321
      %v2480 = vpop.f32.mrf.mxu0
      %v2481 = vadd.f32 0.0, %v2480
      %v2482 = vpop.f32.mrf.mxu0
      %v2483 = vpop.f32.mrf.mxu0
      %v2484 = vadd.f32 0.0, %v2483
      %v2485 = vpop.f32.mrf.mxu0
      %2486 = vmatprep.mubr.bf16.mxu0 0
      %2487 = vmatmul.mubr.bf16.gmra.mxu0 %v2324
      %v2488 = vpop.f32.mrf.mxu0
      %v2489 = vadd.f32 0.0, %v2488
      %v2490 = vpop.f32.mrf.mxu0
      %v2491 = vpop.f32.mrf.mxu0
      %v2492 = vadd.f32 0.0, %v2491
      %v2493 = vpop.f32.mrf.mxu0
      %2494 = vmatprep.mubr.bf16.mxu0 0
      %2495 = vmatmul.mubr.bf16.gmra.mxu0 %v2327
      %v2496 = vpop.f32.mrf.mxu0
      %v2497 = vadd.f32 0.0, %v2496
      %v2498 = vpop.f32.mrf.mxu0
      %v2499 = vpop.f32.mrf.mxu0
      %v2500 = vadd.f32 0.0, %v2499
      %v2501 = vpop.f32.mrf.mxu0
      %2502 = vmatprep.mubr.bf16.mxu0 0
      %2503 = vmatmul.mubr.bf16.gmra.mxu0 %v2330
      %v2504 = vpop.f32.mrf.mxu0
      %v2505 = vadd.f32 0.0, %v2504
      %v2506 = vpop.f32.mrf.mxu0
      %v2507 = vpop.f32.mrf.mxu0
      %v2508 = vadd.f32 0.0, %v2507
      %v2509 = vpop.f32.mrf.mxu0
      %2510 = vmatprep.mubr.bf16.mxu0 0
      %2511 = vmatmul.mubr.bf16.gmra.mxu0 %v2333
      %v2512 = vpop.f32.mrf.mxu0
      %v2513 = vadd.f32 0.0, %v2512
      %v2514 = vpop.f32.mrf.mxu0
      %v2515 = vpop.f32.mrf.mxu0
      %v2516 = vadd.f32 0.0, %v2515
      %v2517 = vpop.f32.mrf.mxu0
      %2518 = vmatprep.mubr.bf16.mxu0 0
      %2519 = vmatmul.mubr.bf16.gmra.mxu0 %v2336
      %v2520 = vpop.f32.mrf.mxu0
      %v2521 = vadd.f32 0.0, %v2520
      %v2522 = vpop.f32.mrf.mxu0
      %v2523 = vpop.f32.mrf.mxu0
      %v2524 = vadd.f32 0.0, %v2523
      %v2525 = vpop.f32.mrf.mxu0
      %2526 = vmatprep.mubr.bf16.mxu0 0
      %2527 = vmatmul.mubr.bf16.gmra.mxu0 %v2339
      %v2528 = vpop.f32.mrf.mxu0
      %v2529 = vadd.f32 0.0, %v2528
      %v2530 = vpop.f32.mrf.mxu0
      %v2531 = vpop.f32.mrf.mxu0
      %v2532 = vadd.f32 0.0, %v2531
      %v2533 = vpop.f32.mrf.mxu0
      %2534 = vmatprep.mubr.bf16.mxu0 0
      %2535 = vmatmul.mubr.bf16.gmra.mxu0 %v2342
      %v2536 = vpop.f32.mrf.mxu0
      %v2537 = vadd.f32 0.0, %v2536
      %v2538 = vpop.f32.mrf.mxu0
      %v2539 = vpop.f32.mrf.mxu0
      %v2540 = vadd.f32 0.0, %v2539
      %v2541 = vpop.f32.mrf.mxu0
      %2542 = vmatprep.mubr.bf16.mxu0 0
      %2543 = vmatmul.mubr.bf16.gmra.mxu0 %v2345
      %v2544 = vpop.f32.mrf.mxu0
      %v2545 = vadd.f32 0.0, %v2544
      %v2546 = vpop.f32.mrf.mxu0
      %v2547 = vpop.f32.mrf.mxu0
      %v2548 = vadd.f32 0.0, %v2547
      %v2549 = vpop.f32.mrf.mxu0
      %2550 = vmatprep.mubr.bf16.mxu0 0
      %2551 = vmatmul.mubr.bf16.gmra.mxu0 %v2348
      %v2552 = vpop.f32.mrf.mxu0
      %v2553 = vadd.f32 0.0, %v2552
      %v2554 = vpop.f32.mrf.mxu0
      %v2555 = vpop.f32.mrf.mxu0
      %v2556 = vadd.f32 0.0, %v2555
      %v2557 = vpop.f32.mrf.mxu0
      %2558 = vmatprep.mubr.bf16.mxu0 0
      %2559 = vmatmul.mubr.bf16.gmra.mxu0 %v2351
      %v2560 = vpop.f32.mrf.mxu0
      %v2561 = vadd.f32 0.0, %v2560
      %v2562 = vpop.f32.mrf.mxu0
      %v2563 = vpop.f32.mrf.mxu0
      %v2564 = vadd.f32 0.0, %v2563
      %v2565 = vpop.f32.mrf.mxu0
      %2566 = vmatprep.mubr.bf16.mxu0 0
      %2567 = vmatmul.mubr.bf16.gmra.mxu0 %v2354
      %v2568 = vpop.f32.mrf.mxu0
      %v2569 = vadd.f32 0.0, %v2568
      %v2570 = vpop.f32.mrf.mxu0
      %v2571 = vpop.f32.mrf.mxu0
      %v2572 = vadd.f32 0.0, %v2571
      %v2573 = vpop.f32.mrf.mxu0
      %2574 = vmatprep.mubr.bf16.mxu0 0
      %2575 = vmatmul.mubr.bf16.gmra.mxu0 %v2357
      %v2576 = vpop.f32.mrf.mxu0
      %v2577 = vadd.f32 0.0, %v2576
      %v2578 = vpop.f32.mrf.mxu0
      %v2579 = vpop.f32.mrf.mxu0
      %v2580 = vadd.f32 0.0, %v2579
      %v2581 = vpop.f32.mrf.mxu0
      %2582 = vmatprep.mubr.bf16.mxu0 0
      %2583 = vmatmul.mubr.bf16.gmra.mxu0 %v2360
      %v2584 = vpop.f32.mrf.mxu0
      %v2585 = vadd.f32 0.0, %v2584
      %v2586 = vpop.f32.mrf.mxu0
      %v2587 = vpop.f32.mrf.mxu0
      %v2588 = vadd.f32 0.0, %v2587
      %v2589 = vpop.f32.mrf.mxu0
      %2590 = vdwg.mxu0
      %v2594 = vunpack.c.l.b16 %v2108
      %v2595 = vunpack.c.l.b16 %v2109
      %v2596 = vunpack.c.l.b16 %v2110
      %v2597 = vpack.c.b16 %v2595, %v2594
      %v2598 = vpack.c.b16 %v2211, %v2596
      %v2599 = vpack.c.b16 %v2213, %v2212
      %v2600 = vpack.c.b16 %v2215, %v2214
      %v2601 = vpack.c.b16 %v2217, %v2216
      %v2602 = vpack.c.b16 %v2219, %v2218
      %v2603 = vpack.c.b16 %v2221, %v2220
      %v2604 = vpack.c.b16 %v2223, %v2222
      %v2605 = vpack.c.b16 %v2225, %v2224
      %v2606 = vpack.c.b16 %v2227, %v2226
      %v2607 = vpack.c.b16 %v2229, %v2228
      %v2608 = vpack.c.b16 %v2231, %v2230
      %v2609 = vpack.c.b16 %v2233, %v2232
      %v2610 = vpack.c.b16 %v2235, %v2234
      %v2611 = vpack.c.b16 %v2237, %v2236
      %v2612 = vpack.c.b16 %v2239, %v2238
      %v2613 = vpack.c.b16 %v2241, %v2240
      %v2614 = vpack.c.b16 %v2243, %v2242
      %v2615 = vpack.c.b16 %v2245, %v2244
      %v2616 = vpack.c.b16 %v2247, %v2246
      %v2617 = vpack.c.b16 %v2249, %v2248
      %v2618 = vpack.c.b16 %v2251, %v2250
      %v2619 = vpack.c.b16 %v2253, %v2252
      %v2620 = vpack.c.b16 %v2255, %v2254
      %v2623 = vunpack.c.l.b16 %v2156
      %v2624 = vunpack.c.l.b16 %v2157
      %v2625 = vpack.c.b16 %v2624, %v2623
      %v2627 = vsel %vm2289, %v2597, 0
      %v2630 = vsel %vm2289, %v2598, 0
      %v2633 = vsel %vm2289, %v2599, 0
      %v2636 = vsel %vm2289, %v2600, 0
      %v2639 = vsel %vm2289, %v2601, 0
      %v2642 = vsel %vm2289, %v2602, 0
      %v2645 = vsel %vm2289, %v2603, 0
      %v2648 = vsel %vm2289, %v2604, 0
      %v2651 = vsel %vm2289, %v2605, 0
      %v2654 = vsel %vm2289, %v2606, 0
      %v2657 = vsel %vm2289, %v2607, 0
      %v2660 = vsel %vm2289, %v2608, 0
      %v2663 = vsel %vm2289, %v2609, 0
      %v2666 = vsel %vm2289, %v2610, 0
      %v2669 = vsel %vm2289, %v2611, 0
      %v2672 = vsel %vm2289, %v2612, 0
      %v2675 = vsel %vm2289, %v2613, 0
      %v2678 = vsel %vm2289, %v2614, 0
      %v2681 = vsel %vm2289, %v2615, 0
      %v2684 = vsel %vm2289, %v2616, 0
      %v2687 = vsel %vm2289, %v2617, 0
      %v2690 = vsel %vm2289, %v2618, 0
      %v2693 = vsel %vm2289, %v2619, 0
      %v2696 = vsel %vm2289, %v2620, 0
      %v2699 = vsel %vm2362, %v2625, 0
      %2701 = vmatprep.subr.bf16.mxu0 0
      %2702 = vmatpush1.bf16.msra.mxu0 0
      %2703 = vmatprep.subr.bf16.mxu0 0
      %2704 = vmatpush1.bf16.msra.mxu0 0
      %2705 = vmatprep.subr.bf16.mxu0 0
      %2706 = vmatpush1.bf16.msra.mxu0 0
      %2707 = vmatprep.subr.bf16.mxu0 0
      %2708 = vmatpush1.bf16.msra.mxu0 0
      %2709 = vmatprep.subr.bf16.mxu0 0
      %2710 = vmatpush1.bf16.msra.mxu0 0
      %2711 = vmatprep.subr.bf16.mxu0 0
      %2712 = vmatpush1.bf16.msra.mxu0 0
      %2713 = vmatprep.subr.bf16.mxu0 0
      %2714 = vmatpush1.bf16.msra.mxu0 0
      %2715 = vmatprep.subr.bf16.mxu0 0
      %2716 = vmatpush1.bf16.msra.mxu0 %v2699
      %2717 = vmatprep.subr.bf16.mxu0 0
      %2718 = vmatpush2.bf16.msra.mxu0 0
      %2719 = vmatprep.subr.bf16.mxu0 0
      %2720 = vmatpush2.bf16.msra.mxu0 0
      %2721 = vmatprep.subr.bf16.mxu0 0
      %2722 = vmatpush2.bf16.msra.mxu0 0
      %2723 = vmatprep.subr.bf16.mxu0 0
      %2724 = vmatpush2.bf16.msra.mxu0 0
      %2725 = vmatprep.subr.bf16.mxu0 0
      %2726 = vmatpush2.bf16.msra.mxu0 0
      %2727 = vmatprep.subr.bf16.mxu0 0
      %2728 = vmatpush2.bf16.msra.mxu0 0
      %2729 = vmatprep.subr.bf16.mxu0 0
      %2730 = vmatpush2.bf16.msra.mxu0 0
      %2731 = vmatprep.subr.bf16.mxu0 0
      %2732 = vmatpush2.bf16.msra.mxu0 0
      %2733 = vmatprep.mubr.bf16.mxu0 0
      %2734 = vmatmul.mubr.bf16.gmra.mxu0 %v2627
      %v2735 = vpop.f32.mrf.mxu0
      %v2736 = vadd.f32 %v2401, %v2735
      %v2737 = vpop.f32.mrf.mxu0
      %v2738 = vpop.f32.mrf.mxu0
      %v2739 = vadd.f32 %v2404, %v2738
      %v2740 = vpop.f32.mrf.mxu0
      %2741 = vmatprep.mubr.bf16.mxu0 0
      %2742 = vmatmul.mubr.bf16.gmra.mxu0 %v2630
      %v2743 = vpop.f32.mrf.mxu0
      %v2744 = vadd.f32 %v2409, %v2743
      %v2745 = vpop.f32.mrf.mxu0
      %v2746 = vpop.f32.mrf.mxu0
      %v2747 = vadd.f32 %v2412, %v2746
      %v2748 = vpop.f32.mrf.mxu0
      %2749 = vmatprep.mubr.bf16.mxu0 0
      %2750 = vmatmul.mubr.bf16.gmra.mxu0 %v2633
      %v2751 = vpop.f32.mrf.mxu0
      %v2752 = vadd.f32 %v2417, %v2751
      %v2753 = vpop.f32.mrf.mxu0
      %v2754 = vpop.f32.mrf.mxu0
      %v2755 = vadd.f32 %v2420, %v2754
      %v2756 = vpop.f32.mrf.mxu0
      %2757 = vmatprep.mubr.bf16.mxu0 0
      %2758 = vmatmul.mubr.bf16.gmra.mxu0 %v2636
      %v2759 = vpop.f32.mrf.mxu0
      %v2760 = vadd.f32 %v2425, %v2759
      %v2761 = vpop.f32.mrf.mxu0
      %v2762 = vpop.f32.mrf.mxu0
      %v2763 = vadd.f32 %v2428, %v2762
      %v2764 = vpop.f32.mrf.mxu0
      %2765 = vmatprep.mubr.bf16.mxu0 0
      %2766 = vmatmul.mubr.bf16.gmra.mxu0 %v2639
      %v2767 = vpop.f32.mrf.mxu0
      %v2768 = vadd.f32 %v2433, %v2767
      %v2769 = vpop.f32.mrf.mxu0
      %v2770 = vpop.f32.mrf.mxu0
      %v2771 = vadd.f32 %v2436, %v2770
      %v2772 = vpop.f32.mrf.mxu0
      %2773 = vmatprep.mubr.bf16.mxu0 0
      %2774 = vmatmul.mubr.bf16.gmra.mxu0 %v2642
      %v2775 = vpop.f32.mrf.mxu0
      %v2776 = vadd.f32 %v2441, %v2775
      %v2777 = vpop.f32.mrf.mxu0
      %v2778 = vpop.f32.mrf.mxu0
      %v2779 = vadd.f32 %v2444, %v2778
      %v2780 = vpop.f32.mrf.mxu0
      %2781 = vmatprep.mubr.bf16.mxu0 0
      %2782 = vmatmul.mubr.bf16.gmra.mxu0 %v2645
      %v2783 = vpop.f32.mrf.mxu0
      %v2784 = vadd.f32 %v2449, %v2783
      %v2785 = vpop.f32.mrf.mxu0
      %v2786 = vpop.f32.mrf.mxu0
      %v2787 = vadd.f32 %v2452, %v2786
      %v2788 = vpop.f32.mrf.mxu0
      %2789 = vmatprep.mubr.bf16.mxu0 0
      %2790 = vmatmul.mubr.bf16.gmra.mxu0 %v2648
      %v2791 = vpop.f32.mrf.mxu0
      %v2792 = vadd.f32 %v2457, %v2791
      %v2793 = vpop.f32.mrf.mxu0
      %v2794 = vpop.f32.mrf.mxu0
      %v2795 = vadd.f32 %v2460, %v2794
      %v2796 = vpop.f32.mrf.mxu0
      %2797 = vmatprep.mubr.bf16.mxu0 0
      %2798 = vmatmul.mubr.bf16.gmra.mxu0 %v2651
      %v2799 = vpop.f32.mrf.mxu0
      %v2800 = vadd.f32 %v2465, %v2799
      %v2801 = vpop.f32.mrf.mxu0
      %v2802 = vpop.f32.mrf.mxu0
      %v2803 = vadd.f32 %v2468, %v2802
      %v2804 = vpop.f32.mrf.mxu0
      %2805 = vmatprep.mubr.bf16.mxu0 0
      %2806 = vmatmul.mubr.bf16.gmra.mxu0 %v2654
      %v2807 = vpop.f32.mrf.mxu0
      %v2808 = vadd.f32 %v2473, %v2807
      %v2809 = vpop.f32.mrf.mxu0
      %v2810 = vpop.f32.mrf.mxu0
      %v2811 = vadd.f32 %v2476, %v2810
      %v2812 = vpop.f32.mrf.mxu0
      %2813 = vmatprep.mubr.bf16.mxu0 0
      %2814 = vmatmul.mubr.bf16.gmra.mxu0 %v2657
      %v2815 = vpop.f32.mrf.mxu0
      %v2816 = vadd.f32 %v2481, %v2815
      %v2817 = vpop.f32.mrf.mxu0
      %v2818 = vpop.f32.mrf.mxu0
      %v2819 = vadd.f32 %v2484, %v2818
      %v2820 = vpop.f32.mrf.mxu0
      %2821 = vmatprep.mubr.bf16.mxu0 0
      %2822 = vmatmul.mubr.bf16.gmra.mxu0 %v2660
      %v2823 = vpop.f32.mrf.mxu0
      %v2824 = vadd.f32 %v2489, %v2823
      %v2825 = vpop.f32.mrf.mxu0
      %v2826 = vpop.f32.mrf.mxu0
      %v2827 = vadd.f32 %v2492, %v2826
      %v2828 = vpop.f32.mrf.mxu0
      %2829 = vmatprep.mubr.bf16.mxu0 0
      %2830 = vmatmul.mubr.bf16.gmra.mxu0 %v2663
      %v2831 = vpop.f32.mrf.mxu0
      %v2832 = vadd.f32 %v2497, %v2831
      %v2833 = vpop.f32.mrf.mxu0
      %v2834 = vpop.f32.mrf.mxu0
      %v2835 = vadd.f32 %v2500, %v2834
      %v2836 = vpop.f32.mrf.mxu0
      %2837 = vmatprep.mubr.bf16.mxu0 0
      %2838 = vmatmul.mubr.bf16.gmra.mxu0 %v2666
      %v2839 = vpop.f32.mrf.mxu0
      %v2840 = vadd.f32 %v2505, %v2839
      %v2841 = vpop.f32.mrf.mxu0
      %v2842 = vpop.f32.mrf.mxu0
      %v2843 = vadd.f32 %v2508, %v2842
      %v2844 = vpop.f32.mrf.mxu0
      %2845 = vmatprep.mubr.bf16.mxu0 0
      %2846 = vmatmul.mubr.bf16.gmra.mxu0 %v2669
      %v2847 = vpop.f32.mrf.mxu0
      %v2848 = vadd.f32 %v2513, %v2847
      %v2849 = vpop.f32.mrf.mxu0
      %v2850 = vpop.f32.mrf.mxu0
      %v2851 = vadd.f32 %v2516, %v2850
      %v2852 = vpop.f32.mrf.mxu0
      %2853 = vmatprep.mubr.bf16.mxu0 0
      %2854 = vmatmul.mubr.bf16.gmra.mxu0 %v2672
      %v2855 = vpop.f32.mrf.mxu0
      %v2856 = vadd.f32 %v2521, %v2855
      %v2857 = vpop.f32.mrf.mxu0
      %v2858 = vpop.f32.mrf.mxu0
      %v2859 = vadd.f32 %v2524, %v2858
      %v2860 = vpop.f32.mrf.mxu0
      %2861 = vmatprep.mubr.bf16.mxu0 0
      %2862 = vmatmul.mubr.bf16.gmra.mxu0 %v2675
      %v2863 = vpop.f32.mrf.mxu0
      %v2864 = vadd.f32 %v2529, %v2863
      %v2865 = vpop.f32.mrf.mxu0
      %v2866 = vpop.f32.mrf.mxu0
      %v2867 = vadd.f32 %v2532, %v2866
      %v2868 = vpop.f32.mrf.mxu0
      %2869 = vmatprep.mubr.bf16.mxu0 0
      %2870 = vmatmul.mubr.bf16.gmra.mxu0 %v2678
      %v2871 = vpop.f32.mrf.mxu0
      %v2872 = vadd.f32 %v2537, %v2871
      %v2873 = vpop.f32.mrf.mxu0
      %v2874 = vpop.f32.mrf.mxu0
      %v2875 = vadd.f32 %v2540, %v2874
      %v2876 = vpop.f32.mrf.mxu0
      %2877 = vmatprep.mubr.bf16.mxu0 0
      %2878 = vmatmul.mubr.bf16.gmra.mxu0 %v2681
      %v2879 = vpop.f32.mrf.mxu0
      %v2880 = vadd.f32 %v2545, %v2879
      %v2881 = vpop.f32.mrf.mxu0
      %v2882 = vpop.f32.mrf.mxu0
      %v2883 = vadd.f32 %v2548, %v2882
      %v2884 = vpop.f32.mrf.mxu0
      %2885 = vmatprep.mubr.bf16.mxu0 0
      %2886 = vmatmul.mubr.bf16.gmra.mxu0 %v2684
      %v2887 = vpop.f32.mrf.mxu0
      %v2888 = vadd.f32 %v2553, %v2887
      %v2889 = vpop.f32.mrf.mxu0
      %v2890 = vpop.f32.mrf.mxu0
      %v2891 = vadd.f32 %v2556, %v2890
      %v2892 = vpop.f32.mrf.mxu0
      %2893 = vmatprep.mubr.bf16.mxu0 0
      %2894 = vmatmul.mubr.bf16.gmra.mxu0 %v2687
      %v2895 = vpop.f32.mrf.mxu0
      %v2896 = vadd.f32 %v2561, %v2895
      %v2897 = vpop.f32.mrf.mxu0
      %v2898 = vpop.f32.mrf.mxu0
      %v2899 = vadd.f32 %v2564, %v2898
      %v2900 = vpop.f32.mrf.mxu0
      %2901 = vmatprep.mubr.bf16.mxu0 0
      %2902 = vmatmul.mubr.bf16.gmra.mxu0 %v2690
      %v2903 = vpop.f32.mrf.mxu0
      %v2904 = vadd.f32 %v2569, %v2903
      %v2905 = vpop.f32.mrf.mxu0
      %v2906 = vpop.f32.mrf.mxu0
      %v2907 = vadd.f32 %v2572, %v2906
      %v2908 = vpop.f32.mrf.mxu0
      %2909 = vmatprep.mubr.bf16.mxu0 0
      %2910 = vmatmul.mubr.bf16.gmra.mxu0 %v2693
      %v2911 = vpop.f32.mrf.mxu0
      %v2912 = vadd.f32 %v2577, %v2911
      %v2913 = vpop.f32.mrf.mxu0
      %v2914 = vpop.f32.mrf.mxu0
      %v2915 = vadd.f32 %v2580, %v2914
      %v2916 = vpop.f32.mrf.mxu0
      %2917 = vmatprep.mubr.bf16.mxu0 0
      %2918 = vmatmul.mubr.bf16.gmra.mxu0 %v2696
      %v2919 = vpop.f32.mrf.mxu0
      %v2920 = vadd.f32 %v2585, %v2919
      %v2921 = vpop.f32.mrf.mxu0
      %v2922 = vpop.f32.mrf.mxu0
      %v2923 = vadd.f32 %v2588, %v2922
      %v2924 = vpop.f32.mrf.mxu0
      %2925 = vdwg.mxu0
      %v2926 = vld [vmem:[#allocation2 + $0x1c] sm:$0xf]
      %v2927 = vld [vmem:[#allocation2 + $0x20] sm:$0xf]
      %v2928 = vld [vmem:[#allocation2 + $0x24] sm:$0xf]
      %v2929 = vld [vmem:[#allocation2 + $0x28] sm:$0xf]
      %v2930 = vld [vmem:[#allocation2 + $0x2c] sm:$0xf]
      %v2931 = vld [vmem:[#allocation2 + $0x30] sm:$0xf]
      %v2932 = vld [vmem:[#allocation2 + $0x34] sm:$0xf]
      %v2933 = vld [vmem:[#allocation2 + $0x38] sm:$0xf]
      %v2934 = vld [vmem:[#allocation2 + $0x3c] sm:$0xf]
      %v2935 = vld [vmem:[#allocation2 + $0x40] sm:$0xf]
      %v2936 = vld [vmem:[#allocation2 + $0x44] sm:$0xf]
      %v2937 = vld [vmem:[#allocation2 + $0x48] sm:$0xf]
      %v2938 = vld [vmem:[#allocation2 + $0x4c] sm:$0xf]
      %v2939 = vld [vmem:[#allocation2 + $0x50] sm:$0xf]
      %v2940 = vld [vmem:[#allocation2 + $0x54] sm:$0xf]
      %v2941 = vld [vmem:[#allocation2 + $0x58] sm:$0xf]
      %v2942 = vld [vmem:[#allocation2 + $0x5c] sm:$0xf]
      %v2943 = vld [vmem:[#allocation2 + $0x60] sm:$0xf]
      %v2944 = vld [vmem:[#allocation2 + $0x64] sm:$0xf]
      %v2945 = vld [vmem:[#allocation2 + $0x68] sm:$0xf]
      %v2946 = vld [vmem:[#allocation2 + $0x6c] sm:$0xf]
      %v2947 = vld [vmem:[#allocation2 + $0x70] sm:$0xf]
      %v2948 = vld [vmem:[#allocation2 + $0x74] sm:$0xf]
      %v2949 = vld [vmem:[#allocation2 + $0x78] sm:$0xf]
      %v2950 = vld [vmem:[#allocation2 + $0x7c] sm:$0xf]
      %v2951 = vld [vmem:[#allocation2 + $0x80] sm:$0xf]
      %v2952 = vld [vmem:[#allocation2 + $0x84] sm:$0xf]
      %v2953 = vld [vmem:[#allocation2 + $0x88] sm:$0xf]
      %v2954 = vld [vmem:[#allocation2 + $0x8c] sm:$0xf]
      %v2955 = vld [vmem:[#allocation2 + $0x90] sm:$0xf]
      %v2956 = vld [vmem:[#allocation2 + $0x94] sm:$0xf]
      %v2957 = vld [vmem:[#allocation2 + $0x98] sm:$0xf]
      %v2958 = vld [vmem:[#allocation2 + $0x9c] sm:$0xf]
      %v2959 = vld [vmem:[#allocation2 + $0xa0] sm:$0xf]
      %v2960 = vld [vmem:[#allocation2 + $0xa4] sm:$0xf]
      %v2961 = vld [vmem:[#allocation2 + $0xa8] sm:$0xf]
      %v2962 = vld [vmem:[#allocation2 + $0xac] sm:$0xf]
      %v2963 = vld [vmem:[#allocation2 + $0xb0] sm:$0xf]
      %v2964 = vld [vmem:[#allocation2 + $0xb4] sm:$0xf]
      %v2965 = vld [vmem:[#allocation2 + $0xb8] sm:$0xf]
      %v2966 = vld [vmem:[#allocation2 + $0xbc] sm:$0xf]
      %v2967 = vld [vmem:[#allocation2 + $0xc0] sm:$0xf]
      %v2968 = vld [vmem:[#allocation2 + $0xc4] sm:$0xf]
      %v2969 = vld [vmem:[#allocation2 + $0xc8] sm:$0xf]
      %v2970 = vld [vmem:[#allocation2 + $0xcc] sm:$0xf]
      %v2971 = vld [vmem:[#allocation2 + $0xd0] sm:$0xf]
      %v2972 = vld [vmem:[#allocation2 + $0xd4] sm:$0xf]
      %v2973 = vld [vmem:[#allocation2 + $0xd8] sm:$0xf]
      %v2974 = vld [vmem:[%s1 + $0xc] sm:$0xf]
      %v2975 = vld [vmem:[%s1 + $0x10] sm:$0x3]
      %v3024 = vunpack.c.l.b16 %v2926
      %v3025 = vunpack.c.l.b16 %v2927
      %v3026 = vunpack.c.l.b16 %v2928
      %v3027 = vunpack.c.l.b16 %v2929
      %v3028 = vunpack.c.l.b16 %v2930
      %v3029 = vunpack.c.l.b16 %v2931
      %v3030 = vunpack.c.l.b16 %v2932
      %v3031 = vunpack.c.l.b16 %v2933
      %v3032 = vunpack.c.l.b16 %v2934
      %v3033 = vunpack.c.l.b16 %v2935
      %v3034 = vunpack.c.l.b16 %v2936
      %v3035 = vunpack.c.l.b16 %v2937
      %v3036 = vunpack.c.l.b16 %v2938
      %v3037 = vunpack.c.l.b16 %v2939
      %v3038 = vunpack.c.l.b16 %v2940
      %v3039 = vunpack.c.l.b16 %v2941
      %v3040 = vunpack.c.l.b16 %v2942
      %v3041 = vunpack.c.l.b16 %v2943
      %v3042 = vunpack.c.l.b16 %v2944
      %v3043 = vunpack.c.l.b16 %v2945
      %v3044 = vunpack.c.l.b16 %v2946
      %v3045 = vunpack.c.l.b16 %v2947
      %v3046 = vunpack.c.l.b16 %v2948
      %v3047 = vunpack.c.l.b16 %v2949
      %v3048 = vunpack.c.l.b16 %v2950
      %v3049 = vunpack.c.l.b16 %v2951
      %v3050 = vunpack.c.l.b16 %v2952
      %v3051 = vunpack.c.l.b16 %v2953
      %v3052 = vunpack.c.l.b16 %v2954
      %v3053 = vunpack.c.l.b16 %v2955
      %v3054 = vunpack.c.l.b16 %v2956
      %v3055 = vunpack.c.l.b16 %v2957
      %v3056 = vunpack.c.l.b16 %v2958
      %v3057 = vunpack.c.l.b16 %v2959
      %v3058 = vunpack.c.l.b16 %v2960
      %v3059 = vunpack.c.l.b16 %v2961
      %v3060 = vunpack.c.l.b16 %v2962
      %v3061 = vunpack.c.l.b16 %v2963
      %v3062 = vunpack.c.l.b16 %v2964
      %v3063 = vunpack.c.l.b16 %v2965
      %v3064 = vunpack.c.l.b16 %v2966
      %v3065 = vunpack.c.l.b16 %v2967
      %v3066 = vunpack.c.l.b16 %v2968
      %v3067 = vunpack.c.l.b16 %v2969
      %v3068 = vunpack.c.l.b16 %v2970
      %v3069 = vunpack.c.l.b16 %v2971
      %v3070 = vunpack.c.l.b16 %v2972
      %v3071 = vunpack.c.l.b16 %v2973
      %v3072 = vpack.c.b16 %v3025, %v3024
      %v3073 = vpack.c.b16 %v3027, %v3026
      %v3074 = vpack.c.b16 %v3029, %v3028
      %v3075 = vpack.c.b16 %v3031, %v3030
      %v3076 = vpack.c.b16 %v3033, %v3032
      %v3077 = vpack.c.b16 %v3035, %v3034
      %v3078 = vpack.c.b16 %v3037, %v3036
      %v3079 = vpack.c.b16 %v3039, %v3038
      %v3080 = vpack.c.b16 %v3041, %v3040
      %v3081 = vpack.c.b16 %v3043, %v3042
      %v3082 = vpack.c.b16 %v3045, %v3044
      %v3083 = vpack.c.b16 %v3047, %v3046
      %v3084 = vpack.c.b16 %v3049, %v3048
      %v3085 = vpack.c.b16 %v3051, %v3050
      %v3086 = vpack.c.b16 %v3053, %v3052
      %v3087 = vpack.c.b16 %v3055, %v3054
      %v3088 = vpack.c.b16 %v3057, %v3056
      %v3089 = vpack.c.b16 %v3059, %v3058
      %v3090 = vpack.c.b16 %v3061, %v3060
      %v3091 = vpack.c.b16 %v3063, %v3062
      %v3092 = vpack.c.b16 %v3065, %v3064
      %v3093 = vpack.c.b16 %v3067, %v3066
      %v3094 = vpack.c.b16 %v3069, %v3068
      %v3095 = vpack.c.b16 %v3071, %v3070
      %v3098 = vunpack.c.l.b16 %v2974
      %v3099 = vunpack.c.l.b16 %v2975
      %v3100 = vpack.c.b16 %v3099, %v3098
      %v3102 = vsel %vm2289, %v3072, 0
      %v3105 = vsel %vm2289, %v3073, 0
      %v3108 = vsel %vm2289, %v3074, 0
      %v3111 = vsel %vm2289, %v3075, 0
      %v3114 = vsel %vm2289, %v3076, 0
      %v3117 = vsel %vm2289, %v3077, 0
      %v3120 = vsel %vm2289, %v3078, 0
      %v3123 = vsel %vm2289, %v3079, 0
      %v3126 = vsel %vm2289, %v3080, 0
      %v3129 = vsel %vm2289, %v3081, 0
      %v3132 = vsel %vm2289, %v3082, 0
      %v3135 = vsel %vm2289, %v3083, 0
      %v3138 = vsel %vm2289, %v3084, 0
      %v3141 = vsel %vm2289, %v3085, 0
      %v3144 = vsel %vm2289, %v3086, 0
      %v3147 = vsel %vm2289, %v3087, 0
      %v3150 = vsel %vm2289, %v3088, 0
      %v3153 = vsel %vm2289, %v3089, 0
      %v3156 = vsel %vm2289, %v3090, 0
      %v3159 = vsel %vm2289, %v3091, 0
      %v3162 = vsel %vm2289, %v3092, 0
      %v3165 = vsel %vm2289, %v3093, 0
      %v3168 = vsel %vm2289, %v3094, 0
      %v3171 = vsel %vm2289, %v3095, 0
      %v3174 = vsel %vm2362, %v3100, 0
      %3176 = vmatprep.subr.bf16.mxu0 0
      %3177 = vmatpush1.bf16.msra.mxu0 0
      %3178 = vmatprep.subr.bf16.mxu0 0
      %3179 = vmatpush1.bf16.msra.mxu0 0
      %3180 = vmatprep.subr.bf16.mxu0 0
      %3181 = vmatpush1.bf16.msra.mxu0 0
      %3182 = vmatprep.subr.bf16.mxu0 0
      %3183 = vmatpush1.bf16.msra.mxu0 0
      %3184 = vmatprep.subr.bf16.mxu0 0
      %3185 = vmatpush1.bf16.msra.mxu0 0
      %3186 = vmatprep.subr.bf16.mxu0 0
      %3187 = vmatpush1.bf16.msra.mxu0 0
      %3188 = vmatprep.subr.bf16.mxu0 0
      %3189 = vmatpush1.bf16.msra.mxu0 0
      %3190 = vmatprep.subr.bf16.mxu0 0
      %3191 = vmatpush1.bf16.msra.mxu0 %v3174
      %3192 = vmatprep.subr.bf16.mxu0 0
      %3193 = vmatpush2.bf16.msra.mxu0 0
      %3194 = vmatprep.subr.bf16.mxu0 0
      %3195 = vmatpush2.bf16.msra.mxu0 0
      %3196 = vmatprep.subr.bf16.mxu0 0
      %3197 = vmatpush2.bf16.msra.mxu0 0
      %3198 = vmatprep.subr.bf16.mxu0 0
      %3199 = vmatpush2.bf16.msra.mxu0 0
      %3200 = vmatprep.subr.bf16.mxu0 0
      %3201 = vmatpush2.bf16.msra.mxu0 0
      %3202 = vmatprep.subr.bf16.mxu0 0
      %3203 = vmatpush2.bf16.msra.mxu0 0
      %3204 = vmatprep.subr.bf16.mxu0 0
      %3205 = vmatpush2.bf16.msra.mxu0 0
      %3206 = vmatprep.subr.bf16.mxu0 0
      %3207 = vmatpush2.bf16.msra.mxu0 0
      %3208 = vmatprep.mubr.bf16.mxu0 0
      %3209 = vmatmul.mubr.bf16.gmra.mxu0 %v3102
      %v3210 = vpop.f32.mrf.mxu0
      %v3211 = vadd.f32 0.0, %v3210
      %v3212 = vpop.f32.mrf.mxu0
      %v3213 = vpop.f32.mrf.mxu0
      %v3214 = vadd.f32 0.0, %v3213
      %v3215 = vpop.f32.mrf.mxu0
      %3216 = vmatprep.mubr.bf16.mxu0 0
      %3217 = vmatmul.mubr.bf16.gmra.mxu0 %v3105
      %v3218 = vpop.f32.mrf.mxu0
      %v3219 = vadd.f32 0.0, %v3218
      %v3220 = vpop.f32.mrf.mxu0
      %v3221 = vpop.f32.mrf.mxu0
      %v3222 = vadd.f32 0.0, %v3221
      %v3223 = vpop.f32.mrf.mxu0
      %3224 = vmatprep.mubr.bf16.mxu0 0
      %3225 = vmatmul.mubr.bf16.gmra.mxu0 %v3108
      %v3226 = vpop.f32.mrf.mxu0
      %v3227 = vadd.f32 0.0, %v3226
      %v3228 = vpop.f32.mrf.mxu0
      %v3229 = vpop.f32.mrf.mxu0
      %v3230 = vadd.f32 0.0, %v3229
      %v3231 = vpop.f32.mrf.mxu0
      %3232 = vmatprep.mubr.bf16.mxu0 0
      %3233 = vmatmul.mubr.bf16.gmra.mxu0 %v3111
      %v3234 = vpop.f32.mrf.mxu0
      %v3235 = vadd.f32 0.0, %v3234
      %v3236 = vpop.f32.mrf.mxu0
      %v3237 = vpop.f32.mrf.mxu0
      %v3238 = vadd.f32 0.0, %v3237
      %v3239 = vpop.f32.mrf.mxu0
      %3240 = vmatprep.mubr.bf16.mxu0 0
      %3241 = vmatmul.mubr.bf16.gmra.mxu0 %v3114
      %v3242 = vpop.f32.mrf.mxu0
      %v3243 = vadd.f32 0.0, %v3242
      %v3244 = vpop.f32.mrf.mxu0
      %v3245 = vpop.f32.mrf.mxu0
      %v3246 = vadd.f32 0.0, %v3245
      %v3247 = vpop.f32.mrf.mxu0
      %3248 = vmatprep.mubr.bf16.mxu0 0
      %3249 = vmatmul.mubr.bf16.gmra.mxu0 %v3117
      %v3250 = vpop.f32.mrf.mxu0
      %v3251 = vadd.f32 0.0, %v3250
      %v3252 = vpop.f32.mrf.mxu0
      %v3253 = vpop.f32.mrf.mxu0
      %v3254 = vadd.f32 0.0, %v3253
      %v3255 = vpop.f32.mrf.mxu0
      %3256 = vmatprep.mubr.bf16.mxu0 0
      %3257 = vmatmul.mubr.bf16.gmra.mxu0 %v3120
      %v3258 = vpop.f32.mrf.mxu0
      %v3259 = vadd.f32 0.0, %v3258
      %v3260 = vpop.f32.mrf.mxu0
      %v3261 = vpop.f32.mrf.mxu0
      %v3262 = vadd.f32 0.0, %v3261
      %v3263 = vpop.f32.mrf.mxu0
      %3264 = vmatprep.mubr.bf16.mxu0 0
      %3265 = vmatmul.mubr.bf16.gmra.mxu0 %v3123
      %v3266 = vpop.f32.mrf.mxu0
      %v3267 = vadd.f32 0.0, %v3266
      %v3268 = vpop.f32.mrf.mxu0
      %v3269 = vpop.f32.mrf.mxu0
      %v3270 = vadd.f32 0.0, %v3269
      %v3271 = vpop.f32.mrf.mxu0
      %3272 = vmatprep.mubr.bf16.mxu0 0
      %3273 = vmatmul.mubr.bf16.gmra.mxu0 %v3126
      %v3274 = vpop.f32.mrf.mxu0
      %v3275 = vadd.f32 0.0, %v3274
      %v3276 = vpop.f32.mrf.mxu0
      %v3277 = vpop.f32.mrf.mxu0
      %v3278 = vadd.f32 0.0, %v3277
      %v3279 = vpop.f32.mrf.mxu0
      %3280 = vmatprep.mubr.bf16.mxu0 0
      %3281 = vmatmul.mubr.bf16.gmra.mxu0 %v3129
      %v3282 = vpop.f32.mrf.mxu0
      %v3283 = vadd.f32 0.0, %v3282
      %v3284 = vpop.f32.mrf.mxu0
      %v3285 = vpop.f32.mrf.mxu0
      %v3286 = vadd.f32 0.0, %v3285
      %v3287 = vpop.f32.mrf.mxu0
      %3288 = vmatprep.mubr.bf16.mxu0 0
      %3289 = vmatmul.mubr.bf16.gmra.mxu0 %v3132
      %v3290 = vpop.f32.mrf.mxu0
      %v3291 = vadd.f32 0.0, %v3290
      %v3292 = vpop.f32.mrf.mxu0
      %v3293 = vpop.f32.mrf.mxu0
      %v3294 = vadd.f32 0.0, %v3293
      %v3295 = vpop.f32.mrf.mxu0
      %3296 = vmatprep.mubr.bf16.mxu0 0
      %3297 = vmatmul.mubr.bf16.gmra.mxu0 %v3135
      %v3298 = vpop.f32.mrf.mxu0
      %v3299 = vadd.f32 0.0, %v3298
      %v3300 = vpop.f32.mrf.mxu0
      %v3301 = vpop.f32.mrf.mxu0
      %v3302 = vadd.f32 0.0, %v3301
      %v3303 = vpop.f32.mrf.mxu0
      %3304 = vmatprep.mubr.bf16.mxu0 0
      %3305 = vmatmul.mubr.bf16.gmra.mxu0 %v3138
      %v3306 = vpop.f32.mrf.mxu0
      %v3307 = vadd.f32 0.0, %v3306
      %v3308 = vpop.f32.mrf.mxu0
      %v3309 = vpop.f32.mrf.mxu0
      %v3310 = vadd.f32 0.0, %v3309
      %v3311 = vpop.f32.mrf.mxu0
      %3312 = vmatprep.mubr.bf16.mxu0 0
      %3313 = vmatmul.mubr.bf16.gmra.mxu0 %v3141
      %v3314 = vpop.f32.mrf.mxu0
      %v3315 = vadd.f32 0.0, %v3314
      %v3316 = vpop.f32.mrf.mxu0
      %v3317 = vpop.f32.mrf.mxu0
      %v3318 = vadd.f32 0.0, %v3317
      %v3319 = vpop.f32.mrf.mxu0
      %3320 = vmatprep.mubr.bf16.mxu0 0
      %3321 = vmatmul.mubr.bf16.gmra.mxu0 %v3144
      %v3322 = vpop.f32.mrf.mxu0
      %v3323 = vadd.f32 0.0, %v3322
      %v3324 = vpop.f32.mrf.mxu0
      %v3325 = vpop.f32.mrf.mxu0
      %v3326 = vadd.f32 0.0, %v3325
      %v3327 = vpop.f32.mrf.mxu0
      %3328 = vmatprep.mubr.bf16.mxu0 0
      %3329 = vmatmul.mubr.bf16.gmra.mxu0 %v3147
      %v3330 = vpop.f32.mrf.mxu0
      %v3331 = vadd.f32 0.0, %v3330
      %v3332 = vpop.f32.mrf.mxu0
      %v3333 = vpop.f32.mrf.mxu0
      %v3334 = vadd.f32 0.0, %v3333
      %v3335 = vpop.f32.mrf.mxu0
      %3336 = vmatprep.mubr.bf16.mxu0 0
      %3337 = vmatmul.mubr.bf16.gmra.mxu0 %v3150
      %v3338 = vpop.f32.mrf.mxu0
      %v3339 = vadd.f32 0.0, %v3338
      %v3340 = vpop.f32.mrf.mxu0
      %v3341 = vpop.f32.mrf.mxu0
      %v3342 = vadd.f32 0.0, %v3341
      %v3343 = vpop.f32.mrf.mxu0
      %3344 = vmatprep.mubr.bf16.mxu0 0
      %3345 = vmatmul.mubr.bf16.gmra.mxu0 %v3153
      %v3346 = vpop.f32.mrf.mxu0
      %v3347 = vadd.f32 0.0, %v3346
      %v3348 = vpop.f32.mrf.mxu0
      %v3349 = vpop.f32.mrf.mxu0
      %v3350 = vadd.f32 0.0, %v3349
      %v3351 = vpop.f32.mrf.mxu0
      %3352 = vmatprep.mubr.bf16.mxu0 0
      %3353 = vmatmul.mubr.bf16.gmra.mxu0 %v3156
      %v3354 = vpop.f32.mrf.mxu0
      %v3355 = vadd.f32 0.0, %v3354
      %v3356 = vpop.f32.mrf.mxu0
      %v3357 = vpop.f32.mrf.mxu0
      %v3358 = vadd.f32 0.0, %v3357
      %v3359 = vpop.f32.mrf.mxu0
      %3360 = vmatprep.mubr.bf16.mxu0 0
      %3361 = vmatmul.mubr.bf16.gmra.mxu0 %v3159
      %v3362 = vpop.f32.mrf.mxu0
      %v3363 = vadd.f32 0.0, %v3362
      %v3364 = vpop.f32.mrf.mxu0
      %v3365 = vpop.f32.mrf.mxu0
      %v3366 = vadd.f32 0.0, %v3365
      %v3367 = vpop.f32.mrf.mxu0
      %3368 = vmatprep.mubr.bf16.mxu0 0
      %3369 = vmatmul.mubr.bf16.gmra.mxu0 %v3162
      %v3370 = vpop.f32.mrf.mxu0
      %v3371 = vadd.f32 0.0, %v3370
      %v3372 = vpop.f32.mrf.mxu0
      %v3373 = vpop.f32.mrf.mxu0
      %v3374 = vadd.f32 0.0, %v3373
      %v3375 = vpop.f32.mrf.mxu0
      %3376 = vmatprep.mubr.bf16.mxu0 0
      %3377 = vmatmul.mubr.bf16.gmra.mxu0 %v3165
      %v3378 = vpop.f32.mrf.mxu0
      %v3379 = vadd.f32 0.0, %v3378
      %v3380 = vpop.f32.mrf.mxu0
      %v3381 = vpop.f32.mrf.mxu0
      %v3382 = vadd.f32 0.0, %v3381
      %v3383 = vpop.f32.mrf.mxu0
      %3384 = vmatprep.mubr.bf16.mxu0 0
      %3385 = vmatmul.mubr.bf16.gmra.mxu0 %v3168
      %v3386 = vpop.f32.mrf.mxu0
      %v3387 = vadd.f32 0.0, %v3386
      %v3388 = vpop.f32.mrf.mxu0
      %v3389 = vpop.f32.mrf.mxu0
      %v3390 = vadd.f32 0.0, %v3389
      %v3391 = vpop.f32.mrf.mxu0
      %3392 = vmatprep.mubr.bf16.mxu0 0
      %3393 = vmatmul.mubr.bf16.gmra.mxu0 %v3171
      %v3394 = vpop.f32.mrf.mxu0
      %v3395 = vadd.f32 0.0, %v3394
      %v3396 = vpop.f32.mrf.mxu0
      %v3397 = vpop.f32.mrf.mxu0
      %v3398 = vadd.f32 0.0, %v3397
      %v3399 = vpop.f32.mrf.mxu0
      %3400 = vdwg.mxu0
      %v3401 = vadd.f32 %v2736, %v3211
      %v3402 = vadd.f32 %v2739, %v3214
      %v3403 = vadd.f32 %v2744, %v3219
      %v3404 = vadd.f32 %v2747, %v3222
      %v3405 = vadd.f32 %v2752, %v3227
      %v3406 = vadd.f32 %v2755, %v3230
      %v3407 = vadd.f32 %v2760, %v3235
      %v3408 = vadd.f32 %v2763, %v3238
      %v3409 = vadd.f32 %v2768, %v3243
      %v3410 = vadd.f32 %v2771, %v3246
      %v3411 = vadd.f32 %v2776, %v3251
      %v3412 = vadd.f32 %v2779, %v3254
      %v3413 = vadd.f32 %v2784, %v3259
      %v3414 = vadd.f32 %v2787, %v3262
      %v3415 = vadd.f32 %v2792, %v3267
      %v3416 = vadd.f32 %v2795, %v3270
      %v3417 = vadd.f32 %v2800, %v3275
      %v3418 = vadd.f32 %v2803, %v3278
      %v3419 = vadd.f32 %v2808, %v3283
      %v3420 = vadd.f32 %v2811, %v3286
      %v3421 = vadd.f32 %v2816, %v3291
      %v3422 = vadd.f32 %v2819, %v3294
      %v3423 = vadd.f32 %v2824, %v3299
      %v3424 = vadd.f32 %v2827, %v3302
      %v3425 = vadd.f32 %v2832, %v3307
      %v3426 = vadd.f32 %v2835, %v3310
      %v3427 = vadd.f32 %v2840, %v3315
      %v3428 = vadd.f32 %v2843, %v3318
      %v3429 = vadd.f32 %v2848, %v3323
      %v3430 = vadd.f32 %v2851, %v3326
      %v3431 = vadd.f32 %v2856, %v3331
      %v3432 = vadd.f32 %v2859, %v3334
      %v3433 = vadd.f32 %v2864, %v3339
      %v3434 = vadd.f32 %v2867, %v3342
      %v3435 = vadd.f32 %v2872, %v3347
      %v3436 = vadd.f32 %v2875, %v3350
      %v3437 = vadd.f32 %v2880, %v3355
      %v3438 = vadd.f32 %v2883, %v3358
      %v3439 = vadd.f32 %v2888, %v3363
      %v3440 = vadd.f32 %v2891, %v3366
      %v3441 = vadd.f32 %v2896, %v3371
      %v3442 = vadd.f32 %v2899, %v3374
      %v3443 = vadd.f32 %v2904, %v3379
      %v3444 = vadd.f32 %v2907, %v3382
      %v3445 = vadd.f32 %v2912, %v3387
      %v3446 = vadd.f32 %v2915, %v3390
      %v3447 = vadd.f32 %v2920, %v3395
      %v3448 = vadd.f32 %v2923, %v3398
      %v3449 = vld [vmem:[%s3] sm:$0x1]
      %v3451 = vlaneseq
      %v3452 = vshrl.u32 %v3451, 7
      %v3453 = vsub.s32 0, %v3452
      %v3454 = vrot.slane %v3449, %v3453
      %v3456 = vadd.f32 %v3401, %v3454
      %v3457 = vadd.f32 %v3402, %v3454
      %v3458 = vadd.f32 %v3403, %v3454
      %v3459 = vadd.f32 %v3404, %v3454
      %v3460 = vadd.f32 %v3405, %v3454
      %v3461 = vadd.f32 %v3406, %v3454
      %v3462 = vadd.f32 %v3407, %v3454
      %v3463 = vadd.f32 %v3408, %v3454
      %v3464 = vadd.f32 %v3409, %v3454
      %v3465 = vadd.f32 %v3410, %v3454
      %v3466 = vadd.f32 %v3411, %v3454
      %v3467 = vadd.f32 %v3412, %v3454
      %v3468 = vadd.f32 %v3413, %v3454
      %v3469 = vadd.f32 %v3414, %v3454
      %v3470 = vadd.f32 %v3415, %v3454
      %v3471 = vadd.f32 %v3416, %v3454
      %v3472 = vadd.f32 %v3417, %v3454
      %v3473 = vadd.f32 %v3418, %v3454
      %v3474 = vadd.f32 %v3419, %v3454
      %v3475 = vadd.f32 %v3420, %v3454
      %v3476 = vadd.f32 %v3421, %v3454
      %v3477 = vadd.f32 %v3422, %v3454
      %v3478 = vadd.f32 %v3423, %v3454
      %v3479 = vadd.f32 %v3424, %v3454
      %v3480 = vadd.f32 %v3425, %v3454
      %v3481 = vadd.f32 %v3426, %v3454
      %v3482 = vadd.f32 %v3427, %v3454
      %v3483 = vadd.f32 %v3428, %v3454
      %v3484 = vadd.f32 %v3429, %v3454
      %v3485 = vadd.f32 %v3430, %v3454
      %v3486 = vadd.f32 %v3431, %v3454
      %v3487 = vadd.f32 %v3432, %v3454
      %v3488 = vadd.f32 %v3433, %v3454
      %v3489 = vadd.f32 %v3434, %v3454
      %v3490 = vadd.f32 %v3435, %v3454
      %v3491 = vadd.f32 %v3436, %v3454
      %v3492 = vadd.f32 %v3437, %v3454
      %v3493 = vadd.f32 %v3438, %v3454
      %v3494 = vadd.f32 %v3439, %v3454
      %v3495 = vadd.f32 %v3440, %v3454
      %v3496 = vadd.f32 %v3441, %v3454
      %v3497 = vadd.f32 %v3442, %v3454
      %v3498 = vadd.f32 %v3443, %v3454
      %v3499 = vadd.f32 %v3444, %v3454
      %v3500 = vadd.f32 %v3445, %v3454
      %v3501 = vadd.f32 %v3446, %v3454
      %v3502 = vadd.f32 %v3447, %v3454
      %v3503 = vadd.f32 %v3448, %v3454
      %v3504 = vmax.f32 %v3456, 0.0
      %v3505 = vmax.f32 %v3457, 0.0
      %v3506 = vmax.f32 %v3458, 0.0
      %v3507 = vmax.f32 %v3459, 0.0
      %v3508 = vmax.f32 %v3460, 0.0
      %v3509 = vmax.f32 %v3461, 0.0
      %v3510 = vmax.f32 %v3462, 0.0
      %v3511 = vmax.f32 %v3463, 0.0
      %v3512 = vmax.f32 %v3464, 0.0
      %v3513 = vmax.f32 %v3465, 0.0
      %v3514 = vmax.f32 %v3466, 0.0
      %v3515 = vmax.f32 %v3467, 0.0
      %v3516 = vmax.f32 %v3468, 0.0
      %v3517 = vmax.f32 %v3469, 0.0
      %v3518 = vmax.f32 %v3470, 0.0
      %v3519 = vmax.f32 %v3471, 0.0
      %v3520 = vmax.f32 %v3472, 0.0
      %v3521 = vmax.f32 %v3473, 0.0
      %v3522 = vmax.f32 %v3474, 0.0
      %v3523 = vmax.f32 %v3475, 0.0
      %v3524 = vmax.f32 %v3476, 0.0
      %v3525 = vmax.f32 %v3477, 0.0
      %v3526 = vmax.f32 %v3478, 0.0
      %v3527 = vmax.f32 %v3479, 0.0
      %v3528 = vmax.f32 %v3480, 0.0
      %v3529 = vmax.f32 %v3481, 0.0
      %v3530 = vmax.f32 %v3482, 0.0
      %v3531 = vmax.f32 %v3483, 0.0
      %v3532 = vmax.f32 %v3484, 0.0
      %v3533 = vmax.f32 %v3485, 0.0
      %v3534 = vmax.f32 %v3486, 0.0
      %v3535 = vmax.f32 %v3487, 0.0
      %v3536 = vmax.f32 %v3488, 0.0
      %v3537 = vmax.f32 %v3489, 0.0
      %v3538 = vmax.f32 %v3490, 0.0
      %v3539 = vmax.f32 %v3491, 0.0
      %v3540 = vmax.f32 %v3492, 0.0
      %v3541 = vmax.f32 %v3493, 0.0
      %v3542 = vmax.f32 %v3494, 0.0
      %v3543 = vmax.f32 %v3495, 0.0
      %v3544 = vmax.f32 %v3496, 0.0
      %v3545 = vmax.f32 %v3497, 0.0
      %v3546 = vmax.f32 %v3498, 0.0
      %v3547 = vmax.f32 %v3499, 0.0
      %v3548 = vmax.f32 %v3500, 0.0
      %v3549 = vmax.f32 %v3501, 0.0
      %v3550 = vmax.f32 %v3502, 0.0
      %v3551 = vmax.f32 %v3503, 0.0
      %v3552 = vpack.c.bf16 %v3505, %v3504
      %v3553 = vpack.c.bf16 %v3507, %v3506
      %v3554 = vpack.c.bf16 %v3509, %v3508
      %v3555 = vpack.c.bf16 %v3511, %v3510
      %v3556 = vpack.c.bf16 %v3513, %v3512
      %v3557 = vpack.c.bf16 %v3515, %v3514
      %v3558 = vpack.c.bf16 %v3517, %v3516
      %v3559 = vpack.c.bf16 %v3519, %v3518
      %v3560 = vpack.c.bf16 %v3521, %v3520
      %v3561 = vpack.c.bf16 %v3523, %v3522
      %v3562 = vpack.c.bf16 %v3525, %v3524
      %v3563 = vpack.c.bf16 %v3527, %v3526
      %v3564 = vpack.c.bf16 %v3529, %v3528
      %v3565 = vpack.c.bf16 %v3531, %v3530
      %v3566 = vpack.c.bf16 %v3533, %v3532
      %v3567 = vpack.c.bf16 %v3535, %v3534
      %v3568 = vpack.c.bf16 %v3537, %v3536
      %v3569 = vpack.c.bf16 %v3539, %v3538
      %v3570 = vpack.c.bf16 %v3541, %v3540
      %v3571 = vpack.c.bf16 %v3543, %v3542
      %v3572 = vpack.c.bf16 %v3545, %v3544
      %v3573 = vpack.c.bf16 %v3547, %v3546
      %v3574 = vpack.c.bf16 %v3549, %v3548
      %v3575 = vpack.c.bf16 %v3551, %v3550
      %v3577 = vunpack.c.l.b16 %v3552
      %v3578 = vunpack.c.h.b16 %v3552
      %v3579 = vpack.c.b16 %v3577, %v3577
      %v3580 = vpack.c.b16 %v3578, %v3578
      %3581 = vrot.lane.b32.xlu0 %v3579, 4
      %v3582 = vpop.permute.xlu0 %3581
      %3583 = vrot.lane.b32.xlu0 %v3580, 4
      %v3584 = vpop.permute.xlu0 %3583
      %3587 = vst.msk [vmem:[#allocation2 + $0x10] sm:$0xf] %vm251, %v3582
      %3588 = vst.msk [vmem:[#allocation2 + $0x14] sm:$0xf] %vm251, %v3584
      %v3591 = vunpack.c.h.b16 %v3553
      %v3592 = vunpack.c.l.b16 %v3554
      %v3593 = vpack.c.b16 %v3591, %v3591
      %v3594 = vpack.c.b16 %v3592, %v3592
      %3595 = vrot.lane.b32.xlu0 %v3593, 4
      %v3596 = vpop.permute.xlu0 %3595
      %3597 = vrot.lane.b32.xlu0 %v3594, 4
      %v3598 = vpop.permute.xlu0 %3597
      %3601 = vst.msk [vmem:[#allocation2 + $0x1c] sm:$0xf] %vm251, %v3596
      %3602 = vst.msk [vmem:[#allocation2 + $0x20] sm:$0xf] %vm251, %v3598
      %v3604 = vunpack.c.l.b16 %v3555
      %v3605 = vunpack.c.h.b16 %v3555
      %v3606 = vpack.c.b16 %v3604, %v3604
      %v3607 = vpack.c.b16 %v3605, %v3605
      %3608 = vrot.lane.b32.xlu0 %v3606, 4
      %v3609 = vpop.permute.xlu0 %3608
      %3610 = vrot.lane.b32.xlu0 %v3607, 4
      %v3611 = vpop.permute.xlu0 %3610
      %3614 = vst.msk [vmem:[#allocation2 + $0x28] sm:$0xf] %vm251, %v3609
      %3615 = vst.msk [vmem:[#allocation2 + $0x2c] sm:$0xf] %vm251, %v3611
      %v3618 = vunpack.c.h.b16 %v3556
      %v3619 = vunpack.c.l.b16 %v3557
      %v3620 = vpack.c.b16 %v3618, %v3618
      %v3621 = vpack.c.b16 %v3619, %v3619
      %3622 = vrot.lane.b32.xlu0 %v3620, 4
      %v3623 = vpop.permute.xlu0 %3622
      %3624 = vrot.lane.b32.xlu0 %v3621, 4
      %v3625 = vpop.permute.xlu0 %3624
      %3628 = vst.msk [vmem:[#allocation2 + $0x34] sm:$0xf] %vm251, %v3623
      %3629 = vst.msk [vmem:[#allocation2 + $0x38] sm:$0xf] %vm251, %v3625
      %v3631 = vunpack.c.l.b16 %v3558
      %v3632 = vunpack.c.h.b16 %v3558
      %v3633 = vpack.c.b16 %v3631, %v3631
      %v3634 = vpack.c.b16 %v3632, %v3632
      %3635 = vrot.lane.b32.xlu0 %v3633, 4
      %v3636 = vpop.permute.xlu0 %3635
      %3637 = vrot.lane.b32.xlu0 %v3634, 4
      %v3638 = vpop.permute.xlu0 %3637
      %3641 = vst.msk [vmem:[#allocation2 + $0x40] sm:$0xf] %vm251, %v3636
      %3642 = vst.msk [vmem:[#allocation2 + $0x44] sm:$0xf] %vm251, %v3638
      %v3645 = vunpack.c.h.b16 %v3559
      %v3646 = vunpack.c.l.b16 %v3560
      %v3647 = vpack.c.b16 %v3645, %v3645
      %v3648 = vpack.c.b16 %v3646, %v3646
      %3649 = vrot.lane.b32.xlu0 %v3647, 4
      %v3650 = vpop.permute.xlu0 %3649
      %3651 = vrot.lane.b32.xlu0 %v3648, 4
      %v3652 = vpop.permute.xlu0 %3651
      %3655 = vst.msk [vmem:[#allocation2 + $0x4c] sm:$0xf] %vm251, %v3650
      %3656 = vst.msk [vmem:[#allocation2 + $0x50] sm:$0xf] %vm251, %v3652
      %v3658 = vunpack.c.l.b16 %v3561
      %v3659 = vunpack.c.h.b16 %v3561
      %v3660 = vpack.c.b16 %v3658, %v3658
      %v3661 = vpack.c.b16 %v3659, %v3659
      %3662 = vrot.lane.b32.xlu0 %v3660, 4
      %v3663 = vpop.permute.xlu0 %3662
      %3664 = vrot.lane.b32.xlu0 %v3661, 4
      %v3665 = vpop.permute.xlu0 %3664
      %3668 = vst.msk [vmem:[#allocation2 + $0x58] sm:$0xf] %vm251, %v3663
      %3669 = vst.msk [vmem:[#allocation2 + $0x5c] sm:$0xf] %vm251, %v3665
      %v3672 = vunpack.c.h.b16 %v3562
      %v3673 = vunpack.c.l.b16 %v3563
      %v3674 = vpack.c.b16 %v3672, %v3672
      %v3675 = vpack.c.b16 %v3673, %v3673
      %3676 = vrot.lane.b32.xlu0 %v3674, 4
      %v3677 = vpop.permute.xlu0 %3676
      %3678 = vrot.lane.b32.xlu0 %v3675, 4
      %v3679 = vpop.permute.xlu0 %3678
      %3682 = vst.msk [vmem:[#allocation2 + $0x64] sm:$0xf] %vm251, %v3677
      %3683 = vst.msk [vmem:[#allocation2 + $0x68] sm:$0xf] %vm251, %v3679
      %v3685 = vunpack.c.l.b16 %v3564
      %v3686 = vunpack.c.h.b16 %v3564
      %v3687 = vpack.c.b16 %v3685, %v3685
      %v3688 = vpack.c.b16 %v3686, %v3686
      %3689 = vrot.lane.b32.xlu0 %v3687, 4
      %v3690 = vpop.permute.xlu0 %3689
      %3691 = vrot.lane.b32.xlu0 %v3688, 4
      %v3692 = vpop.permute.xlu0 %3691
      %3695 = vst.msk [vmem:[#allocation2 + $0x70] sm:$0xf] %vm251, %v3690
      %3696 = vst.msk [vmem:[#allocation2 + $0x74] sm:$0xf] %vm251, %v3692
      %v3699 = vunpack.c.h.b16 %v3565
      %v3700 = vunpack.c.l.b16 %v3566
      %v3701 = vpack.c.b16 %v3699, %v3699
      %v3702 = vpack.c.b16 %v3700, %v3700
      %3703 = vrot.lane.b32.xlu0 %v3701, 4
      %v3704 = vpop.permute.xlu0 %3703
      %3705 = vrot.lane.b32.xlu0 %v3702, 4
      %v3706 = vpop.permute.xlu0 %3705
      %3709 = vst.msk [vmem:[#allocation2 + $0x7c] sm:$0xf] %vm251, %v3704
      %3710 = vst.msk [vmem:[#allocation2 + $0x80] sm:$0xf] %vm251, %v3706
      %v3712 = vunpack.c.l.b16 %v3567
      %v3713 = vunpack.c.h.b16 %v3567
      %v3714 = vpack.c.b16 %v3712, %v3712
      %v3715 = vpack.c.b16 %v3713, %v3713
      %3716 = vrot.lane.b32.xlu0 %v3714, 4
      %v3717 = vpop.permute.xlu0 %3716
      %3718 = vrot.lane.b32.xlu0 %v3715, 4
      %v3719 = vpop.permute.xlu0 %3718
      %3722 = vst.msk [vmem:[#allocation2 + $0x88] sm:$0xf] %vm251, %v3717
      %3723 = vst.msk [vmem:[#allocation2 + $0x8c] sm:$0xf] %vm251, %v3719
      %v3726 = vunpack.c.h.b16 %v3568
      %v3727 = vunpack.c.l.b16 %v3569
      %v3728 = vpack.c.b16 %v3726, %v3726
      %v3729 = vpack.c.b16 %v3727, %v3727
      %3730 = vrot.lane.b32.xlu0 %v3728, 4
      %v3731 = vpop.permute.xlu0 %3730
      %3732 = vrot.lane.b32.xlu0 %v3729, 4
      %v3733 = vpop.permute.xlu0 %3732
      %3736 = vst.msk [vmem:[#allocation2 + $0x94] sm:$0xf] %vm251, %v3731
      %3737 = vst.msk [vmem:[#allocation2 + $0x98] sm:$0xf] %vm251, %v3733
      %v3739 = vunpack.c.l.b16 %v3570
      %v3740 = vunpack.c.h.b16 %v3570
      %v3741 = vpack.c.b16 %v3739, %v3739
      %v3742 = vpack.c.b16 %v3740, %v3740
      %3743 = vrot.lane.b32.xlu0 %v3741, 4
      %v3744 = vpop.permute.xlu0 %3743
      %3745 = vrot.lane.b32.xlu0 %v3742, 4
      %v3746 = vpop.permute.xlu0 %3745
      %3749 = vst.msk [vmem:[#allocation2 + $0xa0] sm:$0xf] %vm251, %v3744
      %3750 = vst.msk [vmem:[#allocation2 + $0xa4] sm:$0xf] %vm251, %v3746
      %v3753 = vunpack.c.h.b16 %v3571
      %v3754 = vunpack.c.l.b16 %v3572
      %v3755 = vpack.c.b16 %v3753, %v3753
      %v3756 = vpack.c.b16 %v3754, %v3754
      %3757 = vrot.lane.b32.xlu0 %v3755, 4
      %v3758 = vpop.permute.xlu0 %3757
      %3759 = vrot.lane.b32.xlu0 %v3756, 4
      %v3760 = vpop.permute.xlu0 %3759
      %3763 = vst.msk [vmem:[#allocation2 + $0xac] sm:$0xf] %vm251, %v3758
      %3764 = vst.msk [vmem:[#allocation2 + $0xb0] sm:$0xf] %vm251, %v3760
      %v3766 = vunpack.c.l.b16 %v3573
      %v3767 = vunpack.c.h.b16 %v3573
      %v3768 = vpack.c.b16 %v3766, %v3766
      %v3769 = vpack.c.b16 %v3767, %v3767
      %3770 = vrot.lane.b32.xlu0 %v3768, 4
      %v3771 = vpop.permute.xlu0 %3770
      %3772 = vrot.lane.b32.xlu0 %v3769, 4
      %v3773 = vpop.permute.xlu0 %3772
      %3776 = vst.msk [vmem:[#allocation2 + $0xb8] sm:$0xf] %vm251, %v3771
      %3777 = vst.msk [vmem:[#allocation2 + $0xbc] sm:$0xf] %vm251, %v3773
      %v3780 = vunpack.c.h.b16 %v3574
      %v3781 = vunpack.c.l.b16 %v3575
      %v3782 = vpack.c.b16 %v3780, %v3780
      %v3783 = vpack.c.b16 %v3781, %v3781
      %3784 = vrot.lane.b32.xlu0 %v3782, 4
      %v3785 = vpop.permute.xlu0 %3784
      %3786 = vrot.lane.b32.xlu0 %v3783, 4
      %v3787 = vpop.permute.xlu0 %3786
      %3790 = vst.msk [vmem:[#allocation2 + $0xc4] sm:$0xf] %vm251, %v3785
      %3791 = vst.msk [vmem:[#allocation2 + $0xc8] sm:$0xf] %vm251, %v3787
      %v3792 = vld [vmem:[#allocation2] sm:$0x8]
      %v3793 = vld [vmem:[#allocation2 + $0x4] sm:$0xf]
      %v3794 = vld [vmem:[#allocation2 + $0x8] sm:$0xf]
      %v3795 = vld [vmem:[#allocation2 + $0xc] sm:$0xf]
      %v3796 = vld [vmem:[#allocation2 + $0x10] sm:$0xf]
      %v3797 = vld [vmem:[#allocation2 + $0x14] sm:$0xf]
      %v3798 = vld [vmem:[#allocation2 + $0x18] sm:$0xf]
      %v3799 = vld [vmem:[#allocation2 + $0x1c] sm:$0xf]
      %v3800 = vld [vmem:[#allocation2 + $0x20] sm:$0xf]
      %v3801 = vld [vmem:[#allocation2 + $0x24] sm:$0xf]
      %v3802 = vld [vmem:[#allocation2 + $0x28] sm:$0xf]
      %v3803 = vld [vmem:[#allocation2 + $0x2c] sm:$0xf]
      %v3804 = vld [vmem:[#allocation2 + $0x30] sm:$0xf]
      %v3805 = vld [vmem:[#allocation2 + $0x34] sm:$0xf]
      %v3806 = vld [vmem:[#allocation2 + $0x38] sm:$0xf]
      %v3807 = vld [vmem:[#allocation2 + $0x3c] sm:$0xf]
      %v3808 = vld [vmem:[#allocation2 + $0x40] sm:$0xf]
      %v3809 = vld [vmem:[#allocation2 + $0x44] sm:$0xf]
      %v3810 = vld [vmem:[#allocation2 + $0x48] sm:$0xf]
      %v3811 = vld [vmem:[#allocation2 + $0x4c] sm:$0xf]
      %v3812 = vld [vmem:[#allocation2 + $0x50] sm:$0xf]
      %v3813 = vld [vmem:[#allocation2 + $0x54] sm:$0xf]
      %v3814 = vld [vmem:[#allocation2 + $0x58] sm:$0xf]
      %v3815 = vld [vmem:[#allocation2 + $0x5c] sm:$0xf]
      %v3816 = vld [vmem:[#allocation2 + $0x60] sm:$0xf]
      %v3817 = vld [vmem:[#allocation2 + $0x64] sm:$0xf]
      %v3818 = vld [vmem:[#allocation2 + $0x68] sm:$0xf]
      %v3819 = vld [vmem:[#allocation2 + $0x6c] sm:$0xf]
      %v3820 = vld [vmem:[#allocation2 + $0x70] sm:$0xf]
      %v3821 = vld [vmem:[#allocation2 + $0x74] sm:$0xf]
      %v3822 = vld [vmem:[#allocation2 + $0x78] sm:$0xf]
      %v3823 = vld [vmem:[#allocation2 + $0x7c] sm:$0xf]
      %v3824 = vld [vmem:[#allocation2 + $0x80] sm:$0xf]
      %v3825 = vld [vmem:[#allocation2 + $0x84] sm:$0xf]
      %v3826 = vld [vmem:[#allocation2 + $0x88] sm:$0xf]
      %v3827 = vld [vmem:[#allocation2 + $0x8c] sm:$0xf]
      %v3828 = vld [vmem:[#allocation2 + $0x90] sm:$0xf]
      %v3829 = vld [vmem:[#allocation2 + $0x94] sm:$0xf]
      %v3830 = vld [vmem:[#allocation2 + $0x98] sm:$0xf]
      %v3831 = vld [vmem:[#allocation2 + $0x9c] sm:$0xf]
      %v3832 = vld [vmem:[#allocation2 + $0xa0] sm:$0xf]
      %v3833 = vld [vmem:[#allocation2 + $0xa4] sm:$0xf]
      %v3834 = vld [vmem:[#allocation2 + $0xa8] sm:$0xf]
      %v3835 = vld [vmem:[#allocation2 + $0xac] sm:$0xf]
      %v3836 = vld [vmem:[#allocation2 + $0xb0] sm:$0xf]
      %v3837 = vld [vmem:[#allocation2 + $0xb4] sm:$0xf]
      %v3838 = vld [vmem:[#allocation2 + $0xb8] sm:$0xf]
      %v3839 = vld [vmem:[#allocation2 + $0xbc] sm:$0xf]
      %v3840 = vld [vmem:[#allocation2 + $0xc0] sm:$0xf]
      %v3841 = vld [vmem:[#allocation2 + $0xc4] sm:$0xf]
      %v3842 = vld [vmem:[#allocation2 + $0xc8] sm:$0xf]
      %v3843 = vld [vmem:[#allocation2 + $0xcc] sm:$0xf]
      %v3844 = vld [vmem:[#allocation2 + $0xd0] sm:$0xf]
      %v3845 = vld [vmem:[#allocation2 + $0xd4] sm:$0xf]
      %v3846 = vld [vmem:[#allocation2 + $0xd8] sm:$0xf]
      %v3848 = vshrl.u32 %v3792, 16
      %v3850 = vrot.slane %v3848, 7
      %v3851 = vrot.slane %v3850, 4
      %v3853 = vshrl.u32 %v3793, 16
      %v3855 = vrot.slane %v3853, 7
      %v3856 = vshll.u32 %v3793, 16
      %v3858 = vor.u32 %v3855, %v3856
      %v3859 = vsel %vm581, %v3851, %v3858
      %v3860 = vrot.slane %v3855, 4
      %v3862 = vshrl.u32 %v3794, 16
      %v3864 = vrot.slane %v3862, 7
      %v3865 = vshll.u32 %v3794, 16
      %v3867 = vor.u32 %v3864, %v3865
      %v3868 = vsel %vm581, %v3860, %v3867
      %v3869 = vrot.slane %v3864, 4
      %v3871 = vshrl.u32 %v3795, 16
      %v3873 = vrot.slane %v3871, 7
      %v3874 = vshll.u32 %v3795, 16
      %v3876 = vor.u32 %v3873, %v3874
      %v3877 = vsel %vm581, %v3869, %v3876
      %v3878 = vrot.slane %v3873, 4
      %v3880 = vshrl.u32 %v3796, 16
      %v3882 = vrot.slane %v3880, 7
      %v3883 = vshll.u32 %v3796, 16
      %v3885 = vor.u32 %v3882, %v3883
      %v3886 = vsel %vm581, %v3878, %v3885
      %v3887 = vrot.slane %v3882, 4
      %v3889 = vshrl.u32 %v3797, 16
      %v3891 = vrot.slane %v3889, 7
      %v3892 = vshll.u32 %v3797, 16
      %v3894 = vor.u32 %v3891, %v3892
      %v3895 = vsel %vm581, %v3887, %v3894
      %v3896 = vrot.slane %v3891, 4
      %v3898 = vshrl.u32 %v3798, 16
      %v3900 = vrot.slane %v3898, 7
      %v3901 = vshll.u32 %v3798, 16
      %v3903 = vor.u32 %v3900, %v3901
      %v3904 = vsel %vm581, %v3896, %v3903
      %v3905 = vrot.slane %v3900, 4
      %v3907 = vshrl.u32 %v3799, 16
      %v3909 = vrot.slane %v3907, 7
      %v3910 = vshll.u32 %v3799, 16
      %v3912 = vor.u32 %v3909, %v3910
      %v3913 = vsel %vm581, %v3905, %v3912
      %v3914 = vrot.slane %v3909, 4
      %v3916 = vshrl.u32 %v3800, 16
      %v3918 = vrot.slane %v3916, 7
      %v3919 = vshll.u32 %v3800, 16
      %v3921 = vor.u32 %v3918, %v3919
      %v3922 = vsel %vm581, %v3914, %v3921
      %v3923 = vrot.slane %v3918, 4
      %v3925 = vshrl.u32 %v3801, 16
      %v3927 = vrot.slane %v3925, 7
      %v3928 = vshll.u32 %v3801, 16
      %v3930 = vor.u32 %v3927, %v3928
      %v3931 = vsel %vm581, %v3923, %v3930
      %v3932 = vrot.slane %v3927, 4
      %v3934 = vshrl.u32 %v3802, 16
      %v3936 = vrot.slane %v3934, 7
      %v3937 = vshll.u32 %v3802, 16
      %v3939 = vor.u32 %v3936, %v3937
      %v3940 = vsel %vm581, %v3932, %v3939
      %v3941 = vrot.slane %v3936, 4
      %v3943 = vshrl.u32 %v3803, 16
      %v3945 = vrot.slane %v3943, 7
      %v3946 = vshll.u32 %v3803, 16
      %v3948 = vor.u32 %v3945, %v3946
      %v3949 = vsel %vm581, %v3941, %v3948
      %v3950 = vrot.slane %v3945, 4
      %v3952 = vshrl.u32 %v3804, 16
      %v3954 = vrot.slane %v3952, 7
      %v3955 = vshll.u32 %v3804, 16
      %v3957 = vor.u32 %v3954, %v3955
      %v3958 = vsel %vm581, %v3950, %v3957
      %v3959 = vrot.slane %v3954, 4
      %v3961 = vshrl.u32 %v3805, 16
      %v3963 = vrot.slane %v3961, 7
      %v3964 = vshll.u32 %v3805, 16
      %v3966 = vor.u32 %v3963, %v3964
      %v3967 = vsel %vm581, %v3959, %v3966
      %v3968 = vrot.slane %v3963, 4
      %v3970 = vshrl.u32 %v3806, 16
      %v3972 = vrot.slane %v3970, 7
      %v3973 = vshll.u32 %v3806, 16
      %v3975 = vor.u32 %v3972, %v3973
      %v3976 = vsel %vm581, %v3968, %v3975
      %v3977 = vrot.slane %v3972, 4
      %v3979 = vshrl.u32 %v3807, 16
      %v3981 = vrot.slane %v3979, 7
      %v3982 = vshll.u32 %v3807, 16
      %v3984 = vor.u32 %v3981, %v3982
      %v3985 = vsel %vm581, %v3977, %v3984
      %v3986 = vrot.slane %v3981, 4
      %v3988 = vshrl.u32 %v3808, 16
      %v3990 = vrot.slane %v3988, 7
      %v3991 = vshll.u32 %v3808, 16
      %v3993 = vor.u32 %v3990, %v3991
      %v3994 = vsel %vm581, %v3986, %v3993
      %v3995 = vrot.slane %v3990, 4
      %v3997 = vshrl.u32 %v3809, 16
      %v3999 = vrot.slane %v3997, 7
      %v4000 = vshll.u32 %v3809, 16
      %v4002 = vor.u32 %v3999, %v4000
      %v4003 = vsel %vm581, %v3995, %v4002
      %v4004 = vrot.slane %v3999, 4
      %v4006 = vshrl.u32 %v3810, 16
      %v4008 = vrot.slane %v4006, 7
      %v4009 = vshll.u32 %v3810, 16
      %v4011 = vor.u32 %v4008, %v4009
      %v4012 = vsel %vm581, %v4004, %v4011
      %v4013 = vrot.slane %v4008, 4
      %v4015 = vshrl.u32 %v3811, 16
      %v4017 = vrot.slane %v4015, 7
      %v4018 = vshll.u32 %v3811, 16
      %v4020 = vor.u32 %v4017, %v4018
      %v4021 = vsel %vm581, %v4013, %v4020
      %v4022 = vrot.slane %v4017, 4
      %v4024 = vshrl.u32 %v3812, 16
      %v4026 = vrot.slane %v4024, 7
      %v4027 = vshll.u32 %v3812, 16
      %v4029 = vor.u32 %v4026, %v4027
      %v4030 = vsel %vm581, %v4022, %v4029
      %v4031 = vrot.slane %v4026, 4
      %v4033 = vshrl.u32 %v3813, 16
      %v4035 = vrot.slane %v4033, 7
      %v4036 = vshll.u32 %v3813, 16
      %v4038 = vor.u32 %v4035, %v4036
      %v4039 = vsel %vm581, %v4031, %v4038
      %v4040 = vrot.slane %v4035, 4
      %v4042 = vshrl.u32 %v3814, 16
      %v4044 = vrot.slane %v4042, 7
      %v4045 = vshll.u32 %v3814, 16
      %v4047 = vor.u32 %v4044, %v4045
      %v4048 = vsel %vm581, %v4040, %v4047
      %v4049 = vrot.slane %v4044, 4
      %v4051 = vshrl.u32 %v3815, 16
      %v4053 = vrot.slane %v4051, 7
      %v4054 = vshll.u32 %v3815, 16
      %v4056 = vor.u32 %v4053, %v4054
      %v4057 = vsel %vm581, %v4049, %v4056
      %v4058 = vrot.slane %v4053, 4
      %v4060 = vshrl.u32 %v3816, 16
      %v4062 = vrot.slane %v4060, 7
      %v4063 = vshll.u32 %v3816, 16
      %v4065 = vor.u32 %v4062, %v4063
      %v4066 = vsel %vm581, %v4058, %v4065
      %v4067 = vrot.slane %v4062, 4
      %v4069 = vshrl.u32 %v3817, 16
      %v4071 = vrot.slane %v4069, 7
      %v4072 = vshll.u32 %v3817, 16
      %v4074 = vor.u32 %v4071, %v4072
      %v4075 = vsel %vm581, %v4067, %v4074
      %v4076 = vrot.slane %v4071, 4
      %v4078 = vshrl.u32 %v3818, 16
      %v4080 = vrot.slane %v4078, 7
      %v4081 = vshll.u32 %v3818, 16
      %v4083 = vor.u32 %v4080, %v4081
      %v4084 = vsel %vm581, %v4076, %v4083
      %v4085 = vrot.slane %v4080, 4
      %v4087 = vshrl.u32 %v3819, 16
      %v4089 = vrot.slane %v4087, 7
      %v4090 = vshll.u32 %v3819, 16
      %v4092 = vor.u32 %v4089, %v4090
      %v4093 = vsel %vm581, %v4085, %v4092
      %v4094 = vrot.slane %v4089, 4
      %v4096 = vshrl.u32 %v3820, 16
      %v4098 = vrot.slane %v4096, 7
      %v4099 = vshll.u32 %v3820, 16
      %v4101 = vor.u32 %v4098, %v4099
      %v4102 = vsel %vm581, %v4094, %v4101
      %v4103 = vrot.slane %v4098, 4
      %v4105 = vshrl.u32 %v3821, 16
      %v4107 = vrot.slane %v4105, 7
      %v4108 = vshll.u32 %v3821, 16
      %v4110 = vor.u32 %v4107, %v4108
      %v4111 = vsel %vm581, %v4103, %v4110
      %v4112 = vrot.slane %v4107, 4
      %v4114 = vshrl.u32 %v3822, 16
      %v4116 = vrot.slane %v4114, 7
      %v4117 = vshll.u32 %v3822, 16
      %v4119 = vor.u32 %v4116, %v4117
      %v4120 = vsel %vm581, %v4112, %v4119
      %v4121 = vrot.slane %v4116, 4
      %v4123 = vshrl.u32 %v3823, 16
      %v4125 = vrot.slane %v4123, 7
      %v4126 = vshll.u32 %v3823, 16
      %v4128 = vor.u32 %v4125, %v4126
      %v4129 = vsel %vm581, %v4121, %v4128
      %v4130 = vrot.slane %v4125, 4
      %v4132 = vshrl.u32 %v3824, 16
      %v4134 = vrot.slane %v4132, 7
      %v4135 = vshll.u32 %v3824, 16
      %v4137 = vor.u32 %v4134, %v4135
      %v4138 = vsel %vm581, %v4130, %v4137
      %v4139 = vrot.slane %v4134, 4
      %v4141 = vshrl.u32 %v3825, 16
      %v4143 = vrot.slane %v4141, 7
      %v4144 = vshll.u32 %v3825, 16
      %v4146 = vor.u32 %v4143, %v4144
      %v4147 = vsel %vm581, %v4139, %v4146
      %v4148 = vrot.slane %v4143, 4
      %v4150 = vshrl.u32 %v3826, 16
      %v4152 = vrot.slane %v4150, 7
      %v4153 = vshll.u32 %v3826, 16
      %v4155 = vor.u32 %v4152, %v4153
      %v4156 = vsel %vm581, %v4148, %v4155
      %v4157 = vrot.slane %v4152, 4
      %v4159 = vshrl.u32 %v3827, 16
      %v4161 = vrot.slane %v4159, 7
      %v4162 = vshll.u32 %v3827, 16
      %v4164 = vor.u32 %v4161, %v4162
      %v4165 = vsel %vm581, %v4157, %v4164
      %v4166 = vrot.slane %v4161, 4
      %v4168 = vshrl.u32 %v3828, 16
      %v4170 = vrot.slane %v4168, 7
      %v4171 = vshll.u32 %v3828, 16
      %v4173 = vor.u32 %v4170, %v4171
      %v4174 = vsel %vm581, %v4166, %v4173
      %v4175 = vrot.slane %v4170, 4
      %v4177 = vshrl.u32 %v3829, 16
      %v4179 = vrot.slane %v4177, 7
      %v4180 = vshll.u32 %v3829, 16
      %v4182 = vor.u32 %v4179, %v4180
      %v4183 = vsel %vm581, %v4175, %v4182
      %v4184 = vrot.slane %v4179, 4
      %v4186 = vshrl.u32 %v3830, 16
      %v4188 = vrot.slane %v4186, 7
      %v4189 = vshll.u32 %v3830, 16
      %v4191 = vor.u32 %v4188, %v4189
      %v4192 = vsel %vm581, %v4184, %v4191
      %v4193 = vrot.slane %v4188, 4
      %v4195 = vshrl.u32 %v3831, 16
      %v4197 = vrot.slane %v4195, 7
      %v4198 = vshll.u32 %v3831, 16
      %v4200 = vor.u32 %v4197, %v4198
      %v4201 = vsel %vm581, %v4193, %v4200
      %v4202 = vrot.slane %v4197, 4
      %v4204 = vshrl.u32 %v3832, 16
      %v4206 = vrot.slane %v4204, 7
      %v4207 = vshll.u32 %v3832, 16
      %v4209 = vor.u32 %v4206, %v4207
      %v4210 = vsel %vm581, %v4202, %v4209
      %v4211 = vrot.slane %v4206, 4
      %v4213 = vshrl.u32 %v3833, 16
      %v4215 = vrot.slane %v4213, 7
      %v4216 = vshll.u32 %v3833, 16
      %v4218 = vor.u32 %v4215, %v4216
      %v4219 = vsel %vm581, %v4211, %v4218
      %v4220 = vrot.slane %v4215, 4
      %v4222 = vshrl.u32 %v3834, 16
      %v4224 = vrot.slane %v4222, 7
      %v4225 = vshll.u32 %v3834, 16
      %v4227 = vor.u32 %v4224, %v4225
      %v4228 = vsel %vm581, %v4220, %v4227
      %v4229 = vrot.slane %v4224, 4
      %v4231 = vshrl.u32 %v3835, 16
      %v4233 = vrot.slane %v4231, 7
      %v4234 = vshll.u32 %v3835, 16
      %v4236 = vor.u32 %v4233, %v4234
      %v4237 = vsel %vm581, %v4229, %v4236
      %v4238 = vrot.slane %v4233, 4
      %v4240 = vshrl.u32 %v3836, 16
      %v4242 = vrot.slane %v4240, 7
      %v4243 = vshll.u32 %v3836, 16
      %v4245 = vor.u32 %v4242, %v4243
      %v4246 = vsel %vm581, %v4238, %v4245
      %v4247 = vrot.slane %v4242, 4
      %v4249 = vshrl.u32 %v3837, 16
      %v4251 = vrot.slane %v4249, 7
      %v4252 = vshll.u32 %v3837, 16
      %v4254 = vor.u32 %v4251, %v4252
      %v4255 = vsel %vm581, %v4247, %v4254
      %v4256 = vrot.slane %v4251, 4
      %v4258 = vshrl.u32 %v3838, 16
      %v4260 = vrot.slane %v4258, 7
      %v4261 = vshll.u32 %v3838, 16
      %v4263 = vor.u32 %v4260, %v4261
      %v4264 = vsel %vm581, %v4256, %v4263
      %v4265 = vrot.slane %v4260, 4
      %v4267 = vshrl.u32 %v3839, 16
      %v4269 = vrot.slane %v4267, 7
      %v4270 = vshll.u32 %v3839, 16
      %v4272 = vor.u32 %v4269, %v4270
      %v4273 = vsel %vm581, %v4265, %v4272
      %v4274 = vrot.slane %v4269, 4
      %v4276 = vshrl.u32 %v3840, 16
      %v4278 = vrot.slane %v4276, 7
      %v4279 = vshll.u32 %v3840, 16
      %v4281 = vor.u32 %v4278, %v4279
      %v4282 = vsel %vm581, %v4274, %v4281
      %v4283 = vrot.slane %v4278, 4
      %v4285 = vshrl.u32 %v3841, 16
      %v4287 = vrot.slane %v4285, 7
      %v4288 = vshll.u32 %v3841, 16
      %v4290 = vor.u32 %v4287, %v4288
      %v4291 = vsel %vm581, %v4283, %v4290
      %v4292 = vrot.slane %v4287, 4
      %v4294 = vshrl.u32 %v3842, 16
      %v4296 = vrot.slane %v4294, 7
      %v4297 = vshll.u32 %v3842, 16
      %v4299 = vor.u32 %v4296, %v4297
      %v4300 = vsel %vm581, %v4292, %v4299
      %v4301 = vrot.slane %v4296, 4
      %v4303 = vshrl.u32 %v3843, 16
      %v4305 = vrot.slane %v4303, 7
      %v4306 = vshll.u32 %v3843, 16
      %v4308 = vor.u32 %v4305, %v4306
      %v4309 = vsel %vm581, %v4301, %v4308
      %v4310 = vrot.slane %v4305, 4
      %v4312 = vshrl.u32 %v3844, 16
      %v4314 = vrot.slane %v4312, 7
      %v4315 = vshll.u32 %v3844, 16
      %v4317 = vor.u32 %v4314, %v4315
      %v4318 = vsel %vm581, %v4310, %v4317
      %v4319 = vrot.slane %v4314, 4
      %v4321 = vshrl.u32 %v3845, 16
      %v4323 = vrot.slane %v4321, 7
      %v4324 = vshll.u32 %v3845, 16
      %v4326 = vor.u32 %v4323, %v4324
      %v4327 = vsel %vm581, %v4319, %v4326
      %v4328 = vrot.slane %v4323, 4
      %v4330 = vshrl.u32 %v3846, 16
      %v4332 = vrot.slane %v4330, 7
      %v4333 = vshll.u32 %v3846, 16
      %v4335 = vor.u32 %v4332, %v4333
      %v4336 = vsel %vm581, %v4328, %v4335
      %4337 = vrot.lane.b32.xlu0 %v3859, 124
      %v4338 = vpop.permute.xlu0 %4337
      %4339 = vrot.lane.b32.xlu0 %v3868, 124
      %v4340 = vpop.permute.xlu0 %4339
      %4341 = vrot.lane.b32.xlu0 %v3877, 124
      %v4342 = vpop.permute.xlu0 %4341
      %4343 = vrot.lane.b32.xlu0 %v3886, 124
      %v4344 = vpop.permute.xlu0 %4343
      %4345 = vrot.lane.b32.xlu0 %v3895, 124
      %v4346 = vpop.permute.xlu0 %4345
      %4347 = vrot.lane.b32.xlu0 %v3904, 124
      %v4348 = vpop.permute.xlu0 %4347
      %4349 = vrot.lane.b32.xlu0 %v3913, 124
      %v4350 = vpop.permute.xlu0 %4349
      %4351 = vrot.lane.b32.xlu0 %v3922, 124
      %v4352 = vpop.permute.xlu0 %4351
      %4353 = vrot.lane.b32.xlu0 %v3931, 124
      %v4354 = vpop.permute.xlu0 %4353
      %4355 = vrot.lane.b32.xlu0 %v3940, 124
      %v4356 = vpop.permute.xlu0 %4355
      %4357 = vrot.lane.b32.xlu0 %v3949, 124
      %v4358 = vpop.permute.xlu0 %4357
      %4359 = vrot.lane.b32.xlu0 %v3958, 124
      %v4360 = vpop.permute.xlu0 %4359
      %4361 = vrot.lane.b32.xlu0 %v3967, 124
      %v4362 = vpop.permute.xlu0 %4361
      %4363 = vrot.lane.b32.xlu0 %v3976, 124
      %v4364 = vpop.permute.xlu0 %4363
      %4365 = vrot.lane.b32.xlu0 %v3985, 124
      %v4366 = vpop.permute.xlu0 %4365
      %4367 = vrot.lane.b32.xlu0 %v3994, 124
      %v4368 = vpop.permute.xlu0 %4367
      %4369 = vrot.lane.b32.xlu0 %v4003, 124
      %v4370 = vpop.permute.xlu0 %4369
      %4371 = vrot.lane.b32.xlu0 %v4012, 124
      %v4372 = vpop.permute.xlu0 %4371
      %4373 = vrot.lane.b32.xlu0 %v4021, 124
      %v4374 = vpop.permute.xlu0 %4373
      %4375 = vrot.lane.b32.xlu0 %v4030, 124
      %v4376 = vpop.permute.xlu0 %4375
      %4377 = vrot.lane.b32.xlu0 %v4039, 124
      %v4378 = vpop.permute.xlu0 %4377
      %4379 = vrot.lane.b32.xlu0 %v4048, 124
      %v4380 = vpop.permute.xlu0 %4379
      %4381 = vrot.lane.b32.xlu0 %v4057, 124
      %v4382 = vpop.permute.xlu0 %4381
      %4383 = vrot.lane.b32.xlu0 %v4066, 124
      %v4384 = vpop.permute.xlu0 %4383
      %4385 = vrot.lane.b32.xlu0 %v4075, 124
      %v4386 = vpop.permute.xlu0 %4385
      %4387 = vrot.lane.b32.xlu0 %v4084, 124
      %v4388 = vpop.permute.xlu0 %4387
      %4389 = vrot.lane.b32.xlu0 %v4093, 124
      %v4390 = vpop.permute.xlu0 %4389
      %4391 = vrot.lane.b32.xlu0 %v4102, 124
      %v4392 = vpop.permute.xlu0 %4391
      %4393 = vrot.lane.b32.xlu0 %v4111, 124
      %v4394 = vpop.permute.xlu0 %4393
      %4395 = vrot.lane.b32.xlu0 %v4120, 124
      %v4396 = vpop.permute.xlu0 %4395
      %4397 = vrot.lane.b32.xlu0 %v4129, 124
      %v4398 = vpop.permute.xlu0 %4397
      %4399 = vrot.lane.b32.xlu0 %v4138, 124
      %v4400 = vpop.permute.xlu0 %4399
      %4401 = vrot.lane.b32.xlu0 %v4147, 124
      %v4402 = vpop.permute.xlu0 %4401
      %4403 = vrot.lane.b32.xlu0 %v4156, 124
      %v4404 = vpop.permute.xlu0 %4403
      %4405 = vrot.lane.b32.xlu0 %v4165, 124
      %v4406 = vpop.permute.xlu0 %4405
      %4407 = vrot.lane.b32.xlu0 %v4174, 124
      %v4408 = vpop.permute.xlu0 %4407
      %4409 = vrot.lane.b32.xlu0 %v4183, 124
      %v4410 = vpop.permute.xlu0 %4409
      %4411 = vrot.lane.b32.xlu0 %v4192, 124
      %v4412 = vpop.permute.xlu0 %4411
      %4413 = vrot.lane.b32.xlu0 %v4201, 124
      %v4414 = vpop.permute.xlu0 %4413
      %4415 = vrot.lane.b32.xlu0 %v4210, 124
      %v4416 = vpop.permute.xlu0 %4415
      %4417 = vrot.lane.b32.xlu0 %v4219, 124
      %v4418 = vpop.permute.xlu0 %4417
      %4419 = vrot.lane.b32.xlu0 %v4228, 124
      %v4420 = vpop.permute.xlu0 %4419
      %4421 = vrot.lane.b32.xlu0 %v4237, 124
      %v4422 = vpop.permute.xlu0 %4421
      %4423 = vrot.lane.b32.xlu0 %v4246, 124
      %v4424 = vpop.permute.xlu0 %4423
      %4425 = vrot.lane.b32.xlu0 %v4255, 124
      %v4426 = vpop.permute.xlu0 %4425
      %4427 = vrot.lane.b32.xlu0 %v4264, 124
      %v4428 = vpop.permute.xlu0 %4427
      %4429 = vrot.lane.b32.xlu0 %v4273, 124
      %v4430 = vpop.permute.xlu0 %4429
      %4431 = vrot.lane.b32.xlu0 %v4282, 124
      %v4432 = vpop.permute.xlu0 %4431
      %4433 = vrot.lane.b32.xlu0 %v4291, 124
      %v4434 = vpop.permute.xlu0 %4433
      %4435 = vrot.lane.b32.xlu0 %v4300, 124
      %v4436 = vpop.permute.xlu0 %4435
      %4437 = vrot.lane.b32.xlu0 %v4309, 124
      %v4438 = vpop.permute.xlu0 %4437
      %4439 = vrot.lane.b32.xlu0 %v4318, 124
      %v4440 = vpop.permute.xlu0 %4439
      %4441 = vrot.lane.b32.xlu0 %v4327, 124
      %v4442 = vpop.permute.xlu0 %4441
      %4443 = vrot.lane.b32.xlu0 %v4336, 124
      %v4444 = vpop.permute.xlu0 %4443
      %4499 = vst.msk [vmem:[#allocation2 + $0x4] sm:$0xf] %vm1234, %v4338
      %4500 = vst.msk [vmem:[#allocation2 + $0x8] sm:$0xf] %vm1234, %v4340
      %4501 = vst.msk [vmem:[#allocation2 + $0xc] sm:$0xf] %vm1234, %v4342
      %4502 = vst.msk [vmem:[#allocation2 + $0x10] sm:$0xf] %vm1234, %v4344
      %4503 = vst.msk [vmem:[#allocation2 + $0x14] sm:$0xf] %vm1234, %v4346
      %4504 = vst.msk [vmem:[#allocation2 + $0x18] sm:$0xf] %vm1234, %v4348
      %4505 = vst.msk [vmem:[#allocation2 + $0x1c] sm:$0xf] %vm1234, %v4350
      %4506 = vst.msk [vmem:[#allocation2 + $0x20] sm:$0xf] %vm1234, %v4352
      %4507 = vst.msk [vmem:[#allocation2 + $0x24] sm:$0xf] %vm1234, %v4354
      %4508 = vst.msk [vmem:[#allocation2 + $0x28] sm:$0xf] %vm1234, %v4356
      %4509 = vst.msk [vmem:[#allocation2 + $0x2c] sm:$0xf] %vm1234, %v4358
      %4510 = vst.msk [vmem:[#allocation2 + $0x30] sm:$0xf] %vm1234, %v4360
      %4511 = vst.msk [vmem:[#allocation2 + $0x34] sm:$0xf] %vm1234, %v4362
      %4512 = vst.msk [vmem:[#allocation2 + $0x38] sm:$0xf] %vm1234, %v4364
      %4513 = vst.msk [vmem:[#allocation2 + $0x3c] sm:$0xf] %vm1234, %v4366
      %4514 = vst.msk [vmem:[#allocation2 + $0x40] sm:$0xf] %vm1234, %v4368
      %4515 = vst.msk [vmem:[#allocation2 + $0x44] sm:$0xf] %vm1234, %v4370
      %4516 = vst.msk [vmem:[#allocation2 + $0x48] sm:$0xf] %vm1234, %v4372
      %4517 = vst.msk [vmem:[#allocation2 + $0x4c] sm:$0xf] %vm1234, %v4374
      %4518 = vst.msk [vmem:[#allocation2 + $0x50] sm:$0xf] %vm1234, %v4376
      %4519 = vst.msk [vmem:[#allocation2 + $0x54] sm:$0xf] %vm1234, %v4378
      %4520 = vst.msk [vmem:[#allocation2 + $0x58] sm:$0xf] %vm1234, %v4380
      %4521 = vst.msk [vmem:[#allocation2 + $0x5c] sm:$0xf] %vm1234, %v4382
      %4522 = vst.msk [vmem:[#allocation2 + $0x60] sm:$0xf] %vm1234, %v4384
      %4523 = vst.msk [vmem:[#allocation2 + $0x64] sm:$0xf] %vm1234, %v4386
      %4524 = vst.msk [vmem:[#allocation2 + $0x68] sm:$0xf] %vm1234, %v4388
      %4525 = vst.msk [vmem:[#allocation2 + $0x6c] sm:$0xf] %vm1234, %v4390
      %4526 = vst.msk [vmem:[#allocation2 + $0x70] sm:$0xf] %vm1234, %v4392
      %4527 = vst.msk [vmem:[#allocation2 + $0x74] sm:$0xf] %vm1234, %v4394
      %4528 = vst.msk [vmem:[#allocation2 + $0x78] sm:$0xf] %vm1234, %v4396
      %4529 = vst.msk [vmem:[#allocation2 + $0x7c] sm:$0xf] %vm1234, %v4398
      %4530 = vst.msk [vmem:[#allocation2 + $0x80] sm:$0xf] %vm1234, %v4400
      %4531 = vst.msk [vmem:[#allocation2 + $0x84] sm:$0xf] %vm1234, %v4402
      %4532 = vst.msk [vmem:[#allocation2 + $0x88] sm:$0xf] %vm1234, %v4404
      %4533 = vst.msk [vmem:[#allocation2 + $0x8c] sm:$0xf] %vm1234, %v4406
      %4534 = vst.msk [vmem:[#allocation2 + $0x90] sm:$0xf] %vm1234, %v4408
      %4535 = vst.msk [vmem:[#allocation2 + $0x94] sm:$0xf] %vm1234, %v4410
      %4536 = vst.msk [vmem:[#allocation2 + $0x98] sm:$0xf] %vm1234, %v4412
      %4537 = vst.msk [vmem:[#allocation2 + $0x9c] sm:$0xf] %vm1234, %v4414
      %4538 = vst.msk [vmem:[#allocation2 + $0xa0] sm:$0xf] %vm1234, %v4416
      %4539 = vst.msk [vmem:[#allocation2 + $0xa4] sm:$0xf] %vm1234, %v4418
      %4540 = vst.msk [vmem:[#allocation2 + $0xa8] sm:$0xf] %vm1234, %v4420
      %4541 = vst.msk [vmem:[#allocation2 + $0xac] sm:$0xf] %vm1234, %v4422
      %4542 = vst.msk [vmem:[#allocation2 + $0xb0] sm:$0xf] %vm1234, %v4424
      %4543 = vst.msk [vmem:[#allocation2 + $0xb4] sm:$0xf] %vm1234, %v4426
      %4544 = vst.msk [vmem:[#allocation2 + $0xb8] sm:$0xf] %vm1234, %v4428
      %4545 = vst.msk [vmem:[#allocation2 + $0xbc] sm:$0xf] %vm1234, %v4430
      %4546 = vst.msk [vmem:[#allocation2 + $0xc0] sm:$0xf] %vm1234, %v4432
      %4547 = vst.msk [vmem:[#allocation2 + $0xc4] sm:$0xf] %vm1234, %v4434
      %4548 = vst.msk [vmem:[#allocation2 + $0xc8] sm:$0xf] %vm1234, %v4436
      %4549 = vst.msk [vmem:[#allocation2 + $0xcc] sm:$0xf] %vm1234, %v4438
      %4550 = vst.msk [vmem:[#allocation2 + $0xd0] sm:$0xf] %vm1234, %v4440
      %4551 = vst.msk [vmem:[#allocation2 + $0xd4] sm:$0xf] %vm1234, %v4442
      %4552 = vst.msk [vmem:[#allocation2 + $0xd8] sm:$0xf] %vm1234, %v4444
      %v4553 = vld [vmem:[#allocation2 + $0x4] sm:$0xf]
      %v4554 = vld [vmem:[#allocation2 + $0x8] sm:$0xf]
      %v4555 = vld [vmem:[#allocation2 + $0xc] sm:$0xf]
      %v4556 = vld [vmem:[#allocation2 + $0x10] sm:$0xf]
      %v4557 = vld [vmem:[#allocation2 + $0x14] sm:$0xf]
      %v4558 = vld [vmem:[#allocation2 + $0x18] sm:$0xf]
      %v4559 = vld [vmem:[#allocation2 + $0x1c] sm:$0xf]
      %v4560 = vld [vmem:[#allocation2 + $0x20] sm:$0xf]
      %v4561 = vld [vmem:[#allocation2 + $0x24] sm:$0xf]
      %v4562 = vld [vmem:[#allocation2 + $0x28] sm:$0xf]
      %v4563 = vld [vmem:[#allocation2 + $0x2c] sm:$0xf]
      %v4564 = vld [vmem:[#allocation2 + $0x30] sm:$0xf]
      %v4565 = vld [vmem:[#allocation2 + $0x34] sm:$0xf]
      %v4566 = vld [vmem:[#allocation2 + $0x38] sm:$0xf]
      %v4567 = vld [vmem:[#allocation2 + $0x3c] sm:$0xf]
      %v4568 = vld [vmem:[#allocation2 + $0x40] sm:$0xf]
      %v4569 = vld [vmem:[#allocation2 + $0x44] sm:$0xf]
      %v4570 = vld [vmem:[#allocation2 + $0x48] sm:$0xf]
      %v4571 = vld [vmem:[#allocation2 + $0x4c] sm:$0xf]
      %v4572 = vld [vmem:[#allocation2 + $0x50] sm:$0xf]
      %v4573 = vld [vmem:[#allocation2 + $0x54] sm:$0xf]
      %v4574 = vld [vmem:[#allocation2 + $0x58] sm:$0xf]
      %v4575 = vld [vmem:[#allocation2 + $0x5c] sm:$0xf]
      %v4576 = vld [vmem:[#allocation2 + $0x60] sm:$0xf]
      %v4577 = vld [vmem:[#allocation2 + $0x64] sm:$0xf]
      %v4578 = vld [vmem:[#allocation2 + $0x68] sm:$0xf]
      %v4579 = vld [vmem:[#allocation2 + $0x6c] sm:$0xf]
      %v4580 = vld [vmem:[#allocation2 + $0x70] sm:$0xf]
      %v4581 = vld [vmem:[#allocation2 + $0x74] sm:$0xf]
      %v4582 = vld [vmem:[#allocation2 + $0x78] sm:$0xf]
      %v4583 = vld [vmem:[#allocation2 + $0x7c] sm:$0xf]
      %v4584 = vld [vmem:[#allocation2 + $0x80] sm:$0xf]
      %v4585 = vld [vmem:[#allocation2 + $0x84] sm:$0xf]
      %v4586 = vld [vmem:[#allocation2 + $0x88] sm:$0xf]
      %v4587 = vld [vmem:[#allocation2 + $0x8c] sm:$0xf]
      %v4588 = vld [vmem:[#allocation2 + $0x90] sm:$0xf]
      %v4589 = vld [vmem:[#allocation2 + $0x94] sm:$0xf]
      %v4590 = vld [vmem:[#allocation2 + $0x98] sm:$0xf]
      %v4591 = vld [vmem:[#allocation2 + $0x9c] sm:$0xf]
      %v4592 = vld [vmem:[#allocation2 + $0xa0] sm:$0xf]
      %v4593 = vld [vmem:[#allocation2 + $0xa4] sm:$0xf]
      %v4594 = vld [vmem:[#allocation2 + $0xa8] sm:$0xf]
      %v4595 = vld [vmem:[#allocation2 + $0xac] sm:$0xf]
      %v4596 = vld [vmem:[#allocation2 + $0xb0] sm:$0xf]
      %v4597 = vld [vmem:[#allocation2 + $0xb4] sm:$0xf]
      %v4598 = vld [vmem:[#allocation2 + $0xb8] sm:$0xf]
      %v4599 = vld [vmem:[#allocation2 + $0xbc] sm:$0xf]
      %v4600 = vld [vmem:[#allocation2 + $0xc0] sm:$0xf]
      %v4601 = vld [vmem:[#allocation2 + $0xc4] sm:$0xf]
      %v4602 = vld [vmem:[#allocation2 + $0xc8] sm:$0xf]
      %v4603 = vld [vmem:[#allocation2 + $0xcc] sm:$0xf]
      %v4604 = vld [vmem:[#allocation2 + $0xd0] sm:$0xf]
      %v4605 = vld [vmem:[#allocation2 + $0xd4] sm:$0xf]
      %v4606 = vld [vmem:[#allocation2 + $0xd8] sm:$0xf]
      %v4607 = vld [vmem:[#allocation2 + $0xdc] sm:$0x1]
      %v4609 = vshrl.u32 %v4553, 16
      %v4611 = vrot.slane %v4609, 4
      %v4612 = vshll.u32 %v4553, 16
      %v4614 = vrot.slane %v4612, 5
      %v4615 = vor.u32 %v4611, %v4614
      %v4616 = vrot.slane %v4615, 4
      %v4618 = vshll.u32 %v4554, 16
      %v4620 = vrot.slane %v4618, 5
      %v4621 = vsel %vm1346, %v4616, %v4620
      %v4622 = vshrl.u32 %v4554, 16
      %v4624 = vrot.slane %v4622, 4
      %v4625 = vor.u32 %v4624, %v4620
      %v4626 = vrot.slane %v4625, 4
      %v4628 = vshll.u32 %v4555, 16
      %v4630 = vrot.slane %v4628, 5
      %v4631 = vsel %vm1346, %v4626, %v4630
      %v4632 = vshrl.u32 %v4555, 16
      %v4634 = vrot.slane %v4632, 4
      %v4635 = vor.u32 %v4634, %v4630
      %v4636 = vrot.slane %v4635, 4
      %v4638 = vshll.u32 %v4556, 16
      %v4640 = vrot.slane %v4638, 5
      %v4641 = vsel %vm1346, %v4636, %v4640
      %v4642 = vshrl.u32 %v4556, 16
      %v4644 = vrot.slane %v4642, 4
      %v4645 = vor.u32 %v4644, %v4640
      %v4646 = vrot.slane %v4645, 4
      %v4648 = vshll.u32 %v4557, 16
      %v4650 = vrot.slane %v4648, 5
      %v4651 = vsel %vm1346, %v4646, %v4650
      %v4652 = vshrl.u32 %v4557, 16
      %v4654 = vrot.slane %v4652, 4
      %v4655 = vor.u32 %v4654, %v4650
      %v4656 = vrot.slane %v4655, 4
      %v4658 = vshll.u32 %v4558, 16
      %v4660 = vrot.slane %v4658, 5
      %v4661 = vsel %vm1346, %v4656, %v4660
      %v4662 = vshrl.u32 %v4558, 16
      %v4664 = vrot.slane %v4662, 4
      %v4665 = vor.u32 %v4664, %v4660
      %v4666 = vrot.slane %v4665, 4
      %v4668 = vshll.u32 %v4559, 16
      %v4670 = vrot.slane %v4668, 5
      %v4671 = vsel %vm1346, %v4666, %v4670
      %v4672 = vshrl.u32 %v4559, 16
      %v4674 = vrot.slane %v4672, 4
      %v4675 = vor.u32 %v4674, %v4670
      %v4676 = vrot.slane %v4675, 4
      %v4678 = vshll.u32 %v4560, 16
      %v4680 = vrot.slane %v4678, 5
      %v4681 = vsel %vm1346, %v4676, %v4680
      %v4682 = vshrl.u32 %v4560, 16
      %v4684 = vrot.slane %v4682, 4
      %v4685 = vor.u32 %v4684, %v4680
      %v4686 = vrot.slane %v4685, 4
      %v4688 = vshll.u32 %v4561, 16
      %v4690 = vrot.slane %v4688, 5
      %v4691 = vsel %vm1346, %v4686, %v4690
      %v4692 = vshrl.u32 %v4561, 16
      %v4694 = vrot.slane %v4692, 4
      %v4695 = vor.u32 %v4694, %v4690
      %v4696 = vrot.slane %v4695, 4
      %v4698 = vshll.u32 %v4562, 16
      %v4700 = vrot.slane %v4698, 5
      %v4701 = vsel %vm1346, %v4696, %v4700
      %v4702 = vshrl.u32 %v4562, 16
      %v4704 = vrot.slane %v4702, 4
      %v4705 = vor.u32 %v4704, %v4700
      %v4706 = vrot.slane %v4705, 4
      %v4708 = vshll.u32 %v4563, 16
      %v4710 = vrot.slane %v4708, 5
      %v4711 = vsel %vm1346, %v4706, %v4710
      %v4712 = vshrl.u32 %v4563, 16
      %v4714 = vrot.slane %v4712, 4
      %v4715 = vor.u32 %v4714, %v4710
      %v4716 = vrot.slane %v4715, 4
      %v4718 = vshll.u32 %v4564, 16
      %v4720 = vrot.slane %v4718, 5
      %v4721 = vsel %vm1346, %v4716, %v4720
      %v4722 = vshrl.u32 %v4564, 16
      %v4724 = vrot.slane %v4722, 4
      %v4725 = vor.u32 %v4724, %v4720
      %v4726 = vrot.slane %v4725, 4
      %v4728 = vshll.u32 %v4565, 16
      %v4730 = vrot.slane %v4728, 5
      %v4731 = vsel %vm1346, %v4726, %v4730
      %v4732 = vshrl.u32 %v4565, 16
      %v4734 = vrot.slane %v4732, 4
      %v4735 = vor.u32 %v4734, %v4730
      %v4736 = vrot.slane %v4735, 4
      %v4738 = vshll.u32 %v4566, 16
      %v4740 = vrot.slane %v4738, 5
      %v4741 = vsel %vm1346, %v4736, %v4740
      %v4742 = vshrl.u32 %v4566, 16
      %v4744 = vrot.slane %v4742, 4
      %v4745 = vor.u32 %v4744, %v4740
      %v4746 = vrot.slane %v4745, 4
      %v4748 = vshll.u32 %v4567, 16
      %v4750 = vrot.slane %v4748, 5
      %v4751 = vsel %vm1346, %v4746, %v4750
      %v4752 = vshrl.u32 %v4567, 16
      %v4754 = vrot.slane %v4752, 4
      %v4755 = vor.u32 %v4754, %v4750
      %v4756 = vrot.slane %v4755, 4
      %v4758 = vshll.u32 %v4568, 16
      %v4760 = vrot.slane %v4758, 5
      %v4761 = vsel %vm1346, %v4756, %v4760
      %v4762 = vshrl.u32 %v4568, 16
      %v4764 = vrot.slane %v4762, 4
      %v4765 = vor.u32 %v4764, %v4760
      %v4766 = vrot.slane %v4765, 4
      %v4768 = vshll.u32 %v4569, 16
      %v4770 = vrot.slane %v4768, 5
      %v4771 = vsel %vm1346, %v4766, %v4770
      %v4772 = vshrl.u32 %v4569, 16
      %v4774 = vrot.slane %v4772, 4
      %v4775 = vor.u32 %v4774, %v4770
      %v4776 = vrot.slane %v4775, 4
      %v4778 = vshll.u32 %v4570, 16
      %v4780 = vrot.slane %v4778, 5
      %v4781 = vsel %vm1346, %v4776, %v4780
      %v4782 = vshrl.u32 %v4570, 16
      %v4784 = vrot.slane %v4782, 4
      %v4785 = vor.u32 %v4784, %v4780
      %v4786 = vrot.slane %v4785, 4
      %v4788 = vshll.u32 %v4571, 16
      %v4790 = vrot.slane %v4788, 5
      %v4791 = vsel %vm1346, %v4786, %v4790
      %v4792 = vshrl.u32 %v4571, 16
      %v4794 = vrot.slane %v4792, 4
      %v4795 = vor.u32 %v4794, %v4790
      %v4796 = vrot.slane %v4795, 4
      %v4798 = vshll.u32 %v4572, 16
      %v4800 = vrot.slane %v4798, 5
      %v4801 = vsel %vm1346, %v4796, %v4800
      %v4802 = vshrl.u32 %v4572, 16
      %v4804 = vrot.slane %v4802, 4
      %v4805 = vor.u32 %v4804, %v4800
      %v4806 = vrot.slane %v4805, 4
      %v4808 = vshll.u32 %v4573, 16
      %v4810 = vrot.slane %v4808, 5
      %v4811 = vsel %vm1346, %v4806, %v4810
      %v4812 = vshrl.u32 %v4573, 16
      %v4814 = vrot.slane %v4812, 4
      %v4815 = vor.u32 %v4814, %v4810
      %v4816 = vrot.slane %v4815, 4
      %v4818 = vshll.u32 %v4574, 16
      %v4820 = vrot.slane %v4818, 5
      %v4821 = vsel %vm1346, %v4816, %v4820
      %v4822 = vshrl.u32 %v4574, 16
      %v4824 = vrot.slane %v4822, 4
      %v4825 = vor.u32 %v4824, %v4820
      %v4826 = vrot.slane %v4825, 4
      %v4828 = vshll.u32 %v4575, 16
      %v4830 = vrot.slane %v4828, 5
      %v4831 = vsel %vm1346, %v4826, %v4830
      %v4832 = vshrl.u32 %v4575, 16
      %v4834 = vrot.slane %v4832, 4
      %v4835 = vor.u32 %v4834, %v4830
      %v4836 = vrot.slane %v4835, 4
      %v4838 = vshll.u32 %v4576, 16
      %v4840 = vrot.slane %v4838, 5
      %v4841 = vsel %vm1346, %v4836, %v4840
      %v4842 = vshrl.u32 %v4576, 16
      %v4844 = vrot.slane %v4842, 4
      %v4845 = vor.u32 %v4844, %v4840
      %v4846 = vrot.slane %v4845, 4
      %v4848 = vshll.u32 %v4577, 16
      %v4850 = vrot.slane %v4848, 5
      %v4851 = vsel %vm1346, %v4846, %v4850
      %v4852 = vshrl.u32 %v4577, 16
      %v4854 = vrot.slane %v4852, 4
      %v4855 = vor.u32 %v4854, %v4850
      %v4856 = vrot.slane %v4855, 4
      %v4858 = vshll.u32 %v4578, 16
      %v4860 = vrot.slane %v4858, 5
      %v4861 = vsel %vm1346, %v4856, %v4860
      %v4862 = vshrl.u32 %v4578, 16
      %v4864 = vrot.slane %v4862, 4
      %v4865 = vor.u32 %v4864, %v4860
      %v4866 = vrot.slane %v4865, 4
      %v4868 = vshll.u32 %v4579, 16
      %v4870 = vrot.slane %v4868, 5
      %v4871 = vsel %vm1346, %v4866, %v4870
      %v4872 = vshrl.u32 %v4579, 16
      %v4874 = vrot.slane %v4872, 4
      %v4875 = vor.u32 %v4874, %v4870
      %v4876 = vrot.slane %v4875, 4
      %v4878 = vshll.u32 %v4580, 16
      %v4880 = vrot.slane %v4878, 5
      %v4881 = vsel %vm1346, %v4876, %v4880
      %v4882 = vshrl.u32 %v4580, 16
      %v4884 = vrot.slane %v4882, 4
      %v4885 = vor.u32 %v4884, %v4880
      %v4886 = vrot.slane %v4885, 4
      %v4888 = vshll.u32 %v4581, 16
      %v4890 = vrot.slane %v4888, 5
      %v4891 = vsel %vm1346, %v4886, %v4890
      %v4892 = vshrl.u32 %v4581, 16
      %v4894 = vrot.slane %v4892, 4
      %v4895 = vor.u32 %v4894, %v4890
      %v4896 = vrot.slane %v4895, 4
      %v4898 = vshll.u32 %v4582, 16
      %v4900 = vrot.slane %v4898, 5
      %v4901 = vsel %vm1346, %v4896, %v4900
      %v4902 = vshrl.u32 %v4582, 16
      %v4904 = vrot.slane %v4902, 4
      %v4905 = vor.u32 %v4904, %v4900
      %v4906 = vrot.slane %v4905, 4
      %v4908 = vshll.u32 %v4583, 16
      %v4910 = vrot.slane %v4908, 5
      %v4911 = vsel %vm1346, %v4906, %v4910
      %v4912 = vshrl.u32 %v4583, 16
      %v4914 = vrot.slane %v4912, 4
      %v4915 = vor.u32 %v4914, %v4910
      %v4916 = vrot.slane %v4915, 4
      %v4918 = vshll.u32 %v4584, 16
      %v4920 = vrot.slane %v4918, 5
      %v4921 = vsel %vm1346, %v4916, %v4920
      %v4922 = vshrl.u32 %v4584, 16
      %v4924 = vrot.slane %v4922, 4
      %v4925 = vor.u32 %v4924, %v4920
      %v4926 = vrot.slane %v4925, 4
      %v4928 = vshll.u32 %v4585, 16
      %v4930 = vrot.slane %v4928, 5
      %v4931 = vsel %vm1346, %v4926, %v4930
      %v4932 = vshrl.u32 %v4585, 16
      %v4934 = vrot.slane %v4932, 4
      %v4935 = vor.u32 %v4934, %v4930
      %v4936 = vrot.slane %v4935, 4
      %v4938 = vshll.u32 %v4586, 16
      %v4940 = vrot.slane %v4938, 5
      %v4941 = vsel %vm1346, %v4936, %v4940
      %v4942 = vshrl.u32 %v4586, 16
      %v4944 = vrot.slane %v4942, 4
      %v4945 = vor.u32 %v4944, %v4940
      %v4946 = vrot.slane %v4945, 4
      %v4948 = vshll.u32 %v4587, 16
      %v4950 = vrot.slane %v4948, 5
      %v4951 = vsel %vm1346, %v4946, %v4950
      %v4952 = vshrl.u32 %v4587, 16
      %v4954 = vrot.slane %v4952, 4
      %v4955 = vor.u32 %v4954, %v4950
      %v4956 = vrot.slane %v4955, 4
      %v4958 = vshll.u32 %v4588, 16
      %v4960 = vrot.slane %v4958, 5
      %v4961 = vsel %vm1346, %v4956, %v4960
      %v4962 = vshrl.u32 %v4588, 16
      %v4964 = vrot.slane %v4962, 4
      %v4965 = vor.u32 %v4964, %v4960
      %v4966 = vrot.slane %v4965, 4
      %v4968 = vshll.u32 %v4589, 16
      %v4970 = vrot.slane %v4968, 5
      %v4971 = vsel %vm1346, %v4966, %v4970
      %v4972 = vshrl.u32 %v4589, 16
      %v4974 = vrot.slane %v4972, 4
      %v4975 = vor.u32 %v4974, %v4970
      %v4976 = vrot.slane %v4975, 4
      %v4978 = vshll.u32 %v4590, 16
      %v4980 = vrot.slane %v4978, 5
      %v4981 = vsel %vm1346, %v4976, %v4980
      %v4982 = vshrl.u32 %v4590, 16
      %v4984 = vrot.slane %v4982, 4
      %v4985 = vor.u32 %v4984, %v4980
      %v4986 = vrot.slane %v4985, 4
      %v4988 = vshll.u32 %v4591, 16
      %v4990 = vrot.slane %v4988, 5
      %v4991 = vsel %vm1346, %v4986, %v4990
      %v4992 = vshrl.u32 %v4591, 16
      %v4994 = vrot.slane %v4992, 4
      %v4995 = vor.u32 %v4994, %v4990
      %v4996 = vrot.slane %v4995, 4
      %v4998 = vshll.u32 %v4592, 16
      %v5000 = vrot.slane %v4998, 5
      %v5001 = vsel %vm1346, %v4996, %v5000
      %v5002 = vshrl.u32 %v4592, 16
      %v5004 = vrot.slane %v5002, 4
      %v5005 = vor.u32 %v5004, %v5000
      %v5006 = vrot.slane %v5005, 4
      %v5008 = vshll.u32 %v4593, 16
      %v5010 = vrot.slane %v5008, 5
      %v5011 = vsel %vm1346, %v5006, %v5010
      %v5012 = vshrl.u32 %v4593, 16
      %v5014 = vrot.slane %v5012, 4
      %v5015 = vor.u32 %v5014, %v5010
      %v5016 = vrot.slane %v5015, 4
      %v5018 = vshll.u32 %v4594, 16
      %v5020 = vrot.slane %v5018, 5
      %v5021 = vsel %vm1346, %v5016, %v5020
      %v5022 = vshrl.u32 %v4594, 16
      %v5024 = vrot.slane %v5022, 4
      %v5025 = vor.u32 %v5024, %v5020
      %v5026 = vrot.slane %v5025, 4
      %v5028 = vshll.u32 %v4595, 16
      %v5030 = vrot.slane %v5028, 5
      %v5031 = vsel %vm1346, %v5026, %v5030
      %v5032 = vshrl.u32 %v4595, 16
      %v5034 = vrot.slane %v5032, 4
      %v5035 = vor.u32 %v5034, %v5030
      %v5036 = vrot.slane %v5035, 4
      %v5038 = vshll.u32 %v4596, 16
      %v5040 = vrot.slane %v5038, 5
      %v5041 = vsel %vm1346, %v5036, %v5040
      %v5042 = vshrl.u32 %v4596, 16
      %v5044 = vrot.slane %v5042, 4
      %v5045 = vor.u32 %v5044, %v5040
      %v5046 = vrot.slane %v5045, 4
      %v5048 = vshll.u32 %v4597, 16
      %v5050 = vrot.slane %v5048, 5
      %v5051 = vsel %vm1346, %v5046, %v5050
      %v5052 = vshrl.u32 %v4597, 16
      %v5054 = vrot.slane %v5052, 4
      %v5055 = vor.u32 %v5054, %v5050
      %v5056 = vrot.slane %v5055, 4
      %v5058 = vshll.u32 %v4598, 16
      %v5060 = vrot.slane %v5058, 5
      %v5061 = vsel %vm1346, %v5056, %v5060
      %v5062 = vshrl.u32 %v4598, 16
      %v5064 = vrot.slane %v5062, 4
      %v5065 = vor.u32 %v5064, %v5060
      %v5066 = vrot.slane %v5065, 4
      %v5068 = vshll.u32 %v4599, 16
      %v5070 = vrot.slane %v5068, 5
      %v5071 = vsel %vm1346, %v5066, %v5070
      %v5072 = vshrl.u32 %v4599, 16
      %v5074 = vrot.slane %v5072, 4
      %v5075 = vor.u32 %v5074, %v5070
      %v5076 = vrot.slane %v5075, 4
      %v5078 = vshll.u32 %v4600, 16
      %v5080 = vrot.slane %v5078, 5
      %v5081 = vsel %vm1346, %v5076, %v5080
      %v5082 = vshrl.u32 %v4600, 16
      %v5084 = vrot.slane %v5082, 4
      %v5085 = vor.u32 %v5084, %v5080
      %v5086 = vrot.slane %v5085, 4
      %v5088 = vshll.u32 %v4601, 16
      %v5090 = vrot.slane %v5088, 5
      %v5091 = vsel %vm1346, %v5086, %v5090
      %v5092 = vshrl.u32 %v4601, 16
      %v5094 = vrot.slane %v5092, 4
      %v5095 = vor.u32 %v5094, %v5090
      %v5096 = vrot.slane %v5095, 4
      %v5098 = vshll.u32 %v4602, 16
      %v5100 = vrot.slane %v5098, 5
      %v5101 = vsel %vm1346, %v5096, %v5100
      %v5102 = vshrl.u32 %v4602, 16
      %v5104 = vrot.slane %v5102, 4
      %v5105 = vor.u32 %v5104, %v5100
      %v5106 = vrot.slane %v5105, 4
      %v5108 = vshll.u32 %v4603, 16
      %v5110 = vrot.slane %v5108, 5
      %v5111 = vsel %vm1346, %v5106, %v5110
      %v5112 = vshrl.u32 %v4603, 16
      %v5114 = vrot.slane %v5112, 4
      %v5115 = vor.u32 %v5114, %v5110
      %v5116 = vrot.slane %v5115, 4
      %v5118 = vshll.u32 %v4604, 16
      %v5120 = vrot.slane %v5118, 5
      %v5121 = vsel %vm1346, %v5116, %v5120
      %v5122 = vshrl.u32 %v4604, 16
      %v5124 = vrot.slane %v5122, 4
      %v5125 = vor.u32 %v5124, %v5120
      %v5126 = vrot.slane %v5125, 4
      %v5128 = vshll.u32 %v4605, 16
      %v5130 = vrot.slane %v5128, 5
      %v5131 = vsel %vm1346, %v5126, %v5130
      %v5132 = vshrl.u32 %v4605, 16
      %v5134 = vrot.slane %v5132, 4
      %v5135 = vor.u32 %v5134, %v5130
      %v5136 = vrot.slane %v5135, 4
      %v5138 = vshll.u32 %v4606, 16
      %v5140 = vrot.slane %v5138, 5
      %v5141 = vsel %vm1346, %v5136, %v5140
      %v5142 = vshrl.u32 %v4606, 16
      %v5144 = vrot.slane %v5142, 4
      %v5145 = vor.u32 %v5144, %v5140
      %v5146 = vrot.slane %v5145, 4
      %v5148 = vshll.u32 %v4607, 16
      %v5150 = vrot.slane %v5148, 5
      %v5151 = vsel %vm1346, %v5146, %v5150
      %5152 = vrot.lane.b32.xlu0 %v4621, 4
      %v5153 = vpop.permute.xlu0 %5152
      %5154 = vrot.lane.b32.xlu0 %v4631, 4
      %v5155 = vpop.permute.xlu0 %5154
      %5156 = vrot.lane.b32.xlu0 %v4641, 4
      %v5157 = vpop.permute.xlu0 %5156
      %5158 = vrot.lane.b32.xlu0 %v4651, 4
      %v5159 = vpop.permute.xlu0 %5158
      %5160 = vrot.lane.b32.xlu0 %v4661, 4
      %v5161 = vpop.permute.xlu0 %5160
      %5162 = vrot.lane.b32.xlu0 %v4671, 4
      %v5163 = vpop.permute.xlu0 %5162
      %5164 = vrot.lane.b32.xlu0 %v4681, 4
      %v5165 = vpop.permute.xlu0 %5164
      %5166 = vrot.lane.b32.xlu0 %v4691, 4
      %v5167 = vpop.permute.xlu0 %5166
      %5168 = vrot.lane.b32.xlu0 %v4701, 4
      %v5169 = vpop.permute.xlu0 %5168
      %5170 = vrot.lane.b32.xlu0 %v4711, 4
      %v5171 = vpop.permute.xlu0 %5170
      %5172 = vrot.lane.b32.xlu0 %v4721, 4
      %v5173 = vpop.permute.xlu0 %5172
      %5174 = vrot.lane.b32.xlu0 %v4731, 4
      %v5175 = vpop.permute.xlu0 %5174
      %5176 = vrot.lane.b32.xlu0 %v4741, 4
      %v5177 = vpop.permute.xlu0 %5176
      %5178 = vrot.lane.b32.xlu0 %v4751, 4
      %v5179 = vpop.permute.xlu0 %5178
      %5180 = vrot.lane.b32.xlu0 %v4761, 4
      %v5181 = vpop.permute.xlu0 %5180
      %5182 = vrot.lane.b32.xlu0 %v4771, 4
      %v5183 = vpop.permute.xlu0 %5182
      %5184 = vrot.lane.b32.xlu0 %v4781, 4
      %v5185 = vpop.permute.xlu0 %5184
      %5186 = vrot.lane.b32.xlu0 %v4791, 4
      %v5187 = vpop.permute.xlu0 %5186
      %5188 = vrot.lane.b32.xlu0 %v4801, 4
      %v5189 = vpop.permute.xlu0 %5188
      %5190 = vrot.lane.b32.xlu0 %v4811, 4
      %v5191 = vpop.permute.xlu0 %5190
      %5192 = vrot.lane.b32.xlu0 %v4821, 4
      %v5193 = vpop.permute.xlu0 %5192
      %5194 = vrot.lane.b32.xlu0 %v4831, 4
      %v5195 = vpop.permute.xlu0 %5194
      %5196 = vrot.lane.b32.xlu0 %v4841, 4
      %v5197 = vpop.permute.xlu0 %5196
      %5198 = vrot.lane.b32.xlu0 %v4851, 4
      %v5199 = vpop.permute.xlu0 %5198
      %5200 = vrot.lane.b32.xlu0 %v4861, 4
      %v5201 = vpop.permute.xlu0 %5200
      %5202 = vrot.lane.b32.xlu0 %v4871, 4
      %v5203 = vpop.permute.xlu0 %5202
      %5204 = vrot.lane.b32.xlu0 %v4881, 4
      %v5205 = vpop.permute.xlu0 %5204
      %5206 = vrot.lane.b32.xlu0 %v4891, 4
      %v5207 = vpop.permute.xlu0 %5206
      %5208 = vrot.lane.b32.xlu0 %v4901, 4
      %v5209 = vpop.permute.xlu0 %5208
      %5210 = vrot.lane.b32.xlu0 %v4911, 4
      %v5211 = vpop.permute.xlu0 %5210
      %5212 = vrot.lane.b32.xlu0 %v4921, 4
      %v5213 = vpop.permute.xlu0 %5212
      %5214 = vrot.lane.b32.xlu0 %v4931, 4
      %v5215 = vpop.permute.xlu0 %5214
      %5216 = vrot.lane.b32.xlu0 %v4941, 4
      %v5217 = vpop.permute.xlu0 %5216
      %5218 = vrot.lane.b32.xlu0 %v4951, 4
      %v5219 = vpop.permute.xlu0 %5218
      %5220 = vrot.lane.b32.xlu0 %v4961, 4
      %v5221 = vpop.permute.xlu0 %5220
      %5222 = vrot.lane.b32.xlu0 %v4971, 4
      %v5223 = vpop.permute.xlu0 %5222
      %5224 = vrot.lane.b32.xlu0 %v4981, 4
      %v5225 = vpop.permute.xlu0 %5224
      %5226 = vrot.lane.b32.xlu0 %v4991, 4
      %v5227 = vpop.permute.xlu0 %5226
      %5228 = vrot.lane.b32.xlu0 %v5001, 4
      %v5229 = vpop.permute.xlu0 %5228
      %5230 = vrot.lane.b32.xlu0 %v5011, 4
      %v5231 = vpop.permute.xlu0 %5230
      %5232 = vrot.lane.b32.xlu0 %v5021, 4
      %v5233 = vpop.permute.xlu0 %5232
      %5234 = vrot.lane.b32.xlu0 %v5031, 4
      %v5235 = vpop.permute.xlu0 %5234
      %5236 = vrot.lane.b32.xlu0 %v5041, 4
      %v5237 = vpop.permute.xlu0 %5236
      %5238 = vrot.lane.b32.xlu0 %v5051, 4
      %v5239 = vpop.permute.xlu0 %5238
      %5240 = vrot.lane.b32.xlu0 %v5061, 4
      %v5241 = vpop.permute.xlu0 %5240
      %5242 = vrot.lane.b32.xlu0 %v5071, 4
      %v5243 = vpop.permute.xlu0 %5242
      %5244 = vrot.lane.b32.xlu0 %v5081, 4
      %v5245 = vpop.permute.xlu0 %5244
      %5246 = vrot.lane.b32.xlu0 %v5091, 4
      %v5247 = vpop.permute.xlu0 %5246
      %5248 = vrot.lane.b32.xlu0 %v5101, 4
      %v5249 = vpop.permute.xlu0 %5248
      %5250 = vrot.lane.b32.xlu0 %v5111, 4
      %v5251 = vpop.permute.xlu0 %5250
      %5252 = vrot.lane.b32.xlu0 %v5121, 4
      %v5253 = vpop.permute.xlu0 %5252
      %5254 = vrot.lane.b32.xlu0 %v5131, 4
      %v5255 = vpop.permute.xlu0 %5254
      %5256 = vrot.lane.b32.xlu0 %v5141, 4
      %v5257 = vpop.permute.xlu0 %5256
      %5258 = vrot.lane.b32.xlu0 %v5151, 4
      %v5259 = vpop.permute.xlu0 %5258
      %5314 = vst.msk [vmem:[#allocation2 + $0x4] sm:$0xf] %vm2053, %v5153
      %5315 = vst.msk [vmem:[#allocation2 + $0x8] sm:$0xf] %vm2053, %v5155
      %5316 = vst.msk [vmem:[#allocation2 + $0xc] sm:$0xf] %vm2053, %v5157
      %5317 = vst.msk [vmem:[#allocation2 + $0x10] sm:$0xf] %vm2053, %v5159
      %5318 = vst.msk [vmem:[#allocation2 + $0x14] sm:$0xf] %vm2053, %v5161
      %5319 = vst.msk [vmem:[#allocation2 + $0x18] sm:$0xf] %vm2053, %v5163
      %5320 = vst.msk [vmem:[#allocation2 + $0x1c] sm:$0xf] %vm2053, %v5165
      %5321 = vst.msk [vmem:[#allocation2 + $0x20] sm:$0xf] %vm2053, %v5167
      %5322 = vst.msk [vmem:[#allocation2 + $0x24] sm:$0xf] %vm2053, %v5169
      %5323 = vst.msk [vmem:[#allocation2 + $0x28] sm:$0xf] %vm2053, %v5171
      %5324 = vst.msk [vmem:[#allocation2 + $0x2c] sm:$0xf] %vm2053, %v5173
      %5325 = vst.msk [vmem:[#allocation2 + $0x30] sm:$0xf] %vm2053, %v5175
      %5326 = vst.msk [vmem:[#allocation2 + $0x34] sm:$0xf] %vm2053, %v5177
      %5327 = vst.msk [vmem:[#allocation2 + $0x38] sm:$0xf] %vm2053, %v5179
      %5328 = vst.msk [vmem:[#allocation2 + $0x3c] sm:$0xf] %vm2053, %v5181
      %5329 = vst.msk [vmem:[#allocation2 + $0x40] sm:$0xf] %vm2053, %v5183
      %5330 = vst.msk [vmem:[#allocation2 + $0x44] sm:$0xf] %vm2053, %v5185
      %5331 = vst.msk [vmem:[#allocation2 + $0x48] sm:$0xf] %vm2053, %v5187
      %5332 = vst.msk [vmem:[#allocation2 + $0x4c] sm:$0xf] %vm2053, %v5189
      %5333 = vst.msk [vmem:[#allocation2 + $0x50] sm:$0xf] %vm2053, %v5191
      %5334 = vst.msk [vmem:[#allocation2 + $0x54] sm:$0xf] %vm2053, %v5193
      %5335 = vst.msk [vmem:[#allocation2 + $0x58] sm:$0xf] %vm2053, %v5195
      %5336 = vst.msk [vmem:[#allocation2 + $0x5c] sm:$0xf] %vm2053, %v5197
      %5337 = vst.msk [vmem:[#allocation2 + $0x60] sm:$0xf] %vm2053, %v5199
      %5338 = vst.msk [vmem:[#allocation2 + $0x64] sm:$0xf] %vm2053, %v5201
      %5339 = vst.msk [vmem:[#allocation2 + $0x68] sm:$0xf] %vm2053, %v5203
      %5340 = vst.msk [vmem:[#allocation2 + $0x6c] sm:$0xf] %vm2053, %v5205
      %5341 = vst.msk [vmem:[#allocation2 + $0x70] sm:$0xf] %vm2053, %v5207
      %5342 = vst.msk [vmem:[#allocation2 + $0x74] sm:$0xf] %vm2053, %v5209
      %5343 = vst.msk [vmem:[#allocation2 + $0x78] sm:$0xf] %vm2053, %v5211
      %5344 = vst.msk [vmem:[#allocation2 + $0x7c] sm:$0xf] %vm2053, %v5213
      %5345 = vst.msk [vmem:[#allocation2 + $0x80] sm:$0xf] %vm2053, %v5215
      %5346 = vst.msk [vmem:[#allocation2 + $0x84] sm:$0xf] %vm2053, %v5217
      %5347 = vst.msk [vmem:[#allocation2 + $0x88] sm:$0xf] %vm2053, %v5219
      %5348 = vst.msk [vmem:[#allocation2 + $0x8c] sm:$0xf] %vm2053, %v5221
      %5349 = vst.msk [vmem:[#allocation2 + $0x90] sm:$0xf] %vm2053, %v5223
      %5350 = vst.msk [vmem:[#allocation2 + $0x94] sm:$0xf] %vm2053, %v5225
      %5351 = vst.msk [vmem:[#allocation2 + $0x98] sm:$0xf] %vm2053, %v5227
      %5352 = vst.msk [vmem:[#allocation2 + $0x9c] sm:$0xf] %vm2053, %v5229
      %5353 = vst.msk [vmem:[#allocation2 + $0xa0] sm:$0xf] %vm2053, %v5231
      %5354 = vst.msk [vmem:[#allocation2 + $0xa4] sm:$0xf] %vm2053, %v5233
      %5355 = vst.msk [vmem:[#allocation2 + $0xa8] sm:$0xf] %vm2053, %v5235
      %5356 = vst.msk [vmem:[#allocation2 + $0xac] sm:$0xf] %vm2053, %v5237
      %5357 = vst.msk [vmem:[#allocation2 + $0xb0] sm:$0xf] %vm2053, %v5239
      %5358 = vst.msk [vmem:[#allocation2 + $0xb4] sm:$0xf] %vm2053, %v5241
      %5359 = vst.msk [vmem:[#allocation2 + $0xb8] sm:$0xf] %vm2053, %v5243
      %5360 = vst.msk [vmem:[#allocation2 + $0xbc] sm:$0xf] %vm2053, %v5245
      %5361 = vst.msk [vmem:[#allocation2 + $0xc0] sm:$0xf] %vm2053, %v5247
      %5362 = vst.msk [vmem:[#allocation2 + $0xc4] sm:$0xf] %vm2053, %v5249
      %5363 = vst.msk [vmem:[#allocation2 + $0xc8] sm:$0xf] %vm2053, %v5251
      %5364 = vst.msk [vmem:[#allocation2 + $0xcc] sm:$0xf] %vm2053, %v5253
      %5365 = vst.msk [vmem:[#allocation2 + $0xd0] sm:$0xf] %vm2053, %v5255
      %5366 = vst.msk [vmem:[#allocation2 + $0xd4] sm:$0xf] %vm2053, %v5257
      %5367 = vst.msk [vmem:[#allocation2 + $0xd8] sm:$0xf] %vm2053, %v5259
      %v5368 = vld [vmem:[#allocation2 + $0x4] sm:$0xf]
      %v5369 = vld [vmem:[#allocation2 + $0x8] sm:$0xf]
      %v5370 = vld [vmem:[#allocation2 + $0xc] sm:$0xf]
      %v5371 = vld [vmem:[#allocation2 + $0x10] sm:$0xf]
      %v5372 = vld [vmem:[#allocation2 + $0x14] sm:$0xf]
      %v5373 = vld [vmem:[#allocation2 + $0x18] sm:$0xf]
      %v5374 = vld [vmem:[#allocation2 + $0x1c] sm:$0xf]
      %v5375 = vld [vmem:[#allocation2 + $0x20] sm:$0xf]
      %v5376 = vld [vmem:[#allocation2 + $0x24] sm:$0xf]
      %v5377 = vld [vmem:[#allocation2 + $0x28] sm:$0xf]
      %v5378 = vld [vmem:[#allocation2 + $0x2c] sm:$0xf]
      %v5379 = vld [vmem:[#allocation2 + $0x30] sm:$0xf]
      %v5380 = vld [vmem:[#allocation2 + $0x34] sm:$0xf]
      %v5381 = vld [vmem:[#allocation2 + $0x38] sm:$0xf]
      %v5382 = vld [vmem:[#allocation2 + $0x3c] sm:$0xf]
      %v5383 = vld [vmem:[#allocation2 + $0x40] sm:$0xf]
      %v5384 = vld [vmem:[#allocation2 + $0x44] sm:$0xf]
      %v5385 = vld [vmem:[#allocation2 + $0x48] sm:$0xf]
      %v5386 = vld [vmem:[#allocation2 + $0x4c] sm:$0xf]
      %v5387 = vld [vmem:[#allocation2 + $0x50] sm:$0xf]
      %v5388 = vld [vmem:[#allocation2 + $0x54] sm:$0xf]
      %v5389 = vld [vmem:[#allocation2 + $0x58] sm:$0xf]
      %v5390 = vld [vmem:[#allocation2 + $0x5c] sm:$0xf]
      %v5391 = vld [vmem:[#allocation2 + $0x60] sm:$0xf]
      %v5392 = vld [vmem:[#allocation2 + $0x64] sm:$0xf]
      %v5393 = vld [vmem:[#allocation2 + $0x68] sm:$0xf]
      %v5394 = vld [vmem:[#allocation2 + $0x6c] sm:$0xf]
      %v5395 = vld [vmem:[#allocation2 + $0x70] sm:$0xf]
      %v5396 = vld [vmem:[#allocation2 + $0x74] sm:$0xf]
      %v5397 = vld [vmem:[#allocation2 + $0x78] sm:$0xf]
      %v5398 = vld [vmem:[#allocation2 + $0x7c] sm:$0xf]
      %v5399 = vld [vmem:[#allocation2 + $0x80] sm:$0xf]
      %v5400 = vld [vmem:[#allocation2 + $0x84] sm:$0xf]
      %v5401 = vld [vmem:[#allocation2 + $0x88] sm:$0xf]
      %v5402 = vld [vmem:[#allocation2 + $0x8c] sm:$0xf]
      %v5403 = vld [vmem:[#allocation2 + $0x90] sm:$0xf]
      %v5404 = vld [vmem:[#allocation2 + $0x94] sm:$0xf]
      %v5405 = vld [vmem:[#allocation2 + $0x98] sm:$0xf]
      %v5406 = vld [vmem:[#allocation2 + $0x9c] sm:$0xf]
      %v5407 = vld [vmem:[#allocation2 + $0xa0] sm:$0xf]
      %v5408 = vld [vmem:[#allocation2 + $0xa4] sm:$0xf]
      %v5409 = vld [vmem:[#allocation2 + $0xa8] sm:$0xf]
      %v5410 = vld [vmem:[#allocation2 + $0xac] sm:$0xf]
      %v5411 = vld [vmem:[#allocation2 + $0xb0] sm:$0xf]
      %v5412 = vld [vmem:[#allocation2 + $0xb4] sm:$0xf]
      %v5413 = vld [vmem:[#allocation2 + $0xb8] sm:$0xf]
      %v5414 = vld [vmem:[#allocation2 + $0xbc] sm:$0xf]
      %v5415 = vld [vmem:[#allocation2 + $0xc0] sm:$0xf]
      %v5416 = vld [vmem:[%s2] sm:$0xf]
      %v5417 = vld [vmem:[%s2 + $0x4] sm:$0x3]
      %v5418 = vld [vmem:[#allocation2 + $0xc4] sm:$0xf]
      %v5419 = vld [vmem:[#allocation2 + $0xc8] sm:$0xf]
      %v5420 = vld [vmem:[#allocation2 + $0xcc] sm:$0xf]
      %v5421 = vld [vmem:[%s2 + $0x4] sm:$0xc]
      %v5422 = vld [vmem:[%s2 + $0x8] sm:$0xf]
      %v5471 = vunpack.c.l.b16 %v5371
      %v5472 = vunpack.c.l.b16 %v5372
      %v5473 = vunpack.c.l.b16 %v5373
      %v5474 = vunpack.c.l.b16 %v5374
      %v5475 = vunpack.c.l.b16 %v5375
      %v5476 = vunpack.c.l.b16 %v5376
      %v5477 = vunpack.c.l.b16 %v5377
      %v5478 = vunpack.c.l.b16 %v5378
      %v5479 = vunpack.c.l.b16 %v5379
      %v5480 = vunpack.c.l.b16 %v5380
      %v5481 = vunpack.c.l.b16 %v5381
      %v5482 = vunpack.c.l.b16 %v5382
      %v5483 = vunpack.c.l.b16 %v5383
      %v5484 = vunpack.c.l.b16 %v5384
      %v5485 = vunpack.c.l.b16 %v5385
      %v5486 = vunpack.c.l.b16 %v5386
      %v5487 = vunpack.c.l.b16 %v5387
      %v5488 = vunpack.c.l.b16 %v5388
      %v5489 = vunpack.c.l.b16 %v5389
      %v5490 = vunpack.c.l.b16 %v5390
      %v5491 = vunpack.c.l.b16 %v5391
      %v5492 = vunpack.c.l.b16 %v5392
      %v5493 = vunpack.c.l.b16 %v5393
      %v5494 = vunpack.c.l.b16 %v5394
      %v5495 = vunpack.c.l.b16 %v5395
      %v5496 = vunpack.c.l.b16 %v5396
      %v5497 = vunpack.c.l.b16 %v5397
      %v5498 = vunpack.c.l.b16 %v5398
      %v5499 = vunpack.c.l.b16 %v5399
      %v5500 = vunpack.c.l.b16 %v5400
      %v5501 = vunpack.c.l.b16 %v5401
      %v5502 = vunpack.c.l.b16 %v5402
      %v5503 = vunpack.c.l.b16 %v5403
      %v5504 = vunpack.c.l.b16 %v5404
      %v5505 = vunpack.c.l.b16 %v5405
      %v5506 = vunpack.c.l.b16 %v5406
      %v5507 = vunpack.c.l.b16 %v5407
      %v5508 = vunpack.c.l.b16 %v5408
      %v5509 = vunpack.c.l.b16 %v5409
      %v5510 = vunpack.c.l.b16 %v5410
      %v5511 = vunpack.c.l.b16 %v5411
      %v5512 = vunpack.c.l.b16 %v5412
      %v5513 = vunpack.c.l.b16 %v5413
      %v5514 = vunpack.c.l.b16 %v5414
      %v5515 = vunpack.c.l.b16 %v5415
      %v5516 = vunpack.c.l.b16 %v5418
      %v5517 = vunpack.c.l.b16 %v5419
      %v5518 = vunpack.c.l.b16 %v5420
      %v5519 = vpack.c.b16 %v5472, %v5471
      %v5520 = vpack.c.b16 %v5474, %v5473
      %v5521 = vpack.c.b16 %v5476, %v5475
      %v5522 = vpack.c.b16 %v5478, %v5477
      %v5523 = vpack.c.b16 %v5480, %v5479
      %v5524 = vpack.c.b16 %v5482, %v5481
      %v5525 = vpack.c.b16 %v5484, %v5483
      %v5526 = vpack.c.b16 %v5486, %v5485
      %v5527 = vpack.c.b16 %v5488, %v5487
      %v5528 = vpack.c.b16 %v5490, %v5489
      %v5529 = vpack.c.b16 %v5492, %v5491
      %v5530 = vpack.c.b16 %v5494, %v5493
      %v5531 = vpack.c.b16 %v5496, %v5495
      %v5532 = vpack.c.b16 %v5498, %v5497
      %v5533 = vpack.c.b16 %v5500, %v5499
      %v5534 = vpack.c.b16 %v5502, %v5501
      %v5535 = vpack.c.b16 %v5504, %v5503
      %v5536 = vpack.c.b16 %v5506, %v5505
      %v5537 = vpack.c.b16 %v5508, %v5507
      %v5538 = vpack.c.b16 %v5510, %v5509
      %v5539 = vpack.c.b16 %v5512, %v5511
      %v5540 = vpack.c.b16 %v5514, %v5513
      %v5541 = vpack.c.b16 %v5516, %v5515
      %v5542 = vpack.c.b16 %v5518, %v5517
      %v5545 = vunpack.c.l.b16 %v5421
      %v5546 = vunpack.c.l.b16 %v5422
      %v5547 = vpack.c.b16 %v5546, %v5545
      %v5548 = vrot.slane %v5547, 2
      %v5550 = vsel %vm2289, %v5519, 0
      %v5553 = vsel %vm2289, %v5520, 0
      %v5556 = vsel %vm2289, %v5521, 0
      %v5559 = vsel %vm2289, %v5522, 0
      %v5562 = vsel %vm2289, %v5523, 0
      %v5565 = vsel %vm2289, %v5524, 0
      %v5568 = vsel %vm2289, %v5525, 0
      %v5571 = vsel %vm2289, %v5526, 0
      %v5574 = vsel %vm2289, %v5527, 0
      %v5577 = vsel %vm2289, %v5528, 0
      %v5580 = vsel %vm2289, %v5529, 0
      %v5583 = vsel %vm2289, %v5530, 0
      %v5586 = vsel %vm2289, %v5531, 0
      %v5589 = vsel %vm2289, %v5532, 0
      %v5592 = vsel %vm2289, %v5533, 0
      %v5595 = vsel %vm2289, %v5534, 0
      %v5598 = vsel %vm2289, %v5535, 0
      %v5601 = vsel %vm2289, %v5536, 0
      %v5604 = vsel %vm2289, %v5537, 0
      %v5607 = vsel %vm2289, %v5538, 0
      %v5610 = vsel %vm2289, %v5539, 0
      %v5613 = vsel %vm2289, %v5540, 0
      %v5616 = vsel %vm2289, %v5541, 0
      %v5619 = vsel %vm2289, %v5542, 0
      %v5622 = vsel %vm2362, %v5548, 0
      %5624 = vmatprep.subr.bf16.mxu0 0
      %5625 = vmatpush1.bf16.msra.mxu0 0
      %5626 = vmatprep.subr.bf16.mxu0 0
      %5627 = vmatpush1.bf16.msra.mxu0 0
      %5628 = vmatprep.subr.bf16.mxu0 0
      %5629 = vmatpush1.bf16.msra.mxu0 0
      %5630 = vmatprep.subr.bf16.mxu0 0
      %5631 = vmatpush1.bf16.msra.mxu0 0
      %5632 = vmatprep.subr.bf16.mxu0 0
      %5633 = vmatpush1.bf16.msra.mxu0 0
      %5634 = vmatprep.subr.bf16.mxu0 0
      %5635 = vmatpush1.bf16.msra.mxu0 0
      %5636 = vmatprep.subr.bf16.mxu0 0
      %5637 = vmatpush1.bf16.msra.mxu0 0
      %5638 = vmatprep.subr.bf16.mxu0 0
      %5639 = vmatpush1.bf16.msra.mxu0 %v5622
      %5640 = vmatprep.subr.bf16.mxu0 0
      %5641 = vmatpush2.bf16.msra.mxu0 0
      %5642 = vmatprep.subr.bf16.mxu0 0
      %5643 = vmatpush2.bf16.msra.mxu0 0
      %5644 = vmatprep.subr.bf16.mxu0 0
      %5645 = vmatpush2.bf16.msra.mxu0 0
      %5646 = vmatprep.subr.bf16.mxu0 0
      %5647 = vmatpush2.bf16.msra.mxu0 0
      %5648 = vmatprep.subr.bf16.mxu0 0
      %5649 = vmatpush2.bf16.msra.mxu0 0
      %5650 = vmatprep.subr.bf16.mxu0 0
      %5651 = vmatpush2.bf16.msra.mxu0 0
      %5652 = vmatprep.subr.bf16.mxu0 0
      %5653 = vmatpush2.bf16.msra.mxu0 0
      %5654 = vmatprep.subr.bf16.mxu0 0
      %5655 = vmatpush2.bf16.msra.mxu0 0
      %5656 = vmatprep.mubr.bf16.mxu0 0
      %5657 = vmatmul.mubr.bf16.gmra.mxu0 %v5550
      %v5658 = vpop.f32.mrf.mxu0
      %v5659 = vadd.f32 0.0, %v5658
      %v5660 = vpop.f32.mrf.mxu0
      %v5661 = vpop.f32.mrf.mxu0
      %v5662 = vadd.f32 0.0, %v5661
      %v5663 = vpop.f32.mrf.mxu0
      %5664 = vmatprep.mubr.bf16.mxu0 0
      %5665 = vmatmul.mubr.bf16.gmra.mxu0 %v5553
      %v5666 = vpop.f32.mrf.mxu0
      %v5667 = vpop.f32.mrf.mxu0
      %v5668 = vpop.f32.mrf.mxu0
      %v5669 = vadd.f32 0.0, %v5668
      %v5670 = vpop.f32.mrf.mxu0
      %5671 = vmatprep.mubr.bf16.mxu0 0
      %5672 = vmatmul.mubr.bf16.gmra.mxu0 %v5556
      %v5673 = vpop.f32.mrf.mxu0
      %v5674 = vadd.f32 0.0, %v5673
      %v5675 = vpop.f32.mrf.mxu0
      %v5676 = vpop.f32.mrf.mxu0
      %v5677 = vpop.f32.mrf.mxu0
      %5678 = vmatprep.mubr.bf16.mxu0 0
      %5679 = vmatmul.mubr.bf16.gmra.mxu0 %v5559
      %v5680 = vpop.f32.mrf.mxu0
      %v5681 = vadd.f32 0.0, %v5680
      %v5682 = vpop.f32.mrf.mxu0
      %v5683 = vpop.f32.mrf.mxu0
      %v5684 = vadd.f32 0.0, %v5683
      %v5685 = vpop.f32.mrf.mxu0
      %5686 = vmatprep.mubr.bf16.mxu0 0
      %5687 = vmatmul.mubr.bf16.gmra.mxu0 %v5562
      %v5688 = vpop.f32.mrf.mxu0
      %v5689 = vpop.f32.mrf.mxu0
      %v5690 = vpop.f32.mrf.mxu0
      %v5691 = vadd.f32 0.0, %v5690
      %v5692 = vpop.f32.mrf.mxu0
      %5693 = vmatprep.mubr.bf16.mxu0 0
      %5694 = vmatmul.mubr.bf16.gmra.mxu0 %v5565
      %v5695 = vpop.f32.mrf.mxu0
      %v5696 = vadd.f32 0.0, %v5695
      %v5697 = vpop.f32.mrf.mxu0
      %v5698 = vpop.f32.mrf.mxu0
      %v5699 = vpop.f32.mrf.mxu0
      %5700 = vmatprep.mubr.bf16.mxu0 0
      %5701 = vmatmul.mubr.bf16.gmra.mxu0 %v5568
      %v5702 = vpop.f32.mrf.mxu0
      %v5703 = vadd.f32 0.0, %v5702
      %v5704 = vpop.f32.mrf.mxu0
      %v5705 = vpop.f32.mrf.mxu0
      %v5706 = vadd.f32 0.0, %v5705
      %v5707 = vpop.f32.mrf.mxu0
      %5708 = vmatprep.mubr.bf16.mxu0 0
      %5709 = vmatmul.mubr.bf16.gmra.mxu0 %v5571
      %v5710 = vpop.f32.mrf.mxu0
      %v5711 = vpop.f32.mrf.mxu0
      %v5712 = vpop.f32.mrf.mxu0
      %v5713 = vadd.f32 0.0, %v5712
      %v5714 = vpop.f32.mrf.mxu0
      %5715 = vmatprep.mubr.bf16.mxu0 0
      %5716 = vmatmul.mubr.bf16.gmra.mxu0 %v5574
      %v5717 = vpop.f32.mrf.mxu0
      %v5718 = vadd.f32 0.0, %v5717
      %v5719 = vpop.f32.mrf.mxu0
      %v5720 = vpop.f32.mrf.mxu0
      %v5721 = vpop.f32.mrf.mxu0
      %5722 = vmatprep.mubr.bf16.mxu0 0
      %5723 = vmatmul.mubr.bf16.gmra.mxu0 %v5577
      %v5724 = vpop.f32.mrf.mxu0
      %v5725 = vadd.f32 0.0, %v5724
      %v5726 = vpop.f32.mrf.mxu0
      %v5727 = vpop.f32.mrf.mxu0
      %v5728 = vadd.f32 0.0, %v5727
      %v5729 = vpop.f32.mrf.mxu0
      %5730 = vmatprep.mubr.bf16.mxu0 0
      %5731 = vmatmul.mubr.bf16.gmra.mxu0 %v5580
      %v5732 = vpop.f32.mrf.mxu0
      %v5733 = vpop.f32.mrf.mxu0
      %v5734 = vpop.f32.mrf.mxu0
      %v5735 = vadd.f32 0.0, %v5734
      %v5736 = vpop.f32.mrf.mxu0
      %5737 = vmatprep.mubr.bf16.mxu0 0
      %5738 = vmatmul.mubr.bf16.gmra.mxu0 %v5583
      %v5739 = vpop.f32.mrf.mxu0
      %v5740 = vadd.f32 0.0, %v5739
      %v5741 = vpop.f32.mrf.mxu0
      %v5742 = vpop.f32.mrf.mxu0
      %v5743 = vpop.f32.mrf.mxu0
      %5744 = vmatprep.mubr.bf16.mxu0 0
      %5745 = vmatmul.mubr.bf16.gmra.mxu0 %v5586
      %v5746 = vpop.f32.mrf.mxu0
      %v5747 = vadd.f32 0.0, %v5746
      %v5748 = vpop.f32.mrf.mxu0
      %v5749 = vpop.f32.mrf.mxu0
      %v5750 = vadd.f32 0.0, %v5749
      %v5751 = vpop.f32.mrf.mxu0
      %5752 = vmatprep.mubr.bf16.mxu0 0
      %5753 = vmatmul.mubr.bf16.gmra.mxu0 %v5589
      %v5754 = vpop.f32.mrf.mxu0
      %v5755 = vpop.f32.mrf.mxu0
      %v5756 = vpop.f32.mrf.mxu0
      %v5757 = vadd.f32 0.0, %v5756
      %v5758 = vpop.f32.mrf.mxu0
      %5759 = vmatprep.mubr.bf16.mxu0 0
      %5760 = vmatmul.mubr.bf16.gmra.mxu0 %v5592
      %v5761 = vpop.f32.mrf.mxu0
      %v5762 = vadd.f32 0.0, %v5761
      %v5763 = vpop.f32.mrf.mxu0
      %v5764 = vpop.f32.mrf.mxu0
      %v5765 = vpop.f32.mrf.mxu0
      %5766 = vmatprep.mubr.bf16.mxu0 0
      %5767 = vmatmul.mubr.bf16.gmra.mxu0 %v5595
      %v5768 = vpop.f32.mrf.mxu0
      %v5769 = vadd.f32 0.0, %v5768
      %v5770 = vpop.f32.mrf.mxu0
      %v5771 = vpop.f32.mrf.mxu0
      %v5772 = vadd.f32 0.0, %v5771
      %v5773 = vpop.f32.mrf.mxu0
      %5774 = vmatprep.mubr.bf16.mxu0 0
      %5775 = vmatmul.mubr.bf16.gmra.mxu0 %v5598
      %v5776 = vpop.f32.mrf.mxu0
      %v5777 = vpop.f32.mrf.mxu0
      %v5778 = vpop.f32.mrf.mxu0
      %v5779 = vadd.f32 0.0, %v5778
      %v5780 = vpop.f32.mrf.mxu0
      %5781 = vmatprep.mubr.bf16.mxu0 0
      %5782 = vmatmul.mubr.bf16.gmra.mxu0 %v5601
      %v5783 = vpop.f32.mrf.mxu0
      %v5784 = vadd.f32 0.0, %v5783
      %v5785 = vpop.f32.mrf.mxu0
      %v5786 = vpop.f32.mrf.mxu0
      %v5787 = vpop.f32.mrf.mxu0
      %5788 = vmatprep.mubr.bf16.mxu0 0
      %5789 = vmatmul.mubr.bf16.gmra.mxu0 %v5604
      %v5790 = vpop.f32.mrf.mxu0
      %v5791 = vadd.f32 0.0, %v5790
      %v5792 = vpop.f32.mrf.mxu0
      %v5793 = vpop.f32.mrf.mxu0
      %v5794 = vadd.f32 0.0, %v5793
      %v5795 = vpop.f32.mrf.mxu0
      %5796 = vmatprep.mubr.bf16.mxu0 0
      %5797 = vmatmul.mubr.bf16.gmra.mxu0 %v5607
      %v5798 = vpop.f32.mrf.mxu0
      %v5799 = vpop.f32.mrf.mxu0
      %v5800 = vpop.f32.mrf.mxu0
      %v5801 = vadd.f32 0.0, %v5800
      %v5802 = vpop.f32.mrf.mxu0
      %5803 = vmatprep.mubr.bf16.mxu0 0
      %5804 = vmatmul.mubr.bf16.gmra.mxu0 %v5610
      %v5805 = vpop.f32.mrf.mxu0
      %v5806 = vadd.f32 0.0, %v5805
      %v5807 = vpop.f32.mrf.mxu0
      %v5808 = vpop.f32.mrf.mxu0
      %v5809 = vpop.f32.mrf.mxu0
      %5810 = vmatprep.mubr.bf16.mxu0 0
      %5811 = vmatmul.mubr.bf16.gmra.mxu0 %v5613
      %v5812 = vpop.f32.mrf.mxu0
      %v5813 = vadd.f32 0.0, %v5812
      %v5814 = vpop.f32.mrf.mxu0
      %v5815 = vpop.f32.mrf.mxu0
      %v5816 = vadd.f32 0.0, %v5815
      %v5817 = vpop.f32.mrf.mxu0
      %5818 = vmatprep.mubr.bf16.mxu0 0
      %5819 = vmatmul.mubr.bf16.gmra.mxu0 %v5616
      %v5820 = vpop.f32.mrf.mxu0
      %v5821 = vpop.f32.mrf.mxu0
      %v5822 = vpop.f32.mrf.mxu0
      %v5823 = vadd.f32 0.0, %v5822
      %v5824 = vpop.f32.mrf.mxu0
      %5825 = vmatprep.mubr.bf16.mxu0 0
      %5826 = vmatmul.mubr.bf16.gmra.mxu0 %v5619
      %v5827 = vpop.f32.mrf.mxu0
      %v5828 = vadd.f32 0.0, %v5827
      %v5829 = vpop.f32.mrf.mxu0
      %v5830 = vpop.f32.mrf.mxu0
      %v5831 = vpop.f32.mrf.mxu0
      %5832 = vdwg.mxu0
      %v5836 = vunpack.c.l.b16 %v5368
      %v5837 = vunpack.c.l.b16 %v5369
      %v5838 = vunpack.c.l.b16 %v5370
      %v5839 = vpack.c.b16 %v5837, %v5836
      %v5840 = vpack.c.b16 %v5471, %v5838
      %v5841 = vpack.c.b16 %v5473, %v5472
      %v5842 = vpack.c.b16 %v5475, %v5474
      %v5843 = vpack.c.b16 %v5477, %v5476
      %v5844 = vpack.c.b16 %v5479, %v5478
      %v5845 = vpack.c.b16 %v5481, %v5480
      %v5846 = vpack.c.b16 %v5483, %v5482
      %v5847 = vpack.c.b16 %v5485, %v5484
      %v5848 = vpack.c.b16 %v5487, %v5486
      %v5849 = vpack.c.b16 %v5489, %v5488
      %v5850 = vpack.c.b16 %v5491, %v5490
      %v5851 = vpack.c.b16 %v5493, %v5492
      %v5852 = vpack.c.b16 %v5495, %v5494
      %v5853 = vpack.c.b16 %v5497, %v5496
      %v5854 = vpack.c.b16 %v5499, %v5498
      %v5855 = vpack.c.b16 %v5501, %v5500
      %v5856 = vpack.c.b16 %v5503, %v5502
      %v5857 = vpack.c.b16 %v5505, %v5504
      %v5858 = vpack.c.b16 %v5507, %v5506
      %v5859 = vpack.c.b16 %v5509, %v5508
      %v5860 = vpack.c.b16 %v5511, %v5510
      %v5861 = vpack.c.b16 %v5513, %v5512
      %v5862 = vpack.c.b16 %v5515, %v5514
      %v5865 = vunpack.c.l.b16 %v5416
      %v5866 = vunpack.c.l.b16 %v5417
      %v5867 = vpack.c.b16 %v5866, %v5865
      %v5869 = vsel %vm2289, %v5839, 0
      %v5872 = vsel %vm2289, %v5840, 0
      %v5875 = vsel %vm2289, %v5841, 0
      %v5878 = vsel %vm2289, %v5842, 0
      %v5881 = vsel %vm2289, %v5843, 0
      %v5884 = vsel %vm2289, %v5844, 0
      %v5887 = vsel %vm2289, %v5845, 0
      %v5890 = vsel %vm2289, %v5846, 0
      %v5893 = vsel %vm2289, %v5847, 0
      %v5896 = vsel %vm2289, %v5848, 0
      %v5899 = vsel %vm2289, %v5849, 0
      %v5902 = vsel %vm2289, %v5850, 0
      %v5905 = vsel %vm2289, %v5851, 0
      %v5908 = vsel %vm2289, %v5852, 0
      %v5911 = vsel %vm2289, %v5853, 0
      %v5914 = vsel %vm2289, %v5854, 0
      %v5917 = vsel %vm2289, %v5855, 0
      %v5920 = vsel %vm2289, %v5856, 0
      %v5923 = vsel %vm2289, %v5857, 0
      %v5926 = vsel %vm2289, %v5858, 0
      %v5929 = vsel %vm2289, %v5859, 0
      %v5932 = vsel %vm2289, %v5860, 0
      %v5935 = vsel %vm2289, %v5861, 0
      %v5938 = vsel %vm2289, %v5862, 0
      %v5941 = vsel %vm2362, %v5867, 0
      %5943 = vmatprep.subr.bf16.mxu0 0
      %5944 = vmatpush1.bf16.msra.mxu0 0
      %5945 = vmatprep.subr.bf16.mxu0 0
      %5946 = vmatpush1.bf16.msra.mxu0 0
      %5947 = vmatprep.subr.bf16.mxu0 0
      %5948 = vmatpush1.bf16.msra.mxu0 0
      %5949 = vmatprep.subr.bf16.mxu0 0
      %5950 = vmatpush1.bf16.msra.mxu0 0
      %5951 = vmatprep.subr.bf16.mxu0 0
      %5952 = vmatpush1.bf16.msra.mxu0 0
      %5953 = vmatprep.subr.bf16.mxu0 0
      %5954 = vmatpush1.bf16.msra.mxu0 0
      %5955 = vmatprep.subr.bf16.mxu0 0
      %5956 = vmatpush1.bf16.msra.mxu0 0
      %5957 = vmatprep.subr.bf16.mxu0 0
      %5958 = vmatpush1.bf16.msra.mxu0 %v5941
      %5959 = vmatprep.subr.bf16.mxu0 0
      %5960 = vmatpush2.bf16.msra.mxu0 0
      %5961 = vmatprep.subr.bf16.mxu0 0
      %5962 = vmatpush2.bf16.msra.mxu0 0
      %5963 = vmatprep.subr.bf16.mxu0 0
      %5964 = vmatpush2.bf16.msra.mxu0 0
      %5965 = vmatprep.subr.bf16.mxu0 0
      %5966 = vmatpush2.bf16.msra.mxu0 0
      %5967 = vmatprep.subr.bf16.mxu0 0
      %5968 = vmatpush2.bf16.msra.mxu0 0
      %5969 = vmatprep.subr.bf16.mxu0 0
      %5970 = vmatpush2.bf16.msra.mxu0 0
      %5971 = vmatprep.subr.bf16.mxu0 0
      %5972 = vmatpush2.bf16.msra.mxu0 0
      %5973 = vmatprep.subr.bf16.mxu0 0
      %5974 = vmatpush2.bf16.msra.mxu0 0
      %5975 = vmatprep.mubr.bf16.mxu0 0
      %5976 = vmatmul.mubr.bf16.gmra.mxu0 %v5869
      %v5977 = vpop.f32.mrf.mxu0
      %v5978 = vadd.f32 %v5659, %v5977
      %v5979 = vpop.f32.mrf.mxu0
      %v5980 = vpop.f32.mrf.mxu0
      %v5981 = vadd.f32 %v5662, %v5980
      %v5982 = vpop.f32.mrf.mxu0
      %5983 = vmatprep.mubr.bf16.mxu0 0
      %5984 = vmatmul.mubr.bf16.gmra.mxu0 %v5872
      %v5985 = vpop.f32.mrf.mxu0
      %v5986 = vpop.f32.mrf.mxu0
      %v5987 = vpop.f32.mrf.mxu0
      %v5988 = vadd.f32 %v5669, %v5987
      %v5989 = vpop.f32.mrf.mxu0
      %5990 = vmatprep.mubr.bf16.mxu0 0
      %5991 = vmatmul.mubr.bf16.gmra.mxu0 %v5875
      %v5992 = vpop.f32.mrf.mxu0
      %v5993 = vadd.f32 %v5674, %v5992
      %v5994 = vpop.f32.mrf.mxu0
      %v5995 = vpop.f32.mrf.mxu0
      %v5996 = vpop.f32.mrf.mxu0
      %5997 = vmatprep.mubr.bf16.mxu0 0
      %5998 = vmatmul.mubr.bf16.gmra.mxu0 %v5878
      %v5999 = vpop.f32.mrf.mxu0
      %v6000 = vadd.f32 %v5681, %v5999
      %v6001 = vpop.f32.mrf.mxu0
      %v6002 = vpop.f32.mrf.mxu0
      %v6003 = vadd.f32 %v5684, %v6002
      %v6004 = vpop.f32.mrf.mxu0
      %6005 = vmatprep.mubr.bf16.mxu0 0
      %6006 = vmatmul.mubr.bf16.gmra.mxu0 %v5881
      %v6007 = vpop.f32.mrf.mxu0
      %v6008 = vpop.f32.mrf.mxu0
      %v6009 = vpop.f32.mrf.mxu0
      %v6010 = vadd.f32 %v5691, %v6009
      %v6011 = vpop.f32.mrf.mxu0
      %6012 = vmatprep.mubr.bf16.mxu0 0
      %6013 = vmatmul.mubr.bf16.gmra.mxu0 %v5884
      %v6014 = vpop.f32.mrf.mxu0
      %v6015 = vadd.f32 %v5696, %v6014
      %v6016 = vpop.f32.mrf.mxu0
      %v6017 = vpop.f32.mrf.mxu0
      %v6018 = vpop.f32.mrf.mxu0
      %6019 = vmatprep.mubr.bf16.mxu0 0
      %6020 = vmatmul.mubr.bf16.gmra.mxu0 %v5887
      %v6021 = vpop.f32.mrf.mxu0
      %v6022 = vadd.f32 %v5703, %v6021
      %v6023 = vpop.f32.mrf.mxu0
      %v6024 = vpop.f32.mrf.mxu0
      %v6025 = vadd.f32 %v5706, %v6024
      %v6026 = vpop.f32.mrf.mxu0
      %6027 = vmatprep.mubr.bf16.mxu0 0
      %6028 = vmatmul.mubr.bf16.gmra.mxu0 %v5890
      %v6029 = vpop.f32.mrf.mxu0
      %v6030 = vpop.f32.mrf.mxu0
      %v6031 = vpop.f32.mrf.mxu0
      %v6032 = vadd.f32 %v5713, %v6031
      %v6033 = vpop.f32.mrf.mxu0
      %6034 = vmatprep.mubr.bf16.mxu0 0
      %6035 = vmatmul.mubr.bf16.gmra.mxu0 %v5893
      %v6036 = vpop.f32.mrf.mxu0
      %v6037 = vadd.f32 %v5718, %v6036
      %v6038 = vpop.f32.mrf.mxu0
      %v6039 = vpop.f32.mrf.mxu0
      %v6040 = vpop.f32.mrf.mxu0
      %6041 = vmatprep.mubr.bf16.mxu0 0
      %6042 = vmatmul.mubr.bf16.gmra.mxu0 %v5896
      %v6043 = vpop.f32.mrf.mxu0
      %v6044 = vadd.f32 %v5725, %v6043
      %v6045 = vpop.f32.mrf.mxu0
      %v6046 = vpop.f32.mrf.mxu0
      %v6047 = vadd.f32 %v5728, %v6046
      %v6048 = vpop.f32.mrf.mxu0
      %6049 = vmatprep.mubr.bf16.mxu0 0
      %6050 = vmatmul.mubr.bf16.gmra.mxu0 %v5899
      %v6051 = vpop.f32.mrf.mxu0
      %v6052 = vpop.f32.mrf.mxu0
      %v6053 = vpop.f32.mrf.mxu0
      %v6054 = vadd.f32 %v5735, %v6053
      %v6055 = vpop.f32.mrf.mxu0
      %6056 = vmatprep.mubr.bf16.mxu0 0
      %6057 = vmatmul.mubr.bf16.gmra.mxu0 %v5902
      %v6058 = vpop.f32.mrf.mxu0
      %v6059 = vadd.f32 %v5740, %v6058
      %v6060 = vpop.f32.mrf.mxu0
      %v6061 = vpop.f32.mrf.mxu0
      %v6062 = vpop.f32.mrf.mxu0
      %6063 = vmatprep.mubr.bf16.mxu0 0
      %6064 = vmatmul.mubr.bf16.gmra.mxu0 %v5905
      %v6065 = vpop.f32.mrf.mxu0
      %v6066 = vadd.f32 %v5747, %v6065
      %v6067 = vpop.f32.mrf.mxu0
      %v6068 = vpop.f32.mrf.mxu0
      %v6069 = vadd.f32 %v5750, %v6068
      %v6070 = vpop.f32.mrf.mxu0
      %6071 = vmatprep.mubr.bf16.mxu0 0
      %6072 = vmatmul.mubr.bf16.gmra.mxu0 %v5908
      %v6073 = vpop.f32.mrf.mxu0
      %v6074 = vpop.f32.mrf.mxu0
      %v6075 = vpop.f32.mrf.mxu0
      %v6076 = vadd.f32 %v5757, %v6075
      %v6077 = vpop.f32.mrf.mxu0
      %6078 = vmatprep.mubr.bf16.mxu0 0
      %6079 = vmatmul.mubr.bf16.gmra.mxu0 %v5911
      %v6080 = vpop.f32.mrf.mxu0
      %v6081 = vadd.f32 %v5762, %v6080
      %v6082 = vpop.f32.mrf.mxu0
      %v6083 = vpop.f32.mrf.mxu0
      %v6084 = vpop.f32.mrf.mxu0
      %6085 = vmatprep.mubr.bf16.mxu0 0
      %6086 = vmatmul.mubr.bf16.gmra.mxu0 %v5914
      %v6087 = vpop.f32.mrf.mxu0
      %v6088 = vadd.f32 %v5769, %v6087
      %v6089 = vpop.f32.mrf.mxu0
      %v6090 = vpop.f32.mrf.mxu0
      %v6091 = vadd.f32 %v5772, %v6090
      %v6092 = vpop.f32.mrf.mxu0
      %6093 = vmatprep.mubr.bf16.mxu0 0
      %6094 = vmatmul.mubr.bf16.gmra.mxu0 %v5917
      %v6095 = vpop.f32.mrf.mxu0
      %v6096 = vpop.f32.mrf.mxu0
      %v6097 = vpop.f32.mrf.mxu0
      %v6098 = vadd.f32 %v5779, %v6097
      %v6099 = vpop.f32.mrf.mxu0
      %6100 = vmatprep.mubr.bf16.mxu0 0
      %6101 = vmatmul.mubr.bf16.gmra.mxu0 %v5920
      %v6102 = vpop.f32.mrf.mxu0
      %v6103 = vadd.f32 %v5784, %v6102
      %v6104 = vpop.f32.mrf.mxu0
      %v6105 = vpop.f32.mrf.mxu0
      %v6106 = vpop.f32.mrf.mxu0
      %6107 = vmatprep.mubr.bf16.mxu0 0
      %6108 = vmatmul.mubr.bf16.gmra.mxu0 %v5923
      %v6109 = vpop.f32.mrf.mxu0
      %v6110 = vadd.f32 %v5791, %v6109
      %v6111 = vpop.f32.mrf.mxu0
      %v6112 = vpop.f32.mrf.mxu0
      %v6113 = vadd.f32 %v5794, %v6112
      %v6114 = vpop.f32.mrf.mxu0
      %6115 = vmatprep.mubr.bf16.mxu0 0
      %6116 = vmatmul.mubr.bf16.gmra.mxu0 %v5926
      %v6117 = vpop.f32.mrf.mxu0
      %v6118 = vpop.f32.mrf.mxu0
      %v6119 = vpop.f32.mrf.mxu0
      %v6120 = vadd.f32 %v5801, %v6119
      %v6121 = vpop.f32.mrf.mxu0
      %6122 = vmatprep.mubr.bf16.mxu0 0
      %6123 = vmatmul.mubr.bf16.gmra.mxu0 %v5929
      %v6124 = vpop.f32.mrf.mxu0
      %v6125 = vadd.f32 %v5806, %v6124
      %v6126 = vpop.f32.mrf.mxu0
      %v6127 = vpop.f32.mrf.mxu0
      %v6128 = vpop.f32.mrf.mxu0
      %6129 = vmatprep.mubr.bf16.mxu0 0
      %6130 = vmatmul.mubr.bf16.gmra.mxu0 %v5932
      %v6131 = vpop.f32.mrf.mxu0
      %v6132 = vadd.f32 %v5813, %v6131
      %v6133 = vpop.f32.mrf.mxu0
      %v6134 = vpop.f32.mrf.mxu0
      %v6135 = vadd.f32 %v5816, %v6134
      %v6136 = vpop.f32.mrf.mxu0
      %6137 = vmatprep.mubr.bf16.mxu0 0
      %6138 = vmatmul.mubr.bf16.gmra.mxu0 %v5935
      %v6139 = vpop.f32.mrf.mxu0
      %v6140 = vpop.f32.mrf.mxu0
      %v6141 = vpop.f32.mrf.mxu0
      %v6142 = vadd.f32 %v5823, %v6141
      %v6143 = vpop.f32.mrf.mxu0
      %6144 = vmatprep.mubr.bf16.mxu0 0
      %6145 = vmatmul.mubr.bf16.gmra.mxu0 %v5938
      %v6146 = vpop.f32.mrf.mxu0
      %v6147 = vadd.f32 %v5828, %v6146
      %v6148 = vpop.f32.mrf.mxu0
      %v6149 = vpop.f32.mrf.mxu0
      %v6150 = vpop.f32.mrf.mxu0
      %6151 = vdwg.mxu0
      %v6152 = vld [vmem:[#allocation2 + $0x1c] sm:$0xf]
      %v6153 = vld [vmem:[#allocation2 + $0x20] sm:$0xf]
      %v6154 = vld [vmem:[#allocation2 + $0x24] sm:$0xf]
      %v6155 = vld [vmem:[#allocation2 + $0x28] sm:$0xf]
      %v6156 = vld [vmem:[#allocation2 + $0x2c] sm:$0xf]
      %v6157 = vld [vmem:[#allocation2 + $0x30] sm:$0xf]
      %v6158 = vld [vmem:[#allocation2 + $0x34] sm:$0xf]
      %v6159 = vld [vmem:[#allocation2 + $0x38] sm:$0xf]
      %v6160 = vld [vmem:[#allocation2 + $0x3c] sm:$0xf]
      %v6161 = vld [vmem:[#allocation2 + $0x40] sm:$0xf]
      %v6162 = vld [vmem:[#allocation2 + $0x44] sm:$0xf]
      %v6163 = vld [vmem:[#allocation2 + $0x48] sm:$0xf]
      %v6164 = vld [vmem:[#allocation2 + $0x4c] sm:$0xf]
      %v6165 = vld [vmem:[#allocation2 + $0x50] sm:$0xf]
      %v6166 = vld [vmem:[#allocation2 + $0x54] sm:$0xf]
      %v6167 = vld [vmem:[#allocation2 + $0x58] sm:$0xf]
      %v6168 = vld [vmem:[#allocation2 + $0x5c] sm:$0xf]
      %v6169 = vld [vmem:[#allocation2 + $0x60] sm:$0xf]
      %v6170 = vld [vmem:[#allocation2 + $0x64] sm:$0xf]
      %v6171 = vld [vmem:[#allocation2 + $0x68] sm:$0xf]
      %v6172 = vld [vmem:[#allocation2 + $0x6c] sm:$0xf]
      %v6173 = vld [vmem:[#allocation2 + $0x70] sm:$0xf]
      %v6174 = vld [vmem:[#allocation2 + $0x74] sm:$0xf]
      %v6175 = vld [vmem:[#allocation2 + $0x78] sm:$0xf]
      %v6176 = vld [vmem:[#allocation2 + $0x7c] sm:$0xf]
      %v6177 = vld [vmem:[#allocation2 + $0x80] sm:$0xf]
      %v6178 = vld [vmem:[#allocation2 + $0x84] sm:$0xf]
      %v6179 = vld [vmem:[#allocation2 + $0x88] sm:$0xf]
      %v6180 = vld [vmem:[#allocation2 + $0x8c] sm:$0xf]
      %v6181 = vld [vmem:[#allocation2 + $0x90] sm:$0xf]
      %v6182 = vld [vmem:[#allocation2 + $0x94] sm:$0xf]
      %v6183 = vld [vmem:[#allocation2 + $0x98] sm:$0xf]
      %v6184 = vld [vmem:[#allocation2 + $0x9c] sm:$0xf]
      %v6185 = vld [vmem:[#allocation2 + $0xa0] sm:$0xf]
      %v6186 = vld [vmem:[#allocation2 + $0xa4] sm:$0xf]
      %v6187 = vld [vmem:[#allocation2 + $0xa8] sm:$0xf]
      %v6188 = vld [vmem:[#allocation2 + $0xac] sm:$0xf]
      %v6189 = vld [vmem:[#allocation2 + $0xb0] sm:$0xf]
      %v6190 = vld [vmem:[#allocation2 + $0xb4] sm:$0xf]
      %v6191 = vld [vmem:[#allocation2 + $0xb8] sm:$0xf]
      %v6192 = vld [vmem:[#allocation2 + $0xbc] sm:$0xf]
      %v6193 = vld [vmem:[#allocation2 + $0xc0] sm:$0xf]
      %v6194 = vld [vmem:[#allocation2 + $0xc4] sm:$0xf]
      %v6195 = vld [vmem:[#allocation2 + $0xc8] sm:$0xf]
      %v6196 = vld [vmem:[#allocation2 + $0xcc] sm:$0xf]
      %v6197 = vld [vmem:[#allocation2 + $0xd0] sm:$0xf]
      %v6198 = vld [vmem:[#allocation2 + $0xd4] sm:$0xf]
      %v6199 = vld [vmem:[#allocation2 + $0xd8] sm:$0xf]
      %v6200 = vld [vmem:[%s2 + $0xc] sm:$0xf]
      %v6201 = vld [vmem:[%s2 + $0x10] sm:$0x3]
      %v6250 = vunpack.c.l.b16 %v6152
      %v6251 = vunpack.c.l.b16 %v6153
      %v6252 = vunpack.c.l.b16 %v6154
      %v6253 = vunpack.c.l.b16 %v6155
      %v6254 = vunpack.c.l.b16 %v6156
      %v6255 = vunpack.c.l.b16 %v6157
      %v6256 = vunpack.c.l.b16 %v6158
      %v6257 = vunpack.c.l.b16 %v6159
      %v6258 = vunpack.c.l.b16 %v6160
      %v6259 = vunpack.c.l.b16 %v6161
      %v6260 = vunpack.c.l.b16 %v6162
      %v6261 = vunpack.c.l.b16 %v6163
      %v6262 = vunpack.c.l.b16 %v6164
      %v6263 = vunpack.c.l.b16 %v6165
      %v6264 = vunpack.c.l.b16 %v6166
      %v6265 = vunpack.c.l.b16 %v6167
      %v6266 = vunpack.c.l.b16 %v6168
      %v6267 = vunpack.c.l.b16 %v6169
      %v6268 = vunpack.c.l.b16 %v6170
      %v6269 = vunpack.c.l.b16 %v6171
      %v6270 = vunpack.c.l.b16 %v6172
      %v6271 = vunpack.c.l.b16 %v6173
      %v6272 = vunpack.c.l.b16 %v6174
      %v6273 = vunpack.c.l.b16 %v6175
      %v6274 = vunpack.c.l.b16 %v6176
      %v6275 = vunpack.c.l.b16 %v6177
      %v6276 = vunpack.c.l.b16 %v6178
      %v6277 = vunpack.c.l.b16 %v6179
      %v6278 = vunpack.c.l.b16 %v6180
      %v6279 = vunpack.c.l.b16 %v6181
      %v6280 = vunpack.c.l.b16 %v6182
      %v6281 = vunpack.c.l.b16 %v6183
      %v6282 = vunpack.c.l.b16 %v6184
      %v6283 = vunpack.c.l.b16 %v6185
      %v6284 = vunpack.c.l.b16 %v6186
      %v6285 = vunpack.c.l.b16 %v6187
      %v6286 = vunpack.c.l.b16 %v6188
      %v6287 = vunpack.c.l.b16 %v6189
      %v6288 = vunpack.c.l.b16 %v6190
      %v6289 = vunpack.c.l.b16 %v6191
      %v6290 = vunpack.c.l.b16 %v6192
      %v6291 = vunpack.c.l.b16 %v6193
      %v6292 = vunpack.c.l.b16 %v6194
      %v6293 = vunpack.c.l.b16 %v6195
      %v6294 = vunpack.c.l.b16 %v6196
      %v6295 = vunpack.c.l.b16 %v6197
      %v6296 = vunpack.c.l.b16 %v6198
      %v6297 = vunpack.c.l.b16 %v6199
      %v6298 = vpack.c.b16 %v6251, %v6250
      %v6299 = vpack.c.b16 %v6253, %v6252
      %v6300 = vpack.c.b16 %v6255, %v6254
      %v6301 = vpack.c.b16 %v6257, %v6256
      %v6302 = vpack.c.b16 %v6259, %v6258
      %v6303 = vpack.c.b16 %v6261, %v6260
      %v6304 = vpack.c.b16 %v6263, %v6262
      %v6305 = vpack.c.b16 %v6265, %v6264
      %v6306 = vpack.c.b16 %v6267, %v6266
      %v6307 = vpack.c.b16 %v6269, %v6268
      %v6308 = vpack.c.b16 %v6271, %v6270
      %v6309 = vpack.c.b16 %v6273, %v6272
      %v6310 = vpack.c.b16 %v6275, %v6274
      %v6311 = vpack.c.b16 %v6277, %v6276
      %v6312 = vpack.c.b16 %v6279, %v6278
      %v6313 = vpack.c.b16 %v6281, %v6280
      %v6314 = vpack.c.b16 %v6283, %v6282
      %v6315 = vpack.c.b16 %v6285, %v6284
      %v6316 = vpack.c.b16 %v6287, %v6286
      %v6317 = vpack.c.b16 %v6289, %v6288
      %v6318 = vpack.c.b16 %v6291, %v6290
      %v6319 = vpack.c.b16 %v6293, %v6292
      %v6320 = vpack.c.b16 %v6295, %v6294
      %v6321 = vpack.c.b16 %v6297, %v6296
      %v6324 = vunpack.c.l.b16 %v6200
      %v6325 = vunpack.c.l.b16 %v6201
      %v6326 = vpack.c.b16 %v6325, %v6324
      %v6328 = vsel %vm2289, %v6298, 0
      %v6331 = vsel %vm2289, %v6299, 0
      %v6334 = vsel %vm2289, %v6300, 0
      %v6337 = vsel %vm2289, %v6301, 0
      %v6340 = vsel %vm2289, %v6302, 0
      %v6343 = vsel %vm2289, %v6303, 0
      %v6346 = vsel %vm2289, %v6304, 0
      %v6349 = vsel %vm2289, %v6305, 0
      %v6352 = vsel %vm2289, %v6306, 0
      %v6355 = vsel %vm2289, %v6307, 0
      %v6358 = vsel %vm2289, %v6308, 0
      %v6361 = vsel %vm2289, %v6309, 0
      %v6364 = vsel %vm2289, %v6310, 0
      %v6367 = vsel %vm2289, %v6311, 0
      %v6370 = vsel %vm2289, %v6312, 0
      %v6373 = vsel %vm2289, %v6313, 0
      %v6376 = vsel %vm2289, %v6314, 0
      %v6379 = vsel %vm2289, %v6315, 0
      %v6382 = vsel %vm2289, %v6316, 0
      %v6385 = vsel %vm2289, %v6317, 0
      %v6388 = vsel %vm2289, %v6318, 0
      %v6391 = vsel %vm2289, %v6319, 0
      %v6394 = vsel %vm2289, %v6320, 0
      %v6397 = vsel %vm2289, %v6321, 0
      %v6400 = vsel %vm2362, %v6326, 0
      %6402 = vmatprep.subr.bf16.mxu0 0
      %6403 = vmatpush1.bf16.msra.mxu0 0
      %6404 = vmatprep.subr.bf16.mxu0 0
      %6405 = vmatpush1.bf16.msra.mxu0 0
      %6406 = vmatprep.subr.bf16.mxu0 0
      %6407 = vmatpush1.bf16.msra.mxu0 0
      %6408 = vmatprep.subr.bf16.mxu0 0
      %6409 = vmatpush1.bf16.msra.mxu0 0
      %6410 = vmatprep.subr.bf16.mxu0 0
      %6411 = vmatpush1.bf16.msra.mxu0 0
      %6412 = vmatprep.subr.bf16.mxu0 0
      %6413 = vmatpush1.bf16.msra.mxu0 0
      %6414 = vmatprep.subr.bf16.mxu0 0
      %6415 = vmatpush1.bf16.msra.mxu0 0
      %6416 = vmatprep.subr.bf16.mxu0 0
      %6417 = vmatpush1.bf16.msra.mxu0 %v6400
      %6418 = vmatprep.subr.bf16.mxu0 0
      %6419 = vmatpush2.bf16.msra.mxu0 0
      %6420 = vmatprep.subr.bf16.mxu0 0
      %6421 = vmatpush2.bf16.msra.mxu0 0
      %6422 = vmatprep.subr.bf16.mxu0 0
      %6423 = vmatpush2.bf16.msra.mxu0 0
      %6424 = vmatprep.subr.bf16.mxu0 0
      %6425 = vmatpush2.bf16.msra.mxu0 0
      %6426 = vmatprep.subr.bf16.mxu0 0
      %6427 = vmatpush2.bf16.msra.mxu0 0
      %6428 = vmatprep.subr.bf16.mxu0 0
      %6429 = vmatpush2.bf16.msra.mxu0 0
      %6430 = vmatprep.subr.bf16.mxu0 0
      %6431 = vmatpush2.bf16.msra.mxu0 0
      %6432 = vmatprep.subr.bf16.mxu0 0
      %6433 = vmatpush2.bf16.msra.mxu0 0
      %6434 = vmatprep.mubr.bf16.mxu0 0
      %6435 = vmatmul.mubr.bf16.gmra.mxu0 %v6328
      %v6436 = vpop.f32.mrf.mxu0
      %v6437 = vadd.f32 0.0, %v6436
      %v6438 = vpop.f32.mrf.mxu0
      %v6439 = vpop.f32.mrf.mxu0
      %v6440 = vadd.f32 0.0, %v6439
      %v6441 = vpop.f32.mrf.mxu0
      %6442 = vmatprep.mubr.bf16.mxu0 0
      %6443 = vmatmul.mubr.bf16.gmra.mxu0 %v6331
      %v6444 = vpop.f32.mrf.mxu0
      %v6445 = vpop.f32.mrf.mxu0
      %v6446 = vpop.f32.mrf.mxu0
      %v6447 = vadd.f32 0.0, %v6446
      %v6448 = vpop.f32.mrf.mxu0
      %6449 = vmatprep.mubr.bf16.mxu0 0
      %6450 = vmatmul.mubr.bf16.gmra.mxu0 %v6334
      %v6451 = vpop.f32.mrf.mxu0
      %v6452 = vadd.f32 0.0, %v6451
      %v6453 = vpop.f32.mrf.mxu0
      %v6454 = vpop.f32.mrf.mxu0
      %v6455 = vpop.f32.mrf.mxu0
      %6456 = vmatprep.mubr.bf16.mxu0 0
      %6457 = vmatmul.mubr.bf16.gmra.mxu0 %v6337
      %v6458 = vpop.f32.mrf.mxu0
      %v6459 = vadd.f32 0.0, %v6458
      %v6460 = vpop.f32.mrf.mxu0
      %v6461 = vpop.f32.mrf.mxu0
      %v6462 = vadd.f32 0.0, %v6461
      %v6463 = vpop.f32.mrf.mxu0
      %6464 = vmatprep.mubr.bf16.mxu0 0
      %6465 = vmatmul.mubr.bf16.gmra.mxu0 %v6340
      %v6466 = vpop.f32.mrf.mxu0
      %v6467 = vpop.f32.mrf.mxu0
      %v6468 = vpop.f32.mrf.mxu0
      %v6469 = vadd.f32 0.0, %v6468
      %v6470 = vpop.f32.mrf.mxu0
      %6471 = vmatprep.mubr.bf16.mxu0 0
      %6472 = vmatmul.mubr.bf16.gmra.mxu0 %v6343
      %v6473 = vpop.f32.mrf.mxu0
      %v6474 = vadd.f32 0.0, %v6473
      %v6475 = vpop.f32.mrf.mxu0
      %v6476 = vpop.f32.mrf.mxu0
      %v6477 = vpop.f32.mrf.mxu0
      %6478 = vmatprep.mubr.bf16.mxu0 0
      %6479 = vmatmul.mubr.bf16.gmra.mxu0 %v6346
      %v6480 = vpop.f32.mrf.mxu0
      %v6481 = vadd.f32 0.0, %v6480
      %v6482 = vpop.f32.mrf.mxu0
      %v6483 = vpop.f32.mrf.mxu0
      %v6484 = vadd.f32 0.0, %v6483
      %v6485 = vpop.f32.mrf.mxu0
      %6486 = vmatprep.mubr.bf16.mxu0 0
      %6487 = vmatmul.mubr.bf16.gmra.mxu0 %v6349
      %v6488 = vpop.f32.mrf.mxu0
      %v6489 = vpop.f32.mrf.mxu0
      %v6490 = vpop.f32.mrf.mxu0
      %v6491 = vadd.f32 0.0, %v6490
      %v6492 = vpop.f32.mrf.mxu0
      %6493 = vmatprep.mubr.bf16.mxu0 0
      %6494 = vmatmul.mubr.bf16.gmra.mxu0 %v6352
      %v6495 = vpop.f32.mrf.mxu0
      %v6496 = vadd.f32 0.0, %v6495
      %v6497 = vpop.f32.mrf.mxu0
      %v6498 = vpop.f32.mrf.mxu0
      %v6499 = vpop.f32.mrf.mxu0
      %6500 = vmatprep.mubr.bf16.mxu0 0
      %6501 = vmatmul.mubr.bf16.gmra.mxu0 %v6355
      %v6502 = vpop.f32.mrf.mxu0
      %v6503 = vadd.f32 0.0, %v6502
      %v6504 = vpop.f32.mrf.mxu0
      %v6505 = vpop.f32.mrf.mxu0
      %v6506 = vadd.f32 0.0, %v6505
      %v6507 = vpop.f32.mrf.mxu0
      %6508 = vmatprep.mubr.bf16.mxu0 0
      %6509 = vmatmul.mubr.bf16.gmra.mxu0 %v6358
      %v6510 = vpop.f32.mrf.mxu0
      %v6511 = vpop.f32.mrf.mxu0
      %v6512 = vpop.f32.mrf.mxu0
      %v6513 = vadd.f32 0.0, %v6512
      %v6514 = vpop.f32.mrf.mxu0
      %6515 = vmatprep.mubr.bf16.mxu0 0
      %6516 = vmatmul.mubr.bf16.gmra.mxu0 %v6361
      %v6517 = vpop.f32.mrf.mxu0
      %v6518 = vadd.f32 0.0, %v6517
      %v6519 = vpop.f32.mrf.mxu0
      %v6520 = vpop.f32.mrf.mxu0
      %v6521 = vpop.f32.mrf.mxu0
      %6522 = vmatprep.mubr.bf16.mxu0 0
      %6523 = vmatmul.mubr.bf16.gmra.mxu0 %v6364
      %v6524 = vpop.f32.mrf.mxu0
      %v6525 = vadd.f32 0.0, %v6524
      %v6526 = vpop.f32.mrf.mxu0
      %v6527 = vpop.f32.mrf.mxu0
      %v6528 = vadd.f32 0.0, %v6527
      %v6529 = vpop.f32.mrf.mxu0
      %6530 = vmatprep.mubr.bf16.mxu0 0
      %6531 = vmatmul.mubr.bf16.gmra.mxu0 %v6367
      %v6532 = vpop.f32.mrf.mxu0
      %v6533 = vpop.f32.mrf.mxu0
      %v6534 = vpop.f32.mrf.mxu0
      %v6535 = vadd.f32 0.0, %v6534
      %v6536 = vpop.f32.mrf.mxu0
      %6537 = vmatprep.mubr.bf16.mxu0 0
      %6538 = vmatmul.mubr.bf16.gmra.mxu0 %v6370
      %v6539 = vpop.f32.mrf.mxu0
      %v6540 = vadd.f32 0.0, %v6539
      %v6541 = vpop.f32.mrf.mxu0
      %v6542 = vpop.f32.mrf.mxu0
      %v6543 = vpop.f32.mrf.mxu0
      %6544 = vmatprep.mubr.bf16.mxu0 0
      %6545 = vmatmul.mubr.bf16.gmra.mxu0 %v6373
      %v6546 = vpop.f32.mrf.mxu0
      %v6547 = vadd.f32 0.0, %v6546
      %v6548 = vpop.f32.mrf.mxu0
      %v6549 = vpop.f32.mrf.mxu0
      %v6550 = vadd.f32 0.0, %v6549
      %v6551 = vpop.f32.mrf.mxu0
      %6552 = vmatprep.mubr.bf16.mxu0 0
      %6553 = vmatmul.mubr.bf16.gmra.mxu0 %v6376
      %v6554 = vpop.f32.mrf.mxu0
      %v6555 = vpop.f32.mrf.mxu0
      %v6556 = vpop.f32.mrf.mxu0
      %v6557 = vadd.f32 0.0, %v6556
      %v6558 = vpop.f32.mrf.mxu0
      %6559 = vmatprep.mubr.bf16.mxu0 0
      %6560 = vmatmul.mubr.bf16.gmra.mxu0 %v6379
      %v6561 = vpop.f32.mrf.mxu0
      %v6562 = vadd.f32 0.0, %v6561
      %v6563 = vpop.f32.mrf.mxu0
      %v6564 = vpop.f32.mrf.mxu0
      %v6565 = vpop.f32.mrf.mxu0
      %6566 = vmatprep.mubr.bf16.mxu0 0
      %6567 = vmatmul.mubr.bf16.gmra.mxu0 %v6382
      %v6568 = vpop.f32.mrf.mxu0
      %v6569 = vadd.f32 0.0, %v6568
      %v6570 = vpop.f32.mrf.mxu0
      %v6571 = vpop.f32.mrf.mxu0
      %v6572 = vadd.f32 0.0, %v6571
      %v6573 = vpop.f32.mrf.mxu0
      %6574 = vmatprep.mubr.bf16.mxu0 0
      %6575 = vmatmul.mubr.bf16.gmra.mxu0 %v6385
      %v6576 = vpop.f32.mrf.mxu0
      %v6577 = vpop.f32.mrf.mxu0
      %v6578 = vpop.f32.mrf.mxu0
      %v6579 = vadd.f32 0.0, %v6578
      %v6580 = vpop.f32.mrf.mxu0
      %6581 = vmatprep.mubr.bf16.mxu0 0
      %6582 = vmatmul.mubr.bf16.gmra.mxu0 %v6388
      %v6583 = vpop.f32.mrf.mxu0
      %v6584 = vadd.f32 0.0, %v6583
      %v6585 = vpop.f32.mrf.mxu0
      %v6586 = vpop.f32.mrf.mxu0
      %v6587 = vpop.f32.mrf.mxu0
      %6588 = vmatprep.mubr.bf16.mxu0 0
      %6589 = vmatmul.mubr.bf16.gmra.mxu0 %v6391
      %v6590 = vpop.f32.mrf.mxu0
      %v6591 = vadd.f32 0.0, %v6590
      %v6592 = vpop.f32.mrf.mxu0
      %v6593 = vpop.f32.mrf.mxu0
      %v6594 = vadd.f32 0.0, %v6593
      %v6595 = vpop.f32.mrf.mxu0
      %6596 = vmatprep.mubr.bf16.mxu0 0
      %6597 = vmatmul.mubr.bf16.gmra.mxu0 %v6394
      %v6598 = vpop.f32.mrf.mxu0
      %v6599 = vpop.f32.mrf.mxu0
      %v6600 = vpop.f32.mrf.mxu0
      %v6601 = vadd.f32 0.0, %v6600
      %v6602 = vpop.f32.mrf.mxu0
      %6603 = vmatprep.mubr.bf16.mxu0 0
      %6604 = vmatmul.mubr.bf16.gmra.mxu0 %v6397
      %v6605 = vpop.f32.mrf.mxu0
      %v6606 = vadd.f32 0.0, %v6605
      %v6607 = vpop.f32.mrf.mxu0
      %v6608 = vpop.f32.mrf.mxu0
      %v6609 = vpop.f32.mrf.mxu0
      %6610 = vdwg.mxu0
      %v6611 = vadd.f32 %v5978, %v6437
      %v6612 = vadd.f32 %v5981, %v6440
      %v6613 = vadd.f32 %v5988, %v6447
      %v6614 = vadd.f32 %v5993, %v6452
      %v6615 = vadd.f32 %v6000, %v6459
      %v6616 = vadd.f32 %v6003, %v6462
      %v6617 = vadd.f32 %v6010, %v6469
      %v6618 = vadd.f32 %v6015, %v6474
      %v6619 = vadd.f32 %v6022, %v6481
      %v6620 = vadd.f32 %v6025, %v6484
      %v6621 = vadd.f32 %v6032, %v6491
      %v6622 = vadd.f32 %v6037, %v6496
      %v6623 = vadd.f32 %v6044, %v6503
      %v6624 = vadd.f32 %v6047, %v6506
      %v6625 = vadd.f32 %v6054, %v6513
      %v6626 = vadd.f32 %v6059, %v6518
      %v6627 = vadd.f32 %v6066, %v6525
      %v6628 = vadd.f32 %v6069, %v6528
      %v6629 = vadd.f32 %v6076, %v6535
      %v6630 = vadd.f32 %v6081, %v6540
      %v6631 = vadd.f32 %v6088, %v6547
      %v6632 = vadd.f32 %v6091, %v6550
      %v6633 = vadd.f32 %v6098, %v6557
      %v6634 = vadd.f32 %v6103, %v6562
      %v6635 = vadd.f32 %v6110, %v6569
      %v6636 = vadd.f32 %v6113, %v6572
      %v6637 = vadd.f32 %v6120, %v6579
      %v6638 = vadd.f32 %v6125, %v6584
      %v6639 = vadd.f32 %v6132, %v6591
      %v6640 = vadd.f32 %v6135, %v6594
      %v6641 = vadd.f32 %v6142, %v6601
      %v6642 = vadd.f32 %v6147, %v6606
      %v6643 = vld [vmem:[%s4] sm:$0x1]
      %v6645 = vlaneseq
      %v6646 = vshrl.u32 %v6645, 7
      %v6647 = vsub.s32 0, %v6646
      %v6648 = vrot.slane %v6643, %v6647
      %v6650 = vadd.f32 %v6611, %v6648
      %v6651 = vadd.f32 %v6612, %v6648
      %v6652 = vadd.f32 %v6613, %v6648
      %v6653 = vadd.f32 %v6614, %v6648
      %v6654 = vadd.f32 %v6615, %v6648
      %v6655 = vadd.f32 %v6616, %v6648
      %v6656 = vadd.f32 %v6617, %v6648
      %v6657 = vadd.f32 %v6618, %v6648
      %v6658 = vadd.f32 %v6619, %v6648
      %v6659 = vadd.f32 %v6620, %v6648
      %v6660 = vadd.f32 %v6621, %v6648
      %v6661 = vadd.f32 %v6622, %v6648
      %v6662 = vadd.f32 %v6623, %v6648
      %v6663 = vadd.f32 %v6624, %v6648
      %v6664 = vadd.f32 %v6625, %v6648
      %v6665 = vadd.f32 %v6626, %v6648
      %v6666 = vadd.f32 %v6627, %v6648
      %v6667 = vadd.f32 %v6628, %v6648
      %v6668 = vadd.f32 %v6629, %v6648
      %v6669 = vadd.f32 %v6630, %v6648
      %v6670 = vadd.f32 %v6631, %v6648
      %v6671 = vadd.f32 %v6632, %v6648
      %v6672 = vadd.f32 %v6633, %v6648
      %v6673 = vadd.f32 %v6634, %v6648
      %v6674 = vadd.f32 %v6635, %v6648
      %v6675 = vadd.f32 %v6636, %v6648
      %v6676 = vadd.f32 %v6637, %v6648
      %v6677 = vadd.f32 %v6638, %v6648
      %v6678 = vadd.f32 %v6639, %v6648
      %v6679 = vadd.f32 %v6640, %v6648
      %v6680 = vadd.f32 %v6641, %v6648
      %v6681 = vadd.f32 %v6642, %v6648
      %v6682 = vld [vmem:[%s219] sm:$0xff]
      %v6683 = vld [vmem:[%s219 + $0x8] sm:$0xff]
      %v6684 = vadd.f32 %v6650, %v6682
      %v6685 = vadd.f32 %v6651, %v6683
      %v6686 = vmax.f32 %v6684, 0.0
      %v6687 = vmax.f32 %v6685, 0.0
      %vm6688 = vcmask 31744
      %6689 = vst.msk [vmem:[%s224] sm:$0xff] %vm6688, %v6686
      %6690 = vst.msk [vmem:[%s224 + $0x8] sm:$0xff] %vm6688, %v6687
      %v6691 = vld [vmem:[%s255] sm:$0xff]
      %v6692 = vld [vmem:[%s255 + $0x8] sm:$0xff]
      %v6693 = vadd.f32 %v6652, %v6691
      %v6694 = vadd.f32 %v6653, %v6692
      %v6695 = vmax.f32 %v6693, 0.0
      %v6696 = vmax.f32 %v6694, 0.0
      %s6697 = scalar_lea.vmem %s224, 16
      %6698 = vst.msk [vmem:[%s6697] sm:$0xff] %vm6688, %v6695
      %6699 = vst.msk [vmem:[%s6697 + $0x8] sm:$0xff] %vm6688, %v6696
      %v6700 = vld [vmem:[%s273] sm:$0xff]
      %v6701 = vld [vmem:[%s273 + $0x8] sm:$0xff]
      %v6702 = vadd.f32 %v6654, %v6700
      %v6703 = vadd.f32 %v6655, %v6701
      %v6704 = vmax.f32 %v6702, 0.0
      %v6705 = vmax.f32 %v6703, 0.0
      %s6706 = scalar_lea.vmem %s224, 32
      %6707 = vst.msk [vmem:[%s6706] sm:$0xff] %vm6688, %v6704
      %6708 = vst.msk [vmem:[%s6706 + $0x8] sm:$0xff] %vm6688, %v6705
      %v6709 = vld [vmem:[%s291] sm:$0xff]
      %v6710 = vld [vmem:[%s291 + $0x8] sm:$0xff]
      %v6711 = vadd.f32 %v6656, %v6709
      %v6712 = vadd.f32 %v6657, %v6710
      %v6713 = vmax.f32 %v6711, 0.0
      %v6714 = vmax.f32 %v6712, 0.0
      %s6715 = scalar_lea.vmem %s224, 48
      %6716 = vst.msk [vmem:[%s6715] sm:$0xff] %vm6688, %v6713
      %6717 = vst.msk [vmem:[%s6715 + $0x8] sm:$0xff] %vm6688, %v6714
      %v6718 = vld [vmem:[%s309] sm:$0xff]
      %v6719 = vld [vmem:[%s309 + $0x8] sm:$0xff]
      %v6720 = vadd.f32 %v6658, %v6718
      %v6721 = vadd.f32 %v6659, %v6719
      %v6722 = vmax.f32 %v6720, 0.0
      %v6723 = vmax.f32 %v6721, 0.0
      %s6724 = scalar_lea.vmem %s224, 64
      %6725 = vst.msk [vmem:[%s6724] sm:$0xff] %vm6688, %v6722
      %6726 = vst.msk [vmem:[%s6724 + $0x8] sm:$0xff] %vm6688, %v6723
      %v6727 = vld [vmem:[%s327] sm:$0xff]
      %v6728 = vld [vmem:[%s327 + $0x8] sm:$0xff]
      %v6729 = vadd.f32 %v6660, %v6727
      %v6730 = vadd.f32 %v6661, %v6728
      %v6731 = vmax.f32 %v6729, 0.0
      %v6732 = vmax.f32 %v6730, 0.0
      %s6733 = scalar_lea.vmem %s224, 80
      %6734 = vst.msk [vmem:[%s6733] sm:$0xff] %vm6688, %v6731
      %6735 = vst.msk [vmem:[%s6733 + $0x8] sm:$0xff] %vm6688, %v6732
      %v6736 = vld [vmem:[%s345] sm:$0xff]
      %v6737 = vld [vmem:[%s345 + $0x8] sm:$0xff]
      %v6738 = vadd.f32 %v6662, %v6736
      %v6739 = vadd.f32 %v6663, %v6737
      %v6740 = vmax.f32 %v6738, 0.0
      %v6741 = vmax.f32 %v6739, 0.0
      %s6742 = scalar_lea.vmem %s224, 96
      %6743 = vst.msk [vmem:[%s6742] sm:$0xff] %vm6688, %v6740
      %6744 = vst.msk [vmem:[%s6742 + $0x8] sm:$0xff] %vm6688, %v6741
      %v6745 = vld [vmem:[%s363] sm:$0xff]
      %v6746 = vld [vmem:[%s363 + $0x8] sm:$0xff]
      %v6747 = vadd.f32 %v6664, %v6745
      %v6748 = vadd.f32 %v6665, %v6746
      %v6749 = vmax.f32 %v6747, 0.0
      %v6750 = vmax.f32 %v6748, 0.0
      %s6751 = scalar_lea.vmem %s224, 112
      %6752 = vst.msk [vmem:[%s6751] sm:$0xff] %vm6688, %v6749
      %6753 = vst.msk [vmem:[%s6751 + $0x8] sm:$0xff] %vm6688, %v6750
      %v6754 = vld [vmem:[%s381] sm:$0xff]
      %v6755 = vld [vmem:[%s381 + $0x8] sm:$0xff]
      %v6756 = vadd.f32 %v6666, %v6754
      %v6757 = vadd.f32 %v6667, %v6755
      %v6758 = vmax.f32 %v6756, 0.0
      %v6759 = vmax.f32 %v6757, 0.0
      %s6760 = scalar_lea.vmem %s224, 128
      %6761 = vst.msk [vmem:[%s6760] sm:$0xff] %vm6688, %v6758
      %6762 = vst.msk [vmem:[%s6760 + $0x8] sm:$0xff] %vm6688, %v6759
      %v6763 = vld [vmem:[%s399] sm:$0xff]
      %v6764 = vld [vmem:[%s399 + $0x8] sm:$0xff]
      %v6765 = vadd.f32 %v6668, %v6763
      %v6766 = vadd.f32 %v6669, %v6764
      %v6767 = vmax.f32 %v6765, 0.0
      %v6768 = vmax.f32 %v6766, 0.0
      %s6769 = scalar_lea.vmem %s224, 144
      %6770 = vst.msk [vmem:[%s6769] sm:$0xff] %vm6688, %v6767
      %6771 = vst.msk [vmem:[%s6769 + $0x8] sm:$0xff] %vm6688, %v6768
      %v6772 = vld [vmem:[%s417] sm:$0xff]
      %v6773 = vld [vmem:[%s417 + $0x8] sm:$0xff]
      %v6774 = vadd.f32 %v6670, %v6772
      %v6775 = vadd.f32 %v6671, %v6773
      %v6776 = vmax.f32 %v6774, 0.0
      %v6777 = vmax.f32 %v6775, 0.0
      %s6778 = scalar_lea.vmem %s224, 160
      %6779 = vst.msk [vmem:[%s6778] sm:$0xff] %vm6688, %v6776
      %6780 = vst.msk [vmem:[%s6778 + $0x8] sm:$0xff] %vm6688, %v6777
      %v6781 = vld [vmem:[%s435] sm:$0xff]
      %v6782 = vld [vmem:[%s435 + $0x8] sm:$0xff]
      %v6783 = vadd.f32 %v6672, %v6781
      %v6784 = vadd.f32 %v6673, %v6782
      %v6785 = vmax.f32 %v6783, 0.0
      %v6786 = vmax.f32 %v6784, 0.0
      %s6787 = scalar_lea.vmem %s224, 176
      %6788 = vst.msk [vmem:[%s6787] sm:$0xff] %vm6688, %v6785
      %6789 = vst.msk [vmem:[%s6787 + $0x8] sm:$0xff] %vm6688, %v6786
      %v6790 = vld [vmem:[%s453] sm:$0xff]
      %v6791 = vld [vmem:[%s453 + $0x8] sm:$0xff]
      %v6792 = vadd.f32 %v6674, %v6790
      %v6793 = vadd.f32 %v6675, %v6791
      %v6794 = vmax.f32 %v6792, 0.0
      %v6795 = vmax.f32 %v6793, 0.0
      %s6796 = scalar_lea.vmem %s224, 192
      %6797 = vst.msk [vmem:[%s6796] sm:$0xff] %vm6688, %v6794
      %6798 = vst.msk [vmem:[%s6796 + $0x8] sm:$0xff] %vm6688, %v6795
      %v6799 = vld [vmem:[%s471] sm:$0xff]
      %v6800 = vld [vmem:[%s471 + $0x8] sm:$0xff]
      %v6801 = vadd.f32 %v6676, %v6799
      %v6802 = vadd.f32 %v6677, %v6800
      %v6803 = vmax.f32 %v6801, 0.0
      %v6804 = vmax.f32 %v6802, 0.0
      %s6805 = scalar_lea.vmem %s224, 208
      %6806 = vst.msk [vmem:[%s6805] sm:$0xff] %vm6688, %v6803
      %6807 = vst.msk [vmem:[%s6805 + $0x8] sm:$0xff] %vm6688, %v6804
      %v6808 = vld [vmem:[%s489] sm:$0xff]
      %v6809 = vld [vmem:[%s489 + $0x8] sm:$0xff]
      %v6810 = vadd.f32 %v6678, %v6808
      %v6811 = vadd.f32 %v6679, %v6809
      %v6812 = vmax.f32 %v6810, 0.0
      %v6813 = vmax.f32 %v6811, 0.0
      %s6814 = scalar_lea.vmem %s224, 224
      %6815 = vst.msk [vmem:[%s6814] sm:$0xff] %vm6688, %v6812
      %6816 = vst.msk [vmem:[%s6814 + $0x8] sm:$0xff] %vm6688, %v6813
      %v6817 = vld [vmem:[%s507] sm:$0xff]
      %v6818 = vld [vmem:[%s507 + $0x8] sm:$0xff]
      %v6819 = vadd.f32 %v6680, %v6817
      %v6820 = vadd.f32 %v6681, %v6818
      %v6821 = vmax.f32 %v6819, 0.0
      %v6822 = vmax.f32 %v6820, 0.0
      %s6823 = scalar_lea.vmem %s224, 240
      %6824 = vst.msk [vmem:[%s6823] sm:$0xff] %vm6688, %v6821
      %6825 = vst.msk [vmem:[%s6823 + $0x8] sm:$0xff] %vm6688, %v6822
      %p6826 = scmp.lt.s32.totalorder %s16, 1
      %s6827 = scalar_select %p6826, %s16, 1
      %s6828 = smul.addr %s6827, 32
      %s6829 = smul.addr %s6828, 8
      %s6830 = scalar_lea.vmem %s5, %s6829
      // Predicated region
      $region41: #{tpu_custom_call.1} parent=39 // pred_check
        %p6831 = pneg %p144
      $region42: #{tpu_custom_call.1} parent=39 // pred_check_branch
        %6833 = sbr.rel (%p6831) target = $region44
      $region43: #{tpu_custom_call.1} parent=39 // pred_region
        _
      $region44: #{tpu_custom_call.1} parent=39 // pred_fallthru
        _
    $region40: #{tpu_custom_call.1} parent=5 // pred_fallthru
      _
    %p6834 = scmp.le.s32.totalorder 2, %s11
    // Predicated region
    $region45: #{tpu_custom_call.1} parent=5 // pred_check
      %p6835 = pneg %p6834
    $region46: #{tpu_custom_call.1} parent=5 // pred_check_branch
      %6837 = sbr.rel (%p6835) target = $region48
    $region47: #{tpu_custom_call.1} parent=5 // pred_region
      %s6838 = ssub.s32 %s11, 2
      // Predicated region
      $region49: #{tpu_custom_call.1} parent=47 // pred_check
        %p6839 = pneg %p150
      $region50: #{tpu_custom_call.1} parent=47 // pred_check_branch
        %6841 = sbr.rel (%p6839) target = $region52
      $region51: #{tpu_custom_call.1} parent=47 // pred_region
        %p6842 = scmp.lt.s32.totalorder %s17, 1
        %s6843 = scalar_select %p6842, %s17, 1
        %s6844 = smul.addr %s6843, 32
        %s6845 = smul.addr %s6844, 8
        %s6846 = scalar_lea.vmem %s5, %s6845
      $region52: #{tpu_custom_call.1} parent=47 // pred_fallthru
        _
    $region48: #{tpu_custom_call.1} parent=5 // pred_fallthru
      _
  $region6: #{tpu_custom_call.1} parent=0 // loop_footer
    %s15 = sadd.s32 1, %s11
  $region7: #{tpu_custom_call.1} parent=0 // loop_footer_branch
    %10 = sbr.rel target = $region3
  $region8: #{tpu_custom_call.1} parent=0 // loop_exit
    _

</llo_original>
